<compile_context>
chip_gen: v7x
topology: tpu7x:2x2x1
jax: 0.10.0
libtpu: 0.0.40
codegen_flags: <defaults>
</compile_context>

<pallas_src>
import jax
import jax.numpy as jnp
from jax.experimental import pallas as pl
from jax.experimental.pallas import tpu as pltpu

IMGSIZE = 28
L_DIM = 128          # 64 * 2
Z_DIM = 8
H_DIM2 = 128
BN_EPS = 1e-5
FLAT = (IMGSIZE // 4) * (IMGSIZE // 4) * 16   # 784
COLOR_SCALE = 1.2
SHAPE_SCALE = 1.0

_VMEM = pl.BlockSpec(memory_space=pltpu.MemorySpace.VMEM)


# ----------------------------- Pallas kernels -----------------------------

def _conv_bn_relu_kernel(w_ref, cols_ref, g_ref, b_ref, o_ref):
    """out = relu(batchnorm(W @ cols)); channel-major: rows=Cout, lanes=B*Ho*Wo.
    BN stats are per-channel (per-row) over all spatial/batch positions (torch training mode)."""
    acc = jnp.dot(w_ref[...], cols_ref[...], preferred_element_type=jnp.float32)  # (Cout, M)
    mean = jnp.mean(acc, axis=1, keepdims=True)
    var = jnp.mean((acc - mean) ** 2, axis=1, keepdims=True)          # biased variance (torch)
    scale = g_ref[...] * jax.lax.rsqrt(var + BN_EPS)                  # (Cout, 1)
    shift = b_ref[...] - mean * scale                                 # (Cout, 1)
    o_ref[...] = jnp.maximum(acc * scale + shift, 0.0)


def _conv_sigmoid_kernel(w_ref, cols_ref, o_ref):
    """Final ConvTranspose (no BN) + sigmoid, channel-major."""
    acc = jnp.dot(w_ref[...], cols_ref[...], preferred_element_type=jnp.float32)
    o_ref[...] = jax.nn.sigmoid(acc)


def _fc_mid_kernel(h_ref, eps_s_ref, eps_c_ref,
                   w2_ref, b2_ref, g2_ref, be2_ref,
                   w31_ref, b31_ref, w32_ref, b32_ref,
                   w33_ref, b33_ref, w34_ref, b34_ref,
                   w4c_ref, b4c_ref, w4s_ref, b4s_ref,
                   w5_ref, b5_ref,
                   mu_s_ref, lv_s_ref, mu_c_ref, lv_c_ref, dech_ref):
    """fc2 -> BatchNorm1d -> ReLU -> latent heads -> reparameterize ->
    relu(fc4c)*1.2 + relu(fc4s)*1.0 -> relu(fc5); everything stays in VMEM."""
    h = jnp.dot(h_ref[...], w2_ref[...], preferred_element_type=jnp.float32) + b2_ref[...]
    mean = jnp.mean(h, axis=0, keepdims=True)
    var = jnp.mean((h - mean) ** 2, axis=0, keepdims=True)
    scale = g2_ref[...] * jax.lax.rsqrt(var + BN_EPS)
    h = jnp.maximum(h * scale + (be2_ref[...] - mean * scale), 0.0)

    mu_s = jnp.dot(h, w31_ref[...], preferred_element_type=jnp.float32) + b31_ref[...]
    lv_s = jnp.dot(h, w32_ref[...], preferred_element_type=jnp.float32) + b32_ref[...]
    mu_c = jnp.dot(h, w33_ref[...], preferred_element_type=jnp.float32) + b33_ref[...]
    lv_c = jnp.dot(h, w34_ref[...], preferred_element_type=jnp.float32) + b34_ref[...]
    mu_s_ref[...] = mu_s
    lv_s_ref[...] = lv_s
    mu_c_ref[...] = mu_c
    lv_c_ref[...] = lv_c

    # z = mu + eps * exp(0.5 * log_var)  (eps ~ N(0,1) supplied; .detach() is a no-op here)
    z_s = mu_s + eps_s_ref[...] * jnp.exp(0.5 * lv_s)
    z_c = mu_c + eps_c_ref[...] * jnp.exp(0.5 * lv_c)

    hc = jnp.maximum(jnp.dot(z_c, w4c_ref[...], preferred_element_type=jnp.float32) + b4c_ref[...], 0.0)
    hs = jnp.maximum(jnp.dot(z_s, w4s_ref[...], preferred_element_type=jnp.float32) + b4s_ref[...], 0.0)
    hm = hc * COLOR_SCALE + hs * SHAPE_SCALE
    dech_ref[...] = jnp.maximum(jnp.dot(hm, w5_ref[...],
                                        preferred_element_type=jnp.float32) + b5_ref[...], 0.0)


# ----------------------------- conv glue (channel-major im2col) -----------------------------
# TODO(synk): im2col / zero-dilation / padding are still XLA-side slice/stack glue; a fully
# in-kernel version would also remove the HBM round-trip of the column matrices.

def _im2col_cm(x, k, stride, pad_tl, pad_br):
    """x: (C, B, H, W) -> (cols (k*k*C, B*Ho*Wo), Ho, Wo); row order (ki*k+kj)*C + c."""
    C, B, H, W = x.shape
    xp = jnp.pad(x, ((0, 0), (0, 0), (pad_tl, pad_br), (pad_tl, pad_br)))
    Hp, Wp = H + pad_tl + pad_br, W + pad_tl + pad_br
    Ho = (Hp - k) // stride + 1
    Wo = (Wp - k) // stride + 1
    slabs = []
    for di in range(k):
        for dj in range(k):
            slabs.append(xp[:, :, di:di + (Ho - 1) * stride + 1:stride,
                            dj:dj + (Wo - 1) * stride + 1:stride])
    cols = jnp.stack(slabs, axis=0).reshape(k * k * C, B * Ho * Wo)
    return cols, Ho, Wo


def _dilate2_cm(x):
    """Insert one zero between neighbours along H and W (stride-2 ConvTranspose), no scatter."""
    C, B, H, W = x.shape
    zw = jnp.zeros_like(x)
    x = jnp.stack([x, zw], axis=4).reshape(C, B, H, 2 * W)[:, :, :, :2 * W - 1]
    zh = jnp.zeros_like(x)
    x = jnp.stack([x, zh], axis=3).reshape(C, B, 2 * H, 2 * W - 1)[:, :, :2 * H - 1, :]
    return x


def conv_bn_relu(x, wmat, gamma, beta, *, stride, pad):
    """PyTorch Conv2d(bias=False)+BN+ReLU. x (Cin,B,H,W); wmat pre-packed (Cout, 9*Cin)."""
    B = x.shape[1]
    Cout = wmat.shape[0]
    cols, Ho, Wo = _im2col_cm(x, 3, stride, pad, pad)
    out = pl.pallas_call(
        _conv_bn_relu_kernel,
        out_shape=jax.ShapeDtypeStruct((Cout, cols.shape[1]), jnp.float32),
        in_specs=[_VMEM] * 4,
        out_specs=_VMEM,
    )(wmat, cols, gamma, beta)
    return out.reshape(Cout, B, Ho, Wo)


def convT_bn_relu(x, wmat, gamma, beta, *, stride, pad, output_padding):
    """PyTorch ConvTranspose2d(bias=False)+BN+ReLU as a stride-1 conv on the dilated input."""
    B = x.shape[1]
    Cout = wmat.shape[0]
    xd = _dilate2_cm(x) if stride == 2 else x
    p0 = 3 - 1 - pad
    cols, Ho, Wo = _im2col_cm(xd, 3, 1, p0, p0 + output_padding)
    out = pl.pallas_call(
        _conv_bn_relu_kernel,
        out_shape=jax.ShapeDtypeStruct((Cout, cols.shape[1]), jnp.float32),
        in_specs=[_VMEM] * 4,
        out_specs=_VMEM,
    )(wmat, cols, gamma, beta)
    return out.reshape(Cout, B, Ho, Wo)


def convT_sigmoid(x, wmat, *, stride, pad, output_padding):
    B = x.shape[1]
    Cout = wmat.shape[0]
    xd = _dilate2_cm(x) if stride == 2 else x
    p0 = 3 - 1 - pad
    cols, Ho, Wo = _im2col_cm(xd, 3, 1, p0, p0 + output_padding)
    out = pl.pallas_call(
        _conv_sigmoid_kernel,
        out_shape=jax.ShapeDtypeStruct((Cout, cols.shape[1]), jnp.float32),
        in_specs=[_VMEM] * 2,
        out_specs=_VMEM,
    )(wmat, cols)
    return out.reshape(Cout, B, Ho, Wo)


# ----------------------------- parameters (pre-packed at init) -----------------------------

def _pack_conv_w(w):
    """Conv2d weight (Cout, Cin, k, k) -> (Cout, k*k*Cin) matching the im2col row order."""
    Cout, Cin, k, _ = w.shape
    return jnp.transpose(w, (0, 2, 3, 1)).reshape(Cout, k * k * Cin)


def _pack_convT_w(w):
    """ConvTranspose2d weight (Cin, Cout, k, k) -> (Cout, k*k*Cin) for the equivalent
    stride-1 conv on the dilated input (spatial flip + in/out swap folded in)."""
    w_eq = jnp.transpose(jnp.flip(w, axis=(2, 3)), (1, 0, 2, 3))     # (Cout, Cin, k, k)
    return _pack_conv_w(w_eq)


def init_params(key):
    keys = iter(jax.random.split(key, 64))

    def nrm(shape, scale=0.05):
        return scale * jax.random.normal(next(keys), shape, jnp.float32)

    # raw parameters in the PyTorch layouts
    conv1 = nrm((16, 3, 3, 3));   conv2 = nrm((32, 16, 3, 3))
    conv3 = nrm((64, 32, 3, 3));  conv4 = nrm((16, 64, 3, 3))
    conv5 = nrm((16, 64, 3, 3));  conv6 = nrm((64, 32, 3, 3))
    conv7 = nrm((32, 16, 3, 3));  conv8 = nrm((16, 3, 3, 3))
    fc2_w = nrm((FLAT, H_DIM2));  fc2_b = nrm((H_DIM2,))
    fc31_w = nrm((H_DIM2, Z_DIM)); fc31_b = nrm((Z_DIM,))
    fc32_w = nrm((H_DIM2, Z_DIM)); fc32_b = nrm((Z_DIM,))
    fc33_w = nrm((H_DIM2, Z_DIM)); fc33_b = nrm((Z_DIM,))
    fc34_w = nrm((H_DIM2, Z_DIM)); fc34_b = nrm((Z_DIM,))
    fc35_b = nrm((Z_DIM,)); fc36_b = nrm((Z_DIM,))   # fc35/fc36 weights unused: l == 0
    fc4s_w = nrm((Z_DIM, H_DIM2)); fc4s_b = nrm((H_DIM2,))
    fc4c_w = nrm((Z_DIM, H_DIM2)); fc4c_b = nrm((H_DIM2,))
    fc5_w = nrm((H_DIM2, FLAT));   fc5_b = nrm((FLAT,))

    def col(c):   # per-channel BN params, broadcast along lanes inside the conv kernels
        return jnp.ones((c, 1), jnp.float32), jnp.zeros((c, 1), jnp.float32)

    bn1_g, bn1_b = col(16); bn2_g, bn2_b = col(32)
    bn3_g, bn3_b = col(64); bn4_g, bn4_b = col(16)
    bn5_g, bn5_b = col(64); bn6_g, bn6_b = col(32); bn7_g, bn7_b = col(16)

    p = {
        "conv1_w": _pack_conv_w(conv1), "bn1_g": bn1_g, "bn1_b": bn1_b,
        "conv2_w": _pack_conv_w(conv2), "bn2_g": bn2_g, "bn2_b": bn2_b,
        "conv3_w": _pack_conv_w(conv3), "bn3_g": bn3_g, "bn3_b": bn3_b,
        "conv4_w": _pack_conv_w(conv4), "bn4_g": bn4_g, "bn4_b": bn4_b,
        "fc2_w": fc2_w, "fc2_b": fc2_b.reshape(1, H_DIM2),
        "fcbn2_g": jnp.ones((1, H_DIM2), jnp.float32), "fcbn2_b": jnp.zeros((1, H_DIM2), jnp.float32),
        "fc31_w": fc31_w, "fc31_b": fc31_b.reshape(1, Z_DIM),
        "fc32_w": fc32_w, "fc32_b": fc32_b.reshape(1, Z_DIM),
        "fc33_w": fc33_w, "fc33_b": fc33_b.reshape(1, Z_DIM),
        "fc34_w": fc34_w, "fc34_b": fc34_b.reshape(1, Z_DIM),
        "fc35_b": fc35_b, "fc36_b": fc36_b,
        "fc4s_w": fc4s_w, "fc4s_b": fc4s_b.reshape(1, H_DIM2),
        "fc4c_w": fc4c_w, "fc4c_b": fc4c_b.reshape(1, H_DIM2),
        "fc5_w": fc5_w, "fc5_b": fc5_b.reshape(1, FLAT),
        "conv5_w": _pack_convT_w(conv5), "bn5_g": bn5_g, "bn5_b": bn5_b,
        "conv6_w": _pack_convT_w(conv6), "bn6_g": bn6_g, "bn6_b": bn6_b,
        "conv7_w": _pack_convT_w(conv7), "bn7_g": bn7_g, "bn7_b": bn7_b,
        "conv8_w": _pack_convT_w(conv8),
    }
    # TODO(synk): fc37/fc38/fc4l/fc4sc/fc6/fc65/fc7/fc8/skipconv/bn8 are unused on the
    # 'cropped' decode path and therefore not materialized.
    return p


# ----------------------------- forward -----------------------------

@jax.jit
def vae_cnn_forward(params, x, key):
    """Equivalent of VAE_CNN.forward(x, whichdecode='cropped', keepgrad=[])."""
    B = x.shape[0]
    xc = jnp.transpose(x, (1, 0, 2, 3))                          # (3, B, 28, 28) channel-major

    # -------- encoder (conv + BN + ReLU fused, one pallas_call per layer) --------
    h = conv_bn_relu(xc, params["conv1_w"], params["bn1_g"], params["bn1_b"], stride=1, pad=1)  # (16,B,28,28)
    h = conv_bn_relu(h, params["conv2_w"], params["bn2_g"], params["bn2_b"], stride=2, pad=1)   # (32,B,14,14)
    h = conv_bn_relu(h, params["conv3_w"], params["bn3_g"], params["bn3_b"], stride=1, pad=1)   # (64,B,14,14)
    h = conv_bn_relu(h, params["conv4_w"], params["bn4_g"], params["bn4_b"], stride=2, pad=1)   # (16,B,7,7)

    # flatten in torch NCHW .view(B, 784) order: (16, B, 7, 7) -> (B, 16*49)
    hflat = jnp.transpose(h.reshape(16, B, 49), (1, 0, 2)).reshape(B, FLAT)

    # eps ~ N(0,1) for the reparameterization (consumed inside the fused FC kernel)
    k1, k2 = jax.random.split(key, 2)
    eps_s = jax.random.normal(k1, (B, Z_DIM), jnp.float32)
    eps_c = jax.random.normal(k2, (B, Z_DIM), jnp.float32)

    # fc2 + fc_bn2 + ReLU + latent heads + sampling + fc4c/fc4s + fc5 + ReLU — one kernel
    out_shapes = (jax.ShapeDtypeStruct((B, Z_DIM), jnp.float32),
                  jax.ShapeDtypeStruct((B, Z_DIM), jnp.float32),
                  jax.ShapeDtypeStruct((B, Z_DIM), jnp.float32),
                  jax.ShapeDtypeStruct((B, Z_DIM), jnp.float32),
                  jax.ShapeDtypeStruct((B, FLAT), jnp.float32))
    mu_shape, log_var_shape, mu_color, log_var_color, dec_h = pl.pallas_call(
        _fc_mid_kernel,
        out_shape=out_shapes,
        in_specs=[_VMEM] * 21,
        out_specs=(_VMEM,) * 5,
    )(hflat, eps_s, eps_c,
      params["fc2_w"], params["fc2_b"], params["fcbn2_g"], params["fcbn2_b"],
      params["fc31_w"], params["fc31_b"], params["fc32_w"], params["fc32_b"],
      params["fc33_w"], params["fc33_b"], params["fc34_w"], params["fc34_b"],
      params["fc4c_w"], params["fc4c_b"], params["fc4s_w"], params["fc4s_b"],
      params["fc5_w"], params["fc5_b"])

    # fc35/fc36 act on l == zeros -> pure bias broadcast (no matmul / pallas_call needed)
    mu_location = jnp.broadcast_to(params["fc35_b"], (B, Z_DIM))
    log_var_location = jnp.broadcast_to(params["fc36_b"], (B, Z_DIM))
    mu_scale = jnp.float32(0.0)
    log_var_scale = jnp.float32(0.0)
    # hskip (fc8) and z_location are not consumed by decoder_cropped -> not computed.

    # -------- decoder_cropped --------
    hd = jnp.transpose(dec_h.reshape(B, 16, 7, 7), (1, 0, 2, 3))  # torch .view(-1,16,7,7), channel-major
    hd = convT_bn_relu(hd, params["conv5_w"], params["bn5_g"], params["bn5_b"],
                       stride=2, pad=1, output_padding=1)         # (64,B,14,14)
    hd = convT_bn_relu(hd, params["conv6_w"], params["bn6_g"], params["bn6_b"],
                       stride=1, pad=1, output_padding=0)         # (32,B,14,14)
    hd = convT_bn_relu(hd, params["conv7_w"], params["bn7_g"], params["bn7_b"],
                       stride=2, pad=1, output_padding=1)         # (16,B,28,28)
    recon_cm = convT_sigmoid(hd, params["conv8_w"], stride=1, pad=1, output_padding=0)  # (3,B,28,28)
    recon = jnp.transpose(recon_cm, (1, 0, 2, 3))                 # back to public NCHW layout

    return (recon, mu_color, log_var_color, mu_shape, log_var_shape,
            mu_location, log_var_location, mu_scale, log_var_scale)


# ----------------------------- main -----------------------------

if __name__ == "__main__":
    root = jax.random.PRNGKey(0)
    k_params, k_x, k_eps = jax.random.split(root, 3)

    params = init_params(k_params)
    x = jax.random.uniform(k_x, (2, 3, IMGSIZE, IMGSIZE), jnp.float32)   # NCHW, like torch

    outputs = vae_cnn_forward(params, x, k_eps)
    outputs = jax.block_until_ready(outputs)

    recon = outputs[0]
    assert recon.shape == (2, 3, IMGSIZE, IMGSIZE), recon.shape
    assert outputs[1].shape == (2, Z_DIM) and outputs[3].shape == (2, Z_DIM)
    assert outputs[5].shape == (2, Z_DIM) and outputs[6].shape == (2, Z_DIM)
    assert bool(jnp.all(jnp.isfinite(recon)))
    assert bool(jnp.all((recon >= 0.0) & (recon <= 1.0)))
    print("KERNEL_OK")
</pallas_src>

<mosaic_0001>
module attributes {stable_mosaic.version = 11 : i64} {
  func.func @_conv_bn_relu_kernel(%arg0: memref<16x27xf32, #tpu.memory_space<vmem>>, %arg1: memref<27x1568xf32, #tpu.memory_space<vmem>>, %arg2: memref<16x1xf32, #tpu.memory_space<vmem>>, %arg3: memref<16x1xf32, #tpu.memory_space<vmem>>, %arg4: memref<16x1568xf32, #tpu.memory_space<vmem>>) attributes {dimension_semantics = [], scalar_prefetch = 0 : i64, scratch_operands = 0 : i64, tpu.core_type = #tpu.core_type<tc>} {
    %c0 = arith.constant 0 : index
    %c0_0 = arith.constant 0 : index
    %0 = vector.load %arg0[%c0, %c0_0] : memref<16x27xf32, #tpu.memory_space<vmem>>, vector<16x27xf32>
    %c0_1 = arith.constant 0 : index
    %c0_2 = arith.constant 0 : index
    %1 = vector.load %arg1[%c0_1, %c0_2] : memref<27x1568xf32, #tpu.memory_space<vmem>>, vector<27x1568xf32>
    %cst = arith.constant dense<0.000000e+00> : vector<16x1568xf32>
    %2 = tpu.matmul %0, %1, %cst {dimension_numbers = #tpu.dot_dimension_numbers<[1], [0], [0], [1], [0, 0, 1, 1], [], []>} : vector<16x27xf32>, vector<27x1568xf32>, vector<16x1568xf32> -> vector<16x1568xf32>
    %cst_3 = arith.constant dense<0.000000e+00> : vector<16xf32>
    %3 = vector.multi_reduction <add>, %2, %cst_3 [1] : vector<16x1568xf32> to vector<16xf32>
    %4 = vector.shape_cast %3 : vector<16xf32> to vector<16x1xf32>
    %cst_4 = arith.constant 1.568000e+03 : f32
    %5 = vector.broadcast %cst_4 : f32 to vector<16x1xf32>
    %6 = arith.divf %4, %5 : vector<16x1xf32>
    %7 = vector.broadcast %6 : vector<16x1xf32> to vector<16x1568xf32>
    %8 = arith.subf %2, %7 : vector<16x1568xf32>
    %9 = arith.mulf %8, %8 : vector<16x1568xf32>
    %cst_5 = arith.constant dense<0.000000e+00> : vector<16xf32>
    %10 = vector.multi_reduction <add>, %9, %cst_5 [1] : vector<16x1568xf32> to vector<16xf32>
    %11 = vector.shape_cast %10 : vector<16xf32> to vector<16x1xf32>
    %cst_6 = arith.constant 1.568000e+03 : f32
    %12 = vector.broadcast %cst_6 : f32 to vector<16x1xf32>
    %13 = arith.divf %11, %12 : vector<16x1xf32>
    %c0_7 = arith.constant 0 : index
    %c0_8 = arith.constant 0 : index
    %14 = vector.load %arg2[%c0_7, %c0_8] : memref<16x1xf32, #tpu.memory_space<vmem>>, vector<16x1xf32>
    %cst_9 = arith.constant 9.99999974E-6 : f32
    %15 = vector.broadcast %cst_9 : f32 to vector<16x1xf32>
    %16 = arith.addf %13, %15 : vector<16x1xf32>
    %17 = math.rsqrt %16 : vector<16x1xf32>
    %18 = arith.mulf %14, %17 : vector<16x1xf32>
    %c0_10 = arith.constant 0 : index
    %c0_11 = arith.constant 0 : index
    %19 = vector.load %arg3[%c0_10, %c0_11] : memref<16x1xf32, #tpu.memory_space<vmem>>, vector<16x1xf32>
    %20 = arith.mulf %6, %18 : vector<16x1xf32>
    %21 = arith.subf %19, %20 : vector<16x1xf32>
    %22 = vector.broadcast %18 : vector<16x1xf32> to vector<16x1568xf32>
    %23 = arith.mulf %2, %22 : vector<16x1568xf32>
    %24 = vector.broadcast %21 : vector<16x1xf32> to vector<16x1568xf32>
    %25 = arith.addf %23, %24 : vector<16x1568xf32>
    %cst_12 = arith.constant 0.000000e+00 : f32
    %26 = vector.broadcast %cst_12 : f32 to vector<16x1568xf32>
    %27 = arith.maximumf %25, %26 : vector<16x1568xf32>
    %c0_13 = arith.constant 0 : index
    %c0_14 = arith.constant 0 : index
    %28 = vector.load %arg4[%c0_13, %c0_14] : memref<16x1568xf32, #tpu.memory_space<vmem>>, vector<16x1568xf32>
    tpu.vector_store %arg4[%c0_13, %c0_14], %27 {strides = array<i32>} : memref<16x1568xf32, #tpu.memory_space<vmem>>, vector<16x1568xf32>,
    return
  }
}

module attributes {stable_mosaic.version = 11 : i64} {
  func.func @_conv_bn_relu_kernel(%arg0: memref<32x144xf32, #tpu.memory_space<vmem>>, %arg1: memref<144x392xf32, #tpu.memory_space<vmem>>, %arg2: memref<32x1xf32, #tpu.memory_space<vmem>>, %arg3: memref<32x1xf32, #tpu.memory_space<vmem>>, %arg4: memref<32x392xf32, #tpu.memory_space<vmem>>) attributes {dimension_semantics = [], scalar_prefetch = 0 : i64, scratch_operands = 0 : i64, tpu.core_type = #tpu.core_type<tc>} {
    %c0 = arith.constant 0 : index
    %c0_0 = arith.constant 0 : index
    %0 = vector.load %arg0[%c0, %c0_0] : memref<32x144xf32, #tpu.memory_space<vmem>>, vector<32x144xf32>
    %c0_1 = arith.constant 0 : index
    %c0_2 = arith.constant 0 : index
    %1 = vector.load %arg1[%c0_1, %c0_2] : memref<144x392xf32, #tpu.memory_space<vmem>>, vector<144x392xf32>
    %cst = arith.constant dense<0.000000e+00> : vector<32x392xf32>
    %2 = tpu.matmul %0, %1, %cst {dimension_numbers = #tpu.dot_dimension_numbers<[1], [0], [0], [1], [0, 0, 1, 1], [], []>} : vector<32x144xf32>, vector<144x392xf32>, vector<32x392xf32> -> vector<32x392xf32>
    %cst_3 = arith.constant dense<0.000000e+00> : vector<32xf32>
    %3 = vector.multi_reduction <add>, %2, %cst_3 [1] : vector<32x392xf32> to vector<32xf32>
    %4 = vector.shape_cast %3 : vector<32xf32> to vector<32x1xf32>
    %cst_4 = arith.constant 3.920000e+02 : f32
    %5 = vector.broadcast %cst_4 : f32 to vector<32x1xf32>
    %6 = arith.divf %4, %5 : vector<32x1xf32>
    %7 = vector.broadcast %6 : vector<32x1xf32> to vector<32x392xf32>
    %8 = arith.subf %2, %7 : vector<32x392xf32>
    %9 = arith.mulf %8, %8 : vector<32x392xf32>
    %cst_5 = arith.constant dense<0.000000e+00> : vector<32xf32>
    %10 = vector.multi_reduction <add>, %9, %cst_5 [1] : vector<32x392xf32> to vector<32xf32>
    %11 = vector.shape_cast %10 : vector<32xf32> to vector<32x1xf32>
    %cst_6 = arith.constant 3.920000e+02 : f32
    %12 = vector.broadcast %cst_6 : f32 to vector<32x1xf32>
    %13 = arith.divf %11, %12 : vector<32x1xf32>
    %c0_7 = arith.constant 0 : index
    %c0_8 = arith.constant 0 : index
    %14 = vector.load %arg2[%c0_7, %c0_8] : memref<32x1xf32, #tpu.memory_space<vmem>>, vector<32x1xf32>
    %cst_9 = arith.constant 9.99999974E-6 : f32
    %15 = vector.broadcast %cst_9 : f32 to vector<32x1xf32>
    %16 = arith.addf %13, %15 : vector<32x1xf32>
    %17 = math.rsqrt %16 : vector<32x1xf32>
    %18 = arith.mulf %14, %17 : vector<32x1xf32>
    %c0_10 = arith.constant 0 : index
    %c0_11 = arith.constant 0 : index
    %19 = vector.load %arg3[%c0_10, %c0_11] : memref<32x1xf32, #tpu.memory_space<vmem>>, vector<32x1xf32>
    %20 = arith.mulf %6, %18 : vector<32x1xf32>
    %21 = arith.subf %19, %20 : vector<32x1xf32>
    %22 = vector.broadcast %18 : vector<32x1xf32> to vector<32x392xf32>
    %23 = arith.mulf %2, %22 : vector<32x392xf32>
    %24 = vector.broadcast %21 : vector<32x1xf32> to vector<32x392xf32>
    %25 = arith.addf %23, %24 : vector<32x392xf32>
    %cst_12 = arith.constant 0.000000e+00 : f32
    %26 = vector.broadcast %cst_12 : f32 to vector<32x392xf32>
    %27 = arith.maximumf %25, %26 : vector<32x392xf32>
    %c0_13 = arith.constant 0 : index
    %c0_14 = arith.constant 0 : index
    %28 = vector.load %arg4[%c0_13, %c0_14] : memref<32x392xf32, #tpu.memory_space<vmem>>, vector<32x392xf32>
    tpu.vector_store %arg4[%c0_13, %c0_14], %27 {strides = array<i32>} : memref<32x392xf32, #tpu.memory_space<vmem>>, vector<32x392xf32>,
    return
  }
}

module attributes {stable_mosaic.version = 11 : i64} {
  func.func @_conv_bn_relu_kernel(%arg0: memref<64x288xf32, #tpu.memory_space<vmem>>, %arg1: memref<288x392xf32, #tpu.memory_space<vmem>>, %arg2: memref<64x1xf32, #tpu.memory_space<vmem>>, %arg3: memref<64x1xf32, #tpu.memory_space<vmem>>, %arg4: memref<64x392xf32, #tpu.memory_space<vmem>>) attributes {dimension_semantics = [], scalar_prefetch = 0 : i64, scratch_operands = 0 : i64, tpu.core_type = #tpu.core_type<tc>} {
    %c0 = arith.constant 0 : index
    %c0_0 = arith.constant 0 : index
    %0 = vector.load %arg0[%c0, %c0_0] : memref<64x288xf32, #tpu.memory_space<vmem>>, vector<64x288xf32>
    %c0_1 = arith.constant 0 : index
    %c0_2 = arith.constant 0 : index
    %1 = vector.load %arg1[%c0_1, %c0_2] : memref<288x392xf32, #tpu.memory_space<vmem>>, vector<288x392xf32>
    %cst = arith.constant dense<0.000000e+00> : vector<64x392xf32>
    %2 = tpu.matmul %0, %1, %cst {dimension_numbers = #tpu.dot_dimension_numbers<[1], [0], [0], [1], [0, 0, 1, 1], [], []>} : vector<64x288xf32>, vector<288x392xf32>, vector<64x392xf32> -> vector<64x392xf32>
    %cst_3 = arith.constant dense<0.000000e+00> : vector<64xf32>
    %3 = vector.multi_reduction <add>, %2, %cst_3 [1] : vector<64x392xf32> to vector<64xf32>
    %4 = vector.shape_cast %3 : vector<64xf32> to vector<64x1xf32>
    %cst_4 = arith.constant 3.920000e+02 : f32
    %5 = vector.broadcast %cst_4 : f32 to vector<64x1xf32>
    %6 = arith.divf %4, %5 : vector<64x1xf32>
    %7 = vector.broadcast %6 : vector<64x1xf32> to vector<64x392xf32>
    %8 = arith.subf %2, %7 : vector<64x392xf32>
    %9 = arith.mulf %8, %8 : vector<64x392xf32>
    %cst_5 = arith.constant dense<0.000000e+00> : vector<64xf32>
    %10 = vector.multi_reduction <add>, %9, %cst_5 [1] : vector<64x392xf32> to vector<64xf32>
    %11 = vector.shape_cast %10 : vector<64xf32> to vector<64x1xf32>
    %cst_6 = arith.constant 3.920000e+02 : f32
    %12 = vector.broadcast %cst_6 : f32 to vector<64x1xf32>
    %13 = arith.divf %11, %12 : vector<64x1xf32>
    %c0_7 = arith.constant 0 : index
    %c0_8 = arith.constant 0 : index
    %14 = vector.load %arg2[%c0_7, %c0_8] : memref<64x1xf32, #tpu.memory_space<vmem>>, vector<64x1xf32>
    %cst_9 = arith.constant 9.99999974E-6 : f32
    %15 = vector.broadcast %cst_9 : f32 to vector<64x1xf32>
    %16 = arith.addf %13, %15 : vector<64x1xf32>
    %17 = math.rsqrt %16 : vector<64x1xf32>
    %18 = arith.mulf %14, %17 : vector<64x1xf32>
    %c0_10 = arith.constant 0 : index
    %c0_11 = arith.constant 0 : index
    %19 = vector.load %arg3[%c0_10, %c0_11] : memref<64x1xf32, #tpu.memory_space<vmem>>, vector<64x1xf32>
    %20 = arith.mulf %6, %18 : vector<64x1xf32>
    %21 = arith.subf %19, %20 : vector<64x1xf32>
    %22 = vector.broadcast %18 : vector<64x1xf32> to vector<64x392xf32>
    %23 = arith.mulf %2, %22 : vector<64x392xf32>
    %24 = vector.broadcast %21 : vector<64x1xf32> to vector<64x392xf32>
    %25 = arith.addf %23, %24 : vector<64x392xf32>
    %cst_12 = arith.constant 0.000000e+00 : f32
    %26 = vector.broadcast %cst_12 : f32 to vector<64x392xf32>
    %27 = arith.maximumf %25, %26 : vector<64x392xf32>
    %c0_13 = arith.constant 0 : index
    %c0_14 = arith.constant 0 : index
    %28 = vector.load %arg4[%c0_13, %c0_14] : memref<64x392xf32, #tpu.memory_space<vmem>>, vector<64x392xf32>
    tpu.vector_store %arg4[%c0_13, %c0_14], %27 {strides = array<i32>} : memref<64x392xf32, #tpu.memory_space<vmem>>, vector<64x392xf32>,
    return
  }
}

module attributes {stable_mosaic.version = 11 : i64} {
  func.func @_conv_bn_relu_kernel(%arg0: memref<16x576xf32, #tpu.memory_space<vmem>>, %arg1: memref<576x98xf32, #tpu.memory_space<vmem>>, %arg2: memref<16x1xf32, #tpu.memory_space<vmem>>, %arg3: memref<16x1xf32, #tpu.memory_space<vmem>>, %arg4: memref<16x98xf32, #tpu.memory_space<vmem>>) attributes {dimension_semantics = [], scalar_prefetch = 0 : i64, scratch_operands = 0 : i64, tpu.core_type = #tpu.core_type<tc>} {
    %c0 = arith.constant 0 : index
    %c0_0 = arith.constant 0 : index
    %0 = vector.load %arg0[%c0, %c0_0] : memref<16x576xf32, #tpu.memory_space<vmem>>, vector<16x576xf32>
    %c0_1 = arith.constant 0 : index
    %c0_2 = arith.constant 0 : index
    %1 = vector.load %arg1[%c0_1, %c0_2] : memref<576x98xf32, #tpu.memory_space<vmem>>, vector<576x98xf32>
    %cst = arith.constant dense<0.000000e+00> : vector<16x98xf32>
    %2 = tpu.matmul %0, %1, %cst {dimension_numbers = #tpu.dot_dimension_numbers<[1], [0], [0], [1], [0, 0, 1, 1], [], []>} : vector<16x576xf32>, vector<576x98xf32>, vector<16x98xf32> -> vector<16x98xf32>
    %cst_3 = arith.constant dense<0.000000e+00> : vector<16xf32>
    %3 = vector.multi_reduction <add>, %2, %cst_3 [1] : vector<16x98xf32> to vector<16xf32>
    %4 = vector.shape_cast %3 : vector<16xf32> to vector<16x1xf32>
    %cst_4 = arith.constant 9.800000e+01 : f32
    %5 = vector.broadcast %cst_4 : f32 to vector<16x1xf32>
    %6 = arith.divf %4, %5 : vector<16x1xf32>
    %7 = vector.broadcast %6 : vector<16x1xf32> to vector<16x98xf32>
    %8 = arith.subf %2, %7 : vector<16x98xf32>
    %9 = arith.mulf %8, %8 : vector<16x98xf32>
    %cst_5 = arith.constant dense<0.000000e+00> : vector<16xf32>
    %10 = vector.multi_reduction <add>, %9, %cst_5 [1] : vector<16x98xf32> to vector<16xf32>
    %11 = vector.shape_cast %10 : vector<16xf32> to vector<16x1xf32>
    %cst_6 = arith.constant 9.800000e+01 : f32
    %12 = vector.broadcast %cst_6 : f32 to vector<16x1xf32>
    %13 = arith.divf %11, %12 : vector<16x1xf32>
    %c0_7 = arith.constant 0 : index
    %c0_8 = arith.constant 0 : index
    %14 = vector.load %arg2[%c0_7, %c0_8] : memref<16x1xf32, #tpu.memory_space<vmem>>, vector<16x1xf32>
    %cst_9 = arith.constant 9.99999974E-6 : f32
    %15 = vector.broadcast %cst_9 : f32 to vector<16x1xf32>
    %16 = arith.addf %13, %15 : vector<16x1xf32>
    %17 = math.rsqrt %16 : vector<16x1xf32>
    %18 = arith.mulf %14, %17 : vector<16x1xf32>
    %c0_10 = arith.constant 0 : index
    %c0_11 = arith.constant 0 : index
    %19 = vector.load %arg3[%c0_10, %c0_11] : memref<16x1xf32, #tpu.memory_space<vmem>>, vector<16x1xf32>
    %20 = arith.mulf %6, %18 : vector<16x1xf32>
    %21 = arith.subf %19, %20 : vector<16x1xf32>
    %22 = vector.broadcast %18 : vector<16x1xf32> to vector<16x98xf32>
    %23 = arith.mulf %2, %22 : vector<16x98xf32>
    %24 = vector.broadcast %21 : vector<16x1xf32> to vector<16x98xf32>
    %25 = arith.addf %23, %24 : vector<16x98xf32>
    %cst_12 = arith.constant 0.000000e+00 : f32
    %26 = vector.broadcast %cst_12 : f32 to vector<16x98xf32>
    %27 = arith.maximumf %25, %26 : vector<16x98xf32>
    %c0_13 = arith.constant 0 : index
    %c0_14 = arith.constant 0 : index
    %28 = vector.load %arg4[%c0_13, %c0_14] : memref<16x98xf32, #tpu.memory_space<vmem>>, vector<16x98xf32>
    tpu.vector_store %arg4[%c0_13, %c0_14], %27 {strides = array<i32>} : memref<16x98xf32, #tpu.memory_space<vmem>>, vector<16x98xf32>,
    return
  }
}

module attributes {stable_mosaic.version = 11 : i64} {
  func.func @_fc_mid_kernel(%arg0: memref<2x784xf32, #tpu.memory_space<vmem>>, %arg1: memref<2x8xf32, #tpu.memory_space<vmem>>, %arg2: memref<2x8xf32, #tpu.memory_space<vmem>>, %arg3: memref<784x128xf32, #tpu.memory_space<vmem>>, %arg4: memref<1x128xf32, #tpu.memory_space<vmem>>, %arg5: memref<1x128xf32, #tpu.memory_space<vmem>>, %arg6: memref<1x128xf32, #tpu.memory_space<vmem>>, %arg7: memref<128x8xf32, #tpu.memory_space<vmem>>, %arg8: memref<1x8xf32, #tpu.memory_space<vmem>>, %arg9: memref<128x8xf32, #tpu.memory_space<vmem>>, %arg10: memref<1x8xf32, #tpu.memory_space<vmem>>, %arg11: memref<128x8xf32, #tpu.memory_space<vmem>>, %arg12: memref<1x8xf32, #tpu.memory_space<vmem>>, %arg13: memref<128x8xf32, #tpu.memory_space<vmem>>, %arg14: memref<1x8xf32, #tpu.memory_space<vmem>>, %arg15: memref<8x128xf32, #tpu.memory_space<vmem>>, %arg16: memref<1x128xf32, #tpu.memory_space<vmem>>, %arg17: memref<8x128xf32, #tpu.memory_space<vmem>>, %arg18: memref<1x128xf32, #tpu.memory_space<vmem>>, %arg19: memref<128x784xf32, #tpu.memory_space<vmem>>, %arg20: memref<1x784xf32, #tpu.memory_space<vmem>>, %arg21: memref<2x8xf32, #tpu.memory_space<vmem>>, %arg22: memref<2x8xf32, #tpu.memory_space<vmem>>, %arg23: memref<2x8xf32, #tpu.memory_space<vmem>>, %arg24: memref<2x8xf32, #tpu.memory_space<vmem>>, %arg25: memref<2x784xf32, #tpu.memory_space<vmem>>) attributes {dimension_semantics = [], scalar_prefetch = 0 : i64, scratch_operands = 0 : i64, tpu.core_type = #tpu.core_type<tc>} {
    %c0 = arith.constant 0 : index
    %c0_0 = arith.constant 0 : index
    %0 = vector.load %arg0[%c0, %c0_0] : memref<2x784xf32, #tpu.memory_space<vmem>>, vector<2x784xf32>
    %c0_1 = arith.constant 0 : index
    %c0_2 = arith.constant 0 : index
    %1 = vector.load %arg3[%c0_1, %c0_2] : memref<784x128xf32, #tpu.memory_space<vmem>>, vector<784x128xf32>
    %cst = arith.constant dense<0.000000e+00> : vector<2x128xf32>
    %2 = tpu.matmul %0, %1, %cst {dimension_numbers = #tpu.dot_dimension_numbers<[1], [0], [0], [1], [0, 0, 1, 1], [], []>} : vector<2x784xf32>, vector<784x128xf32>, vector<2x128xf32> -> vector<2x128xf32>
    %c0_3 = arith.constant 0 : index
    %c0_4 = arith.constant 0 : index
    %3 = vector.load %arg4[%c0_3, %c0_4] : memref<1x128xf32, #tpu.memory_space<vmem>>, vector<1x128xf32>
    %4 = vector.broadcast %3 : vector<1x128xf32> to vector<2x128xf32>
    %5 = arith.addf %2, %4 : vector<2x128xf32>
    %cst_5 = arith.constant dense<0.000000e+00> : vector<128xf32>
    %6 = vector.multi_reduction <add>, %5, %cst_5 [0] : vector<2x128xf32> to vector<128xf32>
    %7 = vector.shape_cast %6 : vector<128xf32> to vector<1x128xf32>
    %cst_6 = arith.constant 2.000000e+00 : f32
    %8 = vector.broadcast %cst_6 : f32 to vector<1x128xf32>
    %9 = arith.divf %7, %8 : vector<1x128xf32>
    %10 = vector.broadcast %9 : vector<1x128xf32> to vector<2x128xf32>
    %11 = arith.subf %5, %10 : vector<2x128xf32>
    %12 = arith.mulf %11, %11 : vector<2x128xf32>
    %cst_7 = arith.constant dense<0.000000e+00> : vector<128xf32>
    %13 = vector.multi_reduction <add>, %12, %cst_7 [0] : vector<2x128xf32> to vector<128xf32>
    %14 = vector.shape_cast %13 : vector<128xf32> to vector<1x128xf32>
    %cst_8 = arith.constant 2.000000e+00 : f32
    %15 = vector.broadcast %cst_8 : f32 to vector<1x128xf32>
    %16 = arith.divf %14, %15 : vector<1x128xf32>
    %c0_9 = arith.constant 0 : index
    %c0_10 = arith.constant 0 : index
    %17 = vector.load %arg5[%c0_9, %c0_10] : memref<1x128xf32, #tpu.memory_space<vmem>>, vector<1x128xf32>
    %cst_11 = arith.constant 9.99999974E-6 : f32
    %18 = vector.broadcast %cst_11 : f32 to vector<1x128xf32>
    %19 = arith.addf %16, %18 : vector<1x128xf32>
    %20 = math.rsqrt %19 : vector<1x128xf32>
    %21 = arith.mulf %17, %20 : vector<1x128xf32>
    %22 = vector.broadcast %21 : vector<1x128xf32> to vector<2x128xf32>
    %23 = arith.mulf %5, %22 : vector<2x128xf32>
    %c0_12 = arith.constant 0 : index
    %c0_13 = arith.constant 0 : index
    %24 = vector.load %arg6[%c0_12, %c0_13] : memref<1x128xf32, #tpu.memory_space<vmem>>, vector<1x128xf32>
    %25 = arith.mulf %9, %21 : vector<1x128xf32>
    %26 = arith.subf %24, %25 : vector<1x128xf32>
    %27 = vector.broadcast %26 : vector<1x128xf32> to vector<2x128xf32>
    %28 = arith.addf %23, %27 : vector<2x128xf32>
    %cst_14 = arith.constant 0.000000e+00 : f32
    %29 = vector.broadcast %cst_14 : f32 to vector<2x128xf32>
    %30 = arith.maximumf %28, %29 : vector<2x128xf32>
    %c0_15 = arith.constant 0 : index
    %c0_16 = arith.constant 0 : index
    %31 = vector.load %arg7[%c0_15, %c0_16] : memref<128x8xf32, #tpu.memory_space<vmem>>, vector<128x8xf32>
    %cst_17 = arith.constant dense<0.000000e+00> : vector<2x8xf32>
    %32 = tpu.matmul %30, %31, %cst_17 {dimension_numbers = #tpu.dot_dimension_numbers<[1], [0], [0], [1], [0, 0, 1, 1], [], []>} : vector<2x128xf32>, vector<128x8xf32>, vector<2x8xf32> -> vector<2x8xf32>
    %c0_18 = arith.constant 0 : index
    %c0_19 = arith.constant 0 : index
    %33 = vector.load %arg8[%c0_18, %c0_19] : memref<1x8xf32, #tpu.memory_space<vmem>>, vector<1x8xf32>
    %34 = vector.broadcast %33 : vector<1x8xf32> to vector<2x8xf32>
    %35 = arith.addf %32, %34 : vector<2x8xf32>
    %c0_20 = arith.constant 0 : index
    %c0_21 = arith.constant 0 : index
    %36 = vector.load %arg9[%c0_20, %c0_21] : memref<128x8xf32, #tpu.memory_space<vmem>>, vector<128x8xf32>
    %cst_22 = arith.constant dense<0.000000e+00> : vector<2x8xf32>
    %37 = tpu.matmul %30, %36, %cst_22 {dimension_numbers = #tpu.dot_dimension_numbers<[1], [0], [0], [1], [0, 0, 1, 1], [], []>} : vector<2x128xf32>, vector<128x8xf32>, vector<2x8xf32> -> vector<2x8xf32>
    %c0_23 = arith.constant 0 : index
    %c0_24 = arith.constant 0 : index
    %38 = vector.load %arg10[%c0_23, %c0_24] : memref<1x8xf32, #tpu.memory_space<vmem>>, vector<1x8xf32>
    %39 = vector.broadcast %38 : vector<1x8xf32> to vector<2x8xf32>
    %40 = arith.addf %37, %39 : vector<2x8xf32>
    %c0_25 = arith.constant 0 : index
    %c0_26 = arith.constant 0 : index
    %41 = vector.load %arg11[%c0_25, %c0_26] : memref<128x8xf32, #tpu.memory_space<vmem>>, vector<128x8xf32>
    %cst_27 = arith.constant dense<0.000000e+00> : vector<2x8xf32>
    %42 = tpu.matmul %30, %41, %cst_27 {dimension_numbers = #tpu.dot_dimension_numbers<[1], [0], [0], [1], [0, 0, 1, 1], [], []>} : vector<2x128xf32>, vector<128x8xf32>, vector<2x8xf32> -> vector<2x8xf32>
    %c0_28 = arith.constant 0 : index
    %c0_29 = arith.constant 0 : index
    %43 = vector.load %arg12[%c0_28, %c0_29] : memref<1x8xf32, #tpu.memory_space<vmem>>, vector<1x8xf32>
    %44 = vector.broadcast %43 : vector<1x8xf32> to vector<2x8xf32>
    %45 = arith.addf %42, %44 : vector<2x8xf32>
    %c0_30 = arith.constant 0 : index
    %c0_31 = arith.constant 0 : index
    %46 = vector.load %arg13[%c0_30, %c0_31] : memref<128x8xf32, #tpu.memory_space<vmem>>, vector<128x8xf32>
    %cst_32 = arith.constant dense<0.000000e+00> : vector<2x8xf32>
    %47 = tpu.matmul %30, %46, %cst_32 {dimension_numbers = #tpu.dot_dimension_numbers<[1], [0], [0], [1], [0, 0, 1, 1], [], []>} : vector<2x128xf32>, vector<128x8xf32>, vector<2x8xf32> -> vector<2x8xf32>
    %c0_33 = arith.constant 0 : index
    %c0_34 = arith.constant 0 : index
    %48 = vector.load %arg14[%c0_33, %c0_34] : memref<1x8xf32, #tpu.memory_space<vmem>>, vector<1x8xf32>
    %49 = vector.broadcast %48 : vector<1x8xf32> to vector<2x8xf32>
    %50 = arith.addf %47, %49 : vector<2x8xf32>
    %c0_35 = arith.constant 0 : index
    %c0_36 = arith.constant 0 : index
    %51 = vector.load %arg21[%c0_35, %c0_36] : memref<2x8xf32, #tpu.memory_space<vmem>>, vector<2x8xf32>
    tpu.vector_store %arg21[%c0_35, %c0_36], %35 {strides = array<i32>} : memref<2x8xf32, #tpu.memory_space<vmem>>, vector<2x8xf32>,
    %c0_37 = arith.constant 0 : index
    %c0_38 = arith.constant 0 : index
    %52 = vector.load %arg22[%c0_37, %c0_38] : memref<2x8xf32, #tpu.memory_space<vmem>>, vector<2x8xf32>
    tpu.vector_store %arg22[%c0_37, %c0_38], %40 {strides = array<i32>} : memref<2x8xf32, #tpu.memory_space<vmem>>, vector<2x8xf32>,
    %c0_39 = arith.constant 0 : index
    %c0_40 = arith.constant 0 : index
    %53 = vector.load %arg23[%c0_39, %c0_40] : memref<2x8xf32, #tpu.memory_space<vmem>>, vector<2x8xf32>
    tpu.vector_store %arg23[%c0_39, %c0_40], %45 {strides = array<i32>} : memref<2x8xf32, #tpu.memory_space<vmem>>, vector<2x8xf32>,
    %c0_41 = arith.constant 0 : index
    %c0_42 = arith.constant 0 : index
    %54 = vector.load %arg24[%c0_41, %c0_42] : memref<2x8xf32, #tpu.memory_space<vmem>>, vector<2x8xf32>
    tpu.vector_store %arg24[%c0_41, %c0_42], %50 {strides = array<i32>} : memref<2x8xf32, #tpu.memory_space<vmem>>, vector<2x8xf32>,
    %c0_43 = arith.constant 0 : index
    %c0_44 = arith.constant 0 : index
    %55 = vector.load %arg1[%c0_43, %c0_44] : memref<2x8xf32, #tpu.memory_space<vmem>>, vector<2x8xf32>
    %cst_45 = arith.constant 5.000000e-01 : f32
    %56 = vector.broadcast %cst_45 : f32 to vector<2x8xf32>
    %57 = arith.mulf %56, %40 : vector<2x8xf32>
    %58 = math.exp %57 : vector<2x8xf32>
    %59 = arith.mulf %55, %58 : vector<2x8xf32>
    %60 = arith.addf %35, %59 : vector<2x8xf32>
    %c0_46 = arith.constant 0 : index
    %c0_47 = arith.constant 0 : index
    %61 = vector.load %arg2[%c0_46, %c0_47] : memref<2x8xf32, #tpu.memory_space<vmem>>, vector<2x8xf32>
    %cst_48 = arith.constant 5.000000e-01 : f32
    %62 = vector.broadcast %cst_48 : f32 to vector<2x8xf32>
    %63 = arith.mulf %62, %50 : vector<2x8xf32>
    %64 = math.exp %63 : vector<2x8xf32>
    %65 = arith.mulf %61, %64 : vector<2x8xf32>
    %66 = arith.addf %45, %65 : vector<2x8xf32>
    %c0_49 = arith.constant 0 : index
    %c0_50 = arith.constant 0 : index
    %67 = vector.load %arg15[%c0_49, %c0_50] : memref<8x128xf32, #tpu.memory_space<vmem>>, vector<8x128xf32>
    %cst_51 = arith.constant dense<0.000000e+00> : vector<2x128xf32>
    %68 = tpu.matmul %66, %67, %cst_51 {dimension_numbers = #tpu.dot_dimension_numbers<[1], [0], [0], [1], [0, 0, 1, 1], [], []>} : vector<2x8xf32>, vector<8x128xf32>, vector<2x128xf32> -> vector<2x128xf32>
    %c0_52 = arith.constant 0 : index
    %c0_53 = arith.constant 0 : index
    %69 = vector.load %arg16[%c0_52, %c0_53] : memref<1x128xf32, #tpu.memory_space<vmem>>, vector<1x128xf32>
    %70 = vector.broadcast %69 : vector<1x128xf32> to vector<2x128xf32>
    %71 = arith.addf %68, %70 : vector<2x128xf32>
    %cst_54 = arith.constant 0.000000e+00 : f32
    %72 = vector.broadcast %cst_54 : f32 to vector<2x128xf32>
    %73 = arith.maximumf %71, %72 : vector<2x128xf32>
    %c0_55 = arith.constant 0 : index
    %c0_56 = arith.constant 0 : index
    %74 = vector.load %arg17[%c0_55, %c0_56] : memref<8x128xf32, #tpu.memory_space<vmem>>, vector<8x128xf32>
    %cst_57 = arith.constant dense<0.000000e+00> : vector<2x128xf32>
    %75 = tpu.matmul %60, %74, %cst_57 {dimension_numbers = #tpu.dot_dimension_numbers<[1], [0], [0], [1], [0, 0, 1, 1], [], []>} : vector<2x8xf32>, vector<8x128xf32>, vector<2x128xf32> -> vector<2x128xf32>
    %c0_58 = arith.constant 0 : index
    %c0_59 = arith.constant 0 : index
    %76 = vector.load %arg18[%c0_58, %c0_59] : memref<1x128xf32, #tpu.memory_space<vmem>>, vector<1x128xf32>
    %77 = vector.broadcast %76 : vector<1x128xf32> to vector<2x128xf32>
    %78 = arith.addf %75, %77 : vector<2x128xf32>
    %cst_60 = arith.constant 0.000000e+00 : f32
    %79 = vector.broadcast %cst_60 : f32 to vector<2x128xf32>
    %80 = arith.maximumf %78, %79 : vector<2x128xf32>
    %cst_61 = arith.constant 1.200000e+00 : f32
    %81 = vector.broadcast %cst_61 : f32 to vector<2x128xf32>
    %82 = arith.mulf %73, %81 : vector<2x128xf32>
    %cst_62 = arith.constant 1.000000e+00 : f32
    %83 = vector.broadcast %cst_62 : f32 to vector<2x128xf32>
    %84 = arith.mulf %80, %83 : vector<2x128xf32>
    %85 = arith.addf %82, %84 : vector<2x128xf32>
    %c0_63 = arith.constant 0 : index
    %c0_64 = arith.constant 0 : index
    %86 = vector.load %arg19[%c0_63, %c0_64] : memref<128x784xf32, #tpu.memory_space<vmem>>, vector<128x784xf32>
    %cst_65 = arith.constant dense<0.000000e+00> : vector<2x784xf32>
    %87 = tpu.matmul %85, %86, %cst_65 {dimension_numbers = #tpu.dot_dimension_numbers<[1], [0], [0], [1], [0, 0, 1, 1], [], []>} : vector<2x128xf32>, vector<128x784xf32>, vector<2x784xf32> -> vector<2x784xf32>
    %c0_66 = arith.constant 0 : index
    %c0_67 = arith.constant 0 : index
    %88 = vector.load %arg20[%c0_66, %c0_67] : memref<1x784xf32, #tpu.memory_space<vmem>>, vector<1x784xf32>
    %89 = vector.broadcast %88 : vector<1x784xf32> to vector<2x784xf32>
    %90 = arith.addf %87, %89 : vector<2x784xf32>
    %cst_68 = arith.constant 0.000000e+00 : f32
    %91 = vector.broadcast %cst_68 : f32 to vector<2x784xf32>
    %92 = arith.maximumf %90, %91 : vector<2x784xf32>
    %c0_69 = arith.constant 0 : index
    %c0_70 = arith.constant 0 : index
    %93 = vector.load %arg25[%c0_69, %c0_70] : memref<2x784xf32, #tpu.memory_space<vmem>>, vector<2x784xf32>
    tpu.vector_store %arg25[%c0_69, %c0_70], %92 {strides = array<i32>} : memref<2x784xf32, #tpu.memory_space<vmem>>, vector<2x784xf32>,
    return
  }
}

module attributes {stable_mosaic.version = 11 : i64} {
  func.func @_conv_bn_relu_kernel(%arg0: memref<64x144xf32, #tpu.memory_space<vmem>>, %arg1: memref<144x392xf32, #tpu.memory_space<vmem>>, %arg2: memref<64x1xf32, #tpu.memory_space<vmem>>, %arg3: memref<64x1xf32, #tpu.memory_space<vmem>>, %arg4: memref<64x392xf32, #tpu.memory_space<vmem>>) attributes {dimension_semantics = [], scalar_prefetch = 0 : i64, scratch_operands = 0 : i64, tpu.core_type = #tpu.core_type<tc>} {
    %c0 = arith.constant 0 : index
    %c0_0 = arith.constant 0 : index
    %0 = vector.load %arg0[%c0, %c0_0] : memref<64x144xf32, #tpu.memory_space<vmem>>, vector<64x144xf32>
    %c0_1 = arith.constant 0 : index
    %c0_2 = arith.constant 0 : index
    %1 = vector.load %arg1[%c0_1, %c0_2] : memref<144x392xf32, #tpu.memory_space<vmem>>, vector<144x392xf32>
    %cst = arith.constant dense<0.000000e+00> : vector<64x392xf32>
    %2 = tpu.matmul %0, %1, %cst {dimension_numbers = #tpu.dot_dimension_numbers<[1], [0], [0], [1], [0, 0, 1, 1], [], []>} : vector<64x144xf32>, vector<144x392xf32>, vector<64x392xf32> -> vector<64x392xf32>
    %cst_3 = arith.constant dense<0.000000e+00> : vector<64xf32>
    %3 = vector.multi_reduction <add>, %2, %cst_3 [1] : vector<64x392xf32> to vector<64xf32>
    %4 = vector.shape_cast %3 : vector<64xf32> to vector<64x1xf32>
    %cst_4 = arith.constant 3.920000e+02 : f32
    %5 = vector.broadcast %cst_4 : f32 to vector<64x1xf32>
    %6 = arith.divf %4, %5 : vector<64x1xf32>
    %7 = vector.broadcast %6 : vector<64x1xf32> to vector<64x392xf32>
    %8 = arith.subf %2, %7 : vector<64x392xf32>
    %9 = arith.mulf %8, %8 : vector<64x392xf32>
    %cst_5 = arith.constant dense<0.000000e+00> : vector<64xf32>
    %10 = vector.multi_reduction <add>, %9, %cst_5 [1] : vector<64x392xf32> to vector<64xf32>
    %11 = vector.shape_cast %10 : vector<64xf32> to vector<64x1xf32>
    %cst_6 = arith.constant 3.920000e+02 : f32
    %12 = vector.broadcast %cst_6 : f32 to vector<64x1xf32>
    %13 = arith.divf %11, %12 : vector<64x1xf32>
    %c0_7 = arith.constant 0 : index
    %c0_8 = arith.constant 0 : index
    %14 = vector.load %arg2[%c0_7, %c0_8] : memref<64x1xf32, #tpu.memory_space<vmem>>, vector<64x1xf32>
    %cst_9 = arith.constant 9.99999974E-6 : f32
    %15 = vector.broadcast %cst_9 : f32 to vector<64x1xf32>
    %16 = arith.addf %13, %15 : vector<64x1xf32>
    %17 = math.rsqrt %16 : vector<64x1xf32>
    %18 = arith.mulf %14, %17 : vector<64x1xf32>
    %c0_10 = arith.constant 0 : index
    %c0_11 = arith.constant 0 : index
    %19 = vector.load %arg3[%c0_10, %c0_11] : memref<64x1xf32, #tpu.memory_space<vmem>>, vector<64x1xf32>
    %20 = arith.mulf %6, %18 : vector<64x1xf32>
    %21 = arith.subf %19, %20 : vector<64x1xf32>
    %22 = vector.broadcast %18 : vector<64x1xf32> to vector<64x392xf32>
    %23 = arith.mulf %2, %22 : vector<64x392xf32>
    %24 = vector.broadcast %21 : vector<64x1xf32> to vector<64x392xf32>
    %25 = arith.addf %23, %24 : vector<64x392xf32>
    %cst_12 = arith.constant 0.000000e+00 : f32
    %26 = vector.broadcast %cst_12 : f32 to vector<64x392xf32>
    %27 = arith.maximumf %25, %26 : vector<64x392xf32>
    %c0_13 = arith.constant 0 : index
    %c0_14 = arith.constant 0 : index
    %28 = vector.load %arg4[%c0_13, %c0_14] : memref<64x392xf32, #tpu.memory_space<vmem>>, vector<64x392xf32>
    tpu.vector_store %arg4[%c0_13, %c0_14], %27 {strides = array<i32>} : memref<64x392xf32, #tpu.memory_space<vmem>>, vector<64x392xf32>,
    return
  }
}

module attributes {stable_mosaic.version = 11 : i64} {
  func.func @_conv_bn_relu_kernel(%arg0: memref<32x576xf32, #tpu.memory_space<vmem>>, %arg1: memref<576x392xf32, #tpu.memory_space<vmem>>, %arg2: memref<32x1xf32, #tpu.memory_space<vmem>>, %arg3: memref<32x1xf32, #tpu.memory_space<vmem>>, %arg4: memref<32x392xf32, #tpu.memory_space<vmem>>) attributes {dimension_semantics = [], scalar_prefetch = 0 : i64, scratch_operands = 0 : i64, tpu.core_type = #tpu.core_type<tc>} {
    %c0 = arith.constant 0 : index
    %c0_0 = arith.constant 0 : index
    %0 = vector.load %arg0[%c0, %c0_0] : memref<32x576xf32, #tpu.memory_space<vmem>>, vector<32x576xf32>
    %c0_1 = arith.constant 0 : index
    %c0_2 = arith.constant 0 : index
    %1 = vector.load %arg1[%c0_1, %c0_2] : memref<576x392xf32, #tpu.memory_space<vmem>>, vector<576x392xf32>
    %cst = arith.constant dense<0.000000e+00> : vector<32x392xf32>
    %2 = tpu.matmul %0, %1, %cst {dimension_numbers = #tpu.dot_dimension_numbers<[1], [0], [0], [1], [0, 0, 1, 1], [], []>} : vector<32x576xf32>, vector<576x392xf32>, vector<32x392xf32> -> vector<32x392xf32>
    %cst_3 = arith.constant dense<0.000000e+00> : vector<32xf32>
    %3 = vector.multi_reduction <add>, %2, %cst_3 [1] : vector<32x392xf32> to vector<32xf32>
    %4 = vector.shape_cast %3 : vector<32xf32> to vector<32x1xf32>
    %cst_4 = arith.constant 3.920000e+02 : f32
    %5 = vector.broadcast %cst_4 : f32 to vector<32x1xf32>
    %6 = arith.divf %4, %5 : vector<32x1xf32>
    %7 = vector.broadcast %6 : vector<32x1xf32> to vector<32x392xf32>
    %8 = arith.subf %2, %7 : vector<32x392xf32>
    %9 = arith.mulf %8, %8 : vector<32x392xf32>
    %cst_5 = arith.constant dense<0.000000e+00> : vector<32xf32>
    %10 = vector.multi_reduction <add>, %9, %cst_5 [1] : vector<32x392xf32> to vector<32xf32>
    %11 = vector.shape_cast %10 : vector<32xf32> to vector<32x1xf32>
    %cst_6 = arith.constant 3.920000e+02 : f32
    %12 = vector.broadcast %cst_6 : f32 to vector<32x1xf32>
    %13 = arith.divf %11, %12 : vector<32x1xf32>
    %c0_7 = arith.constant 0 : index
    %c0_8 = arith.constant 0 : index
    %14 = vector.load %arg2[%c0_7, %c0_8] : memref<32x1xf32, #tpu.memory_space<vmem>>, vector<32x1xf32>
    %cst_9 = arith.constant 9.99999974E-6 : f32
    %15 = vector.broadcast %cst_9 : f32 to vector<32x1xf32>
    %16 = arith.addf %13, %15 : vector<32x1xf32>
    %17 = math.rsqrt %16 : vector<32x1xf32>
    %18 = arith.mulf %14, %17 : vector<32x1xf32>
    %c0_10 = arith.constant 0 : index
    %c0_11 = arith.constant 0 : index
    %19 = vector.load %arg3[%c0_10, %c0_11] : memref<32x1xf32, #tpu.memory_space<vmem>>, vector<32x1xf32>
    %20 = arith.mulf %6, %18 : vector<32x1xf32>
    %21 = arith.subf %19, %20 : vector<32x1xf32>
    %22 = vector.broadcast %18 : vector<32x1xf32> to vector<32x392xf32>
    %23 = arith.mulf %2, %22 : vector<32x392xf32>
    %24 = vector.broadcast %21 : vector<32x1xf32> to vector<32x392xf32>
    %25 = arith.addf %23, %24 : vector<32x392xf32>
    %cst_12 = arith.constant 0.000000e+00 : f32
    %26 = vector.broadcast %cst_12 : f32 to vector<32x392xf32>
    %27 = arith.maximumf %25, %26 : vector<32x392xf32>
    %c0_13 = arith.constant 0 : index
    %c0_14 = arith.constant 0 : index
    %28 = vector.load %arg4[%c0_13, %c0_14] : memref<32x392xf32, #tpu.memory_space<vmem>>, vector<32x392xf32>
    tpu.vector_store %arg4[%c0_13, %c0_14], %27 {strides = array<i32>} : memref<32x392xf32, #tpu.memory_space<vmem>>, vector<32x392xf32>,
    return
  }
}

module attributes {stable_mosaic.version = 11 : i64} {
  func.func @_conv_bn_relu_kernel(%arg0: memref<16x288xf32, #tpu.memory_space<vmem>>, %arg1: memref<288x1568xf32, #tpu.memory_space<vmem>>, %arg2: memref<16x1xf32, #tpu.memory_space<vmem>>, %arg3: memref<16x1xf32, #tpu.memory_space<vmem>>, %arg4: memref<16x1568xf32, #tpu.memory_space<vmem>>) attributes {dimension_semantics = [], scalar_prefetch = 0 : i64, scratch_operands = 0 : i64, tpu.core_type = #tpu.core_type<tc>} {
    %c0 = arith.constant 0 : index
    %c0_0 = arith.constant 0 : index
    %0 = vector.load %arg0[%c0, %c0_0] : memref<16x288xf32, #tpu.memory_space<vmem>>, vector<16x288xf32>
    %c0_1 = arith.constant 0 : index
    %c0_2 = arith.constant 0 : index
    %1 = vector.load %arg1[%c0_1, %c0_2] : memref<288x1568xf32, #tpu.memory_space<vmem>>, vector<288x1568xf32>
    %cst = arith.constant dense<0.000000e+00> : vector<16x1568xf32>
    %2 = tpu.matmul %0, %1, %cst {dimension_numbers = #tpu.dot_dimension_numbers<[1], [0], [0], [1], [0, 0, 1, 1], [], []>} : vector<16x288xf32>, vector<288x1568xf32>, vector<16x1568xf32> -> vector<16x1568xf32>
    %cst_3 = arith.constant dense<0.000000e+00> : vector<16xf32>
    %3 = vector.multi_reduction <add>, %2, %cst_3 [1] : vector<16x1568xf32> to vector<16xf32>
    %4 = vector.shape_cast %3 : vector<16xf32> to vector<16x1xf32>
    %cst_4 = arith.constant 1.568000e+03 : f32
    %5 = vector.broadcast %cst_4 : f32 to vector<16x1xf32>
    %6 = arith.divf %4, %5 : vector<16x1xf32>
    %7 = vector.broadcast %6 : vector<16x1xf32> to vector<16x1568xf32>
    %8 = arith.subf %2, %7 : vector<16x1568xf32>
    %9 = arith.mulf %8, %8 : vector<16x1568xf32>
    %cst_5 = arith.constant dense<0.000000e+00> : vector<16xf32>
    %10 = vector.multi_reduction <add>, %9, %cst_5 [1] : vector<16x1568xf32> to vector<16xf32>
    %11 = vector.shape_cast %10 : vector<16xf32> to vector<16x1xf32>
    %cst_6 = arith.constant 1.568000e+03 : f32
    %12 = vector.broadcast %cst_6 : f32 to vector<16x1xf32>
    %13 = arith.divf %11, %12 : vector<16x1xf32>
    %c0_7 = arith.constant 0 : index
    %c0_8 = arith.constant 0 : index
    %14 = vector.load %arg2[%c0_7, %c0_8] : memref<16x1xf32, #tpu.memory_space<vmem>>, vector<16x1xf32>
    %cst_9 = arith.constant 9.99999974E-6 : f32
    %15 = vector.broadcast %cst_9 : f32 to vector<16x1xf32>
    %16 = arith.addf %13, %15 : vector<16x1xf32>
    %17 = math.rsqrt %16 : vector<16x1xf32>
    %18 = arith.mulf %14, %17 : vector<16x1xf32>
    %c0_10 = arith.constant 0 : index
    %c0_11 = arith.constant 0 : index
    %19 = vector.load %arg3[%c0_10, %c0_11] : memref<16x1xf32, #tpu.memory_space<vmem>>, vector<16x1xf32>
    %20 = arith.mulf %6, %18 : vector<16x1xf32>
    %21 = arith.subf %19, %20 : vector<16x1xf32>
    %22 = vector.broadcast %18 : vector<16x1xf32> to vector<16x1568xf32>
    %23 = arith.mulf %2, %22 : vector<16x1568xf32>
    %24 = vector.broadcast %21 : vector<16x1xf32> to vector<16x1568xf32>
    %25 = arith.addf %23, %24 : vector<16x1568xf32>
    %cst_12 = arith.constant 0.000000e+00 : f32
    %26 = vector.broadcast %cst_12 : f32 to vector<16x1568xf32>
    %27 = arith.maximumf %25, %26 : vector<16x1568xf32>
    %c0_13 = arith.constant 0 : index
    %c0_14 = arith.constant 0 : index
    %28 = vector.load %arg4[%c0_13, %c0_14] : memref<16x1568xf32, #tpu.memory_space<vmem>>, vector<16x1568xf32>
    tpu.vector_store %arg4[%c0_13, %c0_14], %27 {strides = array<i32>} : memref<16x1568xf32, #tpu.memory_space<vmem>>, vector<16x1568xf32>,
    return
  }
}

module attributes {stable_mosaic.version = 11 : i64} {
  func.func @_conv_sigmoid_kernel(%arg0: memref<3x144xf32, #tpu.memory_space<vmem>>, %arg1: memref<144x1568xf32, #tpu.memory_space<vmem>>, %arg2: memref<3x1568xf32, #tpu.memory_space<vmem>>) attributes {dimension_semantics = [], scalar_prefetch = 0 : i64, scratch_operands = 0 : i64, tpu.core_type = #tpu.core_type<tc>} {
    %c0 = arith.constant 0 : index
    %c0_0 = arith.constant 0 : index
    %0 = vector.load %arg0[%c0, %c0_0] : memref<3x144xf32, #tpu.memory_space<vmem>>, vector<3x144xf32>
    %c0_1 = arith.constant 0 : index
    %c0_2 = arith.constant 0 : index
    %1 = vector.load %arg1[%c0_1, %c0_2] : memref<144x1568xf32, #tpu.memory_space<vmem>>, vector<144x1568xf32>
    %cst = arith.constant dense<0.000000e+00> : vector<3x1568xf32>
    %2 = tpu.matmul %0, %1, %cst {dimension_numbers = #tpu.dot_dimension_numbers<[1], [0], [0], [1], [0, 0, 1, 1], [], []>} : vector<3x144xf32>, vector<144x1568xf32>, vector<3x1568xf32> -> vector<3x1568xf32>
    %3 = arith.negf %2 : vector<3x1568xf32>
    %4 = math.exp %3 : vector<3x1568xf32>
    %cst_3 = arith.constant 1.000000e+00 : f32
    %5 = vector.broadcast %cst_3 : f32 to vector<3x1568xf32>
    %6 = arith.addf %5, %4 : vector<3x1568xf32>
    %7 = arith.divf %5, %6 : vector<3x1568xf32>
    %c0_4 = arith.constant 0 : index
    %c0_5 = arith.constant 0 : index
    %8 = vector.load %arg2[%c0_4, %c0_5] : memref<3x1568xf32, #tpu.memory_space<vmem>>, vector<3x1568xf32>
    tpu.vector_store %arg2[%c0_4, %c0_5], %7 {strides = array<i32>} : memref<3x1568xf32, #tpu.memory_space<vmem>>, vector<3x1568xf32>,
    return
  }
}

</mosaic_0001>

<llo_original>
// kernel: vae_cnn_forward.11
$region0: #{vae_cnn_forward.11}
  #allocation0 [shape = 'u32[]', space=smem, size = 0x4, offset = 0x4, fixed_abs, tag = 'smem constant byte address 0x4 - core index']
  #allocation1 [shape = 'u32[144,128]{1,0:T(1,128)}', space=vmem, size = 0x12000, scoped, tag = 'internal scratch']
  %s0 = inlined_call_operand.vmem [shape: f32[16,27], index: 0, kind: input, shape index: {}]
  %s1 = inlined_call_operand.vmem [shape: f32[27,1568], index: 1, kind: input, shape index: {}]
  %s2 = inlined_call_operand.vmem [shape: f32[16,1], index: 2, kind: input, shape index: {}]
  %s3 = inlined_call_operand.vmem [shape: f32[16,1], index: 3, kind: input, shape index: {}]
  %s4 = inlined_call_operand.vmem [shape: f32[16,1568], index: 4, kind: output, shape index: {}]
  %s5 = sld [smem:[#allocation0]]
  $region26: #{vae_cnn_forward.11} parent=0
    _
  %s7 = ssub.s32 1, %s5
  %s8 = scalar_select 0, %s7, %s5
  // Predicated region
  $region2: #{vae_cnn_forward.11} parent=0 // pred_check
    _
  $region3: #{vae_cnn_forward.11} parent=0 // pred_check_branch
    %10 = sbr.rel (0) target = $region5
  $region4: #{vae_cnn_forward.11} parent=0 // pred_region
    _
  $region5: #{vae_cnn_forward.11} parent=0 // pred_fallthru
    _
  // Predicated region
  $region6: #{vae_cnn_forward.11} parent=0 // pred_check
    _
  $region7: #{vae_cnn_forward.11} parent=0 // pred_check_branch
    %12 = sbr.rel (0) target = $region9
  $region8: #{vae_cnn_forward.11} parent=0 // pred_region
    _
  $region9: #{vae_cnn_forward.11} parent=0 // pred_fallthru
    _
  // Predicated region
  $region10: #{vae_cnn_forward.11} parent=0 // pred_check
    _
  $region11: #{vae_cnn_forward.11} parent=0 // pred_check_branch
    %14 = sbr.rel (0) target = $region13
  $region12: #{vae_cnn_forward.11} parent=0 // pred_region
    _
  $region13: #{vae_cnn_forward.11} parent=0 // pred_fallthru
    _
  // Predicated region
  $region14: #{vae_cnn_forward.11} parent=0 // pred_check
    _
  $region15: #{vae_cnn_forward.11} parent=0 // pred_check_branch
    %16 = sbr.rel (0) target = $region17
  $region16: #{vae_cnn_forward.11} parent=0 // pred_region
    _
  $region17: #{vae_cnn_forward.11} parent=0 // pred_fallthru
    _
  %v17 = vld [vmem:[%s0] sm:$0xff]
  %v18 = vld [vmem:[%s0 + $0x8] sm:$0xff]
  %v19 = vld [vmem:[%s1] sm:$0xff]
  %v20 = vld [vmem:[%s1 + $0x8] sm:$0xff]
  %v21 = vld [vmem:[%s1 + $0x10] sm:$0xff]
  %v22 = vld [vmem:[%s1 + $0x18] sm:$0xff]
  %v23 = vld [vmem:[%s1 + $0x20] sm:$0xff]
  %v24 = vld [vmem:[%s1 + $0x28] sm:$0xff]
  %v25 = vld [vmem:[%s1 + $0x30] sm:$0xff]
  %v26 = vld [vmem:[%s1 + $0x38] sm:$0xff]
  %v27 = vld [vmem:[%s1 + $0x40] sm:$0xff]
  %v28 = vld [vmem:[%s1 + $0x48] sm:$0xff]
  %v29 = vld [vmem:[%s1 + $0x50] sm:$0xff]
  %v30 = vld [vmem:[%s1 + $0x58] sm:$0xff]
  %v31 = vld [vmem:[%s1 + $0x60] sm:$0xff]
  %v32 = vld [vmem:[%s1 + $0x68] sm:$0xff]
  %v33 = vld [vmem:[%s1 + $0x70] sm:$0xff]
  %v34 = vld [vmem:[%s1 + $0x78] sm:$0xff]
  %v35 = vld [vmem:[%s1 + $0x80] sm:$0xff]
  %v36 = vld [vmem:[%s1 + $0x88] sm:$0xff]
  %v37 = vld [vmem:[%s1 + $0x90] sm:$0xff]
  %v38 = vld [vmem:[%s1 + $0x98] sm:$0xff]
  %v39 = vld [vmem:[%s1 + $0xa0] sm:$0xff]
  %v40 = vld [vmem:[%s1 + $0xa8] sm:$0xff]
  %v41 = vld [vmem:[%s1 + $0xb0] sm:$0xff]
  %v42 = vld [vmem:[%s1 + $0xb8] sm:$0xff]
  %v43 = vld [vmem:[%s1 + $0xc0] sm:$0xff]
  %v44 = vld [vmem:[%s1 + $0xc8] sm:$0xff]
  %v45 = vld [vmem:[%s1 + $0xd0] sm:$0xff]
  %v46 = vld [vmem:[%s1 + $0xd8] sm:$0xff]
  %v47 = vld [vmem:[%s1 + $0xe0] sm:$0xff]
  %v48 = vld [vmem:[%s1 + $0xe8] sm:$0xff]
  %v49 = vld [vmem:[%s1 + $0xf0] sm:$0xff]
  %v50 = vld [vmem:[%s1 + $0xf8] sm:$0xff]
  %v51 = vld [vmem:[%s1 + $0x100] sm:$0xff]
  %v52 = vld [vmem:[%s1 + $0x108] sm:$0xff]
  %v53 = vld [vmem:[%s1 + $0x110] sm:$0xff]
  %v54 = vld [vmem:[%s1 + $0x118] sm:$0xff]
  %v55 = vld [vmem:[%s1 + $0x120] sm:$0xff]
  %v56 = vld [vmem:[%s1 + $0x128] sm:$0xff]
  %v57 = vld [vmem:[%s1 + $0x130] sm:$0xff]
  %v58 = vld [vmem:[%s1 + $0x138] sm:$0x7]
  %v59 = vld [vmem:[%s1 + $0x140] sm:$0x7]
  %v60 = vld [vmem:[%s1 + $0x148] sm:$0x7]
  %v61 = vld [vmem:[%s1 + $0x150] sm:$0x7]
  %v62 = vld [vmem:[%s1 + $0x158] sm:$0x7]
  %v63 = vld [vmem:[%s1 + $0x160] sm:$0x7]
  %v64 = vld [vmem:[%s1 + $0x168] sm:$0x7]
  %v65 = vld [vmem:[%s1 + $0x170] sm:$0x7]
  %v66 = vld [vmem:[%s1 + $0x178] sm:$0x7]
  %v67 = vld [vmem:[%s1 + $0x180] sm:$0x7]
  %v68 = vld [vmem:[%s1 + $0x188] sm:$0x7]
  %v69 = vld [vmem:[%s1 + $0x190] sm:$0x7]
  %v70 = vld [vmem:[%s1 + $0x198] sm:$0x7]
  %vm71 = vcmask 220160
  %v73 = vsel %vm71, %v17, 0
  %v76 = vsel %vm71, %v18, 0
  %vm78 = vcmask 1042432
  %v80 = vsel %vm78, %v58, 0
  %v83 = vsel %vm78, %v59, 0
  %v86 = vsel %vm78, %v60, 0
  %v89 = vsel %vm78, %v61, 0
  %v92 = vsel %vm78, %v62, 0
  %v95 = vsel %vm78, %v63, 0
  %v98 = vsel %vm78, %v64, 0
  %v101 = vsel %vm78, %v65, 0
  %v104 = vsel %vm78, %v66, 0
  %v107 = vsel %vm78, %v67, 0
  %v110 = vsel %vm78, %v68, 0
  %v113 = vsel %vm78, %v69, 0
  %v116 = vsel %vm78, %v70, 0
  %118 = vmatprep.subr.mxu0 %v20
  %119 = vmatpush1.msra.mxu0 %v19
  %120 = vmatprep.subr.mxu0 %v33
  %121 = vmatpush1.msra.mxu0 %v32
  %122 = vmatprep.subr.mxu0 %v46
  %123 = vmatpush1.msra.mxu0 %v45
  %124 = vmatprep.subr.mxu0 %v83
  %125 = vmatpush1.msra.mxu0 %v80
  %126 = vmatprep.subr.mxu0 0.0
  %127 = vmatpush1.msra.mxu0 0.0
  %128 = vmatprep.subr.mxu0 0.0
  %129 = vmatpush1.msra.mxu0 0.0
  %130 = vmatprep.subr.mxu0 0.0
  %131 = vmatpush1.msra.mxu0 0.0
  %132 = vmatprep.subr.mxu0 0.0
  %133 = vmatpush1.msra.mxu0 0.0
  %134 = vmatprep.subr.mxu0 0.0
  %135 = vmatpush1.msra.mxu0 0.0
  %136 = vmatprep.subr.mxu0 0.0
  %137 = vmatpush1.msra.mxu0 0.0
  %138 = vmatprep.subr.mxu0 0.0
  %139 = vmatpush1.msra.mxu0 0.0
  %140 = vmatprep.subr.mxu0 0.0
  %141 = vmatpush1.msra.mxu0 0.0
  %142 = vmatprep.subr.mxu0 0.0
  %143 = vmatpush1.msra.mxu0 0.0
  %144 = vmatprep.subr.mxu0 0.0
  %145 = vmatpush1.msra.mxu0 0.0
  %146 = vmatprep.subr.mxu0 0.0
  %147 = vmatpush1.msra.mxu0 0.0
  %148 = vmatprep.subr.mxu0 0.0
  %149 = vmatpush1.msra.mxu0 0.0
  %150 = vmatprep.subr.mxu0 0.0
  %151 = vmatpush1.msra.mxu0 0.0
  %152 = vmatprep.subr.mxu0 0.0
  %153 = vmatpush1.msra.mxu0 0.0
  %154 = vmatprep.subr.mxu0 0.0
  %155 = vmatpush1.msra.mxu0 0.0
  %156 = vmatprep.subr.mxu0 0.0
  %157 = vmatpush1.msra.mxu0 0.0
  %158 = vmatprep.subr.mxu0 0.0
  %159 = vmatpush1.msra.mxu0 0.0
  %160 = vmatprep.subr.mxu0 0.0
  %161 = vmatpush1.msra.mxu0 0.0
  %162 = vmatprep.subr.mxu0 0.0
  %163 = vmatpush1.msra.mxu0 0.0
  %164 = vmatprep.subr.mxu0 0.0
  %165 = vmatpush1.msra.mxu0 0.0
  %166 = vmatprep.subr.mxu0 0.0
  %167 = vmatpush1.msra.mxu0 0.0
  %168 = vmatprep.subr.mxu0 0.0
  %169 = vmatpush1.msra.mxu0 0.0
  %170 = vmatprep.subr.mxu0 0.0
  %171 = vmatpush1.msra.mxu0 0.0
  %172 = vmatprep.subr.mxu0 0.0
  %173 = vmatpush1.msra.mxu0 0.0
  %174 = vmatprep.subr.mxu0 0.0
  %175 = vmatpush1.msra.mxu0 0.0
  %176 = vmatprep.subr.mxu0 0.0
  %177 = vmatpush1.msra.mxu0 0.0
  %178 = vmatprep.subr.mxu0 0.0
  %179 = vmatpush1.msra.mxu0 0.0
  %180 = vmatprep.subr.mxu0 0.0
  %181 = vmatpush1.msra.mxu0 0.0
  %182 = vmatprep.mubr.f32.mxu0 0.0
  %183 = vmatmul.mubr.f32.gmra.mrb[0].mxu0 %v73
  %v184 = vpop.f32.mrb[0].mxu0
  %v185 = vadd.f32 0.0, %v184
  %v186 = vpop.f32.mrb[0].mxu0
  %v187 = vadd.f32 0.0, %v186
  %188 = vmatprep.mubr.f32.mxu0 0.0
  %189 = vmatmul.mubr.f32.gmra.mrb[0].mxu0 %v76
  %v190 = vpop.f32.mrb[0].mxu0
  %v191 = vadd.f32 0.0, %v190
  %v192 = vpop.f32.mrb[0].mxu0
  %v193 = vadd.f32 0.0, %v192
  %194 = vdwg.mxu0
  %195 = vmatprep.subr.mxu0 %v22
  %196 = vmatpush1.msra.mxu0 %v21
  %197 = vmatprep.subr.mxu0 %v35
  %198 = vmatpush1.msra.mxu0 %v34
  %199 = vmatprep.subr.mxu0 %v48
  %200 = vmatpush1.msra.mxu0 %v47
  %201 = vmatprep.subr.mxu0 %v89
  %202 = vmatpush1.msra.mxu0 %v86
  %203 = vmatprep.subr.mxu0 0.0
  %204 = vmatpush1.msra.mxu0 0.0
  %205 = vmatprep.subr.mxu0 0.0
  %206 = vmatpush1.msra.mxu0 0.0
  %207 = vmatprep.subr.mxu0 0.0
  %208 = vmatpush1.msra.mxu0 0.0
  %209 = vmatprep.subr.mxu0 0.0
  %210 = vmatpush1.msra.mxu0 0.0
  %211 = vmatprep.subr.mxu0 0.0
  %212 = vmatpush1.msra.mxu0 0.0
  %213 = vmatprep.subr.mxu0 0.0
  %214 = vmatpush1.msra.mxu0 0.0
  %215 = vmatprep.subr.mxu0 0.0
  %216 = vmatpush1.msra.mxu0 0.0
  %217 = vmatprep.subr.mxu0 0.0
  %218 = vmatpush1.msra.mxu0 0.0
  %219 = vmatprep.subr.mxu0 0.0
  %220 = vmatpush1.msra.mxu0 0.0
  %221 = vmatprep.subr.mxu0 0.0
  %222 = vmatpush1.msra.mxu0 0.0
  %223 = vmatprep.subr.mxu0 0.0
  %224 = vmatpush1.msra.mxu0 0.0
  %225 = vmatprep.subr.mxu0 0.0
  %226 = vmatpush1.msra.mxu0 0.0
  %227 = vmatprep.subr.mxu0 0.0
  %228 = vmatpush1.msra.mxu0 0.0
  %229 = vmatprep.subr.mxu0 0.0
  %230 = vmatpush1.msra.mxu0 0.0
  %231 = vmatprep.subr.mxu0 0.0
  %232 = vmatpush1.msra.mxu0 0.0
  %233 = vmatprep.subr.mxu0 0.0
  %234 = vmatpush1.msra.mxu0 0.0
  %235 = vmatprep.subr.mxu0 0.0
  %236 = vmatpush1.msra.mxu0 0.0
  %237 = vmatprep.subr.mxu0 0.0
  %238 = vmatpush1.msra.mxu0 0.0
  %239 = vmatprep.subr.mxu0 0.0
  %240 = vmatpush1.msra.mxu0 0.0
  %241 = vmatprep.subr.mxu0 0.0
  %242 = vmatpush1.msra.mxu0 0.0
  %243 = vmatprep.subr.mxu0 0.0
  %244 = vmatpush1.msra.mxu0 0.0
  %245 = vmatprep.subr.mxu0 0.0
  %246 = vmatpush1.msra.mxu0 0.0
  %247 = vmatprep.subr.mxu0 0.0
  %248 = vmatpush1.msra.mxu0 0.0
  %249 = vmatprep.subr.mxu0 0.0
  %250 = vmatpush1.msra.mxu0 0.0
  %251 = vmatprep.subr.mxu0 0.0
  %252 = vmatpush1.msra.mxu0 0.0
  %253 = vmatprep.subr.mxu0 0.0
  %254 = vmatpush1.msra.mxu0 0.0
  %255 = vmatprep.subr.mxu0 0.0
  %256 = vmatpush1.msra.mxu0 0.0
  %257 = vmatprep.subr.mxu0 0.0
  %258 = vmatpush1.msra.mxu0 0.0
  %259 = vmatprep.mubr.f32.mxu0 0.0
  %260 = vmatmul.mubr.f32.gmra.mrb[0].mxu0 %v73
  %v261 = vpop.f32.mrb[0].mxu0
  %v262 = vadd.f32 0.0, %v261
  %v263 = vpop.f32.mrb[0].mxu0
  %v264 = vadd.f32 0.0, %v263
  %265 = vmatprep.mubr.f32.mxu0 0.0
  %266 = vmatmul.mubr.f32.gmra.mrb[0].mxu0 %v76
  %v267 = vpop.f32.mrb[0].mxu0
  %v268 = vadd.f32 0.0, %v267
  %v269 = vpop.f32.mrb[0].mxu0
  %v270 = vadd.f32 0.0, %v269
  %271 = vdwg.mxu0
  %272 = vmatprep.subr.mxu0 %v24
  %273 = vmatpush1.msra.mxu0 %v23
  %274 = vmatprep.subr.mxu0 %v37
  %275 = vmatpush1.msra.mxu0 %v36
  %276 = vmatprep.subr.mxu0 %v50
  %277 = vmatpush1.msra.mxu0 %v49
  %278 = vmatprep.subr.mxu0 %v95
  %279 = vmatpush1.msra.mxu0 %v92
  %280 = vmatprep.subr.mxu0 0.0
  %281 = vmatpush1.msra.mxu0 0.0
  %282 = vmatprep.subr.mxu0 0.0
  %283 = vmatpush1.msra.mxu0 0.0
  %284 = vmatprep.subr.mxu0 0.0
  %285 = vmatpush1.msra.mxu0 0.0
  %286 = vmatprep.subr.mxu0 0.0
  %287 = vmatpush1.msra.mxu0 0.0
  %288 = vmatprep.subr.mxu0 0.0
  %289 = vmatpush1.msra.mxu0 0.0
  %290 = vmatprep.subr.mxu0 0.0
  %291 = vmatpush1.msra.mxu0 0.0
  %292 = vmatprep.subr.mxu0 0.0
  %293 = vmatpush1.msra.mxu0 0.0
  %294 = vmatprep.subr.mxu0 0.0
  %295 = vmatpush1.msra.mxu0 0.0
  %296 = vmatprep.subr.mxu0 0.0
  %297 = vmatpush1.msra.mxu0 0.0
  %298 = vmatprep.subr.mxu0 0.0
  %299 = vmatpush1.msra.mxu0 0.0
  %300 = vmatprep.subr.mxu0 0.0
  %301 = vmatpush1.msra.mxu0 0.0
  %302 = vmatprep.subr.mxu0 0.0
  %303 = vmatpush1.msra.mxu0 0.0
  %304 = vmatprep.subr.mxu0 0.0
  %305 = vmatpush1.msra.mxu0 0.0
  %306 = vmatprep.subr.mxu0 0.0
  %307 = vmatpush1.msra.mxu0 0.0
  %308 = vmatprep.subr.mxu0 0.0
  %309 = vmatpush1.msra.mxu0 0.0
  %310 = vmatprep.subr.mxu0 0.0
  %311 = vmatpush1.msra.mxu0 0.0
  %312 = vmatprep.subr.mxu0 0.0
  %313 = vmatpush1.msra.mxu0 0.0
  %314 = vmatprep.subr.mxu0 0.0
  %315 = vmatpush1.msra.mxu0 0.0
  %316 = vmatprep.subr.mxu0 0.0
  %317 = vmatpush1.msra.mxu0 0.0
  %318 = vmatprep.subr.mxu0 0.0
  %319 = vmatpush1.msra.mxu0 0.0
  %320 = vmatprep.subr.mxu0 0.0
  %321 = vmatpush1.msra.mxu0 0.0
  %322 = vmatprep.subr.mxu0 0.0
  %323 = vmatpush1.msra.mxu0 0.0
  %324 = vmatprep.subr.mxu0 0.0
  %325 = vmatpush1.msra.mxu0 0.0
  %326 = vmatprep.subr.mxu0 0.0
  %327 = vmatpush1.msra.mxu0 0.0
  %328 = vmatprep.subr.mxu0 0.0
  %329 = vmatpush1.msra.mxu0 0.0
  %330 = vmatprep.subr.mxu0 0.0
  %331 = vmatpush1.msra.mxu0 0.0
  %332 = vmatprep.subr.mxu0 0.0
  %333 = vmatpush1.msra.mxu0 0.0
  %334 = vmatprep.subr.mxu0 0.0
  %335 = vmatpush1.msra.mxu0 0.0
  %336 = vmatprep.mubr.f32.mxu0 0.0
  %337 = vmatmul.mubr.f32.gmra.mrb[0].mxu0 %v73
  %v338 = vpop.f32.mrb[0].mxu0
  %v339 = vadd.f32 0.0, %v338
  %v340 = vpop.f32.mrb[0].mxu0
  %v341 = vadd.f32 0.0, %v340
  %342 = vmatprep.mubr.f32.mxu0 0.0
  %343 = vmatmul.mubr.f32.gmra.mrb[0].mxu0 %v76
  %v344 = vpop.f32.mrb[0].mxu0
  %v345 = vadd.f32 0.0, %v344
  %v346 = vpop.f32.mrb[0].mxu0
  %v347 = vadd.f32 0.0, %v346
  %348 = vdwg.mxu0
  %349 = vmatprep.subr.mxu0 %v26
  %350 = vmatpush1.msra.mxu0 %v25
  %351 = vmatprep.subr.mxu0 %v39
  %352 = vmatpush1.msra.mxu0 %v38
  %353 = vmatprep.subr.mxu0 %v52
  %354 = vmatpush1.msra.mxu0 %v51
  %355 = vmatprep.subr.mxu0 %v101
  %356 = vmatpush1.msra.mxu0 %v98
  %357 = vmatprep.subr.mxu0 0.0
  %358 = vmatpush1.msra.mxu0 0.0
  %359 = vmatprep.subr.mxu0 0.0
  %360 = vmatpush1.msra.mxu0 0.0
  %361 = vmatprep.subr.mxu0 0.0
  %362 = vmatpush1.msra.mxu0 0.0
  %363 = vmatprep.subr.mxu0 0.0
  %364 = vmatpush1.msra.mxu0 0.0
  %365 = vmatprep.subr.mxu0 0.0
  %366 = vmatpush1.msra.mxu0 0.0
  %367 = vmatprep.subr.mxu0 0.0
  %368 = vmatpush1.msra.mxu0 0.0
  %369 = vmatprep.subr.mxu0 0.0
  %370 = vmatpush1.msra.mxu0 0.0
  %371 = vmatprep.subr.mxu0 0.0
  %372 = vmatpush1.msra.mxu0 0.0
  %373 = vmatprep.subr.mxu0 0.0
  %374 = vmatpush1.msra.mxu0 0.0
  %375 = vmatprep.subr.mxu0 0.0
  %376 = vmatpush1.msra.mxu0 0.0
  %377 = vmatprep.subr.mxu0 0.0
  %378 = vmatpush1.msra.mxu0 0.0
  %379 = vmatprep.subr.mxu0 0.0
  %380 = vmatpush1.msra.mxu0 0.0
  %381 = vmatprep.subr.mxu0 0.0
  %382 = vmatpush1.msra.mxu0 0.0
  %383 = vmatprep.subr.mxu0 0.0
  %384 = vmatpush1.msra.mxu0 0.0
  %385 = vmatprep.subr.mxu0 0.0
  %386 = vmatpush1.msra.mxu0 0.0
  %387 = vmatprep.subr.mxu0 0.0
  %388 = vmatpush1.msra.mxu0 0.0
  %389 = vmatprep.subr.mxu0 0.0
  %390 = vmatpush1.msra.mxu0 0.0
  %391 = vmatprep.subr.mxu0 0.0
  %392 = vmatpush1.msra.mxu0 0.0
  %393 = vmatprep.subr.mxu0 0.0
  %394 = vmatpush1.msra.mxu0 0.0
  %395 = vmatprep.subr.mxu0 0.0
  %396 = vmatpush1.msra.mxu0 0.0
  %397 = vmatprep.subr.mxu0 0.0
  %398 = vmatpush1.msra.mxu0 0.0
  %399 = vmatprep.subr.mxu0 0.0
  %400 = vmatpush1.msra.mxu0 0.0
  %401 = vmatprep.subr.mxu0 0.0
  %402 = vmatpush1.msra.mxu0 0.0
  %403 = vmatprep.subr.mxu0 0.0
  %404 = vmatpush1.msra.mxu0 0.0
  %405 = vmatprep.subr.mxu0 0.0
  %406 = vmatpush1.msra.mxu0 0.0
  %407 = vmatprep.subr.mxu0 0.0
  %408 = vmatpush1.msra.mxu0 0.0
  %409 = vmatprep.subr.mxu0 0.0
  %410 = vmatpush1.msra.mxu0 0.0
  %411 = vmatprep.subr.mxu0 0.0
  %412 = vmatpush1.msra.mxu0 0.0
  %413 = vmatprep.mubr.f32.mxu0 0.0
  %414 = vmatmul.mubr.f32.gmra.mrb[0].mxu0 %v73
  %v415 = vpop.f32.mrb[0].mxu0
  %v416 = vadd.f32 0.0, %v415
  %v417 = vpop.f32.mrb[0].mxu0
  %v418 = vadd.f32 0.0, %v417
  %419 = vmatprep.mubr.f32.mxu0 0.0
  %420 = vmatmul.mubr.f32.gmra.mrb[0].mxu0 %v76
  %v421 = vpop.f32.mrb[0].mxu0
  %v422 = vadd.f32 0.0, %v421
  %v423 = vpop.f32.mrb[0].mxu0
  %v424 = vadd.f32 0.0, %v423
  %425 = vdwg.mxu0
  %426 = vmatprep.subr.mxu0 %v28
  %427 = vmatpush1.msra.mxu0 %v27
  %428 = vmatprep.subr.mxu0 %v41
  %429 = vmatpush1.msra.mxu0 %v40
  %430 = vmatprep.subr.mxu0 %v54
  %431 = vmatpush1.msra.mxu0 %v53
  %432 = vmatprep.subr.mxu0 %v107
  %433 = vmatpush1.msra.mxu0 %v104
  %434 = vmatprep.subr.mxu0 0.0
  %435 = vmatpush1.msra.mxu0 0.0
  %436 = vmatprep.subr.mxu0 0.0
  %437 = vmatpush1.msra.mxu0 0.0
  %438 = vmatprep.subr.mxu0 0.0
  %439 = vmatpush1.msra.mxu0 0.0
  %440 = vmatprep.subr.mxu0 0.0
  %441 = vmatpush1.msra.mxu0 0.0
  %442 = vmatprep.subr.mxu0 0.0
  %443 = vmatpush1.msra.mxu0 0.0
  %444 = vmatprep.subr.mxu0 0.0
  %445 = vmatpush1.msra.mxu0 0.0
  %446 = vmatprep.subr.mxu0 0.0
  %447 = vmatpush1.msra.mxu0 0.0
  %448 = vmatprep.subr.mxu0 0.0
  %449 = vmatpush1.msra.mxu0 0.0
  %450 = vmatprep.subr.mxu0 0.0
  %451 = vmatpush1.msra.mxu0 0.0
  %452 = vmatprep.subr.mxu0 0.0
  %453 = vmatpush1.msra.mxu0 0.0
  %454 = vmatprep.subr.mxu0 0.0
  %455 = vmatpush1.msra.mxu0 0.0
  %456 = vmatprep.subr.mxu0 0.0
  %457 = vmatpush1.msra.mxu0 0.0
  %458 = vmatprep.subr.mxu0 0.0
  %459 = vmatpush1.msra.mxu0 0.0
  %460 = vmatprep.subr.mxu0 0.0
  %461 = vmatpush1.msra.mxu0 0.0
  %462 = vmatprep.subr.mxu0 0.0
  %463 = vmatpush1.msra.mxu0 0.0
  %464 = vmatprep.subr.mxu0 0.0
  %465 = vmatpush1.msra.mxu0 0.0
  %466 = vmatprep.subr.mxu0 0.0
  %467 = vmatpush1.msra.mxu0 0.0
  %468 = vmatprep.subr.mxu0 0.0
  %469 = vmatpush1.msra.mxu0 0.0
  %470 = vmatprep.subr.mxu0 0.0
  %471 = vmatpush1.msra.mxu0 0.0
  %472 = vmatprep.subr.mxu0 0.0
  %473 = vmatpush1.msra.mxu0 0.0
  %474 = vmatprep.subr.mxu0 0.0
  %475 = vmatpush1.msra.mxu0 0.0
  %476 = vmatprep.subr.mxu0 0.0
  %477 = vmatpush1.msra.mxu0 0.0
  %478 = vmatprep.subr.mxu0 0.0
  %479 = vmatpush1.msra.mxu0 0.0
  %480 = vmatprep.subr.mxu0 0.0
  %481 = vmatpush1.msra.mxu0 0.0
  %482 = vmatprep.subr.mxu0 0.0
  %483 = vmatpush1.msra.mxu0 0.0
  %484 = vmatprep.subr.mxu0 0.0
  %485 = vmatpush1.msra.mxu0 0.0
  %486 = vmatprep.subr.mxu0 0.0
  %487 = vmatpush1.msra.mxu0 0.0
  %488 = vmatprep.subr.mxu0 0.0
  %489 = vmatpush1.msra.mxu0 0.0
  %490 = vmatprep.mubr.f32.mxu0 0.0
  %491 = vmatmul.mubr.f32.gmra.mrb[0].mxu0 %v73
  %v492 = vpop.f32.mrb[0].mxu0
  %v493 = vadd.f32 0.0, %v492
  %v494 = vpop.f32.mrb[0].mxu0
  %v495 = vadd.f32 0.0, %v494
  %496 = vmatprep.mubr.f32.mxu0 0.0
  %497 = vmatmul.mubr.f32.gmra.mrb[0].mxu0 %v76
  %v498 = vpop.f32.mrb[0].mxu0
  %v499 = vadd.f32 0.0, %v498
  %v500 = vpop.f32.mrb[0].mxu0
  %v501 = vadd.f32 0.0, %v500
  %502 = vdwg.mxu0
  %503 = vmatprep.subr.mxu0 %v30
  %504 = vmatpush1.msra.mxu0 %v29
  %505 = vmatprep.subr.mxu0 %v43
  %506 = vmatpush1.msra.mxu0 %v42
  %507 = vmatprep.subr.mxu0 %v56
  %508 = vmatpush1.msra.mxu0 %v55
  %509 = vmatprep.subr.mxu0 %v113
  %510 = vmatpush1.msra.mxu0 %v110
  %511 = vmatprep.subr.mxu0 0.0
  %512 = vmatpush1.msra.mxu0 0.0
  %513 = vmatprep.subr.mxu0 0.0
  %514 = vmatpush1.msra.mxu0 0.0
  %515 = vmatprep.subr.mxu0 0.0
  %516 = vmatpush1.msra.mxu0 0.0
  %517 = vmatprep.subr.mxu0 0.0
  %518 = vmatpush1.msra.mxu0 0.0
  %519 = vmatprep.subr.mxu0 0.0
  %520 = vmatpush1.msra.mxu0 0.0
  %521 = vmatprep.subr.mxu0 0.0
  %522 = vmatpush1.msra.mxu0 0.0
  %523 = vmatprep.subr.mxu0 0.0
  %524 = vmatpush1.msra.mxu0 0.0
  %525 = vmatprep.subr.mxu0 0.0
  %526 = vmatpush1.msra.mxu0 0.0
  %527 = vmatprep.subr.mxu0 0.0
  %528 = vmatpush1.msra.mxu0 0.0
  %529 = vmatprep.subr.mxu0 0.0
  %530 = vmatpush1.msra.mxu0 0.0
  %531 = vmatprep.subr.mxu0 0.0
  %532 = vmatpush1.msra.mxu0 0.0
  %533 = vmatprep.subr.mxu0 0.0
  %534 = vmatpush1.msra.mxu0 0.0
  %535 = vmatprep.subr.mxu0 0.0
  %536 = vmatpush1.msra.mxu0 0.0
  %537 = vmatprep.subr.mxu0 0.0
  %538 = vmatpush1.msra.mxu0 0.0
  %539 = vmatprep.subr.mxu0 0.0
  %540 = vmatpush1.msra.mxu0 0.0
  %541 = vmatprep.subr.mxu0 0.0
  %542 = vmatpush1.msra.mxu0 0.0
  %543 = vmatprep.subr.mxu0 0.0
  %544 = vmatpush1.msra.mxu0 0.0
  %545 = vmatprep.subr.mxu0 0.0
  %546 = vmatpush1.msra.mxu0 0.0
  %547 = vmatprep.subr.mxu0 0.0
  %548 = vmatpush1.msra.mxu0 0.0
  %549 = vmatprep.subr.mxu0 0.0
  %550 = vmatpush1.msra.mxu0 0.0
  %551 = vmatprep.subr.mxu0 0.0
  %552 = vmatpush1.msra.mxu0 0.0
  %553 = vmatprep.subr.mxu0 0.0
  %554 = vmatpush1.msra.mxu0 0.0
  %555 = vmatprep.subr.mxu0 0.0
  %556 = vmatpush1.msra.mxu0 0.0
  %557 = vmatprep.subr.mxu0 0.0
  %558 = vmatpush1.msra.mxu0 0.0
  %559 = vmatprep.subr.mxu0 0.0
  %560 = vmatpush1.msra.mxu0 0.0
  %561 = vmatprep.subr.mxu0 0.0
  %562 = vmatpush1.msra.mxu0 0.0
  %563 = vmatprep.subr.mxu0 0.0
  %564 = vmatpush1.msra.mxu0 0.0
  %565 = vmatprep.subr.mxu0 0.0
  %566 = vmatpush1.msra.mxu0 0.0
  %567 = vmatprep.mubr.f32.mxu0 0.0
  %568 = vmatmul.mubr.f32.gmra.mrb[0].mxu0 %v73
  %v569 = vpop.f32.mrb[0].mxu0
  %v570 = vadd.f32 0.0, %v569
  %v571 = vpop.f32.mrb[0].mxu0
  %v572 = vadd.f32 0.0, %v571
  %573 = vmatprep.mubr.f32.mxu0 0.0
  %574 = vmatmul.mubr.f32.gmra.mrb[0].mxu0 %v76
  %v575 = vpop.f32.mrb[0].mxu0
  %v576 = vadd.f32 0.0, %v575
  %v577 = vpop.f32.mrb[0].mxu0
  %v578 = vadd.f32 0.0, %v577
  %579 = vdwg.mxu0
  %580 = vmatprep.subr.mxu0 0.0
  %581 = vmatpush1.msra.mxu0 %v31
  %582 = vmatprep.subr.mxu0 0.0
  %583 = vmatpush1.msra.mxu0 %v44
  %584 = vmatprep.subr.mxu0 0.0
  %585 = vmatpush1.msra.mxu0 %v57
  %586 = vmatprep.subr.mxu0 0.0
  %587 = vmatpush1.msra.mxu0 %v116
  %588 = vmatprep.subr.mxu0 0.0
  %589 = vmatpush1.msra.mxu0 0.0
  %590 = vmatprep.subr.mxu0 0.0
  %591 = vmatpush1.msra.mxu0 0.0
  %592 = vmatprep.subr.mxu0 0.0
  %593 = vmatpush1.msra.mxu0 0.0
  %594 = vmatprep.subr.mxu0 0.0
  %595 = vmatpush1.msra.mxu0 0.0
  %596 = vmatprep.subr.mxu0 0.0
  %597 = vmatpush1.msra.mxu0 0.0
  %598 = vmatprep.subr.mxu0 0.0
  %599 = vmatpush1.msra.mxu0 0.0
  %600 = vmatprep.subr.mxu0 0.0
  %601 = vmatpush1.msra.mxu0 0.0
  %602 = vmatprep.subr.mxu0 0.0
  %603 = vmatpush1.msra.mxu0 0.0
  %604 = vmatprep.subr.mxu0 0.0
  %605 = vmatpush1.msra.mxu0 0.0
  %606 = vmatprep.subr.mxu0 0.0
  %607 = vmatpush1.msra.mxu0 0.0
  %608 = vmatprep.subr.mxu0 0.0
  %609 = vmatpush1.msra.mxu0 0.0
  %610 = vmatprep.subr.mxu0 0.0
  %611 = vmatpush1.msra.mxu0 0.0
  %612 = vmatprep.subr.mxu0 0.0
  %613 = vmatpush1.msra.mxu0 0.0
  %614 = vmatprep.subr.mxu0 0.0
  %615 = vmatpush1.msra.mxu0 0.0
  %616 = vmatprep.subr.mxu0 0.0
  %617 = vmatpush1.msra.mxu0 0.0
  %618 = vmatprep.subr.mxu0 0.0
  %619 = vmatpush1.msra.mxu0 0.0
  %620 = vmatprep.subr.mxu0 0.0
  %621 = vmatpush1.msra.mxu0 0.0
  %622 = vmatprep.subr.mxu0 0.0
  %623 = vmatpush1.msra.mxu0 0.0
  %624 = vmatprep.subr.mxu0 0.0
  %625 = vmatpush1.msra.mxu0 0.0
  %626 = vmatprep.subr.mxu0 0.0
  %627 = vmatpush1.msra.mxu0 0.0
  %628 = vmatprep.subr.mxu0 0.0
  %629 = vmatpush1.msra.mxu0 0.0
  %630 = vmatprep.subr.mxu0 0.0
  %631 = vmatpush1.msra.mxu0 0.0
  %632 = vmatprep.subr.mxu0 0.0
  %633 = vmatpush1.msra.mxu0 0.0
  %634 = vmatprep.subr.mxu0 0.0
  %635 = vmatpush1.msra.mxu0 0.0
  %636 = vmatprep.subr.mxu0 0.0
  %637 = vmatpush1.msra.mxu0 0.0
  %638 = vmatprep.subr.mxu0 0.0
  %639 = vmatpush1.msra.mxu0 0.0
  %640 = vmatprep.subr.mxu0 0.0
  %641 = vmatpush1.msra.mxu0 0.0
  %642 = vmatprep.subr.mxu0 0.0
  %643 = vmatpush1.msra.mxu0 0.0
  %644 = vmatprep.mubr.f32.mxu0 0.0
  %645 = vmatmul.mubr.f32.gmra.mrb[0].mxu0 %v73
  %v646 = vpop.f32.mrb[0].mxu0
  %v647 = vadd.f32 0.0, %v646
  %v648 = vpop.f32.mrb[0].mxu0
  %649 = vmatprep.mubr.f32.mxu0 0.0
  %650 = vmatmul.mubr.f32.gmra.mrb[0].mxu0 %v76
  %v651 = vpop.f32.mrb[0].mxu0
  %v652 = vadd.f32 0.0, %v651
  %v653 = vpop.f32.mrb[0].mxu0
  %654 = vdwg.mxu0
  %v655 = vadd.f32 %v185, %v187
  %v656 = vadd.f32 %v655, %v262
  %v657 = vadd.f32 %v656, %v264
  %v658 = vadd.f32 %v657, %v339
  %v659 = vadd.f32 %v658, %v341
  %v660 = vadd.f32 %v659, %v416
  %v661 = vadd.f32 %v660, %v418
  %v662 = vadd.f32 %v661, %v493
  %v663 = vadd.f32 %v662, %v495
  %v664 = vadd.f32 %v663, %v570
  %v665 = vadd.f32 %v664, %v572
  %vm666 = vcmask 261120
  %v667 = vsel %vm666, %v647, 0.0
  %v668 = vadd.f32 %v665, %v667
  %669 = vadd.xlane.f32.xlu0 %v668
  %v670 = vpop.xlane.xlu0 %669
  %v671 = vadd.f32 %v191, %v193
  %v672 = vadd.f32 %v671, %v268
  %v673 = vadd.f32 %v672, %v270
  %v674 = vadd.f32 %v673, %v345
  %v675 = vadd.f32 %v674, %v347
  %v676 = vadd.f32 %v675, %v422
  %v677 = vadd.f32 %v676, %v424
  %v678 = vadd.f32 %v677, %v499
  %v679 = vadd.f32 %v678, %v501
  %v680 = vadd.f32 %v679, %v576
  %v681 = vadd.f32 %v680, %v578
  %v682 = vsel %vm666, %v652, 0.0
  %v683 = vadd.f32 %v681, %v682
  %684 = vadd.xlane.f32.xlu0 %v683
  %v685 = vpop.xlane.xlu0 %684
  %v686 = vrcp.pop 1568.0
  %v687 = vmul.f32 %v670, %v686
  %v688 = vmul.f32 %v685, %v686
  %v689 = vsub.f32 %v185, %v687
  %v690 = vsub.f32 %v187, %v687
  %v691 = vsub.f32 %v262, %v687
  %v692 = vsub.f32 %v264, %v687
  %v693 = vsub.f32 %v339, %v687
  %v694 = vsub.f32 %v341, %v687
  %v695 = vsub.f32 %v416, %v687
  %v696 = vsub.f32 %v418, %v687
  %v697 = vsub.f32 %v493, %v687
  %v698 = vsub.f32 %v495, %v687
  %v699 = vsub.f32 %v570, %v687
  %v700 = vsub.f32 %v572, %v687
  %v701 = vsub.f32 %v647, %v687
  %v702 = vsub.f32 %v191, %v688
  %v703 = vsub.f32 %v193, %v688
  %v704 = vsub.f32 %v268, %v688
  %v705 = vsub.f32 %v270, %v688
  %v706 = vsub.f32 %v345, %v688
  %v707 = vsub.f32 %v347, %v688
  %v708 = vsub.f32 %v422, %v688
  %v709 = vsub.f32 %v424, %v688
  %v710 = vsub.f32 %v499, %v688
  %v711 = vsub.f32 %v501, %v688
  %v712 = vsub.f32 %v576, %v688
  %v713 = vsub.f32 %v578, %v688
  %v714 = vsub.f32 %v652, %v688
  %v715 = vmul.f32 %v689, %v689
  %v716 = vmul.f32 %v690, %v690
  %v717 = vmul.f32 %v691, %v691
  %v718 = vmul.f32 %v692, %v692
  %v719 = vmul.f32 %v693, %v693
  %v720 = vmul.f32 %v694, %v694
  %v721 = vmul.f32 %v695, %v695
  %v722 = vmul.f32 %v696, %v696
  %v723 = vmul.f32 %v697, %v697
  %v724 = vmul.f32 %v698, %v698
  %v725 = vmul.f32 %v699, %v699
  %v726 = vmul.f32 %v700, %v700
  %v727 = vmul.f32 %v701, %v701
  %v728 = vmul.f32 %v702, %v702
  %v729 = vmul.f32 %v703, %v703
  %v730 = vmul.f32 %v704, %v704
  %v731 = vmul.f32 %v705, %v705
  %v732 = vmul.f32 %v706, %v706
  %v733 = vmul.f32 %v707, %v707
  %v734 = vmul.f32 %v708, %v708
  %v735 = vmul.f32 %v709, %v709
  %v736 = vmul.f32 %v710, %v710
  %v737 = vmul.f32 %v711, %v711
  %v738 = vmul.f32 %v712, %v712
  %v739 = vmul.f32 %v713, %v713
  %v740 = vmul.f32 %v714, %v714
  %v741 = vadd.f32 %v715, %v716
  %v742 = vadd.f32 %v741, %v717
  %v743 = vadd.f32 %v742, %v718
  %v744 = vadd.f32 %v743, %v719
  %v745 = vadd.f32 %v744, %v720
  %v746 = vadd.f32 %v745, %v721
  %v747 = vadd.f32 %v746, %v722
  %v748 = vadd.f32 %v747, %v723
  %v749 = vadd.f32 %v748, %v724
  %v750 = vadd.f32 %v749, %v725
  %v751 = vadd.f32 %v750, %v726
  %v752 = vsel %vm666, %v727, 0.0
  %v753 = vadd.f32 %v751, %v752
  %754 = vadd.xlane.f32.xlu0 %v753
  %v755 = vpop.xlane.xlu0 %754
  %v756 = vadd.f32 %v728, %v729
  %v757 = vadd.f32 %v756, %v730
  %v758 = vadd.f32 %v757, %v731
  %v759 = vadd.f32 %v758, %v732
  %v760 = vadd.f32 %v759, %v733
  %v761 = vadd.f32 %v760, %v734
  %v762 = vadd.f32 %v761, %v735
  %v763 = vadd.f32 %v762, %v736
  %v764 = vadd.f32 %v763, %v737
  %v765 = vadd.f32 %v764, %v738
  %v766 = vadd.f32 %v765, %v739
  %v767 = vsel %vm666, %v740, 0.0
  %v768 = vadd.f32 %v766, %v767
  %769 = vadd.xlane.f32.xlu0 %v768
  %v770 = vpop.xlane.xlu0 %769
  %v771 = vmul.f32 %v755, %v686
  %v772 = vmul.f32 %v770, %v686
  %v773 = vld [vmem:[%s2] sm:$0xff]
  %v774 = vld [vmem:[%s2 + $0x8] sm:$0xff]
  %v775 = vadd.f32 %v771, 1e-05
  %v776 = vadd.f32 %v772, 1e-05
  %v777 = vrsqrt.pop %v775
  %v778 = vrsqrt.pop %v776
  %v779 = vmul.f32 %v773, %v777
  %v780 = vmul.f32 %v774, %v778
  %v781 = vld [vmem:[%s3] sm:$0xff]
  %v782 = vld [vmem:[%s3 + $0x8] sm:$0xff]
  %v783 = vmul.f32 %v687, %v779
  %v784 = vmul.f32 %v688, %v780
  %v785 = vsub.f32 %v781, %v783
  %v786 = vsub.f32 %v782, %v784
  %788 = vset.pattern.permute.xlu0 0
  %789 = vperm.xlu0 %788, %v779
  %v790 = vpop.permute.xlu0 %789
  %793 = vset.pattern.permute.xlu0 0
  %794 = vperm.xlu0 %793, %v780
  %v795 = vpop.permute.xlu0 %794
  %v797 = vmul.f32 %v185, %v790
  %v798 = vmul.f32 %v187, %v790
  %v799 = vmul.f32 %v262, %v790
  %v800 = vmul.f32 %v264, %v790
  %v801 = vmul.f32 %v339, %v790
  %v802 = vmul.f32 %v341, %v790
  %v803 = vmul.f32 %v416, %v790
  %v804 = vmul.f32 %v418, %v790
  %v805 = vmul.f32 %v493, %v790
  %v806 = vmul.f32 %v495, %v790
  %v807 = vmul.f32 %v570, %v790
  %v808 = vmul.f32 %v572, %v790
  %v809 = vmul.f32 %v647, %v790
  %v810 = vmul.f32 %v191, %v795
  %v811 = vmul.f32 %v193, %v795
  %v812 = vmul.f32 %v268, %v795
  %v813 = vmul.f32 %v270, %v795
  %v814 = vmul.f32 %v345, %v795
  %v815 = vmul.f32 %v347, %v795
  %v816 = vmul.f32 %v422, %v795
  %v817 = vmul.f32 %v424, %v795
  %v818 = vmul.f32 %v499, %v795
  %v819 = vmul.f32 %v501, %v795
  %v820 = vmul.f32 %v576, %v795
  %v821 = vmul.f32 %v578, %v795
  %v822 = vmul.f32 %v652, %v795
  %824 = vset.pattern.permute.xlu0 0
  %825 = vperm.xlu0 %824, %v785
  %v826 = vpop.permute.xlu0 %825
  %829 = vset.pattern.permute.xlu0 0
  %830 = vperm.xlu0 %829, %v786
  %v831 = vpop.permute.xlu0 %830
  %v833 = vadd.f32 %v797, %v826
  %v834 = vadd.f32 %v798, %v826
  %v835 = vadd.f32 %v799, %v826
  %v836 = vadd.f32 %v800, %v826
  %v837 = vadd.f32 %v801, %v826
  %v838 = vadd.f32 %v802, %v826
  %v839 = vadd.f32 %v803, %v826
  %v840 = vadd.f32 %v804, %v826
  %v841 = vadd.f32 %v805, %v826
  %v842 = vadd.f32 %v806, %v826
  %v843 = vadd.f32 %v807, %v826
  %v844 = vadd.f32 %v808, %v826
  %v845 = vadd.f32 %v809, %v826
  %v846 = vadd.f32 %v810, %v831
  %v847 = vadd.f32 %v811, %v831
  %v848 = vadd.f32 %v812, %v831
  %v849 = vadd.f32 %v813, %v831
  %v850 = vadd.f32 %v814, %v831
  %v851 = vadd.f32 %v815, %v831
  %v852 = vadd.f32 %v816, %v831
  %v853 = vadd.f32 %v817, %v831
  %v854 = vadd.f32 %v818, %v831
  %v855 = vadd.f32 %v819, %v831
  %v856 = vadd.f32 %v820, %v831
  %v857 = vadd.f32 %v821, %v831
  %v858 = vadd.f32 %v822, %v831
  %v859 = vmax.f32 %v833, 0.0
  %v860 = vmax.f32 %v834, 0.0
  %v861 = vmax.f32 %v835, 0.0
  %v862 = vmax.f32 %v836, 0.0
  %v863 = vmax.f32 %v837, 0.0
  %v864 = vmax.f32 %v838, 0.0
  %v865 = vmax.f32 %v839, 0.0
  %v866 = vmax.f32 %v840, 0.0
  %v867 = vmax.f32 %v841, 0.0
  %v868 = vmax.f32 %v842, 0.0
  %v869 = vmax.f32 %v843, 0.0
  %v870 = vmax.f32 %v844, 0.0
  %v871 = vmax.f32 %v845, 0.0
  %v872 = vmax.f32 %v846, 0.0
  %v873 = vmax.f32 %v847, 0.0
  %v874 = vmax.f32 %v848, 0.0
  %v875 = vmax.f32 %v849, 0.0
  %v876 = vmax.f32 %v850, 0.0
  %v877 = vmax.f32 %v851, 0.0
  %v878 = vmax.f32 %v852, 0.0
  %v879 = vmax.f32 %v853, 0.0
  %v880 = vmax.f32 %v854, 0.0
  %v881 = vmax.f32 %v855, 0.0
  %v882 = vmax.f32 %v856, 0.0
  %v883 = vmax.f32 %v857, 0.0
  %v884 = vmax.f32 %v858, 0.0
  %885 = vst [vmem:[%s4] sm:$0xff] %v859
  %886 = vst [vmem:[%s4 + $0x8] sm:$0xff] %v860
  %887 = vst [vmem:[%s4 + $0x10] sm:$0xff] %v861
  %888 = vst [vmem:[%s4 + $0x18] sm:$0xff] %v862
  %889 = vst [vmem:[%s4 + $0x20] sm:$0xff] %v863
  %890 = vst [vmem:[%s4 + $0x28] sm:$0xff] %v864
  %891 = vst [vmem:[%s4 + $0x30] sm:$0xff] %v865
  %892 = vst [vmem:[%s4 + $0x38] sm:$0xff] %v866
  %893 = vst [vmem:[%s4 + $0x40] sm:$0xff] %v867
  %894 = vst [vmem:[%s4 + $0x48] sm:$0xff] %v868
  %895 = vst [vmem:[%s4 + $0x50] sm:$0xff] %v869
  %896 = vst [vmem:[%s4 + $0x58] sm:$0xff] %v870
  %897 = vst.msk [vmem:[%s4 + $0x60] sm:$0xff] %vm666, %v871
  %898 = vst [vmem:[%s4 + $0x68] sm:$0xff] %v872
  %899 = vst [vmem:[%s4 + $0x70] sm:$0xff] %v873
  %900 = vst [vmem:[%s4 + $0x78] sm:$0xff] %v874
  %901 = vst [vmem:[%s4 + $0x80] sm:$0xff] %v875
  %902 = vst [vmem:[%s4 + $0x88] sm:$0xff] %v876
  %903 = vst [vmem:[%s4 + $0x90] sm:$0xff] %v877
  %904 = vst [vmem:[%s4 + $0x98] sm:$0xff] %v878
  %905 = vst [vmem:[%s4 + $0xa0] sm:$0xff] %v879
  %906 = vst [vmem:[%s4 + $0xa8] sm:$0xff] %v880
  %907 = vst [vmem:[%s4 + $0xb0] sm:$0xff] %v881
  %908 = vst [vmem:[%s4 + $0xb8] sm:$0xff] %v882
  %909 = vst [vmem:[%s4 + $0xc0] sm:$0xff] %v883
  %910 = vst.msk [vmem:[%s4 + $0xc8] sm:$0xff] %vm666, %v884
  // Predicated region
  $region18: #{vae_cnn_forward.11} parent=0 // pred_check
    _
  $region19: #{vae_cnn_forward.11} parent=0 // pred_check_branch
    %912 = sbr.rel (0) target = $region21
  $region20: #{vae_cnn_forward.11} parent=0 // pred_region
    _
  $region21: #{vae_cnn_forward.11} parent=0 // pred_fallthru
    _
  // Predicated region
  $region22: #{vae_cnn_forward.11} parent=0 // pred_check
    _
  $region23: #{vae_cnn_forward.11} parent=0 // pred_check_branch
    %914 = sbr.rel (0) target = $region25
  $region24: #{vae_cnn_forward.11} parent=0 // pred_region
    _
  $region25: #{vae_cnn_forward.11} parent=0 // pred_fallthru
    _

// kernel: vae_cnn_forward.12
$region0: #{vae_cnn_forward.12}
  #allocation0 [shape = 'u32[]', space=smem, size = 0x4, offset = 0x4, fixed_abs, tag = 'smem constant byte address 0x4 - core index']
  #allocation1 [shape = 'u32[144,128]{1,0:T(1,128)}', space=vmem, size = 0x12000, scoped, tag = 'internal scratch']
  %s0 = inlined_call_operand.vmem [shape: f32[32,144], index: 0, kind: input, shape index: {}]
  %s1 = inlined_call_operand.vmem [shape: f32[144,392], index: 1, kind: input, shape index: {}]
  %s2 = inlined_call_operand.vmem [shape: f32[32,1], index: 2, kind: input, shape index: {}]
  %s3 = inlined_call_operand.vmem [shape: f32[32,1], index: 3, kind: input, shape index: {}]
  %s4 = inlined_call_operand.vmem [shape: f32[32,392], index: 4, kind: output, shape index: {}]
  %s5 = sld [smem:[#allocation0]]
  $region26: #{vae_cnn_forward.12} parent=0
    _
  %s7 = ssub.s32 1, %s5
  %s8 = scalar_select 0, %s7, %s5
  // Predicated region
  $region2: #{vae_cnn_forward.12} parent=0 // pred_check
    _
  $region3: #{vae_cnn_forward.12} parent=0 // pred_check_branch
    %10 = sbr.rel (0) target = $region5
  $region4: #{vae_cnn_forward.12} parent=0 // pred_region
    _
  $region5: #{vae_cnn_forward.12} parent=0 // pred_fallthru
    _
  // Predicated region
  $region6: #{vae_cnn_forward.12} parent=0 // pred_check
    _
  $region7: #{vae_cnn_forward.12} parent=0 // pred_check_branch
    %12 = sbr.rel (0) target = $region9
  $region8: #{vae_cnn_forward.12} parent=0 // pred_region
    _
  $region9: #{vae_cnn_forward.12} parent=0 // pred_fallthru
    _
  // Predicated region
  $region10: #{vae_cnn_forward.12} parent=0 // pred_check
    _
  $region11: #{vae_cnn_forward.12} parent=0 // pred_check_branch
    %14 = sbr.rel (0) target = $region13
  $region12: #{vae_cnn_forward.12} parent=0 // pred_region
    _
  $region13: #{vae_cnn_forward.12} parent=0 // pred_fallthru
    _
  // Predicated region
  $region14: #{vae_cnn_forward.12} parent=0 // pred_check
    _
  $region15: #{vae_cnn_forward.12} parent=0 // pred_check_branch
    %16 = sbr.rel (0) target = $region17
  $region16: #{vae_cnn_forward.12} parent=0 // pred_region
    _
  $region17: #{vae_cnn_forward.12} parent=0 // pred_fallthru
    _
  %v17 = vld [vmem:[%s0] sm:$0xff]
  %v18 = vld [vmem:[%s0 + $0x8] sm:$0xff]
  %v19 = vld [vmem:[%s0 + $0x10] sm:$0xff]
  %v20 = vld [vmem:[%s0 + $0x18] sm:$0xff]
  %v21 = vld [vmem:[%s0 + $0x20] sm:$0xff]
  %v22 = vld [vmem:[%s0 + $0x28] sm:$0xff]
  %v23 = vld [vmem:[%s0 + $0x30] sm:$0xff]
  %v24 = vld [vmem:[%s0 + $0x38] sm:$0xff]
  %v25 = vld [vmem:[%s1] sm:$0xff]
  %v26 = vld [vmem:[%s1 + $0x8] sm:$0xff]
  %v27 = vld [vmem:[%s1 + $0x10] sm:$0xff]
  %v28 = vld [vmem:[%s1 + $0x18] sm:$0xff]
  %v29 = vld [vmem:[%s1 + $0x20] sm:$0xff]
  %v30 = vld [vmem:[%s1 + $0x28] sm:$0xff]
  %v31 = vld [vmem:[%s1 + $0x30] sm:$0xff]
  %v32 = vld [vmem:[%s1 + $0x38] sm:$0xff]
  %v33 = vld [vmem:[%s1 + $0x40] sm:$0xff]
  %v34 = vld [vmem:[%s1 + $0x48] sm:$0xff]
  %v35 = vld [vmem:[%s1 + $0x50] sm:$0xff]
  %v36 = vld [vmem:[%s1 + $0x58] sm:$0xff]
  %v37 = vld [vmem:[%s1 + $0x60] sm:$0xff]
  %v38 = vld [vmem:[%s1 + $0x68] sm:$0xff]
  %v39 = vld [vmem:[%s1 + $0x70] sm:$0xff]
  %v40 = vld [vmem:[%s1 + $0x78] sm:$0xff]
  %v41 = vld [vmem:[%s1 + $0x80] sm:$0xff]
  %v42 = vld [vmem:[%s1 + $0x88] sm:$0xff]
  %v43 = vld [vmem:[%s1 + $0x90] sm:$0xff]
  %v44 = vld [vmem:[%s1 + $0x98] sm:$0xff]
  %v45 = vld [vmem:[%s1 + $0xa0] sm:$0xff]
  %v46 = vld [vmem:[%s1 + $0xa8] sm:$0xff]
  %v47 = vld [vmem:[%s1 + $0xb0] sm:$0xff]
  %v48 = vld [vmem:[%s1 + $0xb8] sm:$0xff]
  %v49 = vld [vmem:[%s1 + $0xc0] sm:$0xff]
  %v50 = vld [vmem:[%s1 + $0xc8] sm:$0xff]
  %v51 = vld [vmem:[%s1 + $0xd0] sm:$0xff]
  %v52 = vld [vmem:[%s1 + $0xd8] sm:$0xff]
  %v53 = vld [vmem:[%s1 + $0xe0] sm:$0xff]
  %v54 = vld [vmem:[%s1 + $0xe8] sm:$0xff]
  %v55 = vld [vmem:[%s1 + $0xf0] sm:$0xff]
  %v56 = vld [vmem:[%s1 + $0xf8] sm:$0xff]
  %v57 = vld [vmem:[%s1 + $0x100] sm:$0xff]
  %v58 = vld [vmem:[%s1 + $0x108] sm:$0xff]
  %v59 = vld [vmem:[%s1 + $0x110] sm:$0xff]
  %v60 = vld [vmem:[%s1 + $0x118] sm:$0xff]
  %v61 = vld [vmem:[%s1 + $0x120] sm:$0xff]
  %v62 = vld [vmem:[%s1 + $0x128] sm:$0xff]
  %v63 = vld [vmem:[%s1 + $0x130] sm:$0xff]
  %v64 = vld [vmem:[%s1 + $0x138] sm:$0xff]
  %v65 = vld [vmem:[%s1 + $0x140] sm:$0xff]
  %v66 = vld [vmem:[%s1 + $0x148] sm:$0xff]
  %v67 = vld [vmem:[%s1 + $0x150] sm:$0xff]
  %v68 = vld [vmem:[%s1 + $0x158] sm:$0xff]
  %v69 = vld [vmem:[%s1 + $0x160] sm:$0xff]
  %v70 = vld [vmem:[%s1 + $0x168] sm:$0xff]
  %v71 = vld [vmem:[%s1 + $0x170] sm:$0xff]
  %v72 = vld [vmem:[%s1 + $0x178] sm:$0xff]
  %v73 = vld [vmem:[%s1 + $0x180] sm:$0xff]
  %v74 = vld [vmem:[%s1 + $0x188] sm:$0xff]
  %v75 = vld [vmem:[%s1 + $0x190] sm:$0xff]
  %v76 = vld [vmem:[%s1 + $0x198] sm:$0xff]
  %v77 = vld [vmem:[%s1 + $0x1a0] sm:$0xff]
  %v78 = vld [vmem:[%s1 + $0x1a8] sm:$0xff]
  %v79 = vld [vmem:[%s1 + $0x1b0] sm:$0xff]
  %v80 = vld [vmem:[%s1 + $0x1b8] sm:$0xff]
  %v81 = vld [vmem:[%s1 + $0x1c0] sm:$0xff]
  %v82 = vld [vmem:[%s1 + $0x1c8] sm:$0xff]
  %v83 = vld [vmem:[%s1 + $0x1d0] sm:$0xff]
  %v84 = vld [vmem:[%s1 + $0x1d8] sm:$0xff]
  %v85 = vld [vmem:[%s1 + $0x1e0] sm:$0xff]
  %v86 = vld [vmem:[%s1 + $0x1e8] sm:$0xff]
  %v87 = vld [vmem:[%s1 + $0x1f0] sm:$0xff]
  %v88 = vld [vmem:[%s1 + $0x1f8] sm:$0xff]
  %v89 = vld [vmem:[%s1 + $0x200] sm:$0xff]
  %v90 = vld [vmem:[%s1 + $0x208] sm:$0xff]
  %v91 = vld [vmem:[%s1 + $0x210] sm:$0xff]
  %v92 = vld [vmem:[%s1 + $0x218] sm:$0xff]
  %v93 = vld [vmem:[%s1 + $0x220] sm:$0xff]
  %v94 = vld [vmem:[%s1 + $0x228] sm:$0xff]
  %v95 = vld [vmem:[%s1 + $0x230] sm:$0xff]
  %v96 = vld [vmem:[%s1 + $0x238] sm:$0xff]
  %vm97 = vcmask 130048
  %v99 = vsel %vm97, %v18, 0
  %v102 = vsel %vm97, %v20, 0
  %v105 = vsel %vm97, %v22, 0
  %v108 = vsel %vm97, %v24, 0
  %110 = vmatprep.subr.mxu0 %v26
  %111 = vmatpush1.msra.mxu0 %v25
  %112 = vmatprep.subr.mxu0 %v30
  %113 = vmatpush1.msra.mxu0 %v29
  %114 = vmatprep.subr.mxu0 %v34
  %115 = vmatpush1.msra.mxu0 %v33
  %116 = vmatprep.subr.mxu0 %v38
  %117 = vmatpush1.msra.mxu0 %v37
  %118 = vmatprep.subr.mxu0 %v42
  %119 = vmatpush1.msra.mxu0 %v41
  %120 = vmatprep.subr.mxu0 %v46
  %121 = vmatpush1.msra.mxu0 %v45
  %122 = vmatprep.subr.mxu0 %v50
  %123 = vmatpush1.msra.mxu0 %v49
  %124 = vmatprep.subr.mxu0 %v54
  %125 = vmatpush1.msra.mxu0 %v53
  %126 = vmatprep.subr.mxu0 %v58
  %127 = vmatpush1.msra.mxu0 %v57
  %128 = vmatprep.subr.mxu0 %v62
  %129 = vmatpush1.msra.mxu0 %v61
  %130 = vmatprep.subr.mxu0 %v66
  %131 = vmatpush1.msra.mxu0 %v65
  %132 = vmatprep.subr.mxu0 %v70
  %133 = vmatpush1.msra.mxu0 %v69
  %134 = vmatprep.subr.mxu0 %v74
  %135 = vmatpush1.msra.mxu0 %v73
  %136 = vmatprep.subr.mxu0 %v78
  %137 = vmatpush1.msra.mxu0 %v77
  %138 = vmatprep.subr.mxu0 %v82
  %139 = vmatpush1.msra.mxu0 %v81
  %140 = vmatprep.subr.mxu0 %v86
  %141 = vmatpush1.msra.mxu0 %v85
  %142 = vmatprep.subr.mxu0 %v90
  %143 = vmatpush1.msra.mxu0 %v89
  %144 = vmatprep.subr.mxu0 %v94
  %145 = vmatpush1.msra.mxu0 %v93
  %146 = vmatprep.subr.mxu0 0.0
  %147 = vmatpush1.msra.mxu0 0.0
  %148 = vmatprep.subr.mxu0 0.0
  %149 = vmatpush1.msra.mxu0 0.0
  %150 = vmatprep.subr.mxu0 0.0
  %151 = vmatpush1.msra.mxu0 0.0
  %152 = vmatprep.subr.mxu0 0.0
  %153 = vmatpush1.msra.mxu0 0.0
  %154 = vmatprep.subr.mxu0 0.0
  %155 = vmatpush1.msra.mxu0 0.0
  %156 = vmatprep.subr.mxu0 0.0
  %157 = vmatpush1.msra.mxu0 0.0
  %158 = vmatprep.subr.mxu0 0.0
  %159 = vmatpush1.msra.mxu0 0.0
  %160 = vmatprep.subr.mxu0 0.0
  %161 = vmatpush1.msra.mxu0 0.0
  %162 = vmatprep.subr.mxu0 0.0
  %163 = vmatpush1.msra.mxu0 0.0
  %164 = vmatprep.subr.mxu0 0.0
  %165 = vmatpush1.msra.mxu0 0.0
  %166 = vmatprep.subr.mxu0 0.0
  %167 = vmatpush1.msra.mxu0 0.0
  %168 = vmatprep.subr.mxu0 0.0
  %169 = vmatpush1.msra.mxu0 0.0
  %170 = vmatprep.subr.mxu0 0.0
  %171 = vmatpush1.msra.mxu0 0.0
  %172 = vmatprep.subr.mxu0 0.0
  %173 = vmatpush1.msra.mxu0 0.0
  %174 = vmatprep.mubr.f32.mxu0 %v99
  %175 = vmatmul.mubr.f32.gmra.mrb[0].mxu0 %v17
  %v176 = vpop.f32.mrb[0].mxu0
  %v177 = vadd.f32 0.0, %v176
  %v178 = vpop.f32.mrb[0].mxu0
  %v179 = vadd.f32 0.0, %v178
  %180 = vmatprep.mubr.f32.mxu0 %v102
  %181 = vmatmul.mubr.f32.gmra.mrb[0].mxu0 %v19
  %v182 = vpop.f32.mrb[0].mxu0
  %v183 = vadd.f32 0.0, %v182
  %v184 = vpop.f32.mrb[0].mxu0
  %v185 = vadd.f32 0.0, %v184
  %186 = vmatprep.mubr.f32.mxu0 %v105
  %187 = vmatmul.mubr.f32.gmra.mrb[0].mxu0 %v21
  %v188 = vpop.f32.mrb[0].mxu0
  %v189 = vadd.f32 0.0, %v188
  %v190 = vpop.f32.mrb[0].mxu0
  %v191 = vadd.f32 0.0, %v190
  %192 = vmatprep.mubr.f32.mxu0 %v108
  %193 = vmatmul.mubr.f32.gmra.mrb[0].mxu0 %v23
  %v194 = vpop.f32.mrb[0].mxu0
  %v195 = vadd.f32 0.0, %v194
  %v196 = vpop.f32.mrb[0].mxu0
  %v197 = vadd.f32 0.0, %v196
  %198 = vdwg.mxu0
  %199 = vmatprep.subr.mxu0 %v28
  %200 = vmatpush1.msra.mxu0 %v27
  %201 = vmatprep.subr.mxu0 %v32
  %202 = vmatpush1.msra.mxu0 %v31
  %203 = vmatprep.subr.mxu0 %v36
  %204 = vmatpush1.msra.mxu0 %v35
  %205 = vmatprep.subr.mxu0 %v40
  %206 = vmatpush1.msra.mxu0 %v39
  %207 = vmatprep.subr.mxu0 %v44
  %208 = vmatpush1.msra.mxu0 %v43
  %209 = vmatprep.subr.mxu0 %v48
  %210 = vmatpush1.msra.mxu0 %v47
  %211 = vmatprep.subr.mxu0 %v52
  %212 = vmatpush1.msra.mxu0 %v51
  %213 = vmatprep.subr.mxu0 %v56
  %214 = vmatpush1.msra.mxu0 %v55
  %215 = vmatprep.subr.mxu0 %v60
  %216 = vmatpush1.msra.mxu0 %v59
  %217 = vmatprep.subr.mxu0 %v64
  %218 = vmatpush1.msra.mxu0 %v63
  %219 = vmatprep.subr.mxu0 %v68
  %220 = vmatpush1.msra.mxu0 %v67
  %221 = vmatprep.subr.mxu0 %v72
  %222 = vmatpush1.msra.mxu0 %v71
  %223 = vmatprep.subr.mxu0 %v76
  %224 = vmatpush1.msra.mxu0 %v75
  %225 = vmatprep.subr.mxu0 %v80
  %226 = vmatpush1.msra.mxu0 %v79
  %227 = vmatprep.subr.mxu0 %v84
  %228 = vmatpush1.msra.mxu0 %v83
  %229 = vmatprep.subr.mxu0 %v88
  %230 = vmatpush1.msra.mxu0 %v87
  %231 = vmatprep.subr.mxu0 %v92
  %232 = vmatpush1.msra.mxu0 %v91
  %233 = vmatprep.subr.mxu0 %v96
  %234 = vmatpush1.msra.mxu0 %v95
  %235 = vmatprep.subr.mxu0 0.0
  %236 = vmatpush1.msra.mxu0 0.0
  %237 = vmatprep.subr.mxu0 0.0
  %238 = vmatpush1.msra.mxu0 0.0
  %239 = vmatprep.subr.mxu0 0.0
  %240 = vmatpush1.msra.mxu0 0.0
  %241 = vmatprep.subr.mxu0 0.0
  %242 = vmatpush1.msra.mxu0 0.0
  %243 = vmatprep.subr.mxu0 0.0
  %244 = vmatpush1.msra.mxu0 0.0
  %245 = vmatprep.subr.mxu0 0.0
  %246 = vmatpush1.msra.mxu0 0.0
  %247 = vmatprep.subr.mxu0 0.0
  %248 = vmatpush1.msra.mxu0 0.0
  %249 = vmatprep.subr.mxu0 0.0
  %250 = vmatpush1.msra.mxu0 0.0
  %251 = vmatprep.subr.mxu0 0.0
  %252 = vmatpush1.msra.mxu0 0.0
  %253 = vmatprep.subr.mxu0 0.0
  %254 = vmatpush1.msra.mxu0 0.0
  %255 = vmatprep.subr.mxu0 0.0
  %256 = vmatpush1.msra.mxu0 0.0
  %257 = vmatprep.subr.mxu0 0.0
  %258 = vmatpush1.msra.mxu0 0.0
  %259 = vmatprep.subr.mxu0 0.0
  %260 = vmatpush1.msra.mxu0 0.0
  %261 = vmatprep.subr.mxu0 0.0
  %262 = vmatpush1.msra.mxu0 0.0
  %263 = vmatprep.mubr.f32.mxu0 %v99
  %264 = vmatmul.mubr.f32.gmra.mrb[0].mxu0 %v17
  %v265 = vpop.f32.mrb[0].mxu0
  %v266 = vadd.f32 0.0, %v265
  %v267 = vpop.f32.mrb[0].mxu0
  %v268 = vadd.f32 0.0, %v267
  %269 = vmatprep.mubr.f32.mxu0 %v102
  %270 = vmatmul.mubr.f32.gmra.mrb[0].mxu0 %v19
  %v271 = vpop.f32.mrb[0].mxu0
  %v272 = vadd.f32 0.0, %v271
  %v273 = vpop.f32.mrb[0].mxu0
  %v274 = vadd.f32 0.0, %v273
  %275 = vmatprep.mubr.f32.mxu0 %v105
  %276 = vmatmul.mubr.f32.gmra.mrb[0].mxu0 %v21
  %v277 = vpop.f32.mrb[0].mxu0
  %v278 = vadd.f32 0.0, %v277
  %v279 = vpop.f32.mrb[0].mxu0
  %v280 = vadd.f32 0.0, %v279
  %281 = vmatprep.mubr.f32.mxu0 %v108
  %282 = vmatmul.mubr.f32.gmra.mrb[0].mxu0 %v23
  %v283 = vpop.f32.mrb[0].mxu0
  %v284 = vadd.f32 0.0, %v283
  %v285 = vpop.f32.mrb[0].mxu0
  %v286 = vadd.f32 0.0, %v285
  %287 = vdwg.mxu0
  %v288 = vadd.f32 %v177, %v179
  %v289 = vadd.f32 %v288, %v266
  %vm290 = vcmask 64512
  %v291 = vsel %vm290, %v268, 0.0
  %v292 = vadd.f32 %v289, %v291
  %293 = vadd.xlane.f32.xlu0 %v292
  %v294 = vpop.xlane.xlu0 %293
  %v295 = vadd.f32 %v183, %v185
  %v296 = vadd.f32 %v295, %v272
  %v297 = vsel %vm290, %v274, 0.0
  %v298 = vadd.f32 %v296, %v297
  %299 = vadd.xlane.f32.xlu0 %v298
  %v300 = vpop.xlane.xlu0 %299
  %v301 = vadd.f32 %v189, %v191
  %v302 = vadd.f32 %v301, %v278
  %v303 = vsel %vm290, %v280, 0.0
  %v304 = vadd.f32 %v302, %v303
  %305 = vadd.xlane.f32.xlu0 %v304
  %v306 = vpop.xlane.xlu0 %305
  %v307 = vadd.f32 %v195, %v197
  %v308 = vadd.f32 %v307, %v284
  %v309 = vsel %vm290, %v286, 0.0
  %v310 = vadd.f32 %v308, %v309
  %311 = vadd.xlane.f32.xlu0 %v310
  %v312 = vpop.xlane.xlu0 %311
  %v313 = vrcp.pop 392.0
  %v314 = vmul.f32 %v294, %v313
  %v315 = vmul.f32 %v300, %v313
  %v316 = vmul.f32 %v306, %v313
  %v317 = vmul.f32 %v312, %v313
  %v318 = vsub.f32 %v177, %v314
  %v319 = vsub.f32 %v179, %v314
  %v320 = vsub.f32 %v266, %v314
  %v321 = vsub.f32 %v268, %v314
  %v322 = vsub.f32 %v183, %v315
  %v323 = vsub.f32 %v185, %v315
  %v324 = vsub.f32 %v272, %v315
  %v325 = vsub.f32 %v274, %v315
  %v326 = vsub.f32 %v189, %v316
  %v327 = vsub.f32 %v191, %v316
  %v328 = vsub.f32 %v278, %v316
  %v329 = vsub.f32 %v280, %v316
  %v330 = vsub.f32 %v195, %v317
  %v331 = vsub.f32 %v197, %v317
  %v332 = vsub.f32 %v284, %v317
  %v333 = vsub.f32 %v286, %v317
  %v334 = vmul.f32 %v318, %v318
  %v335 = vmul.f32 %v319, %v319
  %v336 = vmul.f32 %v320, %v320
  %v337 = vmul.f32 %v321, %v321
  %v338 = vmul.f32 %v322, %v322
  %v339 = vmul.f32 %v323, %v323
  %v340 = vmul.f32 %v324, %v324
  %v341 = vmul.f32 %v325, %v325
  %v342 = vmul.f32 %v326, %v326
  %v343 = vmul.f32 %v327, %v327
  %v344 = vmul.f32 %v328, %v328
  %v345 = vmul.f32 %v329, %v329
  %v346 = vmul.f32 %v330, %v330
  %v347 = vmul.f32 %v331, %v331
  %v348 = vmul.f32 %v332, %v332
  %v349 = vmul.f32 %v333, %v333
  %v350 = vadd.f32 %v334, %v335
  %v351 = vadd.f32 %v350, %v336
  %v352 = vsel %vm290, %v337, 0.0
  %v353 = vadd.f32 %v351, %v352
  %354 = vadd.xlane.f32.xlu0 %v353
  %v355 = vpop.xlane.xlu0 %354
  %v356 = vadd.f32 %v338, %v339
  %v357 = vadd.f32 %v356, %v340
  %v358 = vsel %vm290, %v341, 0.0
  %v359 = vadd.f32 %v357, %v358
  %360 = vadd.xlane.f32.xlu0 %v359
  %v361 = vpop.xlane.xlu0 %360
  %v362 = vadd.f32 %v342, %v343
  %v363 = vadd.f32 %v362, %v344
  %v364 = vsel %vm290, %v345, 0.0
  %v365 = vadd.f32 %v363, %v364
  %366 = vadd.xlane.f32.xlu0 %v365
  %v367 = vpop.xlane.xlu0 %366
  %v368 = vadd.f32 %v346, %v347
  %v369 = vadd.f32 %v368, %v348
  %v370 = vsel %vm290, %v349, 0.0
  %v371 = vadd.f32 %v369, %v370
  %372 = vadd.xlane.f32.xlu0 %v371
  %v373 = vpop.xlane.xlu0 %372
  %v374 = vmul.f32 %v355, %v313
  %v375 = vmul.f32 %v361, %v313
  %v376 = vmul.f32 %v367, %v313
  %v377 = vmul.f32 %v373, %v313
  %v378 = vld [vmem:[%s2] sm:$0xff]
  %v379 = vld [vmem:[%s2 + $0x8] sm:$0xff]
  %v380 = vld [vmem:[%s2 + $0x10] sm:$0xff]
  %v381 = vld [vmem:[%s2 + $0x18] sm:$0xff]
  %v382 = vadd.f32 %v374, 1e-05
  %v383 = vadd.f32 %v375, 1e-05
  %v384 = vadd.f32 %v376, 1e-05
  %v385 = vadd.f32 %v377, 1e-05
  %v386 = vrsqrt.pop %v382
  %v387 = vrsqrt.pop %v383
  %v388 = vrsqrt.pop %v384
  %v389 = vrsqrt.pop %v385
  %v390 = vmul.f32 %v378, %v386
  %v391 = vmul.f32 %v379, %v387
  %v392 = vmul.f32 %v380, %v388
  %v393 = vmul.f32 %v381, %v389
  %v394 = vld [vmem:[%s3] sm:$0xff]
  %v395 = vld [vmem:[%s3 + $0x8] sm:$0xff]
  %v396 = vld [vmem:[%s3 + $0x10] sm:$0xff]
  %v397 = vld [vmem:[%s3 + $0x18] sm:$0xff]
  %v398 = vmul.f32 %v314, %v390
  %v399 = vmul.f32 %v315, %v391
  %v400 = vmul.f32 %v316, %v392
  %v401 = vmul.f32 %v317, %v393
  %v402 = vsub.f32 %v394, %v398
  %v403 = vsub.f32 %v395, %v399
  %v404 = vsub.f32 %v396, %v400
  %v405 = vsub.f32 %v397, %v401
  %407 = vset.pattern.permute.xlu0 0
  %408 = vperm.xlu0 %407, %v390
  %v409 = vpop.permute.xlu0 %408
  %412 = vset.pattern.permute.xlu0 0
  %413 = vperm.xlu0 %412, %v391
  %v414 = vpop.permute.xlu0 %413
  %417 = vset.pattern.permute.xlu0 0
  %418 = vperm.xlu0 %417, %v392
  %v419 = vpop.permute.xlu0 %418
  %422 = vset.pattern.permute.xlu0 0
  %423 = vperm.xlu0 %422, %v393
  %v424 = vpop.permute.xlu0 %423
  %v426 = vmul.f32 %v177, %v409
  %v427 = vmul.f32 %v179, %v409
  %v428 = vmul.f32 %v266, %v409
  %v429 = vmul.f32 %v268, %v409
  %v430 = vmul.f32 %v183, %v414
  %v431 = vmul.f32 %v185, %v414
  %v432 = vmul.f32 %v272, %v414
  %v433 = vmul.f32 %v274, %v414
  %v434 = vmul.f32 %v189, %v419
  %v435 = vmul.f32 %v191, %v419
  %v436 = vmul.f32 %v278, %v419
  %v437 = vmul.f32 %v280, %v419
  %v438 = vmul.f32 %v195, %v424
  %v439 = vmul.f32 %v197, %v424
  %v440 = vmul.f32 %v284, %v424
  %v441 = vmul.f32 %v286, %v424
  %443 = vset.pattern.permute.xlu0 0
  %444 = vperm.xlu0 %443, %v402
  %v445 = vpop.permute.xlu0 %444
  %448 = vset.pattern.permute.xlu0 0
  %449 = vperm.xlu0 %448, %v403
  %v450 = vpop.permute.xlu0 %449
  %453 = vset.pattern.permute.xlu0 0
  %454 = vperm.xlu0 %453, %v404
  %v455 = vpop.permute.xlu0 %454
  %458 = vset.pattern.permute.xlu0 0
  %459 = vperm.xlu0 %458, %v405
  %v460 = vpop.permute.xlu0 %459
  %v462 = vadd.f32 %v426, %v445
  %v463 = vadd.f32 %v427, %v445
  %v464 = vadd.f32 %v428, %v445
  %v465 = vadd.f32 %v429, %v445
  %v466 = vadd.f32 %v430, %v450
  %v467 = vadd.f32 %v431, %v450
  %v468 = vadd.f32 %v432, %v450
  %v469 = vadd.f32 %v433, %v450
  %v470 = vadd.f32 %v434, %v455
  %v471 = vadd.f32 %v435, %v455
  %v472 = vadd.f32 %v436, %v455
  %v473 = vadd.f32 %v437, %v455
  %v474 = vadd.f32 %v438, %v460
  %v475 = vadd.f32 %v439, %v460
  %v476 = vadd.f32 %v440, %v460
  %v477 = vadd.f32 %v441, %v460
  %v478 = vmax.f32 %v462, 0.0
  %v479 = vmax.f32 %v463, 0.0
  %v480 = vmax.f32 %v464, 0.0
  %v481 = vmax.f32 %v465, 0.0
  %v482 = vmax.f32 %v466, 0.0
  %v483 = vmax.f32 %v467, 0.0
  %v484 = vmax.f32 %v468, 0.0
  %v485 = vmax.f32 %v469, 0.0
  %v486 = vmax.f32 %v470, 0.0
  %v487 = vmax.f32 %v471, 0.0
  %v488 = vmax.f32 %v472, 0.0
  %v489 = vmax.f32 %v473, 0.0
  %v490 = vmax.f32 %v474, 0.0
  %v491 = vmax.f32 %v475, 0.0
  %v492 = vmax.f32 %v476, 0.0
  %v493 = vmax.f32 %v477, 0.0
  %494 = vst [vmem:[%s4] sm:$0xff] %v478
  %495 = vst [vmem:[%s4 + $0x8] sm:$0xff] %v479
  %496 = vst [vmem:[%s4 + $0x10] sm:$0xff] %v480
  %497 = vst.msk [vmem:[%s4 + $0x18] sm:$0xff] %vm290, %v481
  %498 = vst [vmem:[%s4 + $0x20] sm:$0xff] %v482
  %499 = vst [vmem:[%s4 + $0x28] sm:$0xff] %v483
  %500 = vst [vmem:[%s4 + $0x30] sm:$0xff] %v484
  %501 = vst.msk [vmem:[%s4 + $0x38] sm:$0xff] %vm290, %v485
  %502 = vst [vmem:[%s4 + $0x40] sm:$0xff] %v486
  %503 = vst [vmem:[%s4 + $0x48] sm:$0xff] %v487
  %504 = vst [vmem:[%s4 + $0x50] sm:$0xff] %v488
  %505 = vst.msk [vmem:[%s4 + $0x58] sm:$0xff] %vm290, %v489
  %506 = vst [vmem:[%s4 + $0x60] sm:$0xff] %v490
  %507 = vst [vmem:[%s4 + $0x68] sm:$0xff] %v491
  %508 = vst [vmem:[%s4 + $0x70] sm:$0xff] %v492
  %509 = vst.msk [vmem:[%s4 + $0x78] sm:$0xff] %vm290, %v493
  // Predicated region
  $region18: #{vae_cnn_forward.12} parent=0 // pred_check
    _
  $region19: #{vae_cnn_forward.12} parent=0 // pred_check_branch
    %511 = sbr.rel (0) target = $region21
  $region20: #{vae_cnn_forward.12} parent=0 // pred_region
    _
  $region21: #{vae_cnn_forward.12} parent=0 // pred_fallthru
    _
  // Predicated region
  $region22: #{vae_cnn_forward.12} parent=0 // pred_check
    _
  $region23: #{vae_cnn_forward.12} parent=0 // pred_check_branch
    %513 = sbr.rel (0) target = $region25
  $region24: #{vae_cnn_forward.12} parent=0 // pred_region
    _
  $region25: #{vae_cnn_forward.12} parent=0 // pred_fallthru
    _

// kernel: vae_cnn_forward.13
$region0: #{vae_cnn_forward.13}
  #allocation0 [shape = 'u32[]', space=smem, size = 0x4, offset = 0x4, fixed_abs, tag = 'smem constant byte address 0x4 - core index']
  #allocation1 [shape = 'u32[144,128]{1,0:T(1,128)}', space=vmem, size = 0x12000, scoped, tag = 'internal scratch']
  %s0 = inlined_call_operand.vmem [shape: f32[64,288], index: 0, kind: input, shape index: {}]
  %s1 = inlined_call_operand.vmem [shape: f32[288,392], index: 1, kind: input, shape index: {}]
  %s2 = inlined_call_operand.vmem [shape: f32[64,1], index: 2, kind: input, shape index: {}]
  %s3 = inlined_call_operand.vmem [shape: f32[64,1], index: 3, kind: input, shape index: {}]
  %s4 = inlined_call_operand.vmem [shape: f32[64,392], index: 4, kind: output, shape index: {}]
  %s5 = sld [smem:[#allocation0]]
  $region26: #{vae_cnn_forward.13} parent=0
    _
  %s7 = ssub.s32 1, %s5
  %s8 = scalar_select 0, %s7, %s5
  // Predicated region
  $region2: #{vae_cnn_forward.13} parent=0 // pred_check
    _
  $region3: #{vae_cnn_forward.13} parent=0 // pred_check_branch
    %10 = sbr.rel (0) target = $region5
  $region4: #{vae_cnn_forward.13} parent=0 // pred_region
    _
  $region5: #{vae_cnn_forward.13} parent=0 // pred_fallthru
    _
  // Predicated region
  $region6: #{vae_cnn_forward.13} parent=0 // pred_check
    _
  $region7: #{vae_cnn_forward.13} parent=0 // pred_check_branch
    %12 = sbr.rel (0) target = $region9
  $region8: #{vae_cnn_forward.13} parent=0 // pred_region
    _
  $region9: #{vae_cnn_forward.13} parent=0 // pred_fallthru
    _
  // Predicated region
  $region10: #{vae_cnn_forward.13} parent=0 // pred_check
    _
  $region11: #{vae_cnn_forward.13} parent=0 // pred_check_branch
    %14 = sbr.rel (0) target = $region13
  $region12: #{vae_cnn_forward.13} parent=0 // pred_region
    _
  $region13: #{vae_cnn_forward.13} parent=0 // pred_fallthru
    _
  // Predicated region
  $region14: #{vae_cnn_forward.13} parent=0 // pred_check
    _
  $region15: #{vae_cnn_forward.13} parent=0 // pred_check_branch
    %16 = sbr.rel (0) target = $region17
  $region16: #{vae_cnn_forward.13} parent=0 // pred_region
    _
  $region17: #{vae_cnn_forward.13} parent=0 // pred_fallthru
    _
  %v17 = vld [vmem:[%s0] sm:$0xff]
  %v18 = vld [vmem:[%s0 + $0x8] sm:$0xff]
  %v19 = vld [vmem:[%s0 + $0x10] sm:$0xff]
  %v20 = vld [vmem:[%s0 + $0x18] sm:$0xff]
  %v21 = vld [vmem:[%s0 + $0x20] sm:$0xff]
  %v22 = vld [vmem:[%s0 + $0x28] sm:$0xff]
  %v23 = vld [vmem:[%s0 + $0x30] sm:$0xff]
  %v24 = vld [vmem:[%s0 + $0x38] sm:$0xff]
  %v25 = vld [vmem:[%s0 + $0x40] sm:$0xff]
  %v26 = vld [vmem:[%s0 + $0x48] sm:$0xff]
  %v27 = vld [vmem:[%s0 + $0x50] sm:$0xff]
  %v28 = vld [vmem:[%s0 + $0x58] sm:$0xff]
  %v29 = vld [vmem:[%s0 + $0x60] sm:$0xff]
  %v30 = vld [vmem:[%s0 + $0x68] sm:$0xff]
  %v31 = vld [vmem:[%s0 + $0x70] sm:$0xff]
  %v32 = vld [vmem:[%s0 + $0x78] sm:$0xff]
  %v33 = vld [vmem:[%s0 + $0x80] sm:$0xff]
  %v34 = vld [vmem:[%s0 + $0x88] sm:$0xff]
  %v35 = vld [vmem:[%s0 + $0x90] sm:$0xff]
  %v36 = vld [vmem:[%s0 + $0x98] sm:$0xff]
  %v37 = vld [vmem:[%s0 + $0xa0] sm:$0xff]
  %v38 = vld [vmem:[%s0 + $0xa8] sm:$0xff]
  %v39 = vld [vmem:[%s0 + $0xb0] sm:$0xff]
  %v40 = vld [vmem:[%s0 + $0xb8] sm:$0xff]
  %v41 = vld [vmem:[%s1] sm:$0xff]
  %v42 = vld [vmem:[%s1 + $0x8] sm:$0xff]
  %v43 = vld [vmem:[%s1 + $0x10] sm:$0xff]
  %v44 = vld [vmem:[%s1 + $0x18] sm:$0xff]
  %v45 = vld [vmem:[%s1 + $0x20] sm:$0xff]
  %v46 = vld [vmem:[%s1 + $0x28] sm:$0xff]
  %v47 = vld [vmem:[%s1 + $0x30] sm:$0xff]
  %v48 = vld [vmem:[%s1 + $0x38] sm:$0xff]
  %v49 = vld [vmem:[%s1 + $0x40] sm:$0xff]
  %v50 = vld [vmem:[%s1 + $0x48] sm:$0xff]
  %v51 = vld [vmem:[%s1 + $0x50] sm:$0xff]
  %v52 = vld [vmem:[%s1 + $0x58] sm:$0xff]
  %v53 = vld [vmem:[%s1 + $0x60] sm:$0xff]
  %v54 = vld [vmem:[%s1 + $0x68] sm:$0xff]
  %v55 = vld [vmem:[%s1 + $0x70] sm:$0xff]
  %v56 = vld [vmem:[%s1 + $0x78] sm:$0xff]
  %v57 = vld [vmem:[%s1 + $0x80] sm:$0xff]
  %v58 = vld [vmem:[%s1 + $0x88] sm:$0xff]
  %v59 = vld [vmem:[%s1 + $0x90] sm:$0xff]
  %v60 = vld [vmem:[%s1 + $0x98] sm:$0xff]
  %v61 = vld [vmem:[%s1 + $0xa0] sm:$0xff]
  %v62 = vld [vmem:[%s1 + $0xa8] sm:$0xff]
  %v63 = vld [vmem:[%s1 + $0xb0] sm:$0xff]
  %v64 = vld [vmem:[%s1 + $0xb8] sm:$0xff]
  %v65 = vld [vmem:[%s1 + $0xc0] sm:$0xff]
  %v66 = vld [vmem:[%s1 + $0xc8] sm:$0xff]
  %v67 = vld [vmem:[%s1 + $0xd0] sm:$0xff]
  %v68 = vld [vmem:[%s1 + $0xd8] sm:$0xff]
  %v69 = vld [vmem:[%s1 + $0xe0] sm:$0xff]
  %v70 = vld [vmem:[%s1 + $0xe8] sm:$0xff]
  %v71 = vld [vmem:[%s1 + $0xf0] sm:$0xff]
  %v72 = vld [vmem:[%s1 + $0xf8] sm:$0xff]
  %v73 = vld [vmem:[%s1 + $0x100] sm:$0xff]
  %v74 = vld [vmem:[%s1 + $0x108] sm:$0xff]
  %v75 = vld [vmem:[%s1 + $0x110] sm:$0xff]
  %v76 = vld [vmem:[%s1 + $0x118] sm:$0xff]
  %v77 = vld [vmem:[%s1 + $0x120] sm:$0xff]
  %v78 = vld [vmem:[%s1 + $0x128] sm:$0xff]
  %v79 = vld [vmem:[%s1 + $0x130] sm:$0xff]
  %v80 = vld [vmem:[%s1 + $0x138] sm:$0xff]
  %v81 = vld [vmem:[%s1 + $0x140] sm:$0xff]
  %v82 = vld [vmem:[%s1 + $0x148] sm:$0xff]
  %v83 = vld [vmem:[%s1 + $0x150] sm:$0xff]
  %v84 = vld [vmem:[%s1 + $0x158] sm:$0xff]
  %v85 = vld [vmem:[%s1 + $0x160] sm:$0xff]
  %v86 = vld [vmem:[%s1 + $0x168] sm:$0xff]
  %v87 = vld [vmem:[%s1 + $0x170] sm:$0xff]
  %v88 = vld [vmem:[%s1 + $0x178] sm:$0xff]
  %v89 = vld [vmem:[%s1 + $0x180] sm:$0xff]
  %v90 = vld [vmem:[%s1 + $0x188] sm:$0xff]
  %v91 = vld [vmem:[%s1 + $0x190] sm:$0xff]
  %v92 = vld [vmem:[%s1 + $0x198] sm:$0xff]
  %v93 = vld [vmem:[%s1 + $0x1a0] sm:$0xff]
  %v94 = vld [vmem:[%s1 + $0x1a8] sm:$0xff]
  %v95 = vld [vmem:[%s1 + $0x1b0] sm:$0xff]
  %v96 = vld [vmem:[%s1 + $0x1b8] sm:$0xff]
  %v97 = vld [vmem:[%s1 + $0x1c0] sm:$0xff]
  %v98 = vld [vmem:[%s1 + $0x1c8] sm:$0xff]
  %v99 = vld [vmem:[%s1 + $0x1d0] sm:$0xff]
  %v100 = vld [vmem:[%s1 + $0x1d8] sm:$0xff]
  %v101 = vld [vmem:[%s1 + $0x1e0] sm:$0xff]
  %v102 = vld [vmem:[%s1 + $0x1e8] sm:$0xff]
  %v103 = vld [vmem:[%s1 + $0x1f0] sm:$0xff]
  %v104 = vld [vmem:[%s1 + $0x1f8] sm:$0xff]
  %v105 = vld [vmem:[%s1 + $0x200] sm:$0xff]
  %v106 = vld [vmem:[%s1 + $0x208] sm:$0xff]
  %v107 = vld [vmem:[%s1 + $0x210] sm:$0xff]
  %v108 = vld [vmem:[%s1 + $0x218] sm:$0xff]
  %v109 = vld [vmem:[%s1 + $0x220] sm:$0xff]
  %v110 = vld [vmem:[%s1 + $0x228] sm:$0xff]
  %v111 = vld [vmem:[%s1 + $0x230] sm:$0xff]
  %v112 = vld [vmem:[%s1 + $0x238] sm:$0xff]
  %v113 = vld [vmem:[%s1 + $0x240] sm:$0xff]
  %v114 = vld [vmem:[%s1 + $0x248] sm:$0xff]
  %v115 = vld [vmem:[%s1 + $0x250] sm:$0xff]
  %v116 = vld [vmem:[%s1 + $0x258] sm:$0xff]
  %v117 = vld [vmem:[%s1 + $0x260] sm:$0xff]
  %v118 = vld [vmem:[%s1 + $0x268] sm:$0xff]
  %v119 = vld [vmem:[%s1 + $0x270] sm:$0xff]
  %v120 = vld [vmem:[%s1 + $0x278] sm:$0xff]
  %v121 = vld [vmem:[%s1 + $0x280] sm:$0xff]
  %v122 = vld [vmem:[%s1 + $0x288] sm:$0xff]
  %v123 = vld [vmem:[%s1 + $0x290] sm:$0xff]
  %v124 = vld [vmem:[%s1 + $0x298] sm:$0xff]
  %v125 = vld [vmem:[%s1 + $0x2a0] sm:$0xff]
  %v126 = vld [vmem:[%s1 + $0x2a8] sm:$0xff]
  %v127 = vld [vmem:[%s1 + $0x2b0] sm:$0xff]
  %v128 = vld [vmem:[%s1 + $0x2b8] sm:$0xff]
  %v129 = vld [vmem:[%s1 + $0x2c0] sm:$0xff]
  %v130 = vld [vmem:[%s1 + $0x2c8] sm:$0xff]
  %v131 = vld [vmem:[%s1 + $0x2d0] sm:$0xff]
  %v132 = vld [vmem:[%s1 + $0x2d8] sm:$0xff]
  %v133 = vld [vmem:[%s1 + $0x2e0] sm:$0xff]
  %v134 = vld [vmem:[%s1 + $0x2e8] sm:$0xff]
  %v135 = vld [vmem:[%s1 + $0x2f0] sm:$0xff]
  %v136 = vld [vmem:[%s1 + $0x2f8] sm:$0xff]
  %v137 = vld [vmem:[%s1 + $0x300] sm:$0xff]
  %v138 = vld [vmem:[%s1 + $0x308] sm:$0xff]
  %v139 = vld [vmem:[%s1 + $0x310] sm:$0xff]
  %v140 = vld [vmem:[%s1 + $0x318] sm:$0xff]
  %v141 = vld [vmem:[%s1 + $0x320] sm:$0xff]
  %v142 = vld [vmem:[%s1 + $0x328] sm:$0xff]
  %v143 = vld [vmem:[%s1 + $0x330] sm:$0xff]
  %v144 = vld [vmem:[%s1 + $0x338] sm:$0xff]
  %v145 = vld [vmem:[%s1 + $0x340] sm:$0xff]
  %v146 = vld [vmem:[%s1 + $0x348] sm:$0xff]
  %v147 = vld [vmem:[%s1 + $0x350] sm:$0xff]
  %v148 = vld [vmem:[%s1 + $0x358] sm:$0xff]
  %v149 = vld [vmem:[%s1 + $0x360] sm:$0xff]
  %v150 = vld [vmem:[%s1 + $0x368] sm:$0xff]
  %v151 = vld [vmem:[%s1 + $0x370] sm:$0xff]
  %v152 = vld [vmem:[%s1 + $0x378] sm:$0xff]
  %v153 = vld [vmem:[%s1 + $0x380] sm:$0xff]
  %v154 = vld [vmem:[%s1 + $0x388] sm:$0xff]
  %v155 = vld [vmem:[%s1 + $0x390] sm:$0xff]
  %v156 = vld [vmem:[%s1 + $0x398] sm:$0xff]
  %v157 = vld [vmem:[%s1 + $0x3a0] sm:$0xff]
  %v158 = vld [vmem:[%s1 + $0x3a8] sm:$0xff]
  %v159 = vld [vmem:[%s1 + $0x3b0] sm:$0xff]
  %v160 = vld [vmem:[%s1 + $0x3b8] sm:$0xff]
  %v161 = vld [vmem:[%s1 + $0x3c0] sm:$0xff]
  %v162 = vld [vmem:[%s1 + $0x3c8] sm:$0xff]
  %v163 = vld [vmem:[%s1 + $0x3d0] sm:$0xff]
  %v164 = vld [vmem:[%s1 + $0x3d8] sm:$0xff]
  %v165 = vld [vmem:[%s1 + $0x3e0] sm:$0xff]
  %v166 = vld [vmem:[%s1 + $0x3e8] sm:$0xff]
  %v167 = vld [vmem:[%s1 + $0x3f0] sm:$0xff]
  %v168 = vld [vmem:[%s1 + $0x3f8] sm:$0xff]
  %v169 = vld [vmem:[%s1 + $0x400] sm:$0xff]
  %v170 = vld [vmem:[%s1 + $0x408] sm:$0xff]
  %v171 = vld [vmem:[%s1 + $0x410] sm:$0xff]
  %v172 = vld [vmem:[%s1 + $0x418] sm:$0xff]
  %v173 = vld [vmem:[%s1 + $0x420] sm:$0xff]
  %v174 = vld [vmem:[%s1 + $0x428] sm:$0xff]
  %v175 = vld [vmem:[%s1 + $0x430] sm:$0xff]
  %v176 = vld [vmem:[%s1 + $0x438] sm:$0xff]
  %v177 = vld [vmem:[%s1 + $0x440] sm:$0xff]
  %v178 = vld [vmem:[%s1 + $0x448] sm:$0xff]
  %v179 = vld [vmem:[%s1 + $0x450] sm:$0xff]
  %v180 = vld [vmem:[%s1 + $0x458] sm:$0xff]
  %v181 = vld [vmem:[%s1 + $0x460] sm:$0xff]
  %v182 = vld [vmem:[%s1 + $0x468] sm:$0xff]
  %v183 = vld [vmem:[%s1 + $0x470] sm:$0xff]
  %v184 = vld [vmem:[%s1 + $0x478] sm:$0xff]
  %vm185 = vcmask 261120
  %v187 = vsel %vm185, %v19, 0
  %v190 = vsel %vm185, %v22, 0
  %v193 = vsel %vm185, %v25, 0
  %v196 = vsel %vm185, %v28, 0
  %v199 = vsel %vm185, %v31, 0
  %v202 = vsel %vm185, %v34, 0
  %v205 = vsel %vm185, %v37, 0
  %v208 = vsel %vm185, %v40, 0
  %210 = vmatprep.subr.mxu0 %v42
  %211 = vmatpush1.msra.mxu0 %v41
  %212 = vmatprep.subr.mxu0 %v46
  %213 = vmatpush1.msra.mxu0 %v45
  %214 = vmatprep.subr.mxu0 %v50
  %215 = vmatpush1.msra.mxu0 %v49
  %216 = vmatprep.subr.mxu0 %v54
  %217 = vmatpush1.msra.mxu0 %v53
  %218 = vmatprep.subr.mxu0 %v58
  %219 = vmatpush1.msra.mxu0 %v57
  %220 = vmatprep.subr.mxu0 %v62
  %221 = vmatpush1.msra.mxu0 %v61
  %222 = vmatprep.subr.mxu0 %v66
  %223 = vmatpush1.msra.mxu0 %v65
  %224 = vmatprep.subr.mxu0 %v70
  %225 = vmatpush1.msra.mxu0 %v69
  %226 = vmatprep.subr.mxu0 %v74
  %227 = vmatpush1.msra.mxu0 %v73
  %228 = vmatprep.subr.mxu0 %v78
  %229 = vmatpush1.msra.mxu0 %v77
  %230 = vmatprep.subr.mxu0 %v82
  %231 = vmatpush1.msra.mxu0 %v81
  %232 = vmatprep.subr.mxu0 %v86
  %233 = vmatpush1.msra.mxu0 %v85
  %234 = vmatprep.subr.mxu0 %v90
  %235 = vmatpush1.msra.mxu0 %v89
  %236 = vmatprep.subr.mxu0 %v94
  %237 = vmatpush1.msra.mxu0 %v93
  %238 = vmatprep.subr.mxu0 %v98
  %239 = vmatpush1.msra.mxu0 %v97
  %240 = vmatprep.subr.mxu0 %v102
  %241 = vmatpush1.msra.mxu0 %v101
  %242 = vmatprep.subr.mxu0 %v106
  %243 = vmatpush1.msra.mxu0 %v105
  %244 = vmatprep.subr.mxu0 %v110
  %245 = vmatpush1.msra.mxu0 %v109
  %246 = vmatprep.subr.mxu0 %v114
  %247 = vmatpush1.msra.mxu0 %v113
  %248 = vmatprep.subr.mxu0 %v118
  %249 = vmatpush1.msra.mxu0 %v117
  %250 = vmatprep.subr.mxu0 %v122
  %251 = vmatpush1.msra.mxu0 %v121
  %252 = vmatprep.subr.mxu0 %v126
  %253 = vmatpush1.msra.mxu0 %v125
  %254 = vmatprep.subr.mxu0 %v130
  %255 = vmatpush1.msra.mxu0 %v129
  %256 = vmatprep.subr.mxu0 %v134
  %257 = vmatpush1.msra.mxu0 %v133
  %258 = vmatprep.subr.mxu0 %v138
  %259 = vmatpush1.msra.mxu0 %v137
  %260 = vmatprep.subr.mxu0 %v142
  %261 = vmatpush1.msra.mxu0 %v141
  %262 = vmatprep.subr.mxu0 %v146
  %263 = vmatpush1.msra.mxu0 %v145
  %264 = vmatprep.subr.mxu0 %v150
  %265 = vmatpush1.msra.mxu0 %v149
  %266 = vmatprep.subr.mxu0 %v154
  %267 = vmatpush1.msra.mxu0 %v153
  %268 = vmatprep.subr.mxu0 %v158
  %269 = vmatpush1.msra.mxu0 %v157
  %270 = vmatprep.subr.mxu0 %v162
  %271 = vmatpush1.msra.mxu0 %v161
  %272 = vmatprep.subr.mxu0 %v166
  %273 = vmatpush1.msra.mxu0 %v165
  %274 = vmatprep.mubr.f32.mxu0 %v18
  %275 = vmatmul.mubr.f32.gmra.mrb[0].mxu0 %v17
  %v276 = vpop.f32.mrb[0].mxu0
  %v277 = vadd.f32 0.0, %v276
  %v278 = vpop.f32.mrb[0].mxu0
  %v279 = vadd.f32 0.0, %v278
  %280 = vmatprep.mubr.f32.mxu0 %v21
  %281 = vmatmul.mubr.f32.gmra.mrb[0].mxu0 %v20
  %v282 = vpop.f32.mrb[0].mxu0
  %v283 = vadd.f32 0.0, %v282
  %v284 = vpop.f32.mrb[0].mxu0
  %v285 = vadd.f32 0.0, %v284
  %286 = vmatprep.mubr.f32.mxu0 %v24
  %287 = vmatmul.mubr.f32.gmra.mrb[0].mxu0 %v23
  %v288 = vpop.f32.mrb[0].mxu0
  %v289 = vadd.f32 0.0, %v288
  %v290 = vpop.f32.mrb[0].mxu0
  %v291 = vadd.f32 0.0, %v290
  %292 = vmatprep.mubr.f32.mxu0 %v27
  %293 = vmatmul.mubr.f32.gmra.mrb[0].mxu0 %v26
  %v294 = vpop.f32.mrb[0].mxu0
  %v295 = vadd.f32 0.0, %v294
  %v296 = vpop.f32.mrb[0].mxu0
  %v297 = vadd.f32 0.0, %v296
  %298 = vmatprep.mubr.f32.mxu0 %v30
  %299 = vmatmul.mubr.f32.gmra.mrb[0].mxu0 %v29
  %v300 = vpop.f32.mrb[0].mxu0
  %v301 = vadd.f32 0.0, %v300
  %v302 = vpop.f32.mrb[0].mxu0
  %v303 = vadd.f32 0.0, %v302
  %304 = vmatprep.mubr.f32.mxu0 %v33
  %305 = vmatmul.mubr.f32.gmra.mrb[0].mxu0 %v32
  %v306 = vpop.f32.mrb[0].mxu0
  %v307 = vadd.f32 0.0, %v306
  %v308 = vpop.f32.mrb[0].mxu0
  %v309 = vadd.f32 0.0, %v308
  %310 = vmatprep.mubr.f32.mxu0 %v36
  %311 = vmatmul.mubr.f32.gmra.mrb[0].mxu0 %v35
  %v312 = vpop.f32.mrb[0].mxu0
  %v313 = vadd.f32 0.0, %v312
  %v314 = vpop.f32.mrb[0].mxu0
  %v315 = vadd.f32 0.0, %v314
  %316 = vmatprep.mubr.f32.mxu0 %v39
  %317 = vmatmul.mubr.f32.gmra.mrb[0].mxu0 %v38
  %v318 = vpop.f32.mrb[0].mxu0
  %v319 = vadd.f32 0.0, %v318
  %v320 = vpop.f32.mrb[0].mxu0
  %v321 = vadd.f32 0.0, %v320
  %322 = vdwg.mxu0
  %323 = vmatprep.subr.mxu0 %v170
  %324 = vmatpush1.msra.mxu0 %v169
  %325 = vmatprep.subr.mxu0 %v174
  %326 = vmatpush1.msra.mxu0 %v173
  %327 = vmatprep.subr.mxu0 %v178
  %328 = vmatpush1.msra.mxu0 %v177
  %329 = vmatprep.subr.mxu0 %v182
  %330 = vmatpush1.msra.mxu0 %v181
  %331 = vmatprep.subr.mxu0 0.0
  %332 = vmatpush1.msra.mxu0 0.0
  %333 = vmatprep.subr.mxu0 0.0
  %334 = vmatpush1.msra.mxu0 0.0
  %335 = vmatprep.subr.mxu0 0.0
  %336 = vmatpush1.msra.mxu0 0.0
  %337 = vmatprep.subr.mxu0 0.0
  %338 = vmatpush1.msra.mxu0 0.0
  %339 = vmatprep.subr.mxu0 0.0
  %340 = vmatpush1.msra.mxu0 0.0
  %341 = vmatprep.subr.mxu0 0.0
  %342 = vmatpush1.msra.mxu0 0.0
  %343 = vmatprep.subr.mxu0 0.0
  %344 = vmatpush1.msra.mxu0 0.0
  %345 = vmatprep.subr.mxu0 0.0
  %346 = vmatpush1.msra.mxu0 0.0
  %347 = vmatprep.subr.mxu0 0.0
  %348 = vmatpush1.msra.mxu0 0.0
  %349 = vmatprep.subr.mxu0 0.0
  %350 = vmatpush1.msra.mxu0 0.0
  %351 = vmatprep.subr.mxu0 0.0
  %352 = vmatpush1.msra.mxu0 0.0
  %353 = vmatprep.subr.mxu0 0.0
  %354 = vmatpush1.msra.mxu0 0.0
  %355 = vmatprep.subr.mxu0 0.0
  %356 = vmatpush1.msra.mxu0 0.0
  %357 = vmatprep.subr.mxu0 0.0
  %358 = vmatpush1.msra.mxu0 0.0
  %359 = vmatprep.subr.mxu0 0.0
  %360 = vmatpush1.msra.mxu0 0.0
  %361 = vmatprep.subr.mxu0 0.0
  %362 = vmatpush1.msra.mxu0 0.0
  %363 = vmatprep.subr.mxu0 0.0
  %364 = vmatpush1.msra.mxu0 0.0
  %365 = vmatprep.subr.mxu0 0.0
  %366 = vmatpush1.msra.mxu0 0.0
  %367 = vmatprep.subr.mxu0 0.0
  %368 = vmatpush1.msra.mxu0 0.0
  %369 = vmatprep.subr.mxu0 0.0
  %370 = vmatpush1.msra.mxu0 0.0
  %371 = vmatprep.subr.mxu0 0.0
  %372 = vmatpush1.msra.mxu0 0.0
  %373 = vmatprep.subr.mxu0 0.0
  %374 = vmatpush1.msra.mxu0 0.0
  %375 = vmatprep.subr.mxu0 0.0
  %376 = vmatpush1.msra.mxu0 0.0
  %377 = vmatprep.subr.mxu0 0.0
  %378 = vmatpush1.msra.mxu0 0.0
  %379 = vmatprep.subr.mxu0 0.0
  %380 = vmatpush1.msra.mxu0 0.0
  %381 = vmatprep.subr.mxu0 0.0
  %382 = vmatpush1.msra.mxu0 0.0
  %383 = vmatprep.subr.mxu0 0.0
  %384 = vmatpush1.msra.mxu0 0.0
  %385 = vmatprep.subr.mxu0 0.0
  %386 = vmatpush1.msra.mxu0 0.0
  %387 = vmatprep.mubr.f32.mxu0 0.0
  %388 = vmatmul.mubr.f32.gmra.mrb[0].mxu0 %v187
  %v389 = vpop.f32.mrb[0].mxu0
  %v390 = vadd.f32 %v277, %v389
  %v391 = vpop.f32.mrb[0].mxu0
  %v392 = vadd.f32 %v279, %v391
  %393 = vmatprep.mubr.f32.mxu0 0.0
  %394 = vmatmul.mubr.f32.gmra.mrb[0].mxu0 %v190
  %v395 = vpop.f32.mrb[0].mxu0
  %v396 = vadd.f32 %v283, %v395
  %v397 = vpop.f32.mrb[0].mxu0
  %v398 = vadd.f32 %v285, %v397
  %399 = vmatprep.mubr.f32.mxu0 0.0
  %400 = vmatmul.mubr.f32.gmra.mrb[0].mxu0 %v193
  %v401 = vpop.f32.mrb[0].mxu0
  %v402 = vadd.f32 %v289, %v401
  %v403 = vpop.f32.mrb[0].mxu0
  %v404 = vadd.f32 %v291, %v403
  %405 = vmatprep.mubr.f32.mxu0 0.0
  %406 = vmatmul.mubr.f32.gmra.mrb[0].mxu0 %v196
  %v407 = vpop.f32.mrb[0].mxu0
  %v408 = vadd.f32 %v295, %v407
  %v409 = vpop.f32.mrb[0].mxu0
  %v410 = vadd.f32 %v297, %v409
  %411 = vmatprep.mubr.f32.mxu0 0.0
  %412 = vmatmul.mubr.f32.gmra.mrb[0].mxu0 %v199
  %v413 = vpop.f32.mrb[0].mxu0
  %v414 = vadd.f32 %v301, %v413
  %v415 = vpop.f32.mrb[0].mxu0
  %v416 = vadd.f32 %v303, %v415
  %417 = vmatprep.mubr.f32.mxu0 0.0
  %418 = vmatmul.mubr.f32.gmra.mrb[0].mxu0 %v202
  %v419 = vpop.f32.mrb[0].mxu0
  %v420 = vadd.f32 %v307, %v419
  %v421 = vpop.f32.mrb[0].mxu0
  %v422 = vadd.f32 %v309, %v421
  %423 = vmatprep.mubr.f32.mxu0 0.0
  %424 = vmatmul.mubr.f32.gmra.mrb[0].mxu0 %v205
  %v425 = vpop.f32.mrb[0].mxu0
  %v426 = vadd.f32 %v313, %v425
  %v427 = vpop.f32.mrb[0].mxu0
  %v428 = vadd.f32 %v315, %v427
  %429 = vmatprep.mubr.f32.mxu0 0.0
  %430 = vmatmul.mubr.f32.gmra.mrb[0].mxu0 %v208
  %v431 = vpop.f32.mrb[0].mxu0
  %v432 = vadd.f32 %v319, %v431
  %v433 = vpop.f32.mrb[0].mxu0
  %v434 = vadd.f32 %v321, %v433
  %435 = vdwg.mxu0
  %436 = vmatprep.subr.mxu0 %v44
  %437 = vmatpush1.msra.mxu0 %v43
  %438 = vmatprep.subr.mxu0 %v48
  %439 = vmatpush1.msra.mxu0 %v47
  %440 = vmatprep.subr.mxu0 %v52
  %441 = vmatpush1.msra.mxu0 %v51
  %442 = vmatprep.subr.mxu0 %v56
  %443 = vmatpush1.msra.mxu0 %v55
  %444 = vmatprep.subr.mxu0 %v60
  %445 = vmatpush1.msra.mxu0 %v59
  %446 = vmatprep.subr.mxu0 %v64
  %447 = vmatpush1.msra.mxu0 %v63
  %448 = vmatprep.subr.mxu0 %v68
  %449 = vmatpush1.msra.mxu0 %v67
  %450 = vmatprep.subr.mxu0 %v72
  %451 = vmatpush1.msra.mxu0 %v71
  %452 = vmatprep.subr.mxu0 %v76
  %453 = vmatpush1.msra.mxu0 %v75
  %454 = vmatprep.subr.mxu0 %v80
  %455 = vmatpush1.msra.mxu0 %v79
  %456 = vmatprep.subr.mxu0 %v84
  %457 = vmatpush1.msra.mxu0 %v83
  %458 = vmatprep.subr.mxu0 %v88
  %459 = vmatpush1.msra.mxu0 %v87
  %460 = vmatprep.subr.mxu0 %v92
  %461 = vmatpush1.msra.mxu0 %v91
  %462 = vmatprep.subr.mxu0 %v96
  %463 = vmatpush1.msra.mxu0 %v95
  %464 = vmatprep.subr.mxu0 %v100
  %465 = vmatpush1.msra.mxu0 %v99
  %466 = vmatprep.subr.mxu0 %v104
  %467 = vmatpush1.msra.mxu0 %v103
  %468 = vmatprep.subr.mxu0 %v108
  %469 = vmatpush1.msra.mxu0 %v107
  %470 = vmatprep.subr.mxu0 %v112
  %471 = vmatpush1.msra.mxu0 %v111
  %472 = vmatprep.subr.mxu0 %v116
  %473 = vmatpush1.msra.mxu0 %v115
  %474 = vmatprep.subr.mxu0 %v120
  %475 = vmatpush1.msra.mxu0 %v119
  %476 = vmatprep.subr.mxu0 %v124
  %477 = vmatpush1.msra.mxu0 %v123
  %478 = vmatprep.subr.mxu0 %v128
  %479 = vmatpush1.msra.mxu0 %v127
  %480 = vmatprep.subr.mxu0 %v132
  %481 = vmatpush1.msra.mxu0 %v131
  %482 = vmatprep.subr.mxu0 %v136
  %483 = vmatpush1.msra.mxu0 %v135
  %484 = vmatprep.subr.mxu0 %v140
  %485 = vmatpush1.msra.mxu0 %v139
  %486 = vmatprep.subr.mxu0 %v144
  %487 = vmatpush1.msra.mxu0 %v143
  %488 = vmatprep.subr.mxu0 %v148
  %489 = vmatpush1.msra.mxu0 %v147
  %490 = vmatprep.subr.mxu0 %v152
  %491 = vmatpush1.msra.mxu0 %v151
  %492 = vmatprep.subr.mxu0 %v156
  %493 = vmatpush1.msra.mxu0 %v155
  %494 = vmatprep.subr.mxu0 %v160
  %495 = vmatpush1.msra.mxu0 %v159
  %496 = vmatprep.subr.mxu0 %v164
  %497 = vmatpush1.msra.mxu0 %v163
  %498 = vmatprep.subr.mxu0 %v168
  %499 = vmatpush1.msra.mxu0 %v167
  %500 = vmatprep.mubr.f32.mxu0 %v18
  %501 = vmatmul.mubr.f32.gmra.mrb[0].mxu0 %v17
  %v502 = vpop.f32.mrb[0].mxu0
  %v503 = vadd.f32 0.0, %v502
  %v504 = vpop.f32.mrb[0].mxu0
  %v505 = vadd.f32 0.0, %v504
  %506 = vmatprep.mubr.f32.mxu0 %v21
  %507 = vmatmul.mubr.f32.gmra.mrb[0].mxu0 %v20
  %v508 = vpop.f32.mrb[0].mxu0
  %v509 = vadd.f32 0.0, %v508
  %v510 = vpop.f32.mrb[0].mxu0
  %v511 = vadd.f32 0.0, %v510
  %512 = vmatprep.mubr.f32.mxu0 %v24
  %513 = vmatmul.mubr.f32.gmra.mrb[0].mxu0 %v23
  %v514 = vpop.f32.mrb[0].mxu0
  %v515 = vadd.f32 0.0, %v514
  %v516 = vpop.f32.mrb[0].mxu0
  %v517 = vadd.f32 0.0, %v516
  %518 = vmatprep.mubr.f32.mxu0 %v27
  %519 = vmatmul.mubr.f32.gmra.mrb[0].mxu0 %v26
  %v520 = vpop.f32.mrb[0].mxu0
  %v521 = vadd.f32 0.0, %v520
  %v522 = vpop.f32.mrb[0].mxu0
  %v523 = vadd.f32 0.0, %v522
  %524 = vmatprep.mubr.f32.mxu0 %v30
  %525 = vmatmul.mubr.f32.gmra.mrb[0].mxu0 %v29
  %v526 = vpop.f32.mrb[0].mxu0
  %v527 = vadd.f32 0.0, %v526
  %v528 = vpop.f32.mrb[0].mxu0
  %v529 = vadd.f32 0.0, %v528
  %530 = vmatprep.mubr.f32.mxu0 %v33
  %531 = vmatmul.mubr.f32.gmra.mrb[0].mxu0 %v32
  %v532 = vpop.f32.mrb[0].mxu0
  %v533 = vadd.f32 0.0, %v532
  %v534 = vpop.f32.mrb[0].mxu0
  %v535 = vadd.f32 0.0, %v534
  %536 = vmatprep.mubr.f32.mxu0 %v36
  %537 = vmatmul.mubr.f32.gmra.mrb[0].mxu0 %v35
  %v538 = vpop.f32.mrb[0].mxu0
  %v539 = vadd.f32 0.0, %v538
  %v540 = vpop.f32.mrb[0].mxu0
  %v541 = vadd.f32 0.0, %v540
  %542 = vmatprep.mubr.f32.mxu0 %v39
  %543 = vmatmul.mubr.f32.gmra.mrb[0].mxu0 %v38
  %v544 = vpop.f32.mrb[0].mxu0
  %v545 = vadd.f32 0.0, %v544
  %v546 = vpop.f32.mrb[0].mxu0
  %v547 = vadd.f32 0.0, %v546
  %548 = vdwg.mxu0
  %549 = vmatprep.subr.mxu0 %v172
  %550 = vmatpush1.msra.mxu0 %v171
  %551 = vmatprep.subr.mxu0 %v176
  %552 = vmatpush1.msra.mxu0 %v175
  %553 = vmatprep.subr.mxu0 %v180
  %554 = vmatpush1.msra.mxu0 %v179
  %555 = vmatprep.subr.mxu0 %v184
  %556 = vmatpush1.msra.mxu0 %v183
  %557 = vmatprep.subr.mxu0 0.0
  %558 = vmatpush1.msra.mxu0 0.0
  %559 = vmatprep.subr.mxu0 0.0
  %560 = vmatpush1.msra.mxu0 0.0
  %561 = vmatprep.subr.mxu0 0.0
  %562 = vmatpush1.msra.mxu0 0.0
  %563 = vmatprep.subr.mxu0 0.0
  %564 = vmatpush1.msra.mxu0 0.0
  %565 = vmatprep.subr.mxu0 0.0
  %566 = vmatpush1.msra.mxu0 0.0
  %567 = vmatprep.subr.mxu0 0.0
  %568 = vmatpush1.msra.mxu0 0.0
  %569 = vmatprep.subr.mxu0 0.0
  %570 = vmatpush1.msra.mxu0 0.0
  %571 = vmatprep.subr.mxu0 0.0
  %572 = vmatpush1.msra.mxu0 0.0
  %573 = vmatprep.subr.mxu0 0.0
  %574 = vmatpush1.msra.mxu0 0.0
  %575 = vmatprep.subr.mxu0 0.0
  %576 = vmatpush1.msra.mxu0 0.0
  %577 = vmatprep.subr.mxu0 0.0
  %578 = vmatpush1.msra.mxu0 0.0
  %579 = vmatprep.subr.mxu0 0.0
  %580 = vmatpush1.msra.mxu0 0.0
  %581 = vmatprep.subr.mxu0 0.0
  %582 = vmatpush1.msra.mxu0 0.0
  %583 = vmatprep.subr.mxu0 0.0
  %584 = vmatpush1.msra.mxu0 0.0
  %585 = vmatprep.subr.mxu0 0.0
  %586 = vmatpush1.msra.mxu0 0.0
  %587 = vmatprep.subr.mxu0 0.0
  %588 = vmatpush1.msra.mxu0 0.0
  %589 = vmatprep.subr.mxu0 0.0
  %590 = vmatpush1.msra.mxu0 0.0
  %591 = vmatprep.subr.mxu0 0.0
  %592 = vmatpush1.msra.mxu0 0.0
  %593 = vmatprep.subr.mxu0 0.0
  %594 = vmatpush1.msra.mxu0 0.0
  %595 = vmatprep.subr.mxu0 0.0
  %596 = vmatpush1.msra.mxu0 0.0
  %597 = vmatprep.subr.mxu0 0.0
  %598 = vmatpush1.msra.mxu0 0.0
  %599 = vmatprep.subr.mxu0 0.0
  %600 = vmatpush1.msra.mxu0 0.0
  %601 = vmatprep.subr.mxu0 0.0
  %602 = vmatpush1.msra.mxu0 0.0
  %603 = vmatprep.subr.mxu0 0.0
  %604 = vmatpush1.msra.mxu0 0.0
  %605 = vmatprep.subr.mxu0 0.0
  %606 = vmatpush1.msra.mxu0 0.0
  %607 = vmatprep.subr.mxu0 0.0
  %608 = vmatpush1.msra.mxu0 0.0
  %609 = vmatprep.subr.mxu0 0.0
  %610 = vmatpush1.msra.mxu0 0.0
  %611 = vmatprep.subr.mxu0 0.0
  %612 = vmatpush1.msra.mxu0 0.0
  %613 = vmatprep.mubr.f32.mxu0 0.0
  %614 = vmatmul.mubr.f32.gmra.mrb[0].mxu0 %v187
  %v615 = vpop.f32.mrb[0].mxu0
  %v616 = vadd.f32 %v503, %v615
  %v617 = vpop.f32.mrb[0].mxu0
  %v618 = vadd.f32 %v505, %v617
  %619 = vmatprep.mubr.f32.mxu0 0.0
  %620 = vmatmul.mubr.f32.gmra.mrb[0].mxu0 %v190
  %v621 = vpop.f32.mrb[0].mxu0
  %v622 = vadd.f32 %v509, %v621
  %v623 = vpop.f32.mrb[0].mxu0
  %v624 = vadd.f32 %v511, %v623
  %625 = vmatprep.mubr.f32.mxu0 0.0
  %626 = vmatmul.mubr.f32.gmra.mrb[0].mxu0 %v193
  %v627 = vpop.f32.mrb[0].mxu0
  %v628 = vadd.f32 %v515, %v627
  %v629 = vpop.f32.mrb[0].mxu0
  %v630 = vadd.f32 %v517, %v629
  %631 = vmatprep.mubr.f32.mxu0 0.0
  %632 = vmatmul.mubr.f32.gmra.mrb[0].mxu0 %v196
  %v633 = vpop.f32.mrb[0].mxu0
  %v634 = vadd.f32 %v521, %v633
  %v635 = vpop.f32.mrb[0].mxu0
  %v636 = vadd.f32 %v523, %v635
  %637 = vmatprep.mubr.f32.mxu0 0.0
  %638 = vmatmul.mubr.f32.gmra.mrb[0].mxu0 %v199
  %v639 = vpop.f32.mrb[0].mxu0
  %v640 = vadd.f32 %v527, %v639
  %v641 = vpop.f32.mrb[0].mxu0
  %v642 = vadd.f32 %v529, %v641
  %643 = vmatprep.mubr.f32.mxu0 0.0
  %644 = vmatmul.mubr.f32.gmra.mrb[0].mxu0 %v202
  %v645 = vpop.f32.mrb[0].mxu0
  %v646 = vadd.f32 %v533, %v645
  %v647 = vpop.f32.mrb[0].mxu0
  %v648 = vadd.f32 %v535, %v647
  %649 = vmatprep.mubr.f32.mxu0 0.0
  %650 = vmatmul.mubr.f32.gmra.mrb[0].mxu0 %v205
  %v651 = vpop.f32.mrb[0].mxu0
  %v652 = vadd.f32 %v539, %v651
  %v653 = vpop.f32.mrb[0].mxu0
  %v654 = vadd.f32 %v541, %v653
  %655 = vmatprep.mubr.f32.mxu0 0.0
  %656 = vmatmul.mubr.f32.gmra.mrb[0].mxu0 %v208
  %v657 = vpop.f32.mrb[0].mxu0
  %v658 = vadd.f32 %v545, %v657
  %v659 = vpop.f32.mrb[0].mxu0
  %v660 = vadd.f32 %v547, %v659
  %661 = vdwg.mxu0
  %v662 = vadd.f32 %v390, %v392
  %v663 = vadd.f32 %v662, %v616
  %vm664 = vcmask 64512
  %v665 = vsel %vm664, %v618, 0.0
  %v666 = vadd.f32 %v663, %v665
  %667 = vadd.xlane.f32.xlu0 %v666
  %v668 = vpop.xlane.xlu0 %667
  %v669 = vadd.f32 %v396, %v398
  %v670 = vadd.f32 %v669, %v622
  %v671 = vsel %vm664, %v624, 0.0
  %v672 = vadd.f32 %v670, %v671
  %673 = vadd.xlane.f32.xlu0 %v672
  %v674 = vpop.xlane.xlu0 %673
  %v675 = vadd.f32 %v402, %v404
  %v676 = vadd.f32 %v675, %v628
  %v677 = vsel %vm664, %v630, 0.0
  %v678 = vadd.f32 %v676, %v677
  %679 = vadd.xlane.f32.xlu0 %v678
  %v680 = vpop.xlane.xlu0 %679
  %v681 = vadd.f32 %v408, %v410
  %v682 = vadd.f32 %v681, %v634
  %v683 = vsel %vm664, %v636, 0.0
  %v684 = vadd.f32 %v682, %v683
  %685 = vadd.xlane.f32.xlu0 %v684
  %v686 = vpop.xlane.xlu0 %685
  %v687 = vadd.f32 %v414, %v416
  %v688 = vadd.f32 %v687, %v640
  %v689 = vsel %vm664, %v642, 0.0
  %v690 = vadd.f32 %v688, %v689
  %691 = vadd.xlane.f32.xlu0 %v690
  %v692 = vpop.xlane.xlu0 %691
  %v693 = vadd.f32 %v420, %v422
  %v694 = vadd.f32 %v693, %v646
  %v695 = vsel %vm664, %v648, 0.0
  %v696 = vadd.f32 %v694, %v695
  %697 = vadd.xlane.f32.xlu0 %v696
  %v698 = vpop.xlane.xlu0 %697
  %v699 = vadd.f32 %v426, %v428
  %v700 = vadd.f32 %v699, %v652
  %v701 = vsel %vm664, %v654, 0.0
  %v702 = vadd.f32 %v700, %v701
  %703 = vadd.xlane.f32.xlu0 %v702
  %v704 = vpop.xlane.xlu0 %703
  %v705 = vadd.f32 %v432, %v434
  %v706 = vadd.f32 %v705, %v658
  %v707 = vsel %vm664, %v660, 0.0
  %v708 = vadd.f32 %v706, %v707
  %709 = vadd.xlane.f32.xlu0 %v708
  %v710 = vpop.xlane.xlu0 %709
  %v711 = vrcp.pop 392.0
  %v712 = vmul.f32 %v668, %v711
  %v713 = vmul.f32 %v674, %v711
  %v714 = vmul.f32 %v680, %v711
  %v715 = vmul.f32 %v686, %v711
  %v716 = vmul.f32 %v692, %v711
  %v717 = vmul.f32 %v698, %v711
  %v718 = vmul.f32 %v704, %v711
  %v719 = vmul.f32 %v710, %v711
  %v720 = vsub.f32 %v390, %v712
  %v721 = vsub.f32 %v392, %v712
  %v722 = vsub.f32 %v616, %v712
  %v723 = vsub.f32 %v618, %v712
  %v724 = vsub.f32 %v396, %v713
  %v725 = vsub.f32 %v398, %v713
  %v726 = vsub.f32 %v622, %v713
  %v727 = vsub.f32 %v624, %v713
  %v728 = vsub.f32 %v402, %v714
  %v729 = vsub.f32 %v404, %v714
  %v730 = vsub.f32 %v628, %v714
  %v731 = vsub.f32 %v630, %v714
  %v732 = vsub.f32 %v408, %v715
  %v733 = vsub.f32 %v410, %v715
  %v734 = vsub.f32 %v634, %v715
  %v735 = vsub.f32 %v636, %v715
  %v736 = vsub.f32 %v414, %v716
  %v737 = vsub.f32 %v416, %v716
  %v738 = vsub.f32 %v640, %v716
  %v739 = vsub.f32 %v642, %v716
  %v740 = vsub.f32 %v420, %v717
  %v741 = vsub.f32 %v422, %v717
  %v742 = vsub.f32 %v646, %v717
  %v743 = vsub.f32 %v648, %v717
  %v744 = vsub.f32 %v426, %v718
  %v745 = vsub.f32 %v428, %v718
  %v746 = vsub.f32 %v652, %v718
  %v747 = vsub.f32 %v654, %v718
  %v748 = vsub.f32 %v432, %v719
  %v749 = vsub.f32 %v434, %v719
  %v750 = vsub.f32 %v658, %v719
  %v751 = vsub.f32 %v660, %v719
  %v752 = vmul.f32 %v720, %v720
  %v753 = vmul.f32 %v721, %v721
  %v754 = vmul.f32 %v722, %v722
  %v755 = vmul.f32 %v723, %v723
  %v756 = vmul.f32 %v724, %v724
  %v757 = vmul.f32 %v725, %v725
  %v758 = vmul.f32 %v726, %v726
  %v759 = vmul.f32 %v727, %v727
  %v760 = vmul.f32 %v728, %v728
  %v761 = vmul.f32 %v729, %v729
  %v762 = vmul.f32 %v730, %v730
  %v763 = vmul.f32 %v731, %v731
  %v764 = vmul.f32 %v732, %v732
  %v765 = vmul.f32 %v733, %v733
  %v766 = vmul.f32 %v734, %v734
  %v767 = vmul.f32 %v735, %v735
  %v768 = vmul.f32 %v736, %v736
  %v769 = vmul.f32 %v737, %v737
  %v770 = vmul.f32 %v738, %v738
  %v771 = vmul.f32 %v739, %v739
  %v772 = vmul.f32 %v740, %v740
  %v773 = vmul.f32 %v741, %v741
  %v774 = vmul.f32 %v742, %v742
  %v775 = vmul.f32 %v743, %v743
  %v776 = vmul.f32 %v744, %v744
  %v777 = vmul.f32 %v745, %v745
  %v778 = vmul.f32 %v746, %v746
  %v779 = vmul.f32 %v747, %v747
  %v780 = vmul.f32 %v748, %v748
  %v781 = vmul.f32 %v749, %v749
  %v782 = vmul.f32 %v750, %v750
  %v783 = vmul.f32 %v751, %v751
  %v784 = vadd.f32 %v752, %v753
  %v785 = vadd.f32 %v784, %v754
  %v786 = vsel %vm664, %v755, 0.0
  %v787 = vadd.f32 %v785, %v786
  %788 = vadd.xlane.f32.xlu0 %v787
  %v789 = vpop.xlane.xlu0 %788
  %v790 = vadd.f32 %v756, %v757
  %v791 = vadd.f32 %v790, %v758
  %v792 = vsel %vm664, %v759, 0.0
  %v793 = vadd.f32 %v791, %v792
  %794 = vadd.xlane.f32.xlu0 %v793
  %v795 = vpop.xlane.xlu0 %794
  %v796 = vadd.f32 %v760, %v761
  %v797 = vadd.f32 %v796, %v762
  %v798 = vsel %vm664, %v763, 0.0
  %v799 = vadd.f32 %v797, %v798
  %800 = vadd.xlane.f32.xlu0 %v799
  %v801 = vpop.xlane.xlu0 %800
  %v802 = vadd.f32 %v764, %v765
  %v803 = vadd.f32 %v802, %v766
  %v804 = vsel %vm664, %v767, 0.0
  %v805 = vadd.f32 %v803, %v804
  %806 = vadd.xlane.f32.xlu0 %v805
  %v807 = vpop.xlane.xlu0 %806
  %v808 = vadd.f32 %v768, %v769
  %v809 = vadd.f32 %v808, %v770
  %v810 = vsel %vm664, %v771, 0.0
  %v811 = vadd.f32 %v809, %v810
  %812 = vadd.xlane.f32.xlu0 %v811
  %v813 = vpop.xlane.xlu0 %812
  %v814 = vadd.f32 %v772, %v773
  %v815 = vadd.f32 %v814, %v774
  %v816 = vsel %vm664, %v775, 0.0
  %v817 = vadd.f32 %v815, %v816
  %818 = vadd.xlane.f32.xlu0 %v817
  %v819 = vpop.xlane.xlu0 %818
  %v820 = vadd.f32 %v776, %v777
  %v821 = vadd.f32 %v820, %v778
  %v822 = vsel %vm664, %v779, 0.0
  %v823 = vadd.f32 %v821, %v822
  %824 = vadd.xlane.f32.xlu0 %v823
  %v825 = vpop.xlane.xlu0 %824
  %v826 = vadd.f32 %v780, %v781
  %v827 = vadd.f32 %v826, %v782
  %v828 = vsel %vm664, %v783, 0.0
  %v829 = vadd.f32 %v827, %v828
  %830 = vadd.xlane.f32.xlu0 %v829
  %v831 = vpop.xlane.xlu0 %830
  %v832 = vmul.f32 %v789, %v711
  %v833 = vmul.f32 %v795, %v711
  %v834 = vmul.f32 %v801, %v711
  %v835 = vmul.f32 %v807, %v711
  %v836 = vmul.f32 %v813, %v711
  %v837 = vmul.f32 %v819, %v711
  %v838 = vmul.f32 %v825, %v711
  %v839 = vmul.f32 %v831, %v711
  %v840 = vld [vmem:[%s2] sm:$0xff]
  %v841 = vld [vmem:[%s2 + $0x8] sm:$0xff]
  %v842 = vld [vmem:[%s2 + $0x10] sm:$0xff]
  %v843 = vld [vmem:[%s2 + $0x18] sm:$0xff]
  %v844 = vld [vmem:[%s2 + $0x20] sm:$0xff]
  %v845 = vld [vmem:[%s2 + $0x28] sm:$0xff]
  %v846 = vld [vmem:[%s2 + $0x30] sm:$0xff]
  %v847 = vld [vmem:[%s2 + $0x38] sm:$0xff]
  %v848 = vadd.f32 %v832, 1e-05
  %v849 = vadd.f32 %v833, 1e-05
  %v850 = vadd.f32 %v834, 1e-05
  %v851 = vadd.f32 %v835, 1e-05
  %v852 = vadd.f32 %v836, 1e-05
  %v853 = vadd.f32 %v837, 1e-05
  %v854 = vadd.f32 %v838, 1e-05
  %v855 = vadd.f32 %v839, 1e-05
  %v856 = vrsqrt.pop %v848
  %v857 = vrsqrt.pop %v849
  %v858 = vrsqrt.pop %v850
  %v859 = vrsqrt.pop %v851
  %v860 = vrsqrt.pop %v852
  %v861 = vrsqrt.pop %v853
  %v862 = vrsqrt.pop %v854
  %v863 = vrsqrt.pop %v855
  %v864 = vmul.f32 %v840, %v856
  %v865 = vmul.f32 %v841, %v857
  %v866 = vmul.f32 %v842, %v858
  %v867 = vmul.f32 %v843, %v859
  %v868 = vmul.f32 %v844, %v860
  %v869 = vmul.f32 %v845, %v861
  %v870 = vmul.f32 %v846, %v862
  %v871 = vmul.f32 %v847, %v863
  %v872 = vld [vmem:[%s3] sm:$0xff]
  %v873 = vld [vmem:[%s3 + $0x8] sm:$0xff]
  %v874 = vld [vmem:[%s3 + $0x10] sm:$0xff]
  %v875 = vld [vmem:[%s3 + $0x18] sm:$0xff]
  %v876 = vld [vmem:[%s3 + $0x20] sm:$0xff]
  %v877 = vld [vmem:[%s3 + $0x28] sm:$0xff]
  %v878 = vld [vmem:[%s3 + $0x30] sm:$0xff]
  %v879 = vld [vmem:[%s3 + $0x38] sm:$0xff]
  %v880 = vmul.f32 %v712, %v864
  %v881 = vmul.f32 %v713, %v865
  %v882 = vmul.f32 %v714, %v866
  %v883 = vmul.f32 %v715, %v867
  %v884 = vmul.f32 %v716, %v868
  %v885 = vmul.f32 %v717, %v869
  %v886 = vmul.f32 %v718, %v870
  %v887 = vmul.f32 %v719, %v871
  %v888 = vsub.f32 %v872, %v880
  %v889 = vsub.f32 %v873, %v881
  %v890 = vsub.f32 %v874, %v882
  %v891 = vsub.f32 %v875, %v883
  %v892 = vsub.f32 %v876, %v884
  %v893 = vsub.f32 %v877, %v885
  %v894 = vsub.f32 %v878, %v886
  %v895 = vsub.f32 %v879, %v887
  %897 = vset.pattern.permute.xlu0 0
  %898 = vperm.xlu0 %897, %v864
  %v899 = vpop.permute.xlu0 %898
  %902 = vset.pattern.permute.xlu0 0
  %903 = vperm.xlu0 %902, %v865
  %v904 = vpop.permute.xlu0 %903
  %907 = vset.pattern.permute.xlu0 0
  %908 = vperm.xlu0 %907, %v866
  %v909 = vpop.permute.xlu0 %908
  %912 = vset.pattern.permute.xlu0 0
  %913 = vperm.xlu0 %912, %v867
  %v914 = vpop.permute.xlu0 %913
  %917 = vset.pattern.permute.xlu0 0
  %918 = vperm.xlu0 %917, %v868
  %v919 = vpop.permute.xlu0 %918
  %922 = vset.pattern.permute.xlu0 0
  %923 = vperm.xlu0 %922, %v869
  %v924 = vpop.permute.xlu0 %923
  %927 = vset.pattern.permute.xlu0 0
  %928 = vperm.xlu0 %927, %v870
  %v929 = vpop.permute.xlu0 %928
  %932 = vset.pattern.permute.xlu0 0
  %933 = vperm.xlu0 %932, %v871
  %v934 = vpop.permute.xlu0 %933
  %v936 = vmul.f32 %v390, %v899
  %v937 = vmul.f32 %v392, %v899
  %v938 = vmul.f32 %v616, %v899
  %v939 = vmul.f32 %v618, %v899
  %v940 = vmul.f32 %v396, %v904
  %v941 = vmul.f32 %v398, %v904
  %v942 = vmul.f32 %v622, %v904
  %v943 = vmul.f32 %v624, %v904
  %v944 = vmul.f32 %v402, %v909
  %v945 = vmul.f32 %v404, %v909
  %v946 = vmul.f32 %v628, %v909
  %v947 = vmul.f32 %v630, %v909
  %v948 = vmul.f32 %v408, %v914
  %v949 = vmul.f32 %v410, %v914
  %v950 = vmul.f32 %v634, %v914
  %v951 = vmul.f32 %v636, %v914
  %v952 = vmul.f32 %v414, %v919
  %v953 = vmul.f32 %v416, %v919
  %v954 = vmul.f32 %v640, %v919
  %v955 = vmul.f32 %v642, %v919
  %v956 = vmul.f32 %v420, %v924
  %v957 = vmul.f32 %v422, %v924
  %v958 = vmul.f32 %v646, %v924
  %v959 = vmul.f32 %v648, %v924
  %v960 = vmul.f32 %v426, %v929
  %v961 = vmul.f32 %v428, %v929
  %v962 = vmul.f32 %v652, %v929
  %v963 = vmul.f32 %v654, %v929
  %v964 = vmul.f32 %v432, %v934
  %v965 = vmul.f32 %v434, %v934
  %v966 = vmul.f32 %v658, %v934
  %v967 = vmul.f32 %v660, %v934
  %969 = vset.pattern.permute.xlu0 0
  %970 = vperm.xlu0 %969, %v888
  %v971 = vpop.permute.xlu0 %970
  %974 = vset.pattern.permute.xlu0 0
  %975 = vperm.xlu0 %974, %v889
  %v976 = vpop.permute.xlu0 %975
  %979 = vset.pattern.permute.xlu0 0
  %980 = vperm.xlu0 %979, %v890
  %v981 = vpop.permute.xlu0 %980
  %984 = vset.pattern.permute.xlu0 0
  %985 = vperm.xlu0 %984, %v891
  %v986 = vpop.permute.xlu0 %985
  %989 = vset.pattern.permute.xlu0 0
  %990 = vperm.xlu0 %989, %v892
  %v991 = vpop.permute.xlu0 %990
  %994 = vset.pattern.permute.xlu0 0
  %995 = vperm.xlu0 %994, %v893
  %v996 = vpop.permute.xlu0 %995
  %999 = vset.pattern.permute.xlu0 0
  %1000 = vperm.xlu0 %999, %v894
  %v1001 = vpop.permute.xlu0 %1000
  %1004 = vset.pattern.permute.xlu0 0
  %1005 = vperm.xlu0 %1004, %v895
  %v1006 = vpop.permute.xlu0 %1005
  %v1008 = vadd.f32 %v936, %v971
  %v1009 = vadd.f32 %v937, %v971
  %v1010 = vadd.f32 %v938, %v971
  %v1011 = vadd.f32 %v939, %v971
  %v1012 = vadd.f32 %v940, %v976
  %v1013 = vadd.f32 %v941, %v976
  %v1014 = vadd.f32 %v942, %v976
  %v1015 = vadd.f32 %v943, %v976
  %v1016 = vadd.f32 %v944, %v981
  %v1017 = vadd.f32 %v945, %v981
  %v1018 = vadd.f32 %v946, %v981
  %v1019 = vadd.f32 %v947, %v981
  %v1020 = vadd.f32 %v948, %v986
  %v1021 = vadd.f32 %v949, %v986
  %v1022 = vadd.f32 %v950, %v986
  %v1023 = vadd.f32 %v951, %v986
  %v1024 = vadd.f32 %v952, %v991
  %v1025 = vadd.f32 %v953, %v991
  %v1026 = vadd.f32 %v954, %v991
  %v1027 = vadd.f32 %v955, %v991
  %v1028 = vadd.f32 %v956, %v996
  %v1029 = vadd.f32 %v957, %v996
  %v1030 = vadd.f32 %v958, %v996
  %v1031 = vadd.f32 %v959, %v996
  %v1032 = vadd.f32 %v960, %v1001
  %v1033 = vadd.f32 %v961, %v1001
  %v1034 = vadd.f32 %v962, %v1001
  %v1035 = vadd.f32 %v963, %v1001
  %v1036 = vadd.f32 %v964, %v1006
  %v1037 = vadd.f32 %v965, %v1006
  %v1038 = vadd.f32 %v966, %v1006
  %v1039 = vadd.f32 %v967, %v1006
  %v1040 = vmax.f32 %v1008, 0.0
  %v1041 = vmax.f32 %v1009, 0.0
  %v1042 = vmax.f32 %v1010, 0.0
  %v1043 = vmax.f32 %v1011, 0.0
  %v1044 = vmax.f32 %v1012, 0.0
  %v1045 = vmax.f32 %v1013, 0.0
  %v1046 = vmax.f32 %v1014, 0.0
  %v1047 = vmax.f32 %v1015, 0.0
  %v1048 = vmax.f32 %v1016, 0.0
  %v1049 = vmax.f32 %v1017, 0.0
  %v1050 = vmax.f32 %v1018, 0.0
  %v1051 = vmax.f32 %v1019, 0.0
  %v1052 = vmax.f32 %v1020, 0.0
  %v1053 = vmax.f32 %v1021, 0.0
  %v1054 = vmax.f32 %v1022, 0.0
  %v1055 = vmax.f32 %v1023, 0.0
  %v1056 = vmax.f32 %v1024, 0.0
  %v1057 = vmax.f32 %v1025, 0.0
  %v1058 = vmax.f32 %v1026, 0.0
  %v1059 = vmax.f32 %v1027, 0.0
  %v1060 = vmax.f32 %v1028, 0.0
  %v1061 = vmax.f32 %v1029, 0.0
  %v1062 = vmax.f32 %v1030, 0.0
  %v1063 = vmax.f32 %v1031, 0.0
  %v1064 = vmax.f32 %v1032, 0.0
  %v1065 = vmax.f32 %v1033, 0.0
  %v1066 = vmax.f32 %v1034, 0.0
  %v1067 = vmax.f32 %v1035, 0.0
  %v1068 = vmax.f32 %v1036, 0.0
  %v1069 = vmax.f32 %v1037, 0.0
  %v1070 = vmax.f32 %v1038, 0.0
  %v1071 = vmax.f32 %v1039, 0.0
  %1072 = vst [vmem:[%s4] sm:$0xff] %v1040
  %1073 = vst [vmem:[%s4 + $0x8] sm:$0xff] %v1041
  %1074 = vst [vmem:[%s4 + $0x10] sm:$0xff] %v1042
  %1075 = vst.msk [vmem:[%s4 + $0x18] sm:$0xff] %vm664, %v1043
  %1076 = vst [vmem:[%s4 + $0x20] sm:$0xff] %v1044
  %1077 = vst [vmem:[%s4 + $0x28] sm:$0xff] %v1045
  %1078 = vst [vmem:[%s4 + $0x30] sm:$0xff] %v1046
  %1079 = vst.msk [vmem:[%s4 + $0x38] sm:$0xff] %vm664, %v1047
  %1080 = vst [vmem:[%s4 + $0x40] sm:$0xff] %v1048
  %1081 = vst [vmem:[%s4 + $0x48] sm:$0xff] %v1049
  %1082 = vst [vmem:[%s4 + $0x50] sm:$0xff] %v1050
  %1083 = vst.msk [vmem:[%s4 + $0x58] sm:$0xff] %vm664, %v1051
  %1084 = vst [vmem:[%s4 + $0x60] sm:$0xff] %v1052
  %1085 = vst [vmem:[%s4 + $0x68] sm:$0xff] %v1053
  %1086 = vst [vmem:[%s4 + $0x70] sm:$0xff] %v1054
  %1087 = vst.msk [vmem:[%s4 + $0x78] sm:$0xff] %vm664, %v1055
  %1088 = vst [vmem:[%s4 + $0x80] sm:$0xff] %v1056
  %1089 = vst [vmem:[%s4 + $0x88] sm:$0xff] %v1057
  %1090 = vst [vmem:[%s4 + $0x90] sm:$0xff] %v1058
  %1091 = vst.msk [vmem:[%s4 + $0x98] sm:$0xff] %vm664, %v1059
  %1092 = vst [vmem:[%s4 + $0xa0] sm:$0xff] %v1060
  %1093 = vst [vmem:[%s4 + $0xa8] sm:$0xff] %v1061
  %1094 = vst [vmem:[%s4 + $0xb0] sm:$0xff] %v1062
  %1095 = vst.msk [vmem:[%s4 + $0xb8] sm:$0xff] %vm664, %v1063
  %1096 = vst [vmem:[%s4 + $0xc0] sm:$0xff] %v1064
  %1097 = vst [vmem:[%s4 + $0xc8] sm:$0xff] %v1065
  %1098 = vst [vmem:[%s4 + $0xd0] sm:$0xff] %v1066
  %1099 = vst.msk [vmem:[%s4 + $0xd8] sm:$0xff] %vm664, %v1067
  %1100 = vst [vmem:[%s4 + $0xe0] sm:$0xff] %v1068
  %1101 = vst [vmem:[%s4 + $0xe8] sm:$0xff] %v1069
  %1102 = vst [vmem:[%s4 + $0xf0] sm:$0xff] %v1070
  %1103 = vst.msk [vmem:[%s4 + $0xf8] sm:$0xff] %vm664, %v1071
  // Predicated region
  $region18: #{vae_cnn_forward.13} parent=0 // pred_check
    _
  $region19: #{vae_cnn_forward.13} parent=0 // pred_check_branch
    %1105 = sbr.rel (0) target = $region21
  $region20: #{vae_cnn_forward.13} parent=0 // pred_region
    _
  $region21: #{vae_cnn_forward.13} parent=0 // pred_fallthru
    _
  // Predicated region
  $region22: #{vae_cnn_forward.13} parent=0 // pred_check
    _
  $region23: #{vae_cnn_forward.13} parent=0 // pred_check_branch
    %1107 = sbr.rel (0) target = $region25
  $region24: #{vae_cnn_forward.13} parent=0 // pred_region
    _
  $region25: #{vae_cnn_forward.13} parent=0 // pred_fallthru
    _

// kernel: vae_cnn_forward.14
$region0: #{vae_cnn_forward.14}
  #allocation0 [shape = 'u32[]', space=smem, size = 0x4, offset = 0x4, fixed_abs, tag = 'smem constant byte address 0x4 - core index']
  #allocation1 [shape = 'u32[144,128]{1,0:T(1,128)}', space=vmem, size = 0x12000, scoped, tag = 'internal scratch']
  %s0 = inlined_call_operand.vmem [shape: f32[16,576], index: 0, kind: input, shape index: {}]
  %s1 = inlined_call_operand.vmem [shape: f32[576,98], index: 1, kind: input, shape index: {}]
  %s2 = inlined_call_operand.vmem [shape: f32[16,1], index: 2, kind: input, shape index: {}]
  %s3 = inlined_call_operand.vmem [shape: f32[16,1], index: 3, kind: input, shape index: {}]
  %s4 = inlined_call_operand.vmem [shape: f32[16,98], index: 4, kind: output, shape index: {}]
  %s5 = sld [smem:[#allocation0]]
  $region26: #{vae_cnn_forward.14} parent=0
    _
  %s7 = ssub.s32 1, %s5
  %s8 = scalar_select 0, %s7, %s5
  // Predicated region
  $region2: #{vae_cnn_forward.14} parent=0 // pred_check
    _
  $region3: #{vae_cnn_forward.14} parent=0 // pred_check_branch
    %10 = sbr.rel (0) target = $region5
  $region4: #{vae_cnn_forward.14} parent=0 // pred_region
    _
  $region5: #{vae_cnn_forward.14} parent=0 // pred_fallthru
    _
  // Predicated region
  $region6: #{vae_cnn_forward.14} parent=0 // pred_check
    _
  $region7: #{vae_cnn_forward.14} parent=0 // pred_check_branch
    %12 = sbr.rel (0) target = $region9
  $region8: #{vae_cnn_forward.14} parent=0 // pred_region
    _
  $region9: #{vae_cnn_forward.14} parent=0 // pred_fallthru
    _
  // Predicated region
  $region10: #{vae_cnn_forward.14} parent=0 // pred_check
    _
  $region11: #{vae_cnn_forward.14} parent=0 // pred_check_branch
    %14 = sbr.rel (0) target = $region13
  $region12: #{vae_cnn_forward.14} parent=0 // pred_region
    _
  $region13: #{vae_cnn_forward.14} parent=0 // pred_fallthru
    _
  // Predicated region
  $region14: #{vae_cnn_forward.14} parent=0 // pred_check
    _
  $region15: #{vae_cnn_forward.14} parent=0 // pred_check_branch
    %16 = sbr.rel (0) target = $region17
  $region16: #{vae_cnn_forward.14} parent=0 // pred_region
    _
  $region17: #{vae_cnn_forward.14} parent=0 // pred_fallthru
    _
  %v17 = vld [vmem:[%s0] sm:$0xff]
  %v18 = vld [vmem:[%s0 + $0x8] sm:$0xff]
  %v19 = vld [vmem:[%s0 + $0x10] sm:$0xff]
  %v20 = vld [vmem:[%s0 + $0x18] sm:$0xff]
  %v21 = vld [vmem:[%s0 + $0x20] sm:$0xff]
  %v22 = vld [vmem:[%s0 + $0x28] sm:$0xff]
  %v23 = vld [vmem:[%s0 + $0x30] sm:$0xff]
  %v24 = vld [vmem:[%s0 + $0x38] sm:$0xff]
  %v25 = vld [vmem:[%s0 + $0x40] sm:$0xff]
  %v26 = vld [vmem:[%s0 + $0x48] sm:$0xff]
  %v27 = vld [vmem:[%s1] sm:$0xff]
  %v28 = vld [vmem:[%s1 + $0x8] sm:$0xff]
  %v29 = vld [vmem:[%s1 + $0x10] sm:$0xff]
  %v30 = vld [vmem:[%s1 + $0x18] sm:$0xff]
  %v31 = vld [vmem:[%s1 + $0x20] sm:$0xff]
  %v32 = vld [vmem:[%s1 + $0x28] sm:$0xff]
  %v33 = vld [vmem:[%s1 + $0x30] sm:$0xff]
  %v34 = vld [vmem:[%s1 + $0x38] sm:$0xff]
  %v35 = vld [vmem:[%s1 + $0x40] sm:$0xff]
  %v36 = vld [vmem:[%s1 + $0x48] sm:$0xff]
  %v37 = vld [vmem:[%s1 + $0x50] sm:$0xff]
  %v38 = vld [vmem:[%s1 + $0x58] sm:$0xff]
  %v39 = vld [vmem:[%s1 + $0x60] sm:$0xff]
  %v40 = vld [vmem:[%s1 + $0x68] sm:$0xff]
  %v41 = vld [vmem:[%s1 + $0x70] sm:$0xff]
  %v42 = vld [vmem:[%s1 + $0x78] sm:$0xff]
  %v43 = vld [vmem:[%s1 + $0x80] sm:$0xff]
  %v44 = vld [vmem:[%s1 + $0x88] sm:$0xff]
  %v45 = vld [vmem:[%s1 + $0x90] sm:$0xff]
  %v46 = vld [vmem:[%s1 + $0x98] sm:$0xff]
  %v47 = vld [vmem:[%s1 + $0xa0] sm:$0xff]
  %v48 = vld [vmem:[%s1 + $0xa8] sm:$0xff]
  %v49 = vld [vmem:[%s1 + $0xb0] sm:$0xff]
  %v50 = vld [vmem:[%s1 + $0xb8] sm:$0xff]
  %v51 = vld [vmem:[%s1 + $0xc0] sm:$0xff]
  %v52 = vld [vmem:[%s1 + $0xc8] sm:$0xff]
  %v53 = vld [vmem:[%s1 + $0xd0] sm:$0xff]
  %v54 = vld [vmem:[%s1 + $0xd8] sm:$0xff]
  %v55 = vld [vmem:[%s1 + $0xe0] sm:$0xff]
  %v56 = vld [vmem:[%s1 + $0xe8] sm:$0xff]
  %v57 = vld [vmem:[%s1 + $0xf0] sm:$0xff]
  %v58 = vld [vmem:[%s1 + $0xf8] sm:$0xff]
  %v59 = vld [vmem:[%s1 + $0x100] sm:$0xff]
  %v60 = vld [vmem:[%s1 + $0x108] sm:$0xff]
  %v61 = vld [vmem:[%s1 + $0x110] sm:$0xff]
  %v62 = vld [vmem:[%s1 + $0x118] sm:$0xff]
  %v63 = vld [vmem:[%s1 + $0x120] sm:$0xff]
  %v64 = vld [vmem:[%s1 + $0x128] sm:$0xff]
  %v65 = vld [vmem:[%s1 + $0x130] sm:$0xff]
  %v66 = vld [vmem:[%s1 + $0x138] sm:$0xff]
  %v67 = vld [vmem:[%s1 + $0x140] sm:$0xff]
  %v68 = vld [vmem:[%s1 + $0x148] sm:$0xff]
  %v69 = vld [vmem:[%s1 + $0x150] sm:$0xff]
  %v70 = vld [vmem:[%s1 + $0x158] sm:$0xff]
  %v71 = vld [vmem:[%s1 + $0x160] sm:$0xff]
  %v72 = vld [vmem:[%s1 + $0x168] sm:$0xff]
  %v73 = vld [vmem:[%s1 + $0x170] sm:$0xff]
  %v74 = vld [vmem:[%s1 + $0x178] sm:$0xff]
  %v75 = vld [vmem:[%s1 + $0x180] sm:$0xff]
  %v76 = vld [vmem:[%s1 + $0x188] sm:$0xff]
  %v77 = vld [vmem:[%s1 + $0x190] sm:$0xff]
  %v78 = vld [vmem:[%s1 + $0x198] sm:$0xff]
  %v79 = vld [vmem:[%s1 + $0x1a0] sm:$0xff]
  %v80 = vld [vmem:[%s1 + $0x1a8] sm:$0xff]
  %v81 = vld [vmem:[%s1 + $0x1b0] sm:$0xff]
  %v82 = vld [vmem:[%s1 + $0x1b8] sm:$0xff]
  %v83 = vld [vmem:[%s1 + $0x1c0] sm:$0xff]
  %v84 = vld [vmem:[%s1 + $0x1c8] sm:$0xff]
  %v85 = vld [vmem:[%s1 + $0x1d0] sm:$0xff]
  %v86 = vld [vmem:[%s1 + $0x1d8] sm:$0xff]
  %v87 = vld [vmem:[%s1 + $0x1e0] sm:$0xff]
  %v88 = vld [vmem:[%s1 + $0x1e8] sm:$0xff]
  %v89 = vld [vmem:[%s1 + $0x1f0] sm:$0xff]
  %v90 = vld [vmem:[%s1 + $0x1f8] sm:$0xff]
  %v91 = vld [vmem:[%s1 + $0x200] sm:$0xff]
  %v92 = vld [vmem:[%s1 + $0x208] sm:$0xff]
  %v93 = vld [vmem:[%s1 + $0x210] sm:$0xff]
  %v94 = vld [vmem:[%s1 + $0x218] sm:$0xff]
  %v95 = vld [vmem:[%s1 + $0x220] sm:$0xff]
  %v96 = vld [vmem:[%s1 + $0x228] sm:$0xff]
  %v97 = vld [vmem:[%s1 + $0x230] sm:$0xff]
  %v98 = vld [vmem:[%s1 + $0x238] sm:$0xff]
  %vm99 = vcmask 523264
  %v101 = vsel %vm99, %v21, 0
  %v104 = vsel %vm99, %v26, 0
  %106 = vmatprep.subr.mxu0 0.0
  %107 = vmatpush1.msra.mxu0 %v27
  %108 = vmatprep.subr.mxu0 0.0
  %109 = vmatpush1.msra.mxu0 %v28
  %110 = vmatprep.subr.mxu0 0.0
  %111 = vmatpush1.msra.mxu0 %v29
  %112 = vmatprep.subr.mxu0 0.0
  %113 = vmatpush1.msra.mxu0 %v30
  %114 = vmatprep.subr.mxu0 0.0
  %115 = vmatpush1.msra.mxu0 %v31
  %116 = vmatprep.subr.mxu0 0.0
  %117 = vmatpush1.msra.mxu0 %v32
  %118 = vmatprep.subr.mxu0 0.0
  %119 = vmatpush1.msra.mxu0 %v33
  %120 = vmatprep.subr.mxu0 0.0
  %121 = vmatpush1.msra.mxu0 %v34
  %122 = vmatprep.subr.mxu0 0.0
  %123 = vmatpush1.msra.mxu0 %v35
  %124 = vmatprep.subr.mxu0 0.0
  %125 = vmatpush1.msra.mxu0 %v36
  %126 = vmatprep.subr.mxu0 0.0
  %127 = vmatpush1.msra.mxu0 %v37
  %128 = vmatprep.subr.mxu0 0.0
  %129 = vmatpush1.msra.mxu0 %v38
  %130 = vmatprep.subr.mxu0 0.0
  %131 = vmatpush1.msra.mxu0 %v39
  %132 = vmatprep.subr.mxu0 0.0
  %133 = vmatpush1.msra.mxu0 %v40
  %134 = vmatprep.subr.mxu0 0.0
  %135 = vmatpush1.msra.mxu0 %v41
  %136 = vmatprep.subr.mxu0 0.0
  %137 = vmatpush1.msra.mxu0 %v42
  %138 = vmatprep.subr.mxu0 0.0
  %139 = vmatpush1.msra.mxu0 %v43
  %140 = vmatprep.subr.mxu0 0.0
  %141 = vmatpush1.msra.mxu0 %v44
  %142 = vmatprep.subr.mxu0 0.0
  %143 = vmatpush1.msra.mxu0 %v45
  %144 = vmatprep.subr.mxu0 0.0
  %145 = vmatpush1.msra.mxu0 %v46
  %146 = vmatprep.subr.mxu0 0.0
  %147 = vmatpush1.msra.mxu0 %v47
  %148 = vmatprep.subr.mxu0 0.0
  %149 = vmatpush1.msra.mxu0 %v48
  %150 = vmatprep.subr.mxu0 0.0
  %151 = vmatpush1.msra.mxu0 %v49
  %152 = vmatprep.subr.mxu0 0.0
  %153 = vmatpush1.msra.mxu0 %v50
  %154 = vmatprep.subr.mxu0 0.0
  %155 = vmatpush1.msra.mxu0 %v51
  %156 = vmatprep.subr.mxu0 0.0
  %157 = vmatpush1.msra.mxu0 %v52
  %158 = vmatprep.subr.mxu0 0.0
  %159 = vmatpush1.msra.mxu0 %v53
  %160 = vmatprep.subr.mxu0 0.0
  %161 = vmatpush1.msra.mxu0 %v54
  %162 = vmatprep.subr.mxu0 0.0
  %163 = vmatpush1.msra.mxu0 %v55
  %164 = vmatprep.subr.mxu0 0.0
  %165 = vmatpush1.msra.mxu0 %v56
  %166 = vmatprep.subr.mxu0 0.0
  %167 = vmatpush1.msra.mxu0 %v57
  %168 = vmatprep.subr.mxu0 0.0
  %169 = vmatpush1.msra.mxu0 %v58
  %170 = vmatprep.mubr.f32.mxu0 %v18
  %171 = vmatmul.mubr.f32.gmra.mrb[0].mxu0 %v17
  %v172 = vpop.f32.mrb[0].mxu0
  %v173 = vadd.f32 0.0, %v172
  %v174 = vpop.f32.mrb[0].mxu0
  %175 = vmatprep.mubr.f32.mxu0 %v23
  %176 = vmatmul.mubr.f32.gmra.mrb[0].mxu0 %v22
  %v177 = vpop.f32.mrb[0].mxu0
  %v178 = vadd.f32 0.0, %v177
  %v179 = vpop.f32.mrb[0].mxu0
  %180 = vdwg.mxu0
  %181 = vmatprep.subr.mxu0 0.0
  %182 = vmatpush1.msra.mxu0 %v59
  %183 = vmatprep.subr.mxu0 0.0
  %184 = vmatpush1.msra.mxu0 %v60
  %185 = vmatprep.subr.mxu0 0.0
  %186 = vmatpush1.msra.mxu0 %v61
  %187 = vmatprep.subr.mxu0 0.0
  %188 = vmatpush1.msra.mxu0 %v62
  %189 = vmatprep.subr.mxu0 0.0
  %190 = vmatpush1.msra.mxu0 %v63
  %191 = vmatprep.subr.mxu0 0.0
  %192 = vmatpush1.msra.mxu0 %v64
  %193 = vmatprep.subr.mxu0 0.0
  %194 = vmatpush1.msra.mxu0 %v65
  %195 = vmatprep.subr.mxu0 0.0
  %196 = vmatpush1.msra.mxu0 %v66
  %197 = vmatprep.subr.mxu0 0.0
  %198 = vmatpush1.msra.mxu0 %v67
  %199 = vmatprep.subr.mxu0 0.0
  %200 = vmatpush1.msra.mxu0 %v68
  %201 = vmatprep.subr.mxu0 0.0
  %202 = vmatpush1.msra.mxu0 %v69
  %203 = vmatprep.subr.mxu0 0.0
  %204 = vmatpush1.msra.mxu0 %v70
  %205 = vmatprep.subr.mxu0 0.0
  %206 = vmatpush1.msra.mxu0 %v71
  %207 = vmatprep.subr.mxu0 0.0
  %208 = vmatpush1.msra.mxu0 %v72
  %209 = vmatprep.subr.mxu0 0.0
  %210 = vmatpush1.msra.mxu0 %v73
  %211 = vmatprep.subr.mxu0 0.0
  %212 = vmatpush1.msra.mxu0 %v74
  %213 = vmatprep.subr.mxu0 0.0
  %214 = vmatpush1.msra.mxu0 %v75
  %215 = vmatprep.subr.mxu0 0.0
  %216 = vmatpush1.msra.mxu0 %v76
  %217 = vmatprep.subr.mxu0 0.0
  %218 = vmatpush1.msra.mxu0 %v77
  %219 = vmatprep.subr.mxu0 0.0
  %220 = vmatpush1.msra.mxu0 %v78
  %221 = vmatprep.subr.mxu0 0.0
  %222 = vmatpush1.msra.mxu0 %v79
  %223 = vmatprep.subr.mxu0 0.0
  %224 = vmatpush1.msra.mxu0 %v80
  %225 = vmatprep.subr.mxu0 0.0
  %226 = vmatpush1.msra.mxu0 %v81
  %227 = vmatprep.subr.mxu0 0.0
  %228 = vmatpush1.msra.mxu0 %v82
  %229 = vmatprep.subr.mxu0 0.0
  %230 = vmatpush1.msra.mxu0 %v83
  %231 = vmatprep.subr.mxu0 0.0
  %232 = vmatpush1.msra.mxu0 %v84
  %233 = vmatprep.subr.mxu0 0.0
  %234 = vmatpush1.msra.mxu0 %v85
  %235 = vmatprep.subr.mxu0 0.0
  %236 = vmatpush1.msra.mxu0 %v86
  %237 = vmatprep.subr.mxu0 0.0
  %238 = vmatpush1.msra.mxu0 %v87
  %239 = vmatprep.subr.mxu0 0.0
  %240 = vmatpush1.msra.mxu0 %v88
  %241 = vmatprep.subr.mxu0 0.0
  %242 = vmatpush1.msra.mxu0 %v89
  %243 = vmatprep.subr.mxu0 0.0
  %244 = vmatpush1.msra.mxu0 %v90
  %245 = vmatprep.mubr.f32.mxu0 %v20
  %246 = vmatmul.mubr.f32.gmra.mrb[0].mxu0 %v19
  %v247 = vpop.f32.mrb[0].mxu0
  %v248 = vadd.f32 %v173, %v247
  %v249 = vpop.f32.mrb[0].mxu0
  %250 = vmatprep.mubr.f32.mxu0 %v25
  %251 = vmatmul.mubr.f32.gmra.mrb[0].mxu0 %v24
  %v252 = vpop.f32.mrb[0].mxu0
  %v253 = vadd.f32 %v178, %v252
  %v254 = vpop.f32.mrb[0].mxu0
  %255 = vdwg.mxu0
  %256 = vmatprep.subr.mxu0 0.0
  %257 = vmatpush1.msra.mxu0 %v91
  %258 = vmatprep.subr.mxu0 0.0
  %259 = vmatpush1.msra.mxu0 %v92
  %260 = vmatprep.subr.mxu0 0.0
  %261 = vmatpush1.msra.mxu0 %v93
  %262 = vmatprep.subr.mxu0 0.0
  %263 = vmatpush1.msra.mxu0 %v94
  %264 = vmatprep.subr.mxu0 0.0
  %265 = vmatpush1.msra.mxu0 %v95
  %266 = vmatprep.subr.mxu0 0.0
  %267 = vmatpush1.msra.mxu0 %v96
  %268 = vmatprep.subr.mxu0 0.0
  %269 = vmatpush1.msra.mxu0 %v97
  %270 = vmatprep.subr.mxu0 0.0
  %271 = vmatpush1.msra.mxu0 %v98
  %272 = vmatprep.subr.mxu0 0.0
  %273 = vmatpush1.msra.mxu0 0.0
  %274 = vmatprep.subr.mxu0 0.0
  %275 = vmatpush1.msra.mxu0 0.0
  %276 = vmatprep.subr.mxu0 0.0
  %277 = vmatpush1.msra.mxu0 0.0
  %278 = vmatprep.subr.mxu0 0.0
  %279 = vmatpush1.msra.mxu0 0.0
  %280 = vmatprep.subr.mxu0 0.0
  %281 = vmatpush1.msra.mxu0 0.0
  %282 = vmatprep.subr.mxu0 0.0
  %283 = vmatpush1.msra.mxu0 0.0
  %284 = vmatprep.subr.mxu0 0.0
  %285 = vmatpush1.msra.mxu0 0.0
  %286 = vmatprep.subr.mxu0 0.0
  %287 = vmatpush1.msra.mxu0 0.0
  %288 = vmatprep.subr.mxu0 0.0
  %289 = vmatpush1.msra.mxu0 0.0
  %290 = vmatprep.subr.mxu0 0.0
  %291 = vmatpush1.msra.mxu0 0.0
  %292 = vmatprep.subr.mxu0 0.0
  %293 = vmatpush1.msra.mxu0 0.0
  %294 = vmatprep.subr.mxu0 0.0
  %295 = vmatpush1.msra.mxu0 0.0
  %296 = vmatprep.subr.mxu0 0.0
  %297 = vmatpush1.msra.mxu0 0.0
  %298 = vmatprep.subr.mxu0 0.0
  %299 = vmatpush1.msra.mxu0 0.0
  %300 = vmatprep.subr.mxu0 0.0
  %301 = vmatpush1.msra.mxu0 0.0
  %302 = vmatprep.subr.mxu0 0.0
  %303 = vmatpush1.msra.mxu0 0.0
  %304 = vmatprep.subr.mxu0 0.0
  %305 = vmatpush1.msra.mxu0 0.0
  %306 = vmatprep.subr.mxu0 0.0
  %307 = vmatpush1.msra.mxu0 0.0
  %308 = vmatprep.subr.mxu0 0.0
  %309 = vmatpush1.msra.mxu0 0.0
  %310 = vmatprep.subr.mxu0 0.0
  %311 = vmatpush1.msra.mxu0 0.0
  %312 = vmatprep.subr.mxu0 0.0
  %313 = vmatpush1.msra.mxu0 0.0
  %314 = vmatprep.subr.mxu0 0.0
  %315 = vmatpush1.msra.mxu0 0.0
  %316 = vmatprep.subr.mxu0 0.0
  %317 = vmatpush1.msra.mxu0 0.0
  %318 = vmatprep.subr.mxu0 0.0
  %319 = vmatpush1.msra.mxu0 0.0
  %320 = vmatprep.mubr.f32.mxu0 0.0
  %321 = vmatmul.mubr.f32.gmra.mrb[0].mxu0 %v101
  %v322 = vpop.f32.mrb[0].mxu0
  %v323 = vadd.f32 %v248, %v322
  %v324 = vpop.f32.mrb[0].mxu0
  %325 = vmatprep.mubr.f32.mxu0 0.0
  %326 = vmatmul.mubr.f32.gmra.mrb[0].mxu0 %v104
  %v327 = vpop.f32.mrb[0].mxu0
  %v328 = vadd.f32 %v253, %v327
  %v329 = vpop.f32.mrb[0].mxu0
  %330 = vdwg.mxu0
  %vm331 = vcmask 801792
  %v332 = vsel %vm331, %v323, 0.0
  %333 = vadd.xlane.f32.xlu0 %v332
  %v334 = vpop.xlane.xlu0 %333
  %v335 = vsel %vm331, %v328, 0.0
  %336 = vadd.xlane.f32.xlu0 %v335
  %v337 = vpop.xlane.xlu0 %336
  %v338 = vrcp.pop 98.0
  %v339 = vmul.f32 %v334, %v338
  %v340 = vmul.f32 %v337, %v338
  %v341 = vsub.f32 %v323, %v339
  %v342 = vsub.f32 %v328, %v340
  %v343 = vmul.f32 %v341, %v341
  %v344 = vmul.f32 %v342, %v342
  %v345 = vsel %vm331, %v343, 0.0
  %346 = vadd.xlane.f32.xlu0 %v345
  %v347 = vpop.xlane.xlu0 %346
  %v348 = vsel %vm331, %v344, 0.0
  %349 = vadd.xlane.f32.xlu0 %v348
  %v350 = vpop.xlane.xlu0 %349
  %v351 = vmul.f32 %v347, %v338
  %v352 = vmul.f32 %v350, %v338
  %v353 = vld [vmem:[%s2] sm:$0xff]
  %v354 = vld [vmem:[%s2 + $0x8] sm:$0xff]
  %v355 = vadd.f32 %v351, 1e-05
  %v356 = vadd.f32 %v352, 1e-05
  %v357 = vrsqrt.pop %v355
  %v358 = vrsqrt.pop %v356
  %v359 = vmul.f32 %v353, %v357
  %v360 = vmul.f32 %v354, %v358
  %v361 = vld [vmem:[%s3] sm:$0xff]
  %v362 = vld [vmem:[%s3 + $0x8] sm:$0xff]
  %v363 = vmul.f32 %v339, %v359
  %v364 = vmul.f32 %v340, %v360
  %v365 = vsub.f32 %v361, %v363
  %v366 = vsub.f32 %v362, %v364
  %368 = vset.pattern.permute.xlu0 0
  %369 = vperm.xlu0 %368, %v359
  %v370 = vpop.permute.xlu0 %369
  %373 = vset.pattern.permute.xlu0 0
  %374 = vperm.xlu0 %373, %v360
  %v375 = vpop.permute.xlu0 %374
  %v377 = vmul.f32 %v323, %v370
  %v378 = vmul.f32 %v328, %v375
  %380 = vset.pattern.permute.xlu0 0
  %381 = vperm.xlu0 %380, %v365
  %v382 = vpop.permute.xlu0 %381
  %385 = vset.pattern.permute.xlu0 0
  %386 = vperm.xlu0 %385, %v366
  %v387 = vpop.permute.xlu0 %386
  %v389 = vadd.f32 %v377, %v382
  %v390 = vadd.f32 %v378, %v387
  %v391 = vmax.f32 %v389, 0.0
  %v392 = vmax.f32 %v390, 0.0
  %393 = vst.msk [vmem:[%s4] sm:$0xff] %vm331, %v391
  %394 = vst.msk [vmem:[%s4 + $0x8] sm:$0xff] %vm331, %v392
  // Predicated region
  $region18: #{vae_cnn_forward.14} parent=0 // pred_check
    _
  $region19: #{vae_cnn_forward.14} parent=0 // pred_check_branch
    %396 = sbr.rel (0) target = $region21
  $region20: #{vae_cnn_forward.14} parent=0 // pred_region
    _
  $region21: #{vae_cnn_forward.14} parent=0 // pred_fallthru
    _
  // Predicated region
  $region22: #{vae_cnn_forward.14} parent=0 // pred_check
    _
  $region23: #{vae_cnn_forward.14} parent=0 // pred_check_branch
    %398 = sbr.rel (0) target = $region25
  $region24: #{vae_cnn_forward.14} parent=0 // pred_region
    _
  $region25: #{vae_cnn_forward.14} parent=0 // pred_fallthru
    _

// kernel: vae_cnn_forward.15
$region0: #{vae_cnn_forward.15}
  #allocation0 [shape = 'u32[]', space=smem, size = 0x4, offset = 0x4, fixed_abs, tag = 'smem constant byte address 0x4 - core index']
  #allocation1 [shape = 'u32[144,128]{1,0:T(1,128)}', space=vmem, size = 0x12000, scoped, tag = 'internal scratch']
  %s0 = inlined_call_operand.vmem [shape: f32[2,784], index: 0, kind: input, shape index: {}]
  %s1 = inlined_call_operand.vmem [shape: f32[2,8], index: 1, kind: input, shape index: {}]
  %s2 = inlined_call_operand.vmem [shape: f32[2,8], index: 2, kind: input, shape index: {}]
  %s3 = inlined_call_operand.vmem [shape: f32[784,128], index: 3, kind: input, shape index: {}]
  %s4 = inlined_call_operand.vmem [shape: f32[1,128], index: 4, kind: input, shape index: {}]
  %s5 = inlined_call_operand.vmem [shape: f32[1,128], index: 5, kind: input, shape index: {}]
  %s6 = inlined_call_operand.vmem [shape: f32[1,128], index: 6, kind: input, shape index: {}]
  %s7 = inlined_call_operand.vmem [shape: f32[128,8], index: 7, kind: input, shape index: {}]
  %s8 = inlined_call_operand.vmem [shape: f32[1,8], index: 8, kind: input, shape index: {}]
  %s9 = inlined_call_operand.vmem [shape: f32[128,8], index: 9, kind: input, shape index: {}]
  %s10 = inlined_call_operand.vmem [shape: f32[1,8], index: 10, kind: input, shape index: {}]
  %s11 = inlined_call_operand.vmem [shape: f32[128,8], index: 11, kind: input, shape index: {}]
  %s12 = inlined_call_operand.vmem [shape: f32[1,8], index: 12, kind: input, shape index: {}]
  %s13 = inlined_call_operand.vmem [shape: f32[128,8], index: 13, kind: input, shape index: {}]
  %s14 = inlined_call_operand.vmem [shape: f32[1,8], index: 14, kind: input, shape index: {}]
  %s15 = inlined_call_operand.vmem [shape: f32[8,128], index: 15, kind: input, shape index: {}]
  %s16 = inlined_call_operand.vmem [shape: f32[1,128], index: 16, kind: input, shape index: {}]
  %s17 = inlined_call_operand.vmem [shape: f32[8,128], index: 17, kind: input, shape index: {}]
  %s18 = inlined_call_operand.vmem [shape: f32[1,128], index: 18, kind: input, shape index: {}]
  %s19 = inlined_call_operand.vmem [shape: f32[128,784], index: 19, kind: input, shape index: {}]
  %s20 = inlined_call_operand.vmem [shape: f32[1,784], index: 20, kind: input, shape index: {}]
  %s21 = inlined_call_operand.hbm [shape: f32[2,8], index: 21, kind: output, shape index: {0}]
  %s22 = inlined_call_operand.hbm [shape: f32[2,8], index: 22, kind: output, shape index: {1}]
  %s23 = inlined_call_operand.hbm [shape: f32[2,8], index: 23, kind: output, shape index: {2}]
  %s24 = inlined_call_operand.hbm [shape: f32[2,8], index: 24, kind: output, shape index: {3}]
  %s25 = inlined_call_operand.vmem [shape: f32[2,784], index: 25, kind: output, shape index: {4}]
  %26 = xla_tuple %s21, %s22, %s23, %s24, %s25
  %s27 = sld [smem:[#allocation0]]
  $region126: #{vae_cnn_forward.15} parent=0
    _
  %s29 = ssub.s32 1, %s27
  %s30 = scalar_select 0, %s29, %s27
  $region1: #{vae_cnn_forward.15} parent=0
    #allocation2 [shape = 'u8[1024]{0}', space=vmem, size = 0x400, scoped, tag = 'output window, operand 0, single buffered']
    #allocation3 [shape = 's32[1]{0}', space=sflag, size = 0x4, scoped, tag = 'scoped memory for vae_cnn_forward.15']
    #allocation4 [shape = 'u8[1024]{0}', space=vmem, size = 0x400, scoped, tag = 'output window, operand 1, single buffered']
    #allocation5 [shape = 's32[1]{0}', space=sflag, size = 0x4, scoped, tag = 'scoped memory for vae_cnn_forward.15']
    #allocation6 [shape = 'u8[1024]{0}', space=vmem, size = 0x400, scoped, tag = 'output window, operand 2, single buffered']
    #allocation7 [shape = 'u8[1024]{0}', space=vmem, size = 0x400, scoped, tag = 'output window, operand 3, single buffered']
    #allocation8 [shape = 's32[1]{0}', space=sflag, size = 0x4, scoped, tag = 'scoped memory for vae_cnn_forward.15']
    %31 = vsyncpa [#allocation3], 0
    %32 = vsyncpa [#allocation5], 0
    %33 = vsyncpa [#allocation8], 0
    // Predicated region
    $region2: #{vae_cnn_forward.15} parent=1 // pred_check
      _
    $region3: #{vae_cnn_forward.15} parent=1 // pred_check_branch
      %35 = sbr.rel (0) target = $region5
    $region4: #{vae_cnn_forward.15} parent=1 // pred_region
      _
    $region5: #{vae_cnn_forward.15} parent=1 // pred_fallthru
      _
    // Predicated region
    $region6: #{vae_cnn_forward.15} parent=1 // pred_check
      _
    $region7: #{vae_cnn_forward.15} parent=1 // pred_check_branch
      %37 = sbr.rel (0) target = $region9
    $region8: #{vae_cnn_forward.15} parent=1 // pred_region
      _
    $region9: #{vae_cnn_forward.15} parent=1 // pred_fallthru
      _
    // Predicated region
    $region10: #{vae_cnn_forward.15} parent=1 // pred_check
      _
    $region11: #{vae_cnn_forward.15} parent=1 // pred_check_branch
      %39 = sbr.rel (0) target = $region13
    $region12: #{vae_cnn_forward.15} parent=1 // pred_region
      _
    $region13: #{vae_cnn_forward.15} parent=1 // pred_fallthru
      _
    // Predicated region
    $region14: #{vae_cnn_forward.15} parent=1 // pred_check
      _
    $region15: #{vae_cnn_forward.15} parent=1 // pred_check_branch
      %41 = sbr.rel (0) target = $region17
    $region16: #{vae_cnn_forward.15} parent=1 // pred_region
      _
    $region17: #{vae_cnn_forward.15} parent=1 // pred_fallthru
      _
    // Predicated region
    $region18: #{vae_cnn_forward.15} parent=1 // pred_check
      _
    $region19: #{vae_cnn_forward.15} parent=1 // pred_check_branch
      %43 = sbr.rel (0) target = $region21
    $region20: #{vae_cnn_forward.15} parent=1 // pred_region
      _
    $region21: #{vae_cnn_forward.15} parent=1 // pred_fallthru
      _
    // Predicated region
    $region22: #{vae_cnn_forward.15} parent=1 // pred_check
      _
    $region23: #{vae_cnn_forward.15} parent=1 // pred_check_branch
      %45 = sbr.rel (0) target = $region25
    $region24: #{vae_cnn_forward.15} parent=1 // pred_region
      _
    $region25: #{vae_cnn_forward.15} parent=1 // pred_fallthru
      _
    // Predicated region
    $region26: #{vae_cnn_forward.15} parent=1 // pred_check
      _
    $region27: #{vae_cnn_forward.15} parent=1 // pred_check_branch
      %47 = sbr.rel (0) target = $region29
    $region28: #{vae_cnn_forward.15} parent=1 // pred_region
      _
    $region29: #{vae_cnn_forward.15} parent=1 // pred_fallthru
      _
    // Predicated region
    $region30: #{vae_cnn_forward.15} parent=1 // pred_check
      _
    $region31: #{vae_cnn_forward.15} parent=1 // pred_check_branch
      %49 = sbr.rel (0) target = $region33
    $region32: #{vae_cnn_forward.15} parent=1 // pred_region
      _
    $region33: #{vae_cnn_forward.15} parent=1 // pred_fallthru
      _
    // Predicated region
    $region34: #{vae_cnn_forward.15} parent=1 // pred_check
      _
    $region35: #{vae_cnn_forward.15} parent=1 // pred_check_branch
      %51 = sbr.rel (0) target = $region37
    $region36: #{vae_cnn_forward.15} parent=1 // pred_region
      _
    $region37: #{vae_cnn_forward.15} parent=1 // pred_fallthru
      _
    // Predicated region
    $region38: #{vae_cnn_forward.15} parent=1 // pred_check
      _
    $region39: #{vae_cnn_forward.15} parent=1 // pred_check_branch
      %53 = sbr.rel (0) target = $region41
    $region40: #{vae_cnn_forward.15} parent=1 // pred_region
      _
    $region41: #{vae_cnn_forward.15} parent=1 // pred_fallthru
      _
    // Predicated region
    $region42: #{vae_cnn_forward.15} parent=1 // pred_check
      _
    $region43: #{vae_cnn_forward.15} parent=1 // pred_check_branch
      %55 = sbr.rel (0) target = $region45
    $region44: #{vae_cnn_forward.15} parent=1 // pred_region
      _
    $region45: #{vae_cnn_forward.15} parent=1 // pred_fallthru
      _
    // Predicated region
    $region46: #{vae_cnn_forward.15} parent=1 // pred_check
      _
    $region47: #{vae_cnn_forward.15} parent=1 // pred_check_branch
      %57 = sbr.rel (0) target = $region49
    $region48: #{vae_cnn_forward.15} parent=1 // pred_region
      _
    $region49: #{vae_cnn_forward.15} parent=1 // pred_fallthru
      _
    // Predicated region
    $region50: #{vae_cnn_forward.15} parent=1 // pred_check
      _
    $region51: #{vae_cnn_forward.15} parent=1 // pred_check_branch
      %59 = sbr.rel (0) target = $region53
    $region52: #{vae_cnn_forward.15} parent=1 // pred_region
      _
    $region53: #{vae_cnn_forward.15} parent=1 // pred_fallthru
      _
    // Predicated region
    $region54: #{vae_cnn_forward.15} parent=1 // pred_check
      _
    $region55: #{vae_cnn_forward.15} parent=1 // pred_check_branch
      %61 = sbr.rel (0) target = $region57
    $region56: #{vae_cnn_forward.15} parent=1 // pred_region
      _
    $region57: #{vae_cnn_forward.15} parent=1 // pred_fallthru
      _
    // Predicated region
    $region58: #{vae_cnn_forward.15} parent=1 // pred_check
      _
    $region59: #{vae_cnn_forward.15} parent=1 // pred_check_branch
      %63 = sbr.rel (0) target = $region61
    $region60: #{vae_cnn_forward.15} parent=1 // pred_region
      _
    $region61: #{vae_cnn_forward.15} parent=1 // pred_fallthru
      _
    // Predicated region
    $region62: #{vae_cnn_forward.15} parent=1 // pred_check
      _
    $region63: #{vae_cnn_forward.15} parent=1 // pred_check_branch
      %65 = sbr.rel (0) target = $region65
    $region64: #{vae_cnn_forward.15} parent=1 // pred_region
      _
    $region65: #{vae_cnn_forward.15} parent=1 // pred_fallthru
      _
    // Predicated region
    $region66: #{vae_cnn_forward.15} parent=1 // pred_check
      _
    $region67: #{vae_cnn_forward.15} parent=1 // pred_check_branch
      %67 = sbr.rel (0) target = $region69
    $region68: #{vae_cnn_forward.15} parent=1 // pred_region
      _
    $region69: #{vae_cnn_forward.15} parent=1 // pred_fallthru
      _
    // Predicated region
    $region70: #{vae_cnn_forward.15} parent=1 // pred_check
      _
    $region71: #{vae_cnn_forward.15} parent=1 // pred_check_branch
      %69 = sbr.rel (0) target = $region73
    $region72: #{vae_cnn_forward.15} parent=1 // pred_region
      _
    $region73: #{vae_cnn_forward.15} parent=1 // pred_fallthru
      _
    // Predicated region
    $region74: #{vae_cnn_forward.15} parent=1 // pred_check
      _
    $region75: #{vae_cnn_forward.15} parent=1 // pred_check_branch
      %71 = sbr.rel (0) target = $region77
    $region76: #{vae_cnn_forward.15} parent=1 // pred_region
      _
    $region77: #{vae_cnn_forward.15} parent=1 // pred_fallthru
      _
    // Predicated region
    $region78: #{vae_cnn_forward.15} parent=1 // pred_check
      _
    $region79: #{vae_cnn_forward.15} parent=1 // pred_check_branch
      %73 = sbr.rel (0) target = $region81
    $region80: #{vae_cnn_forward.15} parent=1 // pred_region
      _
    $region81: #{vae_cnn_forward.15} parent=1 // pred_fallthru
      _
    // Predicated region
    $region82: #{vae_cnn_forward.15} parent=1 // pred_check
      _
    $region83: #{vae_cnn_forward.15} parent=1 // pred_check_branch
      %75 = sbr.rel (0) target = $region85
    $region84: #{vae_cnn_forward.15} parent=1 // pred_region
      _
    $region85: #{vae_cnn_forward.15} parent=1 // pred_fallthru
      _
    %v76 = vld [vmem:[%s0] sm:$0xff]
    %v77 = vld [vmem:[%s0 + $0x8] sm:$0x3f]
    %v78 = vld [vmem:[%s3] sm:$0xff]
    %v79 = vld [vmem:[%s3 + $0x8] sm:$0xff]
    %v80 = vld [vmem:[%s3 + $0x10] sm:$0xff]
    %v81 = vld [vmem:[%s3 + $0x18] sm:$0xff]
    %v82 = vld [vmem:[%s3 + $0x20] sm:$0xff]
    %v83 = vld [vmem:[%s3 + $0x28] sm:$0xff]
    %v84 = vld [vmem:[%s3 + $0x30] sm:$0xff]
    %v85 = vld [vmem:[%s3 + $0x38] sm:$0xff]
    %v86 = vld [vmem:[%s3 + $0x40] sm:$0xff]
    %v87 = vld [vmem:[%s3 + $0x48] sm:$0xff]
    %v88 = vld [vmem:[%s3 + $0x50] sm:$0xff]
    %v89 = vld [vmem:[%s3 + $0x58] sm:$0xff]
    %v90 = vld [vmem:[%s3 + $0x60] sm:$0xff]
    %v91 = vld [vmem:[%s3 + $0x68] sm:$0xff]
    %v92 = vld [vmem:[%s3 + $0x70] sm:$0xff]
    %v93 = vld [vmem:[%s3 + $0x78] sm:$0xff]
    %v94 = vld [vmem:[%s3 + $0x80] sm:$0xff]
    %v95 = vld [vmem:[%s3 + $0x88] sm:$0xff]
    %v96 = vld [vmem:[%s3 + $0x90] sm:$0xff]
    %v97 = vld [vmem:[%s3 + $0x98] sm:$0xff]
    %v98 = vld [vmem:[%s3 + $0xa0] sm:$0xff]
    %v99 = vld [vmem:[%s3 + $0xa8] sm:$0xff]
    %v100 = vld [vmem:[%s3 + $0xb0] sm:$0xff]
    %v101 = vld [vmem:[%s3 + $0xb8] sm:$0xff]
    %v102 = vld [vmem:[%s3 + $0xc0] sm:$0xff]
    %v103 = vld [vmem:[%s3 + $0xc8] sm:$0xff]
    %v104 = vld [vmem:[%s3 + $0xd0] sm:$0xff]
    %v105 = vld [vmem:[%s3 + $0xd8] sm:$0xff]
    %v106 = vld [vmem:[%s3 + $0xe0] sm:$0xff]
    %v107 = vld [vmem:[%s3 + $0xe8] sm:$0xff]
    %v108 = vld [vmem:[%s3 + $0xf0] sm:$0xff]
    %v109 = vld [vmem:[%s3 + $0xf8] sm:$0xff]
    %v110 = vld [vmem:[%s3 + $0x100] sm:$0xff]
    %v111 = vld [vmem:[%s3 + $0x108] sm:$0xff]
    %v112 = vld [vmem:[%s3 + $0x110] sm:$0xff]
    %v113 = vld [vmem:[%s3 + $0x118] sm:$0xff]
    %v114 = vld [vmem:[%s3 + $0x120] sm:$0xff]
    %v115 = vld [vmem:[%s3 + $0x128] sm:$0xff]
    %v116 = vld [vmem:[%s3 + $0x130] sm:$0xff]
    %v117 = vld [vmem:[%s3 + $0x138] sm:$0xff]
    %v118 = vld [vmem:[%s3 + $0x140] sm:$0xff]
    %v119 = vld [vmem:[%s3 + $0x148] sm:$0xff]
    %v120 = vld [vmem:[%s3 + $0x150] sm:$0xff]
    %v121 = vld [vmem:[%s3 + $0x158] sm:$0xff]
    %v122 = vld [vmem:[%s3 + $0x160] sm:$0xff]
    %v123 = vld [vmem:[%s3 + $0x168] sm:$0xff]
    %v124 = vld [vmem:[%s3 + $0x170] sm:$0xff]
    %v125 = vld [vmem:[%s3 + $0x178] sm:$0xff]
    %v126 = vld [vmem:[%s3 + $0x180] sm:$0xff]
    %v127 = vld [vmem:[%s3 + $0x188] sm:$0xff]
    %v128 = vld [vmem:[%s3 + $0x190] sm:$0xff]
    %v129 = vld [vmem:[%s3 + $0x198] sm:$0xff]
    %v130 = vld [vmem:[%s3 + $0x1a0] sm:$0xff]
    %v131 = vld [vmem:[%s3 + $0x1a8] sm:$0xff]
    %v132 = vld [vmem:[%s3 + $0x1b0] sm:$0xff]
    %v133 = vld [vmem:[%s3 + $0x1b8] sm:$0xff]
    %v134 = vld [vmem:[%s3 + $0x1c0] sm:$0xff]
    %v135 = vld [vmem:[%s3 + $0x1c8] sm:$0xff]
    %v136 = vld [vmem:[%s3 + $0x1d0] sm:$0xff]
    %v137 = vld [vmem:[%s3 + $0x1d8] sm:$0xff]
    %v138 = vld [vmem:[%s3 + $0x1e0] sm:$0xff]
    %v139 = vld [vmem:[%s3 + $0x1e8] sm:$0xff]
    %v140 = vld [vmem:[%s3 + $0x1f0] sm:$0xff]
    %v141 = vld [vmem:[%s3 + $0x1f8] sm:$0xff]
    %v142 = vld [vmem:[%s3 + $0x200] sm:$0xff]
    %v143 = vld [vmem:[%s3 + $0x208] sm:$0xff]
    %v144 = vld [vmem:[%s3 + $0x210] sm:$0xff]
    %v145 = vld [vmem:[%s3 + $0x218] sm:$0xff]
    %v146 = vld [vmem:[%s3 + $0x220] sm:$0xff]
    %v147 = vld [vmem:[%s3 + $0x228] sm:$0xff]
    %v148 = vld [vmem:[%s3 + $0x230] sm:$0xff]
    %v149 = vld [vmem:[%s3 + $0x238] sm:$0xff]
    %v150 = vld [vmem:[%s3 + $0x240] sm:$0xff]
    %v151 = vld [vmem:[%s3 + $0x248] sm:$0xff]
    %v152 = vld [vmem:[%s3 + $0x250] sm:$0xff]
    %v153 = vld [vmem:[%s3 + $0x258] sm:$0xff]
    %v154 = vld [vmem:[%s3 + $0x260] sm:$0xff]
    %v155 = vld [vmem:[%s3 + $0x268] sm:$0xff]
    %v156 = vld [vmem:[%s3 + $0x270] sm:$0xff]
    %v157 = vld [vmem:[%s3 + $0x278] sm:$0xff]
    %v158 = vld [vmem:[%s3 + $0x280] sm:$0xff]
    %v159 = vld [vmem:[%s3 + $0x288] sm:$0xff]
    %v160 = vld [vmem:[%s3 + $0x290] sm:$0xff]
    %v161 = vld [vmem:[%s3 + $0x298] sm:$0xff]
    %v162 = vld [vmem:[%s3 + $0x2a0] sm:$0xff]
    %v163 = vld [vmem:[%s3 + $0x2a8] sm:$0xff]
    %v164 = vld [vmem:[%s3 + $0x2b0] sm:$0xff]
    %v165 = vld [vmem:[%s3 + $0x2b8] sm:$0xff]
    %v166 = vld [vmem:[%s3 + $0x2c0] sm:$0xff]
    %v167 = vld [vmem:[%s3 + $0x2c8] sm:$0xff]
    %v168 = vld [vmem:[%s3 + $0x2d0] sm:$0xff]
    %v169 = vld [vmem:[%s3 + $0x2d8] sm:$0xff]
    %v170 = vld [vmem:[%s3 + $0x2e0] sm:$0xff]
    %v171 = vld [vmem:[%s3 + $0x2e8] sm:$0xff]
    %v172 = vld [vmem:[%s3 + $0x2f0] sm:$0xff]
    %v173 = vld [vmem:[%s3 + $0x2f8] sm:$0xff]
    %v174 = vld [vmem:[%s3 + $0x300] sm:$0xff]
    %v175 = vld [vmem:[%s3 + $0x308] sm:$0xff]
    %v176 = vld [vmem:[%s4] sm:$0x1]
    %v178 = vlaneseq
    %v179 = vshrl.u32 %v178, 7
    %v180 = vsub.s32 0, %v179
    %v181 = vrot.slane %v176, %v180
    %v185 = vcombine.high %v76, %v76
    %v187 = vunpack.c.l.s4 1983009808
    %v188 = vunpack.c.0.s8 %v187
    %v189 = vlaneseq
    %v190 = vshrl.u32 %v189, 7
    %v191 = vsub.s32 %v188, %v190
    %v192 = vrot.slane %v76, %v191
    %v194 = vunpack.c.l.s4 1983009808
    %v195 = vunpack.c.0.s8 %v194
    %v196 = vlaneseq
    %v197 = vshrl.u32 %v196, 7
    %v198 = vsub.s32 %v195, %v197
    %v199 = vrot.slane %v185, %v198
    %v200 = vcombine.high %v192, %v192
    %v201 = vcombine.high %v199, %v199
    %v202 = vcombine.high %v77, %v77
    %v204 = vunpack.c.l.s4 1983009808
    %v205 = vunpack.c.0.s8 %v204
    %v206 = vlaneseq
    %v207 = vshrl.u32 %v206, 7
    %v208 = vsub.s32 %v205, %v207
    %v209 = vrot.slane %v77, %v208
    %v211 = vunpack.c.l.s4 1983009808
    %v212 = vunpack.c.0.s8 %v211
    %v213 = vlaneseq
    %v214 = vshrl.u32 %v213, 7
    %v215 = vsub.s32 %v212, %v214
    %v216 = vrot.slane %v202, %v215
    %v217 = vcombine.high %v209, %v209
    %vm224 = vcmask 130048
    %v225 = vsel %vm224, %v216, 0
    %227 = vmatprep.subr.mxu0 0.0
    %228 = vmatpush1.msra.mxu0 %v78
    %229 = vmatprep.subr.mxu0 0.0
    %230 = vmatpush1.msra.mxu0 %v79
    %231 = vmatprep.subr.mxu0 0.0
    %232 = vmatpush1.msra.mxu0 %v80
    %233 = vmatprep.subr.mxu0 0.0
    %234 = vmatpush1.msra.mxu0 %v81
    %235 = vmatprep.subr.mxu0 0.0
    %236 = vmatpush1.msra.mxu0 %v82
    %237 = vmatprep.subr.mxu0 0.0
    %238 = vmatpush1.msra.mxu0 %v83
    %239 = vmatprep.subr.mxu0 0.0
    %240 = vmatpush1.msra.mxu0 %v84
    %241 = vmatprep.subr.mxu0 0.0
    %242 = vmatpush1.msra.mxu0 %v85
    %243 = vmatprep.subr.mxu0 0.0
    %244 = vmatpush1.msra.mxu0 %v86
    %245 = vmatprep.subr.mxu0 0.0
    %246 = vmatpush1.msra.mxu0 %v87
    %247 = vmatprep.subr.mxu0 0.0
    %248 = vmatpush1.msra.mxu0 %v88
    %249 = vmatprep.subr.mxu0 0.0
    %250 = vmatpush1.msra.mxu0 %v89
    %251 = vmatprep.subr.mxu0 0.0
    %252 = vmatpush1.msra.mxu0 %v90
    %253 = vmatprep.subr.mxu0 0.0
    %254 = vmatpush1.msra.mxu0 %v91
    %255 = vmatprep.subr.mxu0 0.0
    %256 = vmatpush1.msra.mxu0 %v92
    %257 = vmatprep.subr.mxu0 0.0
    %258 = vmatpush1.msra.mxu0 %v93
    %259 = vmatprep.subr.mxu0 0.0
    %260 = vmatpush1.msra.mxu0 %v94
    %261 = vmatprep.subr.mxu0 0.0
    %262 = vmatpush1.msra.mxu0 %v95
    %263 = vmatprep.subr.mxu0 0.0
    %264 = vmatpush1.msra.mxu0 %v96
    %265 = vmatprep.subr.mxu0 0.0
    %266 = vmatpush1.msra.mxu0 %v97
    %267 = vmatprep.subr.mxu0 0.0
    %268 = vmatpush1.msra.mxu0 %v98
    %269 = vmatprep.subr.mxu0 0.0
    %270 = vmatpush1.msra.mxu0 %v99
    %271 = vmatprep.subr.mxu0 0.0
    %272 = vmatpush1.msra.mxu0 %v100
    %273 = vmatprep.subr.mxu0 0.0
    %274 = vmatpush1.msra.mxu0 %v101
    %275 = vmatprep.subr.mxu0 0.0
    %276 = vmatpush1.msra.mxu0 %v102
    %277 = vmatprep.subr.mxu0 0.0
    %278 = vmatpush1.msra.mxu0 %v103
    %279 = vmatprep.subr.mxu0 0.0
    %280 = vmatpush1.msra.mxu0 %v104
    %281 = vmatprep.subr.mxu0 0.0
    %282 = vmatpush1.msra.mxu0 %v105
    %283 = vmatprep.subr.mxu0 0.0
    %284 = vmatpush1.msra.mxu0 %v106
    %285 = vmatprep.subr.mxu0 0.0
    %286 = vmatpush1.msra.mxu0 %v107
    %287 = vmatprep.subr.mxu0 0.0
    %288 = vmatpush1.msra.mxu0 %v108
    %289 = vmatprep.subr.mxu0 0.0
    %290 = vmatpush1.msra.mxu0 %v109
    %291 = vmatprep.mubr.f32.mxu0 %v200
    %292 = vmatmul.mubr.f32.gmra.mrb[0].mxu0 %v192
    %v293 = vpop.f32.mrb[0].mxu0
    %v294 = vadd.f32 %v181, %v293
    %v295 = vpop.f32.mrb[0].mxu0
    %296 = vdwg.mxu0
    %297 = vmatprep.subr.mxu0 0.0
    %298 = vmatpush1.msra.mxu0 %v110
    %299 = vmatprep.subr.mxu0 0.0
    %300 = vmatpush1.msra.mxu0 %v111
    %301 = vmatprep.subr.mxu0 0.0
    %302 = vmatpush1.msra.mxu0 %v112
    %303 = vmatprep.subr.mxu0 0.0
    %304 = vmatpush1.msra.mxu0 %v113
    %305 = vmatprep.subr.mxu0 0.0
    %306 = vmatpush1.msra.mxu0 %v114
    %307 = vmatprep.subr.mxu0 0.0
    %308 = vmatpush1.msra.mxu0 %v115
    %309 = vmatprep.subr.mxu0 0.0
    %310 = vmatpush1.msra.mxu0 %v116
    %311 = vmatprep.subr.mxu0 0.0
    %312 = vmatpush1.msra.mxu0 %v117
    %313 = vmatprep.subr.mxu0 0.0
    %314 = vmatpush1.msra.mxu0 %v118
    %315 = vmatprep.subr.mxu0 0.0
    %316 = vmatpush1.msra.mxu0 %v119
    %317 = vmatprep.subr.mxu0 0.0
    %318 = vmatpush1.msra.mxu0 %v120
    %319 = vmatprep.subr.mxu0 0.0
    %320 = vmatpush1.msra.mxu0 %v121
    %321 = vmatprep.subr.mxu0 0.0
    %322 = vmatpush1.msra.mxu0 %v122
    %323 = vmatprep.subr.mxu0 0.0
    %324 = vmatpush1.msra.mxu0 %v123
    %325 = vmatprep.subr.mxu0 0.0
    %326 = vmatpush1.msra.mxu0 %v124
    %327 = vmatprep.subr.mxu0 0.0
    %328 = vmatpush1.msra.mxu0 %v125
    %329 = vmatprep.subr.mxu0 0.0
    %330 = vmatpush1.msra.mxu0 %v126
    %331 = vmatprep.subr.mxu0 0.0
    %332 = vmatpush1.msra.mxu0 %v127
    %333 = vmatprep.subr.mxu0 0.0
    %334 = vmatpush1.msra.mxu0 %v128
    %335 = vmatprep.subr.mxu0 0.0
    %336 = vmatpush1.msra.mxu0 %v129
    %337 = vmatprep.subr.mxu0 0.0
    %338 = vmatpush1.msra.mxu0 %v130
    %339 = vmatprep.subr.mxu0 0.0
    %340 = vmatpush1.msra.mxu0 %v131
    %341 = vmatprep.subr.mxu0 0.0
    %342 = vmatpush1.msra.mxu0 %v132
    %343 = vmatprep.subr.mxu0 0.0
    %344 = vmatpush1.msra.mxu0 %v133
    %345 = vmatprep.subr.mxu0 0.0
    %346 = vmatpush1.msra.mxu0 %v134
    %347 = vmatprep.subr.mxu0 0.0
    %348 = vmatpush1.msra.mxu0 %v135
    %349 = vmatprep.subr.mxu0 0.0
    %350 = vmatpush1.msra.mxu0 %v136
    %351 = vmatprep.subr.mxu0 0.0
    %352 = vmatpush1.msra.mxu0 %v137
    %353 = vmatprep.subr.mxu0 0.0
    %354 = vmatpush1.msra.mxu0 %v138
    %355 = vmatprep.subr.mxu0 0.0
    %356 = vmatpush1.msra.mxu0 %v139
    %357 = vmatprep.subr.mxu0 0.0
    %358 = vmatpush1.msra.mxu0 %v140
    %359 = vmatprep.subr.mxu0 0.0
    %360 = vmatpush1.msra.mxu0 %v141
    %361 = vmatprep.mubr.f32.mxu0 %v201
    %362 = vmatmul.mubr.f32.gmra.mrb[0].mxu0 %v199
    %v363 = vpop.f32.mrb[0].mxu0
    %v364 = vadd.f32 %v294, %v363
    %v365 = vpop.f32.mrb[0].mxu0
    %366 = vdwg.mxu0
    %367 = vmatprep.subr.mxu0 0.0
    %368 = vmatpush1.msra.mxu0 %v142
    %369 = vmatprep.subr.mxu0 0.0
    %370 = vmatpush1.msra.mxu0 %v143
    %371 = vmatprep.subr.mxu0 0.0
    %372 = vmatpush1.msra.mxu0 %v144
    %373 = vmatprep.subr.mxu0 0.0
    %374 = vmatpush1.msra.mxu0 %v145
    %375 = vmatprep.subr.mxu0 0.0
    %376 = vmatpush1.msra.mxu0 %v146
    %377 = vmatprep.subr.mxu0 0.0
    %378 = vmatpush1.msra.mxu0 %v147
    %379 = vmatprep.subr.mxu0 0.0
    %380 = vmatpush1.msra.mxu0 %v148
    %381 = vmatprep.subr.mxu0 0.0
    %382 = vmatpush1.msra.mxu0 %v149
    %383 = vmatprep.subr.mxu0 0.0
    %384 = vmatpush1.msra.mxu0 %v150
    %385 = vmatprep.subr.mxu0 0.0
    %386 = vmatpush1.msra.mxu0 %v151
    %387 = vmatprep.subr.mxu0 0.0
    %388 = vmatpush1.msra.mxu0 %v152
    %389 = vmatprep.subr.mxu0 0.0
    %390 = vmatpush1.msra.mxu0 %v153
    %391 = vmatprep.subr.mxu0 0.0
    %392 = vmatpush1.msra.mxu0 %v154
    %393 = vmatprep.subr.mxu0 0.0
    %394 = vmatpush1.msra.mxu0 %v155
    %395 = vmatprep.subr.mxu0 0.0
    %396 = vmatpush1.msra.mxu0 %v156
    %397 = vmatprep.subr.mxu0 0.0
    %398 = vmatpush1.msra.mxu0 %v157
    %399 = vmatprep.subr.mxu0 0.0
    %400 = vmatpush1.msra.mxu0 %v158
    %401 = vmatprep.subr.mxu0 0.0
    %402 = vmatpush1.msra.mxu0 %v159
    %403 = vmatprep.subr.mxu0 0.0
    %404 = vmatpush1.msra.mxu0 %v160
    %405 = vmatprep.subr.mxu0 0.0
    %406 = vmatpush1.msra.mxu0 %v161
    %407 = vmatprep.subr.mxu0 0.0
    %408 = vmatpush1.msra.mxu0 %v162
    %409 = vmatprep.subr.mxu0 0.0
    %410 = vmatpush1.msra.mxu0 %v163
    %411 = vmatprep.subr.mxu0 0.0
    %412 = vmatpush1.msra.mxu0 %v164
    %413 = vmatprep.subr.mxu0 0.0
    %414 = vmatpush1.msra.mxu0 %v165
    %415 = vmatprep.subr.mxu0 0.0
    %416 = vmatpush1.msra.mxu0 %v166
    %417 = vmatprep.subr.mxu0 0.0
    %418 = vmatpush1.msra.mxu0 %v167
    %419 = vmatprep.subr.mxu0 0.0
    %420 = vmatpush1.msra.mxu0 %v168
    %421 = vmatprep.subr.mxu0 0.0
    %422 = vmatpush1.msra.mxu0 %v169
    %423 = vmatprep.subr.mxu0 0.0
    %424 = vmatpush1.msra.mxu0 %v170
    %425 = vmatprep.subr.mxu0 0.0
    %426 = vmatpush1.msra.mxu0 %v171
    %427 = vmatprep.subr.mxu0 0.0
    %428 = vmatpush1.msra.mxu0 %v172
    %429 = vmatprep.subr.mxu0 0.0
    %430 = vmatpush1.msra.mxu0 %v173
    %431 = vmatprep.mubr.f32.mxu0 %v217
    %432 = vmatmul.mubr.f32.gmra.mrb[0].mxu0 %v209
    %v433 = vpop.f32.mrb[0].mxu0
    %v434 = vadd.f32 %v364, %v433
    %v435 = vpop.f32.mrb[0].mxu0
    %436 = vdwg.mxu0
    %437 = vmatprep.subr.mxu0 0.0
    %438 = vmatpush1.msra.mxu0 %v174
    %439 = vmatprep.subr.mxu0 0.0
    %440 = vmatpush1.msra.mxu0 %v175
    %441 = vmatprep.subr.mxu0 0.0
    %442 = vmatpush1.msra.mxu0 0.0
    %443 = vmatprep.subr.mxu0 0.0
    %444 = vmatpush1.msra.mxu0 0.0
    %445 = vmatprep.subr.mxu0 0.0
    %446 = vmatpush1.msra.mxu0 0.0
    %447 = vmatprep.subr.mxu0 0.0
    %448 = vmatpush1.msra.mxu0 0.0
    %449 = vmatprep.subr.mxu0 0.0
    %450 = vmatpush1.msra.mxu0 0.0
    %451 = vmatprep.subr.mxu0 0.0
    %452 = vmatpush1.msra.mxu0 0.0
    %453 = vmatprep.subr.mxu0 0.0
    %454 = vmatpush1.msra.mxu0 0.0
    %455 = vmatprep.subr.mxu0 0.0
    %456 = vmatpush1.msra.mxu0 0.0
    %457 = vmatprep.subr.mxu0 0.0
    %458 = vmatpush1.msra.mxu0 0.0
    %459 = vmatprep.subr.mxu0 0.0
    %460 = vmatpush1.msra.mxu0 0.0
    %461 = vmatprep.subr.mxu0 0.0
    %462 = vmatpush1.msra.mxu0 0.0
    %463 = vmatprep.subr.mxu0 0.0
    %464 = vmatpush1.msra.mxu0 0.0
    %465 = vmatprep.subr.mxu0 0.0
    %466 = vmatpush1.msra.mxu0 0.0
    %467 = vmatprep.subr.mxu0 0.0
    %468 = vmatpush1.msra.mxu0 0.0
    %469 = vmatprep.subr.mxu0 0.0
    %470 = vmatpush1.msra.mxu0 0.0
    %471 = vmatprep.subr.mxu0 0.0
    %472 = vmatpush1.msra.mxu0 0.0
    %473 = vmatprep.subr.mxu0 0.0
    %474 = vmatpush1.msra.mxu0 0.0
    %475 = vmatprep.subr.mxu0 0.0
    %476 = vmatpush1.msra.mxu0 0.0
    %477 = vmatprep.subr.mxu0 0.0
    %478 = vmatpush1.msra.mxu0 0.0
    %479 = vmatprep.subr.mxu0 0.0
    %480 = vmatpush1.msra.mxu0 0.0
    %481 = vmatprep.subr.mxu0 0.0
    %482 = vmatpush1.msra.mxu0 0.0
    %483 = vmatprep.subr.mxu0 0.0
    %484 = vmatpush1.msra.mxu0 0.0
    %485 = vmatprep.subr.mxu0 0.0
    %486 = vmatpush1.msra.mxu0 0.0
    %487 = vmatprep.subr.mxu0 0.0
    %488 = vmatpush1.msra.mxu0 0.0
    %489 = vmatprep.subr.mxu0 0.0
    %490 = vmatpush1.msra.mxu0 0.0
    %491 = vmatprep.subr.mxu0 0.0
    %492 = vmatpush1.msra.mxu0 0.0
    %493 = vmatprep.subr.mxu0 0.0
    %494 = vmatpush1.msra.mxu0 0.0
    %495 = vmatprep.subr.mxu0 0.0
    %496 = vmatpush1.msra.mxu0 0.0
    %497 = vmatprep.subr.mxu0 0.0
    %498 = vmatpush1.msra.mxu0 0.0
    %499 = vmatprep.subr.mxu0 0.0
    %500 = vmatpush1.msra.mxu0 0.0
    %501 = vmatprep.mubr.f32.mxu0 0.0
    %502 = vmatmul.mubr.f32.gmra.mrb[0].mxu0 %v225
    %v503 = vpop.f32.mrb[0].mxu0
    %v504 = vadd.f32 %v434, %v503
    %v505 = vpop.f32.mrb[0].mxu0
    %506 = vdwg.mxu0
    %vm507 = vcmask 1041408
    %v508 = vsel %vm507, %v504, 0.0
    %v509 = vrot.slane %v508, 4
    %v510 = vadd.f32 %v508, %v509
    %v511 = vrot.slane %v510, 2
    %v512 = vadd.f32 %v510, %v511
    %v513 = vrot.slane %v512, 1
    %v514 = vadd.f32 %v512, %v513
    %v515 = vrcp.pop 2.0
    %v516 = vmul.f32 %v514, %v515
    %v517 = vsub.f32 %v504, %v516
    %v518 = vmul.f32 %v517, %v517
    %v519 = vsel %vm507, %v518, 0.0
    %v520 = vrot.slane %v519, 4
    %v521 = vadd.f32 %v519, %v520
    %v522 = vrot.slane %v521, 2
    %v523 = vadd.f32 %v521, %v522
    %v524 = vrot.slane %v523, 1
    %v525 = vadd.f32 %v523, %v524
    %v526 = vmul.f32 %v525, %v515
    %v527 = vld [vmem:[%s5] sm:$0x1]
    %v528 = vadd.f32 %v526, 1e-05
    %v529 = vrsqrt.pop %v528
    %v530 = vmul.f32 %v527, %v529
    %v532 = vlaneseq
    %v533 = vshrl.u32 %v532, 7
    %v534 = vsub.s32 0, %v533
    %v535 = vrot.slane %v530, %v534
    %v537 = vmul.f32 %v504, %v535
    %v538 = vld [vmem:[%s6] sm:$0x1]
    %v539 = vmul.f32 %v516, %v530
    %v540 = vsub.f32 %v538, %v539
    %v542 = vlaneseq
    %v543 = vshrl.u32 %v542, 7
    %v544 = vsub.s32 0, %v543
    %v545 = vrot.slane %v540, %v544
    %v547 = vadd.f32 %v537, %v545
    %v548 = vmax.f32 %v547, 0.0
    %v549 = vld [vmem:[%s7] sm:$0xff]
    %v550 = vld [vmem:[%s7 + $0x8] sm:$0xff]
    %v551 = vld [vmem:[%s7 + $0x10] sm:$0xff]
    %v552 = vld [vmem:[%s7 + $0x18] sm:$0xff]
    %v553 = vld [vmem:[%s7 + $0x20] sm:$0xff]
    %v554 = vld [vmem:[%s7 + $0x28] sm:$0xff]
    %v555 = vld [vmem:[%s7 + $0x30] sm:$0xff]
    %v556 = vld [vmem:[%s7 + $0x38] sm:$0xff]
    %v557 = vld [vmem:[%s7 + $0x40] sm:$0xff]
    %v558 = vld [vmem:[%s7 + $0x48] sm:$0xff]
    %v559 = vld [vmem:[%s7 + $0x50] sm:$0xff]
    %v560 = vld [vmem:[%s7 + $0x58] sm:$0xff]
    %v561 = vld [vmem:[%s7 + $0x60] sm:$0xff]
    %v562 = vld [vmem:[%s7 + $0x68] sm:$0xff]
    %v563 = vld [vmem:[%s7 + $0x70] sm:$0xff]
    %v564 = vld [vmem:[%s7 + $0x78] sm:$0xff]
    %v565 = vld [vmem:[%s8] sm:$0x1]
    %v567 = vlaneseq
    %v568 = vshrl.u32 %v567, 7
    %v569 = vsub.s32 0, %v568
    %v570 = vrot.slane %v565, %v569
    %572 = vmatprep.subr.mxu0 0.0
    %573 = vmatpush1.msra.mxu0 %v549
    %574 = vmatprep.subr.mxu0 0.0
    %575 = vmatpush1.msra.mxu0 %v550
    %576 = vmatprep.subr.mxu0 0.0
    %577 = vmatpush1.msra.mxu0 %v551
    %578 = vmatprep.subr.mxu0 0.0
    %579 = vmatpush1.msra.mxu0 %v552
    %580 = vmatprep.subr.mxu0 0.0
    %581 = vmatpush1.msra.mxu0 %v553
    %582 = vmatprep.subr.mxu0 0.0
    %583 = vmatpush1.msra.mxu0 %v554
    %584 = vmatprep.subr.mxu0 0.0
    %585 = vmatpush1.msra.mxu0 %v555
    %586 = vmatprep.subr.mxu0 0.0
    %587 = vmatpush1.msra.mxu0 %v556
    %588 = vmatprep.subr.mxu0 0.0
    %589 = vmatpush1.msra.mxu0 %v557
    %590 = vmatprep.subr.mxu0 0.0
    %591 = vmatpush1.msra.mxu0 %v558
    %592 = vmatprep.subr.mxu0 0.0
    %593 = vmatpush1.msra.mxu0 %v559
    %594 = vmatprep.subr.mxu0 0.0
    %595 = vmatpush1.msra.mxu0 %v560
    %596 = vmatprep.subr.mxu0 0.0
    %597 = vmatpush1.msra.mxu0 %v561
    %598 = vmatprep.subr.mxu0 0.0
    %599 = vmatpush1.msra.mxu0 %v562
    %600 = vmatprep.subr.mxu0 0.0
    %601 = vmatpush1.msra.mxu0 %v563
    %602 = vmatprep.subr.mxu0 0.0
    %603 = vmatpush1.msra.mxu0 %v564
    %604 = vmatprep.subr.mxu0 0.0
    %605 = vmatpush1.msra.mxu0 0.0
    %606 = vmatprep.subr.mxu0 0.0
    %607 = vmatpush1.msra.mxu0 0.0
    %608 = vmatprep.subr.mxu0 0.0
    %609 = vmatpush1.msra.mxu0 0.0
    %610 = vmatprep.subr.mxu0 0.0
    %611 = vmatpush1.msra.mxu0 0.0
    %612 = vmatprep.subr.mxu0 0.0
    %613 = vmatpush1.msra.mxu0 0.0
    %614 = vmatprep.subr.mxu0 0.0
    %615 = vmatpush1.msra.mxu0 0.0
    %616 = vmatprep.subr.mxu0 0.0
    %617 = vmatpush1.msra.mxu0 0.0
    %618 = vmatprep.subr.mxu0 0.0
    %619 = vmatpush1.msra.mxu0 0.0
    %620 = vmatprep.subr.mxu0 0.0
    %621 = vmatpush1.msra.mxu0 0.0
    %622 = vmatprep.subr.mxu0 0.0
    %623 = vmatpush1.msra.mxu0 0.0
    %624 = vmatprep.subr.mxu0 0.0
    %625 = vmatpush1.msra.mxu0 0.0
    %626 = vmatprep.subr.mxu0 0.0
    %627 = vmatpush1.msra.mxu0 0.0
    %628 = vmatprep.subr.mxu0 0.0
    %629 = vmatpush1.msra.mxu0 0.0
    %630 = vmatprep.subr.mxu0 0.0
    %631 = vmatpush1.msra.mxu0 0.0
    %632 = vmatprep.subr.mxu0 0.0
    %633 = vmatpush1.msra.mxu0 0.0
    %634 = vmatprep.subr.mxu0 0.0
    %635 = vmatpush1.msra.mxu0 0.0
    %636 = vmatprep.mubr.f32.mxu0 0.0
    %637 = vmatmul.mubr.f32.gmra.mrb[0].mxu0 %v548
    %v638 = vpop.f32.mrb[0].mxu0
    %v639 = vadd.f32 %v570, %v638
    %v640 = vpop.f32.mrb[0].mxu0
    %641 = vdwg.mxu0
    %v642 = vld [vmem:[%s9] sm:$0xff]
    %v643 = vld [vmem:[%s9 + $0x8] sm:$0xff]
    %v644 = vld [vmem:[%s9 + $0x10] sm:$0xff]
    %v645 = vld [vmem:[%s9 + $0x18] sm:$0xff]
    %v646 = vld [vmem:[%s9 + $0x20] sm:$0xff]
    %v647 = vld [vmem:[%s9 + $0x28] sm:$0xff]
    %v648 = vld [vmem:[%s9 + $0x30] sm:$0xff]
    %v649 = vld [vmem:[%s9 + $0x38] sm:$0xff]
    %v650 = vld [vmem:[%s9 + $0x40] sm:$0xff]
    %v651 = vld [vmem:[%s9 + $0x48] sm:$0xff]
    %v652 = vld [vmem:[%s9 + $0x50] sm:$0xff]
    %v653 = vld [vmem:[%s9 + $0x58] sm:$0xff]
    %v654 = vld [vmem:[%s9 + $0x60] sm:$0xff]
    %v655 = vld [vmem:[%s9 + $0x68] sm:$0xff]
    %v656 = vld [vmem:[%s9 + $0x70] sm:$0xff]
    %v657 = vld [vmem:[%s9 + $0x78] sm:$0xff]
    %v658 = vld [vmem:[%s10] sm:$0x1]
    %v660 = vlaneseq
    %v661 = vshrl.u32 %v660, 7
    %v662 = vsub.s32 0, %v661
    %v663 = vrot.slane %v658, %v662
    %665 = vmatprep.subr.mxu0 0.0
    %666 = vmatpush1.msra.mxu0 %v642
    %667 = vmatprep.subr.mxu0 0.0
    %668 = vmatpush1.msra.mxu0 %v643
    %669 = vmatprep.subr.mxu0 0.0
    %670 = vmatpush1.msra.mxu0 %v644
    %671 = vmatprep.subr.mxu0 0.0
    %672 = vmatpush1.msra.mxu0 %v645
    %673 = vmatprep.subr.mxu0 0.0
    %674 = vmatpush1.msra.mxu0 %v646
    %675 = vmatprep.subr.mxu0 0.0
    %676 = vmatpush1.msra.mxu0 %v647
    %677 = vmatprep.subr.mxu0 0.0
    %678 = vmatpush1.msra.mxu0 %v648
    %679 = vmatprep.subr.mxu0 0.0
    %680 = vmatpush1.msra.mxu0 %v649
    %681 = vmatprep.subr.mxu0 0.0
    %682 = vmatpush1.msra.mxu0 %v650
    %683 = vmatprep.subr.mxu0 0.0
    %684 = vmatpush1.msra.mxu0 %v651
    %685 = vmatprep.subr.mxu0 0.0
    %686 = vmatpush1.msra.mxu0 %v652
    %687 = vmatprep.subr.mxu0 0.0
    %688 = vmatpush1.msra.mxu0 %v653
    %689 = vmatprep.subr.mxu0 0.0
    %690 = vmatpush1.msra.mxu0 %v654
    %691 = vmatprep.subr.mxu0 0.0
    %692 = vmatpush1.msra.mxu0 %v655
    %693 = vmatprep.subr.mxu0 0.0
    %694 = vmatpush1.msra.mxu0 %v656
    %695 = vmatprep.subr.mxu0 0.0
    %696 = vmatpush1.msra.mxu0 %v657
    %697 = vmatprep.subr.mxu0 0.0
    %698 = vmatpush1.msra.mxu0 0.0
    %699 = vmatprep.subr.mxu0 0.0
    %700 = vmatpush1.msra.mxu0 0.0
    %701 = vmatprep.subr.mxu0 0.0
    %702 = vmatpush1.msra.mxu0 0.0
    %703 = vmatprep.subr.mxu0 0.0
    %704 = vmatpush1.msra.mxu0 0.0
    %705 = vmatprep.subr.mxu0 0.0
    %706 = vmatpush1.msra.mxu0 0.0
    %707 = vmatprep.subr.mxu0 0.0
    %708 = vmatpush1.msra.mxu0 0.0
    %709 = vmatprep.subr.mxu0 0.0
    %710 = vmatpush1.msra.mxu0 0.0
    %711 = vmatprep.subr.mxu0 0.0
    %712 = vmatpush1.msra.mxu0 0.0
    %713 = vmatprep.subr.mxu0 0.0
    %714 = vmatpush1.msra.mxu0 0.0
    %715 = vmatprep.subr.mxu0 0.0
    %716 = vmatpush1.msra.mxu0 0.0
    %717 = vmatprep.subr.mxu0 0.0
    %718 = vmatpush1.msra.mxu0 0.0
    %719 = vmatprep.subr.mxu0 0.0
    %720 = vmatpush1.msra.mxu0 0.0
    %721 = vmatprep.subr.mxu0 0.0
    %722 = vmatpush1.msra.mxu0 0.0
    %723 = vmatprep.subr.mxu0 0.0
    %724 = vmatpush1.msra.mxu0 0.0
    %725 = vmatprep.subr.mxu0 0.0
    %726 = vmatpush1.msra.mxu0 0.0
    %727 = vmatprep.subr.mxu0 0.0
    %728 = vmatpush1.msra.mxu0 0.0
    %729 = vmatprep.mubr.f32.mxu0 0.0
    %730 = vmatmul.mubr.f32.gmra.mrb[0].mxu0 %v548
    %v731 = vpop.f32.mrb[0].mxu0
    %v732 = vadd.f32 %v663, %v731
    %v733 = vpop.f32.mrb[0].mxu0
    %734 = vdwg.mxu0
    %v735 = vld [vmem:[%s11] sm:$0xff]
    %v736 = vld [vmem:[%s11 + $0x8] sm:$0xff]
    %v737 = vld [vmem:[%s11 + $0x10] sm:$0xff]
    %v738 = vld [vmem:[%s11 + $0x18] sm:$0xff]
    %v739 = vld [vmem:[%s11 + $0x20] sm:$0xff]
    %v740 = vld [vmem:[%s11 + $0x28] sm:$0xff]
    %v741 = vld [vmem:[%s11 + $0x30] sm:$0xff]
    %v742 = vld [vmem:[%s11 + $0x38] sm:$0xff]
    %v743 = vld [vmem:[%s11 + $0x40] sm:$0xff]
    %v744 = vld [vmem:[%s11 + $0x48] sm:$0xff]
    %v745 = vld [vmem:[%s11 + $0x50] sm:$0xff]
    %v746 = vld [vmem:[%s11 + $0x58] sm:$0xff]
    %v747 = vld [vmem:[%s11 + $0x60] sm:$0xff]
    %v748 = vld [vmem:[%s11 + $0x68] sm:$0xff]
    %v749 = vld [vmem:[%s11 + $0x70] sm:$0xff]
    %v750 = vld [vmem:[%s11 + $0x78] sm:$0xff]
    %v751 = vld [vmem:[%s12] sm:$0x1]
    %v753 = vlaneseq
    %v754 = vshrl.u32 %v753, 7
    %v755 = vsub.s32 0, %v754
    %v756 = vrot.slane %v751, %v755
    %758 = vmatprep.subr.mxu0 0.0
    %759 = vmatpush1.msra.mxu0 %v735
    %760 = vmatprep.subr.mxu0 0.0
    %761 = vmatpush1.msra.mxu0 %v736
    %762 = vmatprep.subr.mxu0 0.0
    %763 = vmatpush1.msra.mxu0 %v737
    %764 = vmatprep.subr.mxu0 0.0
    %765 = vmatpush1.msra.mxu0 %v738
    %766 = vmatprep.subr.mxu0 0.0
    %767 = vmatpush1.msra.mxu0 %v739
    %768 = vmatprep.subr.mxu0 0.0
    %769 = vmatpush1.msra.mxu0 %v740
    %770 = vmatprep.subr.mxu0 0.0
    %771 = vmatpush1.msra.mxu0 %v741
    %772 = vmatprep.subr.mxu0 0.0
    %773 = vmatpush1.msra.mxu0 %v742
    %774 = vmatprep.subr.mxu0 0.0
    %775 = vmatpush1.msra.mxu0 %v743
    %776 = vmatprep.subr.mxu0 0.0
    %777 = vmatpush1.msra.mxu0 %v744
    %778 = vmatprep.subr.mxu0 0.0
    %779 = vmatpush1.msra.mxu0 %v745
    %780 = vmatprep.subr.mxu0 0.0
    %781 = vmatpush1.msra.mxu0 %v746
    %782 = vmatprep.subr.mxu0 0.0
    %783 = vmatpush1.msra.mxu0 %v747
    %784 = vmatprep.subr.mxu0 0.0
    %785 = vmatpush1.msra.mxu0 %v748
    %786 = vmatprep.subr.mxu0 0.0
    %787 = vmatpush1.msra.mxu0 %v749
    %788 = vmatprep.subr.mxu0 0.0
    %789 = vmatpush1.msra.mxu0 %v750
    %790 = vmatprep.subr.mxu0 0.0
    %791 = vmatpush1.msra.mxu0 0.0
    %792 = vmatprep.subr.mxu0 0.0
    %793 = vmatpush1.msra.mxu0 0.0
    %794 = vmatprep.subr.mxu0 0.0
    %795 = vmatpush1.msra.mxu0 0.0
    %796 = vmatprep.subr.mxu0 0.0
    %797 = vmatpush1.msra.mxu0 0.0
    %798 = vmatprep.subr.mxu0 0.0
    %799 = vmatpush1.msra.mxu0 0.0
    %800 = vmatprep.subr.mxu0 0.0
    %801 = vmatpush1.msra.mxu0 0.0
    %802 = vmatprep.subr.mxu0 0.0
    %803 = vmatpush1.msra.mxu0 0.0
    %804 = vmatprep.subr.mxu0 0.0
    %805 = vmatpush1.msra.mxu0 0.0
    %806 = vmatprep.subr.mxu0 0.0
    %807 = vmatpush1.msra.mxu0 0.0
    %808 = vmatprep.subr.mxu0 0.0
    %809 = vmatpush1.msra.mxu0 0.0
    %810 = vmatprep.subr.mxu0 0.0
    %811 = vmatpush1.msra.mxu0 0.0
    %812 = vmatprep.subr.mxu0 0.0
    %813 = vmatpush1.msra.mxu0 0.0
    %814 = vmatprep.subr.mxu0 0.0
    %815 = vmatpush1.msra.mxu0 0.0
    %816 = vmatprep.subr.mxu0 0.0
    %817 = vmatpush1.msra.mxu0 0.0
    %818 = vmatprep.subr.mxu0 0.0
    %819 = vmatpush1.msra.mxu0 0.0
    %820 = vmatprep.subr.mxu0 0.0
    %821 = vmatpush1.msra.mxu0 0.0
    %822 = vmatprep.mubr.f32.mxu0 0.0
    %823 = vmatmul.mubr.f32.gmra.mrb[0].mxu0 %v548
    %v824 = vpop.f32.mrb[0].mxu0
    %v825 = vadd.f32 %v756, %v824
    %v826 = vpop.f32.mrb[0].mxu0
    %827 = vdwg.mxu0
    %v828 = vld [vmem:[%s13] sm:$0xff]
    %v829 = vld [vmem:[%s13 + $0x8] sm:$0xff]
    %v830 = vld [vmem:[%s13 + $0x10] sm:$0xff]
    %v831 = vld [vmem:[%s13 + $0x18] sm:$0xff]
    %v832 = vld [vmem:[%s13 + $0x20] sm:$0xff]
    %v833 = vld [vmem:[%s13 + $0x28] sm:$0xff]
    %v834 = vld [vmem:[%s13 + $0x30] sm:$0xff]
    %v835 = vld [vmem:[%s13 + $0x38] sm:$0xff]
    %v836 = vld [vmem:[%s13 + $0x40] sm:$0xff]
    %v837 = vld [vmem:[%s13 + $0x48] sm:$0xff]
    %v838 = vld [vmem:[%s13 + $0x50] sm:$0xff]
    %v839 = vld [vmem:[%s13 + $0x58] sm:$0xff]
    %v840 = vld [vmem:[%s13 + $0x60] sm:$0xff]
    %v841 = vld [vmem:[%s13 + $0x68] sm:$0xff]
    %v842 = vld [vmem:[%s13 + $0x70] sm:$0xff]
    %v843 = vld [vmem:[%s13 + $0x78] sm:$0xff]
    %v844 = vld [vmem:[%s14] sm:$0x1]
    %v846 = vlaneseq
    %v847 = vshrl.u32 %v846, 7
    %v848 = vsub.s32 0, %v847
    %v849 = vrot.slane %v844, %v848
    %851 = vmatprep.subr.mxu0 0.0
    %852 = vmatpush1.msra.mxu0 %v828
    %853 = vmatprep.subr.mxu0 0.0
    %854 = vmatpush1.msra.mxu0 %v829
    %855 = vmatprep.subr.mxu0 0.0
    %856 = vmatpush1.msra.mxu0 %v830
    %857 = vmatprep.subr.mxu0 0.0
    %858 = vmatpush1.msra.mxu0 %v831
    %859 = vmatprep.subr.mxu0 0.0
    %860 = vmatpush1.msra.mxu0 %v832
    %861 = vmatprep.subr.mxu0 0.0
    %862 = vmatpush1.msra.mxu0 %v833
    %863 = vmatprep.subr.mxu0 0.0
    %864 = vmatpush1.msra.mxu0 %v834
    %865 = vmatprep.subr.mxu0 0.0
    %866 = vmatpush1.msra.mxu0 %v835
    %867 = vmatprep.subr.mxu0 0.0
    %868 = vmatpush1.msra.mxu0 %v836
    %869 = vmatprep.subr.mxu0 0.0
    %870 = vmatpush1.msra.mxu0 %v837
    %871 = vmatprep.subr.mxu0 0.0
    %872 = vmatpush1.msra.mxu0 %v838
    %873 = vmatprep.subr.mxu0 0.0
    %874 = vmatpush1.msra.mxu0 %v839
    %875 = vmatprep.subr.mxu0 0.0
    %876 = vmatpush1.msra.mxu0 %v840
    %877 = vmatprep.subr.mxu0 0.0
    %878 = vmatpush1.msra.mxu0 %v841
    %879 = vmatprep.subr.mxu0 0.0
    %880 = vmatpush1.msra.mxu0 %v842
    %881 = vmatprep.subr.mxu0 0.0
    %882 = vmatpush1.msra.mxu0 %v843
    %883 = vmatprep.subr.mxu0 0.0
    %884 = vmatpush1.msra.mxu0 0.0
    %885 = vmatprep.subr.mxu0 0.0
    %886 = vmatpush1.msra.mxu0 0.0
    %887 = vmatprep.subr.mxu0 0.0
    %888 = vmatpush1.msra.mxu0 0.0
    %889 = vmatprep.subr.mxu0 0.0
    %890 = vmatpush1.msra.mxu0 0.0
    %891 = vmatprep.subr.mxu0 0.0
    %892 = vmatpush1.msra.mxu0 0.0
    %893 = vmatprep.subr.mxu0 0.0
    %894 = vmatpush1.msra.mxu0 0.0
    %895 = vmatprep.subr.mxu0 0.0
    %896 = vmatpush1.msra.mxu0 0.0
    %897 = vmatprep.subr.mxu0 0.0
    %898 = vmatpush1.msra.mxu0 0.0
    %899 = vmatprep.subr.mxu0 0.0
    %900 = vmatpush1.msra.mxu0 0.0
    %901 = vmatprep.subr.mxu0 0.0
    %902 = vmatpush1.msra.mxu0 0.0
    %903 = vmatprep.subr.mxu0 0.0
    %904 = vmatpush1.msra.mxu0 0.0
    %905 = vmatprep.subr.mxu0 0.0
    %906 = vmatpush1.msra.mxu0 0.0
    %907 = vmatprep.subr.mxu0 0.0
    %908 = vmatpush1.msra.mxu0 0.0
    %909 = vmatprep.subr.mxu0 0.0
    %910 = vmatpush1.msra.mxu0 0.0
    %911 = vmatprep.subr.mxu0 0.0
    %912 = vmatpush1.msra.mxu0 0.0
    %913 = vmatprep.subr.mxu0 0.0
    %914 = vmatpush1.msra.mxu0 0.0
    %915 = vmatprep.mubr.f32.mxu0 0.0
    %916 = vmatmul.mubr.f32.gmra.mrb[0].mxu0 %v548
    %v917 = vpop.f32.mrb[0].mxu0
    %v918 = vadd.f32 %v849, %v917
    %v919 = vpop.f32.mrb[0].mxu0
    %920 = vdwg.mxu0
    %vm921 = vcmask 58368
    %922 = vst.msk [vmem:[#allocation2] sm:$0x3] %vm921, %v639
    %923 = vst.msk [vmem:[#allocation4] sm:$0x3] %vm921, %v732
    %924 = vst.msk [vmem:[#allocation6] sm:$0x3] %vm921, %v825
    %925 = vst.msk [vmem:[#allocation7] sm:$0x3] %vm921, %v918
    %v926 = vld [vmem:[%s1] sm:$0x3]
    %v927 = vmul.f32 %v732, 0.5
    %v928 = vmul.f32 %v927, 1.442695
    %v929 = vpow.pop %v928
    %v930 = vmul.f32 %v926, %v929
    %v931 = vadd.f32 %v639, %v930
    %v932 = vld [vmem:[%s2] sm:$0x3]
    %v933 = vmul.f32 %v918, 0.5
    %v934 = vmul.f32 %v933, 1.442695
    %v935 = vpow.pop %v934
    %v936 = vmul.f32 %v932, %v935
    %v937 = vadd.f32 %v825, %v936
    %v938 = vld [vmem:[%s15] sm:$0xff]
    %v939 = vld [vmem:[%s16] sm:$0x1]
    %v941 = vlaneseq
    %v942 = vshrl.u32 %v941, 7
    %v943 = vsub.s32 0, %v942
    %v944 = vrot.slane %v939, %v943
    %vm946 = vcmask 64512
    %v948 = vsel %vm946, %v937, 0
    %950 = vmatprep.subr.mxu0 0.0
    %951 = vmatpush1.msra.mxu0 %v938
    %952 = vmatprep.subr.mxu0 0.0
    %953 = vmatpush1.msra.mxu0 0.0
    %954 = vmatprep.subr.mxu0 0.0
    %955 = vmatpush1.msra.mxu0 0.0
    %956 = vmatprep.subr.mxu0 0.0
    %957 = vmatpush1.msra.mxu0 0.0
    %958 = vmatprep.subr.mxu0 0.0
    %959 = vmatpush1.msra.mxu0 0.0
    %960 = vmatprep.subr.mxu0 0.0
    %961 = vmatpush1.msra.mxu0 0.0
    %962 = vmatprep.subr.mxu0 0.0
    %963 = vmatpush1.msra.mxu0 0.0
    %964 = vmatprep.subr.mxu0 0.0
    %965 = vmatpush1.msra.mxu0 0.0
    %966 = vmatprep.subr.mxu0 0.0
    %967 = vmatpush1.msra.mxu0 0.0
    %968 = vmatprep.subr.mxu0 0.0
    %969 = vmatpush1.msra.mxu0 0.0
    %970 = vmatprep.subr.mxu0 0.0
    %971 = vmatpush1.msra.mxu0 0.0
    %972 = vmatprep.subr.mxu0 0.0
    %973 = vmatpush1.msra.mxu0 0.0
    %974 = vmatprep.subr.mxu0 0.0
    %975 = vmatpush1.msra.mxu0 0.0
    %976 = vmatprep.subr.mxu0 0.0
    %977 = vmatpush1.msra.mxu0 0.0
    %978 = vmatprep.subr.mxu0 0.0
    %979 = vmatpush1.msra.mxu0 0.0
    %980 = vmatprep.subr.mxu0 0.0
    %981 = vmatpush1.msra.mxu0 0.0
    %982 = vmatprep.subr.mxu0 0.0
    %983 = vmatpush1.msra.mxu0 0.0
    %984 = vmatprep.subr.mxu0 0.0
    %985 = vmatpush1.msra.mxu0 0.0
    %986 = vmatprep.subr.mxu0 0.0
    %987 = vmatpush1.msra.mxu0 0.0
    %988 = vmatprep.subr.mxu0 0.0
    %989 = vmatpush1.msra.mxu0 0.0
    %990 = vmatprep.subr.mxu0 0.0
    %991 = vmatpush1.msra.mxu0 0.0
    %992 = vmatprep.subr.mxu0 0.0
    %993 = vmatpush1.msra.mxu0 0.0
    %994 = vmatprep.subr.mxu0 0.0
    %995 = vmatpush1.msra.mxu0 0.0
    %996 = vmatprep.subr.mxu0 0.0
    %997 = vmatpush1.msra.mxu0 0.0
    %998 = vmatprep.subr.mxu0 0.0
    %999 = vmatpush1.msra.mxu0 0.0
    %1000 = vmatprep.subr.mxu0 0.0
    %1001 = vmatpush1.msra.mxu0 0.0
    %1002 = vmatprep.subr.mxu0 0.0
    %1003 = vmatpush1.msra.mxu0 0.0
    %1004 = vmatprep.subr.mxu0 0.0
    %1005 = vmatpush1.msra.mxu0 0.0
    %1006 = vmatprep.subr.mxu0 0.0
    %1007 = vmatpush1.msra.mxu0 0.0
    %1008 = vmatprep.subr.mxu0 0.0
    %1009 = vmatpush1.msra.mxu0 0.0
    %1010 = vmatprep.subr.mxu0 0.0
    %1011 = vmatpush1.msra.mxu0 0.0
    %1012 = vmatprep.subr.mxu0 0.0
    %1013 = vmatpush1.msra.mxu0 0.0
    %1014 = vmatprep.mubr.f32.mxu0 0.0
    %1015 = vmatmul.mubr.f32.gmra.mrb[0].mxu0 %v948
    %v1016 = vpop.f32.mrb[0].mxu0
    %v1017 = vadd.f32 %v944, %v1016
    %v1018 = vpop.f32.mrb[0].mxu0
    %1019 = vdwg.mxu0
    %v1020 = vmax.f32 %v1017, 0.0
    %v1021 = vld [vmem:[%s17] sm:$0xff]
    %v1022 = vld [vmem:[%s18] sm:$0x1]
    %v1024 = vlaneseq
    %v1025 = vshrl.u32 %v1024, 7
    %v1026 = vsub.s32 0, %v1025
    %v1027 = vrot.slane %v1022, %v1026
    %v1030 = vsel %vm946, %v931, 0
    %1032 = vmatprep.subr.mxu0 0.0
    %1033 = vmatpush1.msra.mxu0 %v1021
    %1034 = vmatprep.subr.mxu0 0.0
    %1035 = vmatpush1.msra.mxu0 0.0
    %1036 = vmatprep.subr.mxu0 0.0
    %1037 = vmatpush1.msra.mxu0 0.0
    %1038 = vmatprep.subr.mxu0 0.0
    %1039 = vmatpush1.msra.mxu0 0.0
    %1040 = vmatprep.subr.mxu0 0.0
    %1041 = vmatpush1.msra.mxu0 0.0
    %1042 = vmatprep.subr.mxu0 0.0
    %1043 = vmatpush1.msra.mxu0 0.0
    %1044 = vmatprep.subr.mxu0 0.0
    %1045 = vmatpush1.msra.mxu0 0.0
    %1046 = vmatprep.subr.mxu0 0.0
    %1047 = vmatpush1.msra.mxu0 0.0
    %1048 = vmatprep.subr.mxu0 0.0
    %1049 = vmatpush1.msra.mxu0 0.0
    %1050 = vmatprep.subr.mxu0 0.0
    %1051 = vmatpush1.msra.mxu0 0.0
    %1052 = vmatprep.subr.mxu0 0.0
    %1053 = vmatpush1.msra.mxu0 0.0
    %1054 = vmatprep.subr.mxu0 0.0
    %1055 = vmatpush1.msra.mxu0 0.0
    %1056 = vmatprep.subr.mxu0 0.0
    %1057 = vmatpush1.msra.mxu0 0.0
    %1058 = vmatprep.subr.mxu0 0.0
    %1059 = vmatpush1.msra.mxu0 0.0
    %1060 = vmatprep.subr.mxu0 0.0
    %1061 = vmatpush1.msra.mxu0 0.0
    %1062 = vmatprep.subr.mxu0 0.0
    %1063 = vmatpush1.msra.mxu0 0.0
    %1064 = vmatprep.subr.mxu0 0.0
    %1065 = vmatpush1.msra.mxu0 0.0
    %1066 = vmatprep.subr.mxu0 0.0
    %1067 = vmatpush1.msra.mxu0 0.0
    %1068 = vmatprep.subr.mxu0 0.0
    %1069 = vmatpush1.msra.mxu0 0.0
    %1070 = vmatprep.subr.mxu0 0.0
    %1071 = vmatpush1.msra.mxu0 0.0
    %1072 = vmatprep.subr.mxu0 0.0
    %1073 = vmatpush1.msra.mxu0 0.0
    %1074 = vmatprep.subr.mxu0 0.0
    %1075 = vmatpush1.msra.mxu0 0.0
    %1076 = vmatprep.subr.mxu0 0.0
    %1077 = vmatpush1.msra.mxu0 0.0
    %1078 = vmatprep.subr.mxu0 0.0
    %1079 = vmatpush1.msra.mxu0 0.0
    %1080 = vmatprep.subr.mxu0 0.0
    %1081 = vmatpush1.msra.mxu0 0.0
    %1082 = vmatprep.subr.mxu0 0.0
    %1083 = vmatpush1.msra.mxu0 0.0
    %1084 = vmatprep.subr.mxu0 0.0
    %1085 = vmatpush1.msra.mxu0 0.0
    %1086 = vmatprep.subr.mxu0 0.0
    %1087 = vmatpush1.msra.mxu0 0.0
    %1088 = vmatprep.subr.mxu0 0.0
    %1089 = vmatpush1.msra.mxu0 0.0
    %1090 = vmatprep.subr.mxu0 0.0
    %1091 = vmatpush1.msra.mxu0 0.0
    %1092 = vmatprep.subr.mxu0 0.0
    %1093 = vmatpush1.msra.mxu0 0.0
    %1094 = vmatprep.subr.mxu0 0.0
    %1095 = vmatpush1.msra.mxu0 0.0
    %1096 = vmatprep.mubr.f32.mxu0 0.0
    %1097 = vmatmul.mubr.f32.gmra.mrb[0].mxu0 %v1030
    %v1098 = vpop.f32.mrb[0].mxu0
    %v1099 = vadd.f32 %v1027, %v1098
    %v1100 = vpop.f32.mrb[0].mxu0
    %1101 = vdwg.mxu0
    %v1102 = vmax.f32 %v1099, 0.0
    %v1103 = vmul.f32 %v1020, 1.2
    %v1104 = vadd.f32 %v1103, %v1102
    %v1105 = vld [vmem:[%s19] sm:$0xff]
    %v1106 = vld [vmem:[%s19 + $0x8] sm:$0xff]
    %v1107 = vld [vmem:[%s19 + $0x10] sm:$0xff]
    %v1108 = vld [vmem:[%s19 + $0x18] sm:$0xff]
    %v1109 = vld [vmem:[%s19 + $0x20] sm:$0xff]
    %v1110 = vld [vmem:[%s19 + $0x28] sm:$0xff]
    %v1111 = vld [vmem:[%s19 + $0x30] sm:$0xff]
    %v1112 = vld [vmem:[%s19 + $0x38] sm:$0xff]
    %v1113 = vld [vmem:[%s19 + $0x40] sm:$0xff]
    %v1114 = vld [vmem:[%s19 + $0x48] sm:$0xff]
    %v1115 = vld [vmem:[%s19 + $0x50] sm:$0xff]
    %v1116 = vld [vmem:[%s19 + $0x58] sm:$0xff]
    %v1117 = vld [vmem:[%s19 + $0x60] sm:$0xff]
    %v1118 = vld [vmem:[%s19 + $0x68] sm:$0xff]
    %v1119 = vld [vmem:[%s19 + $0x70] sm:$0xff]
    %v1120 = vld [vmem:[%s19 + $0x78] sm:$0xff]
    %v1121 = vld [vmem:[%s19 + $0x80] sm:$0xff]
    %v1122 = vld [vmem:[%s19 + $0x88] sm:$0xff]
    %v1123 = vld [vmem:[%s19 + $0x90] sm:$0xff]
    %v1124 = vld [vmem:[%s19 + $0x98] sm:$0xff]
    %v1125 = vld [vmem:[%s19 + $0xa0] sm:$0xff]
    %v1126 = vld [vmem:[%s19 + $0xa8] sm:$0xff]
    %v1127 = vld [vmem:[%s19 + $0xb0] sm:$0xff]
    %v1128 = vld [vmem:[%s19 + $0xb8] sm:$0xff]
    %v1129 = vld [vmem:[%s19 + $0xc0] sm:$0xff]
    %v1130 = vld [vmem:[%s19 + $0xc8] sm:$0xff]
    %v1131 = vld [vmem:[%s19 + $0xd0] sm:$0xff]
    %v1132 = vld [vmem:[%s19 + $0xd8] sm:$0xff]
    %v1133 = vld [vmem:[%s19 + $0xe0] sm:$0xff]
    %v1134 = vld [vmem:[%s19 + $0xe8] sm:$0xff]
    %v1135 = vld [vmem:[%s19 + $0xf0] sm:$0xff]
    %v1136 = vld [vmem:[%s19 + $0xf8] sm:$0xff]
    %v1137 = vld [vmem:[%s19 + $0x100] sm:$0xff]
    %v1138 = vld [vmem:[%s19 + $0x108] sm:$0xff]
    %v1139 = vld [vmem:[%s19 + $0x110] sm:$0xff]
    %v1140 = vld [vmem:[%s19 + $0x118] sm:$0xff]
    %v1141 = vld [vmem:[%s19 + $0x120] sm:$0xff]
    %v1142 = vld [vmem:[%s19 + $0x128] sm:$0xff]
    %v1143 = vld [vmem:[%s19 + $0x130] sm:$0xff]
    %v1144 = vld [vmem:[%s19 + $0x138] sm:$0xff]
    %v1145 = vld [vmem:[%s19 + $0x140] sm:$0xff]
    %v1146 = vld [vmem:[%s19 + $0x148] sm:$0xff]
    %v1147 = vld [vmem:[%s19 + $0x150] sm:$0xff]
    %v1148 = vld [vmem:[%s19 + $0x158] sm:$0xff]
    %v1149 = vld [vmem:[%s19 + $0x160] sm:$0xff]
    %v1150 = vld [vmem:[%s19 + $0x168] sm:$0xff]
    %v1151 = vld [vmem:[%s19 + $0x170] sm:$0xff]
    %v1152 = vld [vmem:[%s19 + $0x178] sm:$0xff]
    %v1153 = vld [vmem:[%s19 + $0x180] sm:$0xff]
    %v1154 = vld [vmem:[%s19 + $0x188] sm:$0xff]
    %v1155 = vld [vmem:[%s19 + $0x190] sm:$0xff]
    %v1156 = vld [vmem:[%s19 + $0x198] sm:$0xff]
    %v1157 = vld [vmem:[%s19 + $0x1a0] sm:$0xff]
    %v1158 = vld [vmem:[%s19 + $0x1a8] sm:$0xff]
    %v1159 = vld [vmem:[%s19 + $0x1b0] sm:$0xff]
    %v1160 = vld [vmem:[%s19 + $0x1b8] sm:$0xff]
    %v1161 = vld [vmem:[%s19 + $0x1c0] sm:$0xff]
    %v1162 = vld [vmem:[%s19 + $0x1c8] sm:$0xff]
    %v1163 = vld [vmem:[%s19 + $0x1d0] sm:$0xff]
    %v1164 = vld [vmem:[%s19 + $0x1d8] sm:$0xff]
    %v1165 = vld [vmem:[%s19 + $0x1e0] sm:$0xff]
    %v1166 = vld [vmem:[%s19 + $0x1e8] sm:$0xff]
    %v1167 = vld [vmem:[%s19 + $0x1f0] sm:$0xff]
    %v1168 = vld [vmem:[%s19 + $0x1f8] sm:$0xff]
    %v1169 = vld [vmem:[%s19 + $0x200] sm:$0xff]
    %v1170 = vld [vmem:[%s19 + $0x208] sm:$0xff]
    %v1171 = vld [vmem:[%s19 + $0x210] sm:$0xff]
    %v1172 = vld [vmem:[%s19 + $0x218] sm:$0xff]
    %v1173 = vld [vmem:[%s19 + $0x220] sm:$0xff]
    %v1174 = vld [vmem:[%s19 + $0x228] sm:$0xff]
    %v1175 = vld [vmem:[%s19 + $0x230] sm:$0xff]
    %v1176 = vld [vmem:[%s19 + $0x238] sm:$0xff]
    %v1177 = vld [vmem:[%s19 + $0x240] sm:$0xff]
    %v1178 = vld [vmem:[%s19 + $0x248] sm:$0xff]
    %v1179 = vld [vmem:[%s19 + $0x250] sm:$0xff]
    %v1180 = vld [vmem:[%s19 + $0x258] sm:$0xff]
    %v1181 = vld [vmem:[%s19 + $0x260] sm:$0xff]
    %v1182 = vld [vmem:[%s19 + $0x268] sm:$0xff]
    %v1183 = vld [vmem:[%s19 + $0x270] sm:$0xff]
    %v1184 = vld [vmem:[%s19 + $0x278] sm:$0xff]
    %v1185 = vld [vmem:[%s19 + $0x280] sm:$0xff]
    %v1186 = vld [vmem:[%s19 + $0x288] sm:$0xff]
    %v1187 = vld [vmem:[%s19 + $0x290] sm:$0xff]
    %v1188 = vld [vmem:[%s19 + $0x298] sm:$0xff]
    %v1189 = vld [vmem:[%s19 + $0x2a0] sm:$0xff]
    %v1190 = vld [vmem:[%s19 + $0x2a8] sm:$0xff]
    %v1191 = vld [vmem:[%s19 + $0x2b0] sm:$0xff]
    %v1192 = vld [vmem:[%s19 + $0x2b8] sm:$0xff]
    %v1193 = vld [vmem:[%s19 + $0x2c0] sm:$0xff]
    %v1194 = vld [vmem:[%s19 + $0x2c8] sm:$0xff]
    %v1195 = vld [vmem:[%s19 + $0x2d0] sm:$0xff]
    %v1196 = vld [vmem:[%s19 + $0x2d8] sm:$0xff]
    %v1197 = vld [vmem:[%s19 + $0x2e0] sm:$0xff]
    %v1198 = vld [vmem:[%s19 + $0x2e8] sm:$0xff]
    %v1199 = vld [vmem:[%s19 + $0x2f0] sm:$0xff]
    %v1200 = vld [vmem:[%s19 + $0x2f8] sm:$0xff]
    %v1201 = vld [vmem:[%s19 + $0x300] sm:$0xff]
    %v1202 = vld [vmem:[%s19 + $0x308] sm:$0xff]
    %v1203 = vld [vmem:[%s19 + $0x310] sm:$0xff]
    %v1204 = vld [vmem:[%s19 + $0x318] sm:$0xff]
    %v1205 = vld [vmem:[%s19 + $0x320] sm:$0xff]
    %v1206 = vld [vmem:[%s19 + $0x328] sm:$0xff]
    %v1207 = vld [vmem:[%s19 + $0x330] sm:$0xff]
    %v1208 = vld [vmem:[%s19 + $0x338] sm:$0xff]
    %v1209 = vld [vmem:[%s19 + $0x340] sm:$0xff]
    %v1210 = vld [vmem:[%s19 + $0x348] sm:$0xff]
    %v1211 = vld [vmem:[%s19 + $0x350] sm:$0xff]
    %v1212 = vld [vmem:[%s19 + $0x358] sm:$0xff]
    %v1213 = vld [vmem:[%s19 + $0x360] sm:$0xff]
    %v1214 = vld [vmem:[%s19 + $0x368] sm:$0xff]
    %v1215 = vld [vmem:[%s19 + $0x370] sm:$0xff]
    %v1216 = vld [vmem:[%s19 + $0x378] sm:$0xff]
    %v1217 = vld [vmem:[%s20] sm:$0x7f]
    %v1219 = vlaneseq
    %v1220 = vshrl.u32 %v1219, 7
    %v1221 = vsub.s32 0, %v1220
    %v1222 = vrot.slane %v1217, %v1221
    %v1223 = vlaneseq
    %v1224 = vshrl.u32 %v1223, 7
    %v1225 = vsub.s32 1, %v1224
    %v1226 = vrot.slane %v1217, %v1225
    %v1227 = vlaneseq
    %v1228 = vshrl.u32 %v1227, 7
    %v1229 = vsub.s32 2, %v1228
    %v1230 = vrot.slane %v1217, %v1229
    %v1231 = vlaneseq
    %v1232 = vshrl.u32 %v1231, 7
    %v1233 = vsub.s32 3, %v1232
    %v1234 = vrot.slane %v1217, %v1233
    %v1235 = vlaneseq
    %v1236 = vshrl.u32 %v1235, 7
    %v1237 = vsub.s32 4, %v1236
    %v1238 = vrot.slane %v1217, %v1237
    %v1239 = vlaneseq
    %v1240 = vshrl.u32 %v1239, 7
    %v1241 = vsub.s32 5, %v1240
    %v1242 = vrot.slane %v1217, %v1241
    %v1243 = vlaneseq
    %v1244 = vshrl.u32 %v1243, 7
    %v1245 = vsub.s32 6, %v1244
    %v1246 = vrot.slane %v1217, %v1245
    %1254 = vmatprep.subr.mxu0 %v1106
    %1255 = vmatpush1.msra.mxu0 %v1105
    %1256 = vmatprep.subr.mxu0 %v1113
    %1257 = vmatpush1.msra.mxu0 %v1112
    %1258 = vmatprep.subr.mxu0 %v1120
    %1259 = vmatpush1.msra.mxu0 %v1119
    %1260 = vmatprep.subr.mxu0 %v1127
    %1261 = vmatpush1.msra.mxu0 %v1126
    %1262 = vmatprep.subr.mxu0 %v1134
    %1263 = vmatpush1.msra.mxu0 %v1133
    %1264 = vmatprep.subr.mxu0 %v1141
    %1265 = vmatpush1.msra.mxu0 %v1140
    %1266 = vmatprep.subr.mxu0 %v1148
    %1267 = vmatpush1.msra.mxu0 %v1147
    %1268 = vmatprep.subr.mxu0 %v1155
    %1269 = vmatpush1.msra.mxu0 %v1154
    %1270 = vmatprep.subr.mxu0 %v1162
    %1271 = vmatpush1.msra.mxu0 %v1161
    %1272 = vmatprep.subr.mxu0 %v1169
    %1273 = vmatpush1.msra.mxu0 %v1168
    %1274 = vmatprep.subr.mxu0 %v1176
    %1275 = vmatpush1.msra.mxu0 %v1175
    %1276 = vmatprep.subr.mxu0 %v1183
    %1277 = vmatpush1.msra.mxu0 %v1182
    %1278 = vmatprep.subr.mxu0 %v1190
    %1279 = vmatpush1.msra.mxu0 %v1189
    %1280 = vmatprep.subr.mxu0 %v1197
    %1281 = vmatpush1.msra.mxu0 %v1196
    %1282 = vmatprep.subr.mxu0 %v1204
    %1283 = vmatpush1.msra.mxu0 %v1203
    %1284 = vmatprep.subr.mxu0 %v1211
    %1285 = vmatpush1.msra.mxu0 %v1210
    %1286 = vmatprep.subr.mxu0 0.0
    %1287 = vmatpush1.msra.mxu0 0.0
    %1288 = vmatprep.subr.mxu0 0.0
    %1289 = vmatpush1.msra.mxu0 0.0
    %1290 = vmatprep.subr.mxu0 0.0
    %1291 = vmatpush1.msra.mxu0 0.0
    %1292 = vmatprep.subr.mxu0 0.0
    %1293 = vmatpush1.msra.mxu0 0.0
    %1294 = vmatprep.subr.mxu0 0.0
    %1295 = vmatpush1.msra.mxu0 0.0
    %1296 = vmatprep.subr.mxu0 0.0
    %1297 = vmatpush1.msra.mxu0 0.0
    %1298 = vmatprep.subr.mxu0 0.0
    %1299 = vmatpush1.msra.mxu0 0.0
    %1300 = vmatprep.subr.mxu0 0.0
    %1301 = vmatpush1.msra.mxu0 0.0
    %1302 = vmatprep.subr.mxu0 0.0
    %1303 = vmatpush1.msra.mxu0 0.0
    %1304 = vmatprep.subr.mxu0 0.0
    %1305 = vmatpush1.msra.mxu0 0.0
    %1306 = vmatprep.subr.mxu0 0.0
    %1307 = vmatpush1.msra.mxu0 0.0
    %1308 = vmatprep.subr.mxu0 0.0
    %1309 = vmatpush1.msra.mxu0 0.0
    %1310 = vmatprep.subr.mxu0 0.0
    %1311 = vmatpush1.msra.mxu0 0.0
    %1312 = vmatprep.subr.mxu0 0.0
    %1313 = vmatpush1.msra.mxu0 0.0
    %1314 = vmatprep.subr.mxu0 0.0
    %1315 = vmatpush1.msra.mxu0 0.0
    %1316 = vmatprep.subr.mxu0 0.0
    %1317 = vmatpush1.msra.mxu0 0.0
    %1318 = vmatprep.mubr.f32.mxu0 0.0
    %1319 = vmatmul.mubr.f32.gmra.mrb[0].mxu0 %v1104
    %v1320 = vpop.f32.mrb[0].mxu0
    %v1321 = vadd.f32 %v1222, %v1320
    %v1322 = vpop.f32.mrb[0].mxu0
    %v1323 = vadd.f32 %v1226, %v1322
    %1324 = vdwg.mxu0
    %1325 = vmatprep.subr.mxu0 %v1108
    %1326 = vmatpush1.msra.mxu0 %v1107
    %1327 = vmatprep.subr.mxu0 %v1115
    %1328 = vmatpush1.msra.mxu0 %v1114
    %1329 = vmatprep.subr.mxu0 %v1122
    %1330 = vmatpush1.msra.mxu0 %v1121
    %1331 = vmatprep.subr.mxu0 %v1129
    %1332 = vmatpush1.msra.mxu0 %v1128
    %1333 = vmatprep.subr.mxu0 %v1136
    %1334 = vmatpush1.msra.mxu0 %v1135
    %1335 = vmatprep.subr.mxu0 %v1143
    %1336 = vmatpush1.msra.mxu0 %v1142
    %1337 = vmatprep.subr.mxu0 %v1150
    %1338 = vmatpush1.msra.mxu0 %v1149
    %1339 = vmatprep.subr.mxu0 %v1157
    %1340 = vmatpush1.msra.mxu0 %v1156
    %1341 = vmatprep.subr.mxu0 %v1164
    %1342 = vmatpush1.msra.mxu0 %v1163
    %1343 = vmatprep.subr.mxu0 %v1171
    %1344 = vmatpush1.msra.mxu0 %v1170
    %1345 = vmatprep.subr.mxu0 %v1178
    %1346 = vmatpush1.msra.mxu0 %v1177
    %1347 = vmatprep.subr.mxu0 %v1185
    %1348 = vmatpush1.msra.mxu0 %v1184
    %1349 = vmatprep.subr.mxu0 %v1192
    %1350 = vmatpush1.msra.mxu0 %v1191
    %1351 = vmatprep.subr.mxu0 %v1199
    %1352 = vmatpush1.msra.mxu0 %v1198
    %1353 = vmatprep.subr.mxu0 %v1206
    %1354 = vmatpush1.msra.mxu0 %v1205
    %1355 = vmatprep.subr.mxu0 %v1213
    %1356 = vmatpush1.msra.mxu0 %v1212
    %1357 = vmatprep.subr.mxu0 0.0
    %1358 = vmatpush1.msra.mxu0 0.0
    %1359 = vmatprep.subr.mxu0 0.0
    %1360 = vmatpush1.msra.mxu0 0.0
    %1361 = vmatprep.subr.mxu0 0.0
    %1362 = vmatpush1.msra.mxu0 0.0
    %1363 = vmatprep.subr.mxu0 0.0
    %1364 = vmatpush1.msra.mxu0 0.0
    %1365 = vmatprep.subr.mxu0 0.0
    %1366 = vmatpush1.msra.mxu0 0.0
    %1367 = vmatprep.subr.mxu0 0.0
    %1368 = vmatpush1.msra.mxu0 0.0
    %1369 = vmatprep.subr.mxu0 0.0
    %1370 = vmatpush1.msra.mxu0 0.0
    %1371 = vmatprep.subr.mxu0 0.0
    %1372 = vmatpush1.msra.mxu0 0.0
    %1373 = vmatprep.subr.mxu0 0.0
    %1374 = vmatpush1.msra.mxu0 0.0
    %1375 = vmatprep.subr.mxu0 0.0
    %1376 = vmatpush1.msra.mxu0 0.0
    %1377 = vmatprep.subr.mxu0 0.0
    %1378 = vmatpush1.msra.mxu0 0.0
    %1379 = vmatprep.subr.mxu0 0.0
    %1380 = vmatpush1.msra.mxu0 0.0
    %1381 = vmatprep.subr.mxu0 0.0
    %1382 = vmatpush1.msra.mxu0 0.0
    %1383 = vmatprep.subr.mxu0 0.0
    %1384 = vmatpush1.msra.mxu0 0.0
    %1385 = vmatprep.subr.mxu0 0.0
    %1386 = vmatpush1.msra.mxu0 0.0
    %1387 = vmatprep.subr.mxu0 0.0
    %1388 = vmatpush1.msra.mxu0 0.0
    %1389 = vmatprep.mubr.f32.mxu0 0.0
    %1390 = vmatmul.mubr.f32.gmra.mrb[0].mxu0 %v1104
    %v1391 = vpop.f32.mrb[0].mxu0
    %v1392 = vadd.f32 %v1230, %v1391
    %v1393 = vpop.f32.mrb[0].mxu0
    %v1394 = vadd.f32 %v1234, %v1393
    %1395 = vdwg.mxu0
    %1396 = vmatprep.subr.mxu0 %v1110
    %1397 = vmatpush1.msra.mxu0 %v1109
    %1398 = vmatprep.subr.mxu0 %v1117
    %1399 = vmatpush1.msra.mxu0 %v1116
    %1400 = vmatprep.subr.mxu0 %v1124
    %1401 = vmatpush1.msra.mxu0 %v1123
    %1402 = vmatprep.subr.mxu0 %v1131
    %1403 = vmatpush1.msra.mxu0 %v1130
    %1404 = vmatprep.subr.mxu0 %v1138
    %1405 = vmatpush1.msra.mxu0 %v1137
    %1406 = vmatprep.subr.mxu0 %v1145
    %1407 = vmatpush1.msra.mxu0 %v1144
    %1408 = vmatprep.subr.mxu0 %v1152
    %1409 = vmatpush1.msra.mxu0 %v1151
    %1410 = vmatprep.subr.mxu0 %v1159
    %1411 = vmatpush1.msra.mxu0 %v1158
    %1412 = vmatprep.subr.mxu0 %v1166
    %1413 = vmatpush1.msra.mxu0 %v1165
    %1414 = vmatprep.subr.mxu0 %v1173
    %1415 = vmatpush1.msra.mxu0 %v1172
    %1416 = vmatprep.subr.mxu0 %v1180
    %1417 = vmatpush1.msra.mxu0 %v1179
    %1418 = vmatprep.subr.mxu0 %v1187
    %1419 = vmatpush1.msra.mxu0 %v1186
    %1420 = vmatprep.subr.mxu0 %v1194
    %1421 = vmatpush1.msra.mxu0 %v1193
    %1422 = vmatprep.subr.mxu0 %v1201
    %1423 = vmatpush1.msra.mxu0 %v1200
    %1424 = vmatprep.subr.mxu0 %v1208
    %1425 = vmatpush1.msra.mxu0 %v1207
    %1426 = vmatprep.subr.mxu0 %v1215
    %1427 = vmatpush1.msra.mxu0 %v1214
    %1428 = vmatprep.subr.mxu0 0.0
    %1429 = vmatpush1.msra.mxu0 0.0
    %1430 = vmatprep.subr.mxu0 0.0
    %1431 = vmatpush1.msra.mxu0 0.0
    %1432 = vmatprep.subr.mxu0 0.0
    %1433 = vmatpush1.msra.mxu0 0.0
    %1434 = vmatprep.subr.mxu0 0.0
    %1435 = vmatpush1.msra.mxu0 0.0
    %1436 = vmatprep.subr.mxu0 0.0
    %1437 = vmatpush1.msra.mxu0 0.0
    %1438 = vmatprep.subr.mxu0 0.0
    %1439 = vmatpush1.msra.mxu0 0.0
    %1440 = vmatprep.subr.mxu0 0.0
    %1441 = vmatpush1.msra.mxu0 0.0
    %1442 = vmatprep.subr.mxu0 0.0
    %1443 = vmatpush1.msra.mxu0 0.0
    %1444 = vmatprep.subr.mxu0 0.0
    %1445 = vmatpush1.msra.mxu0 0.0
    %1446 = vmatprep.subr.mxu0 0.0
    %1447 = vmatpush1.msra.mxu0 0.0
    %1448 = vmatprep.subr.mxu0 0.0
    %1449 = vmatpush1.msra.mxu0 0.0
    %1450 = vmatprep.subr.mxu0 0.0
    %1451 = vmatpush1.msra.mxu0 0.0
    %1452 = vmatprep.subr.mxu0 0.0
    %1453 = vmatpush1.msra.mxu0 0.0
    %1454 = vmatprep.subr.mxu0 0.0
    %1455 = vmatpush1.msra.mxu0 0.0
    %1456 = vmatprep.subr.mxu0 0.0
    %1457 = vmatpush1.msra.mxu0 0.0
    %1458 = vmatprep.subr.mxu0 0.0
    %1459 = vmatpush1.msra.mxu0 0.0
    %1460 = vmatprep.mubr.f32.mxu0 0.0
    %1461 = vmatmul.mubr.f32.gmra.mrb[0].mxu0 %v1104
    %v1462 = vpop.f32.mrb[0].mxu0
    %v1463 = vadd.f32 %v1238, %v1462
    %v1464 = vpop.f32.mrb[0].mxu0
    %v1465 = vadd.f32 %v1242, %v1464
    %1466 = vdwg.mxu0
    %1467 = vmatprep.subr.mxu0 0.0
    %1468 = vmatpush1.msra.mxu0 %v1111
    %1469 = vmatprep.subr.mxu0 0.0
    %1470 = vmatpush1.msra.mxu0 %v1118
    %1471 = vmatprep.subr.mxu0 0.0
    %1472 = vmatpush1.msra.mxu0 %v1125
    %1473 = vmatprep.subr.mxu0 0.0
    %1474 = vmatpush1.msra.mxu0 %v1132
    %1475 = vmatprep.subr.mxu0 0.0
    %1476 = vmatpush1.msra.mxu0 %v1139
    %1477 = vmatprep.subr.mxu0 0.0
    %1478 = vmatpush1.msra.mxu0 %v1146
    %1479 = vmatprep.subr.mxu0 0.0
    %1480 = vmatpush1.msra.mxu0 %v1153
    %1481 = vmatprep.subr.mxu0 0.0
    %1482 = vmatpush1.msra.mxu0 %v1160
    %1483 = vmatprep.subr.mxu0 0.0
    %1484 = vmatpush1.msra.mxu0 %v1167
    %1485 = vmatprep.subr.mxu0 0.0
    %1486 = vmatpush1.msra.mxu0 %v1174
    %1487 = vmatprep.subr.mxu0 0.0
    %1488 = vmatpush1.msra.mxu0 %v1181
    %1489 = vmatprep.subr.mxu0 0.0
    %1490 = vmatpush1.msra.mxu0 %v1188
    %1491 = vmatprep.subr.mxu0 0.0
    %1492 = vmatpush1.msra.mxu0 %v1195
    %1493 = vmatprep.subr.mxu0 0.0
    %1494 = vmatpush1.msra.mxu0 %v1202
    %1495 = vmatprep.subr.mxu0 0.0
    %1496 = vmatpush1.msra.mxu0 %v1209
    %1497 = vmatprep.subr.mxu0 0.0
    %1498 = vmatpush1.msra.mxu0 %v1216
    %1499 = vmatprep.subr.mxu0 0.0
    %1500 = vmatpush1.msra.mxu0 0.0
    %1501 = vmatprep.subr.mxu0 0.0
    %1502 = vmatpush1.msra.mxu0 0.0
    %1503 = vmatprep.subr.mxu0 0.0
    %1504 = vmatpush1.msra.mxu0 0.0
    %1505 = vmatprep.subr.mxu0 0.0
    %1506 = vmatpush1.msra.mxu0 0.0
    %1507 = vmatprep.subr.mxu0 0.0
    %1508 = vmatpush1.msra.mxu0 0.0
    %1509 = vmatprep.subr.mxu0 0.0
    %1510 = vmatpush1.msra.mxu0 0.0
    %1511 = vmatprep.subr.mxu0 0.0
    %1512 = vmatpush1.msra.mxu0 0.0
    %1513 = vmatprep.subr.mxu0 0.0
    %1514 = vmatpush1.msra.mxu0 0.0
    %1515 = vmatprep.subr.mxu0 0.0
    %1516 = vmatpush1.msra.mxu0 0.0
    %1517 = vmatprep.subr.mxu0 0.0
    %1518 = vmatpush1.msra.mxu0 0.0
    %1519 = vmatprep.subr.mxu0 0.0
    %1520 = vmatpush1.msra.mxu0 0.0
    %1521 = vmatprep.subr.mxu0 0.0
    %1522 = vmatpush1.msra.mxu0 0.0
    %1523 = vmatprep.subr.mxu0 0.0
    %1524 = vmatpush1.msra.mxu0 0.0
    %1525 = vmatprep.subr.mxu0 0.0
    %1526 = vmatpush1.msra.mxu0 0.0
    %1527 = vmatprep.subr.mxu0 0.0
    %1528 = vmatpush1.msra.mxu0 0.0
    %1529 = vmatprep.subr.mxu0 0.0
    %1530 = vmatpush1.msra.mxu0 0.0
    %1531 = vmatprep.mubr.f32.mxu0 0.0
    %1532 = vmatmul.mubr.f32.gmra.mrb[0].mxu0 %v1104
    %v1533 = vpop.f32.mrb[0].mxu0
    %v1534 = vadd.f32 %v1246, %v1533
    %v1535 = vpop.f32.mrb[0].mxu0
    %1536 = vdwg.mxu0
    %v1537 = vmax.f32 %v1321, 0.0
    %v1538 = vmax.f32 %v1323, 0.0
    %v1539 = vmax.f32 %v1392, 0.0
    %v1540 = vmax.f32 %v1394, 0.0
    %v1541 = vmax.f32 %v1463, 0.0
    %v1542 = vmax.f32 %v1465, 0.0
    %v1543 = vmax.f32 %v1534, 0.0
    %v1551 = vcombine.low %v1537, %v1538
    %v1552 = vcombine.low %v1539, %v1540
    %v1554 = vunpack.c.l.s4 1983009808
    %v1555 = vunpack.c.0.s8 %v1554
    %v1556 = vlaneseq
    %v1557 = vshrl.u32 %v1556, 7
    %v1558 = vsub.s32 %v1555, %v1557
    %v1559 = vrot.slane %v1551, %v1558
    %v1561 = vunpack.c.l.s4 1983009808
    %v1562 = vunpack.c.0.s8 %v1561
    %v1563 = vlaneseq
    %v1564 = vshrl.u32 %v1563, 7
    %v1565 = vsub.s32 %v1562, %v1564
    %v1566 = vrot.slane %v1552, %v1565
    %v1567 = vcombine.low %v1559, %v1566
    %v1568 = vcombine.low %v1541, %v1542
    %v1570 = vunpack.c.l.s4 1983009808
    %v1571 = vunpack.c.0.s8 %v1570
    %v1572 = vlaneseq
    %v1573 = vshrl.u32 %v1572, 7
    %v1574 = vsub.s32 %v1571, %v1573
    %v1575 = vrot.slane %v1568, %v1574
    %v1577 = vunpack.c.l.s4 1983009808
    %v1578 = vunpack.c.0.s8 %v1577
    %v1579 = vlaneseq
    %v1580 = vshrl.u32 %v1579, 7
    %v1581 = vsub.s32 %v1578, %v1580
    %v1582 = vrot.slane %v1543, %v1581
    %v1583 = vcombine.low %v1575, %v1582
    %1586 = vst [vmem:[%s25] sm:$0xff] %v1567
    %vm1587 = vcmask 1043458
    %vm1588 = vmor %vm1587, %vm507
    %vm1589 = vcmask 128004
    %vm1590 = vmor %vm1589, %vm1588
    %1591 = vst.msk [vmem:[%s25 + $0x8] sm:$0x3f] %vm1590, %v1583
    // Predicated region
    $region86: #{vae_cnn_forward.15} parent=1 // pred_check
      _
    $region87: #{vae_cnn_forward.15} parent=1 // pred_check_branch
      %1593 = sbr.rel (0) target = $region89
    $region88: #{vae_cnn_forward.15} parent=1 // pred_region
      %s1595 = ssub.s32 32, 32
      %1596 = vsyncadd [#allocation3], %s1595
      %s1598 = sshll.u32 [#allocation2], 4
      %s1599 = int_to_ptr.vmem [resolvable:$true] %s1598
      %1601 = dma.vmem_to_hbm [thread:$0]  %s1599, 32, %s21, [#allocation3]
    $region89: #{vae_cnn_forward.15} parent=1 // pred_fallthru
      _
    // Predicated region
    $region90: #{vae_cnn_forward.15} parent=1 // pred_check
      _
    $region91: #{vae_cnn_forward.15} parent=1 // pred_check_branch
      %1603 = sbr.rel (0) target = $region93
    $region92: #{vae_cnn_forward.15} parent=1 // pred_region
      %s1605 = ssub.s32 32, 32
      %1606 = vsyncadd [#allocation5], %s1605
      %s1608 = sshll.u32 [#allocation4], 4
      %s1609 = int_to_ptr.vmem [resolvable:$true] %s1608
      %1611 = dma.vmem_to_hbm [thread:$0]  %s1609, 32, %s22, [#allocation5]
    $region93: #{vae_cnn_forward.15} parent=1 // pred_fallthru
      _
    // Predicated region
    $region94: #{vae_cnn_forward.15} parent=1 // pred_check
      _
    $region95: #{vae_cnn_forward.15} parent=1 // pred_check_branch
      %1613 = sbr.rel (0) target = $region97
    $region96: #{vae_cnn_forward.15} parent=1 // pred_region
      %s1615 = ssub.s32 32, 32
      %1616 = vsyncadd [#allocation5], %s1615
      %s1618 = sshll.u32 [#allocation6], 4
      %s1619 = int_to_ptr.vmem [resolvable:$true] %s1618
      %1621 = dma.vmem_to_hbm [thread:$0]  %s1619, 32, %s23, [#allocation5]
    $region97: #{vae_cnn_forward.15} parent=1 // pred_fallthru
      _
    // Predicated region
    $region98: #{vae_cnn_forward.15} parent=1 // pred_check
      _
    $region99: #{vae_cnn_forward.15} parent=1 // pred_check_branch
      %1623 = sbr.rel (0) target = $region101
    $region100: #{vae_cnn_forward.15} parent=1 // pred_region
      %s1625 = ssub.s32 32, 32
      %1626 = vsyncadd [#allocation8], %s1625
      %s1628 = sshll.u32 [#allocation7], 4
      %s1629 = int_to_ptr.vmem [resolvable:$true] %s1628
      %1631 = dma.vmem_to_hbm [thread:$0]  %s1629, 32, %s24, [#allocation8]
    $region101: #{vae_cnn_forward.15} parent=1 // pred_fallthru
      _
    // Predicated region
    $region102: #{vae_cnn_forward.15} parent=1 // pred_check
      _
    $region103: #{vae_cnn_forward.15} parent=1 // pred_check_branch
      %1633 = sbr.rel (0) target = $region105
    $region104: #{vae_cnn_forward.15} parent=1 // pred_region
      _
    $region105: #{vae_cnn_forward.15} parent=1 // pred_fallthru
      _
    // Predicated region
    $region106: #{vae_cnn_forward.15} parent=1 // pred_check
      _
    $region107: #{vae_cnn_forward.15} parent=1 // pred_check_branch
      %1635 = sbr.rel (0) target = $region109
    $region108: #{vae_cnn_forward.15} parent=1 // pred_region
      %1636 = dma.done [#allocation3], 32
    $region109: #{vae_cnn_forward.15} parent=1 // pred_fallthru
      _
    // Predicated region
    $region110: #{vae_cnn_forward.15} parent=1 // pred_check
      _
    $region111: #{vae_cnn_forward.15} parent=1 // pred_check_branch
      %1638 = sbr.rel (0) target = $region113
    $region112: #{vae_cnn_forward.15} parent=1 // pred_region
      %1639 = dma.done [#allocation5], 32
    $region113: #{vae_cnn_forward.15} parent=1 // pred_fallthru
      _
    // Predicated region
    $region114: #{vae_cnn_forward.15} parent=1 // pred_check
      _
    $region115: #{vae_cnn_forward.15} parent=1 // pred_check_branch
      %1641 = sbr.rel (0) target = $region117
    $region116: #{vae_cnn_forward.15} parent=1 // pred_region
      %1642 = dma.done [#allocation5], 32
    $region117: #{vae_cnn_forward.15} parent=1 // pred_fallthru
      _
    // Predicated region
    $region118: #{vae_cnn_forward.15} parent=1 // pred_check
      _
    $region119: #{vae_cnn_forward.15} parent=1 // pred_check_branch
      %1644 = sbr.rel (0) target = $region121
    $region120: #{vae_cnn_forward.15} parent=1 // pred_region
      %1645 = dma.done [#allocation8], 32
    $region121: #{vae_cnn_forward.15} parent=1 // pred_fallthru
      _
    // Predicated region
    $region122: #{vae_cnn_forward.15} parent=1 // pred_check
      _
    $region123: #{vae_cnn_forward.15} parent=1 // pred_check_branch
      %1647 = sbr.rel (0) target = $region125
    $region124: #{vae_cnn_forward.15} parent=1 // pred_region
      _
    $region125: #{vae_cnn_forward.15} parent=1 // pred_fallthru
      _
    %1648 = vsyncpa [#allocation3], 1
    %1649 = vsyncpa [#allocation5], 1
    %1650 = vsyncpa [#allocation8], 1

// kernel: vae_cnn_forward.16
$region0: #{vae_cnn_forward.16}
  #allocation0 [shape = 'u32[]', space=smem, size = 0x4, offset = 0x4, fixed_abs, tag = 'smem constant byte address 0x4 - core index']
  #allocation1 [shape = 'u32[144,128]{1,0:T(1,128)}', space=vmem, size = 0x12000, scoped, tag = 'internal scratch']
  %s0 = inlined_call_operand.vmem [shape: f32[64,144], index: 0, kind: input, shape index: {}]
  %s1 = inlined_call_operand.vmem [shape: f32[144,392], index: 1, kind: input, shape index: {}]
  %s2 = inlined_call_operand.vmem [shape: f32[64,1], index: 2, kind: input, shape index: {}]
  %s3 = inlined_call_operand.vmem [shape: f32[64,1], index: 3, kind: input, shape index: {}]
  %s4 = inlined_call_operand.vmem [shape: f32[64,392], index: 4, kind: output, shape index: {}]
  %s5 = sld [smem:[#allocation0]]
  $region26: #{vae_cnn_forward.16} parent=0
    _
  %s7 = ssub.s32 1, %s5
  %s8 = scalar_select 0, %s7, %s5
  // Predicated region
  $region2: #{vae_cnn_forward.16} parent=0 // pred_check
    _
  $region3: #{vae_cnn_forward.16} parent=0 // pred_check_branch
    %10 = sbr.rel (0) target = $region5
  $region4: #{vae_cnn_forward.16} parent=0 // pred_region
    _
  $region5: #{vae_cnn_forward.16} parent=0 // pred_fallthru
    _
  // Predicated region
  $region6: #{vae_cnn_forward.16} parent=0 // pred_check
    _
  $region7: #{vae_cnn_forward.16} parent=0 // pred_check_branch
    %12 = sbr.rel (0) target = $region9
  $region8: #{vae_cnn_forward.16} parent=0 // pred_region
    _
  $region9: #{vae_cnn_forward.16} parent=0 // pred_fallthru
    _
  // Predicated region
  $region10: #{vae_cnn_forward.16} parent=0 // pred_check
    _
  $region11: #{vae_cnn_forward.16} parent=0 // pred_check_branch
    %14 = sbr.rel (0) target = $region13
  $region12: #{vae_cnn_forward.16} parent=0 // pred_region
    _
  $region13: #{vae_cnn_forward.16} parent=0 // pred_fallthru
    _
  // Predicated region
  $region14: #{vae_cnn_forward.16} parent=0 // pred_check
    _
  $region15: #{vae_cnn_forward.16} parent=0 // pred_check_branch
    %16 = sbr.rel (0) target = $region17
  $region16: #{vae_cnn_forward.16} parent=0 // pred_region
    _
  $region17: #{vae_cnn_forward.16} parent=0 // pred_fallthru
    _
  %v17 = vld [vmem:[%s0] sm:$0xff]
  %v18 = vld [vmem:[%s0 + $0x8] sm:$0xff]
  %v19 = vld [vmem:[%s0 + $0x10] sm:$0xff]
  %v20 = vld [vmem:[%s0 + $0x18] sm:$0xff]
  %v21 = vld [vmem:[%s0 + $0x20] sm:$0xff]
  %v22 = vld [vmem:[%s0 + $0x28] sm:$0xff]
  %v23 = vld [vmem:[%s0 + $0x30] sm:$0xff]
  %v24 = vld [vmem:[%s0 + $0x38] sm:$0xff]
  %v25 = vld [vmem:[%s0 + $0x40] sm:$0xff]
  %v26 = vld [vmem:[%s0 + $0x48] sm:$0xff]
  %v27 = vld [vmem:[%s0 + $0x50] sm:$0xff]
  %v28 = vld [vmem:[%s0 + $0x58] sm:$0xff]
  %v29 = vld [vmem:[%s0 + $0x60] sm:$0xff]
  %v30 = vld [vmem:[%s0 + $0x68] sm:$0xff]
  %v31 = vld [vmem:[%s0 + $0x70] sm:$0xff]
  %v32 = vld [vmem:[%s0 + $0x78] sm:$0xff]
  %v33 = vld [vmem:[%s1] sm:$0xff]
  %v34 = vld [vmem:[%s1 + $0x8] sm:$0xff]
  %v35 = vld [vmem:[%s1 + $0x10] sm:$0xff]
  %v36 = vld [vmem:[%s1 + $0x18] sm:$0xff]
  %v37 = vld [vmem:[%s1 + $0x20] sm:$0xff]
  %v38 = vld [vmem:[%s1 + $0x28] sm:$0xff]
  %v39 = vld [vmem:[%s1 + $0x30] sm:$0xff]
  %v40 = vld [vmem:[%s1 + $0x38] sm:$0xff]
  %v41 = vld [vmem:[%s1 + $0x40] sm:$0xff]
  %v42 = vld [vmem:[%s1 + $0x48] sm:$0xff]
  %v43 = vld [vmem:[%s1 + $0x50] sm:$0xff]
  %v44 = vld [vmem:[%s1 + $0x58] sm:$0xff]
  %v45 = vld [vmem:[%s1 + $0x60] sm:$0xff]
  %v46 = vld [vmem:[%s1 + $0x68] sm:$0xff]
  %v47 = vld [vmem:[%s1 + $0x70] sm:$0xff]
  %v48 = vld [vmem:[%s1 + $0x78] sm:$0xff]
  %v49 = vld [vmem:[%s1 + $0x80] sm:$0xff]
  %v50 = vld [vmem:[%s1 + $0x88] sm:$0xff]
  %v51 = vld [vmem:[%s1 + $0x90] sm:$0xff]
  %v52 = vld [vmem:[%s1 + $0x98] sm:$0xff]
  %v53 = vld [vmem:[%s1 + $0xa0] sm:$0xff]
  %v54 = vld [vmem:[%s1 + $0xa8] sm:$0xff]
  %v55 = vld [vmem:[%s1 + $0xb0] sm:$0xff]
  %v56 = vld [vmem:[%s1 + $0xb8] sm:$0xff]
  %v57 = vld [vmem:[%s1 + $0xc0] sm:$0xff]
  %v58 = vld [vmem:[%s1 + $0xc8] sm:$0xff]
  %v59 = vld [vmem:[%s1 + $0xd0] sm:$0xff]
  %v60 = vld [vmem:[%s1 + $0xd8] sm:$0xff]
  %v61 = vld [vmem:[%s1 + $0xe0] sm:$0xff]
  %v62 = vld [vmem:[%s1 + $0xe8] sm:$0xff]
  %v63 = vld [vmem:[%s1 + $0xf0] sm:$0xff]
  %v64 = vld [vmem:[%s1 + $0xf8] sm:$0xff]
  %v65 = vld [vmem:[%s1 + $0x100] sm:$0xff]
  %v66 = vld [vmem:[%s1 + $0x108] sm:$0xff]
  %v67 = vld [vmem:[%s1 + $0x110] sm:$0xff]
  %v68 = vld [vmem:[%s1 + $0x118] sm:$0xff]
  %v69 = vld [vmem:[%s1 + $0x120] sm:$0xff]
  %v70 = vld [vmem:[%s1 + $0x128] sm:$0xff]
  %v71 = vld [vmem:[%s1 + $0x130] sm:$0xff]
  %v72 = vld [vmem:[%s1 + $0x138] sm:$0xff]
  %v73 = vld [vmem:[%s1 + $0x140] sm:$0xff]
  %v74 = vld [vmem:[%s1 + $0x148] sm:$0xff]
  %v75 = vld [vmem:[%s1 + $0x150] sm:$0xff]
  %v76 = vld [vmem:[%s1 + $0x158] sm:$0xff]
  %v77 = vld [vmem:[%s1 + $0x160] sm:$0xff]
  %v78 = vld [vmem:[%s1 + $0x168] sm:$0xff]
  %v79 = vld [vmem:[%s1 + $0x170] sm:$0xff]
  %v80 = vld [vmem:[%s1 + $0x178] sm:$0xff]
  %v81 = vld [vmem:[%s1 + $0x180] sm:$0xff]
  %v82 = vld [vmem:[%s1 + $0x188] sm:$0xff]
  %v83 = vld [vmem:[%s1 + $0x190] sm:$0xff]
  %v84 = vld [vmem:[%s1 + $0x198] sm:$0xff]
  %v85 = vld [vmem:[%s1 + $0x1a0] sm:$0xff]
  %v86 = vld [vmem:[%s1 + $0x1a8] sm:$0xff]
  %v87 = vld [vmem:[%s1 + $0x1b0] sm:$0xff]
  %v88 = vld [vmem:[%s1 + $0x1b8] sm:$0xff]
  %v89 = vld [vmem:[%s1 + $0x1c0] sm:$0xff]
  %v90 = vld [vmem:[%s1 + $0x1c8] sm:$0xff]
  %v91 = vld [vmem:[%s1 + $0x1d0] sm:$0xff]
  %v92 = vld [vmem:[%s1 + $0x1d8] sm:$0xff]
  %v93 = vld [vmem:[%s1 + $0x1e0] sm:$0xff]
  %v94 = vld [vmem:[%s1 + $0x1e8] sm:$0xff]
  %v95 = vld [vmem:[%s1 + $0x1f0] sm:$0xff]
  %v96 = vld [vmem:[%s1 + $0x1f8] sm:$0xff]
  %v97 = vld [vmem:[%s1 + $0x200] sm:$0xff]
  %v98 = vld [vmem:[%s1 + $0x208] sm:$0xff]
  %v99 = vld [vmem:[%s1 + $0x210] sm:$0xff]
  %v100 = vld [vmem:[%s1 + $0x218] sm:$0xff]
  %v101 = vld [vmem:[%s1 + $0x220] sm:$0xff]
  %v102 = vld [vmem:[%s1 + $0x228] sm:$0xff]
  %v103 = vld [vmem:[%s1 + $0x230] sm:$0xff]
  %v104 = vld [vmem:[%s1 + $0x238] sm:$0xff]
  %vm105 = vcmask 130048
  %v107 = vsel %vm105, %v18, 0
  %v110 = vsel %vm105, %v20, 0
  %v113 = vsel %vm105, %v22, 0
  %v116 = vsel %vm105, %v24, 0
  %v119 = vsel %vm105, %v26, 0
  %v122 = vsel %vm105, %v28, 0
  %v125 = vsel %vm105, %v30, 0
  %v128 = vsel %vm105, %v32, 0
  %130 = vmatprep.subr.mxu0 %v34
  %131 = vmatpush1.msra.mxu0 %v33
  %132 = vmatprep.subr.mxu0 %v38
  %133 = vmatpush1.msra.mxu0 %v37
  %134 = vmatprep.subr.mxu0 %v42
  %135 = vmatpush1.msra.mxu0 %v41
  %136 = vmatprep.subr.mxu0 %v46
  %137 = vmatpush1.msra.mxu0 %v45
  %138 = vmatprep.subr.mxu0 %v50
  %139 = vmatpush1.msra.mxu0 %v49
  %140 = vmatprep.subr.mxu0 %v54
  %141 = vmatpush1.msra.mxu0 %v53
  %142 = vmatprep.subr.mxu0 %v58
  %143 = vmatpush1.msra.mxu0 %v57
  %144 = vmatprep.subr.mxu0 %v62
  %145 = vmatpush1.msra.mxu0 %v61
  %146 = vmatprep.subr.mxu0 %v66
  %147 = vmatpush1.msra.mxu0 %v65
  %148 = vmatprep.subr.mxu0 %v70
  %149 = vmatpush1.msra.mxu0 %v69
  %150 = vmatprep.subr.mxu0 %v74
  %151 = vmatpush1.msra.mxu0 %v73
  %152 = vmatprep.subr.mxu0 %v78
  %153 = vmatpush1.msra.mxu0 %v77
  %154 = vmatprep.subr.mxu0 %v82
  %155 = vmatpush1.msra.mxu0 %v81
  %156 = vmatprep.subr.mxu0 %v86
  %157 = vmatpush1.msra.mxu0 %v85
  %158 = vmatprep.subr.mxu0 %v90
  %159 = vmatpush1.msra.mxu0 %v89
  %160 = vmatprep.subr.mxu0 %v94
  %161 = vmatpush1.msra.mxu0 %v93
  %162 = vmatprep.subr.mxu0 %v98
  %163 = vmatpush1.msra.mxu0 %v97
  %164 = vmatprep.subr.mxu0 %v102
  %165 = vmatpush1.msra.mxu0 %v101
  %166 = vmatprep.subr.mxu0 0.0
  %167 = vmatpush1.msra.mxu0 0.0
  %168 = vmatprep.subr.mxu0 0.0
  %169 = vmatpush1.msra.mxu0 0.0
  %170 = vmatprep.subr.mxu0 0.0
  %171 = vmatpush1.msra.mxu0 0.0
  %172 = vmatprep.subr.mxu0 0.0
  %173 = vmatpush1.msra.mxu0 0.0
  %174 = vmatprep.subr.mxu0 0.0
  %175 = vmatpush1.msra.mxu0 0.0
  %176 = vmatprep.subr.mxu0 0.0
  %177 = vmatpush1.msra.mxu0 0.0
  %178 = vmatprep.subr.mxu0 0.0
  %179 = vmatpush1.msra.mxu0 0.0
  %180 = vmatprep.subr.mxu0 0.0
  %181 = vmatpush1.msra.mxu0 0.0
  %182 = vmatprep.subr.mxu0 0.0
  %183 = vmatpush1.msra.mxu0 0.0
  %184 = vmatprep.subr.mxu0 0.0
  %185 = vmatpush1.msra.mxu0 0.0
  %186 = vmatprep.subr.mxu0 0.0
  %187 = vmatpush1.msra.mxu0 0.0
  %188 = vmatprep.subr.mxu0 0.0
  %189 = vmatpush1.msra.mxu0 0.0
  %190 = vmatprep.subr.mxu0 0.0
  %191 = vmatpush1.msra.mxu0 0.0
  %192 = vmatprep.subr.mxu0 0.0
  %193 = vmatpush1.msra.mxu0 0.0
  %194 = vmatprep.mubr.f32.mxu0 %v107
  %195 = vmatmul.mubr.f32.gmra.mrb[0].mxu0 %v17
  %v196 = vpop.f32.mrb[0].mxu0
  %v197 = vadd.f32 0.0, %v196
  %v198 = vpop.f32.mrb[0].mxu0
  %v199 = vadd.f32 0.0, %v198
  %200 = vmatprep.mubr.f32.mxu0 %v110
  %201 = vmatmul.mubr.f32.gmra.mrb[0].mxu0 %v19
  %v202 = vpop.f32.mrb[0].mxu0
  %v203 = vadd.f32 0.0, %v202
  %v204 = vpop.f32.mrb[0].mxu0
  %v205 = vadd.f32 0.0, %v204
  %206 = vmatprep.mubr.f32.mxu0 %v113
  %207 = vmatmul.mubr.f32.gmra.mrb[0].mxu0 %v21
  %v208 = vpop.f32.mrb[0].mxu0
  %v209 = vadd.f32 0.0, %v208
  %v210 = vpop.f32.mrb[0].mxu0
  %v211 = vadd.f32 0.0, %v210
  %212 = vmatprep.mubr.f32.mxu0 %v116
  %213 = vmatmul.mubr.f32.gmra.mrb[0].mxu0 %v23
  %v214 = vpop.f32.mrb[0].mxu0
  %v215 = vadd.f32 0.0, %v214
  %v216 = vpop.f32.mrb[0].mxu0
  %v217 = vadd.f32 0.0, %v216
  %218 = vmatprep.mubr.f32.mxu0 %v119
  %219 = vmatmul.mubr.f32.gmra.mrb[0].mxu0 %v25
  %v220 = vpop.f32.mrb[0].mxu0
  %v221 = vadd.f32 0.0, %v220
  %v222 = vpop.f32.mrb[0].mxu0
  %v223 = vadd.f32 0.0, %v222
  %224 = vmatprep.mubr.f32.mxu0 %v122
  %225 = vmatmul.mubr.f32.gmra.mrb[0].mxu0 %v27
  %v226 = vpop.f32.mrb[0].mxu0
  %v227 = vadd.f32 0.0, %v226
  %v228 = vpop.f32.mrb[0].mxu0
  %v229 = vadd.f32 0.0, %v228
  %230 = vmatprep.mubr.f32.mxu0 %v125
  %231 = vmatmul.mubr.f32.gmra.mrb[0].mxu0 %v29
  %v232 = vpop.f32.mrb[0].mxu0
  %v233 = vadd.f32 0.0, %v232
  %v234 = vpop.f32.mrb[0].mxu0
  %v235 = vadd.f32 0.0, %v234
  %236 = vmatprep.mubr.f32.mxu0 %v128
  %237 = vmatmul.mubr.f32.gmra.mrb[0].mxu0 %v31
  %v238 = vpop.f32.mrb[0].mxu0
  %v239 = vadd.f32 0.0, %v238
  %v240 = vpop.f32.mrb[0].mxu0
  %v241 = vadd.f32 0.0, %v240
  %242 = vdwg.mxu0
  %243 = vmatprep.subr.mxu0 %v36
  %244 = vmatpush1.msra.mxu0 %v35
  %245 = vmatprep.subr.mxu0 %v40
  %246 = vmatpush1.msra.mxu0 %v39
  %247 = vmatprep.subr.mxu0 %v44
  %248 = vmatpush1.msra.mxu0 %v43
  %249 = vmatprep.subr.mxu0 %v48
  %250 = vmatpush1.msra.mxu0 %v47
  %251 = vmatprep.subr.mxu0 %v52
  %252 = vmatpush1.msra.mxu0 %v51
  %253 = vmatprep.subr.mxu0 %v56
  %254 = vmatpush1.msra.mxu0 %v55
  %255 = vmatprep.subr.mxu0 %v60
  %256 = vmatpush1.msra.mxu0 %v59
  %257 = vmatprep.subr.mxu0 %v64
  %258 = vmatpush1.msra.mxu0 %v63
  %259 = vmatprep.subr.mxu0 %v68
  %260 = vmatpush1.msra.mxu0 %v67
  %261 = vmatprep.subr.mxu0 %v72
  %262 = vmatpush1.msra.mxu0 %v71
  %263 = vmatprep.subr.mxu0 %v76
  %264 = vmatpush1.msra.mxu0 %v75
  %265 = vmatprep.subr.mxu0 %v80
  %266 = vmatpush1.msra.mxu0 %v79
  %267 = vmatprep.subr.mxu0 %v84
  %268 = vmatpush1.msra.mxu0 %v83
  %269 = vmatprep.subr.mxu0 %v88
  %270 = vmatpush1.msra.mxu0 %v87
  %271 = vmatprep.subr.mxu0 %v92
  %272 = vmatpush1.msra.mxu0 %v91
  %273 = vmatprep.subr.mxu0 %v96
  %274 = vmatpush1.msra.mxu0 %v95
  %275 = vmatprep.subr.mxu0 %v100
  %276 = vmatpush1.msra.mxu0 %v99
  %277 = vmatprep.subr.mxu0 %v104
  %278 = vmatpush1.msra.mxu0 %v103
  %279 = vmatprep.subr.mxu0 0.0
  %280 = vmatpush1.msra.mxu0 0.0
  %281 = vmatprep.subr.mxu0 0.0
  %282 = vmatpush1.msra.mxu0 0.0
  %283 = vmatprep.subr.mxu0 0.0
  %284 = vmatpush1.msra.mxu0 0.0
  %285 = vmatprep.subr.mxu0 0.0
  %286 = vmatpush1.msra.mxu0 0.0
  %287 = vmatprep.subr.mxu0 0.0
  %288 = vmatpush1.msra.mxu0 0.0
  %289 = vmatprep.subr.mxu0 0.0
  %290 = vmatpush1.msra.mxu0 0.0
  %291 = vmatprep.subr.mxu0 0.0
  %292 = vmatpush1.msra.mxu0 0.0
  %293 = vmatprep.subr.mxu0 0.0
  %294 = vmatpush1.msra.mxu0 0.0
  %295 = vmatprep.subr.mxu0 0.0
  %296 = vmatpush1.msra.mxu0 0.0
  %297 = vmatprep.subr.mxu0 0.0
  %298 = vmatpush1.msra.mxu0 0.0
  %299 = vmatprep.subr.mxu0 0.0
  %300 = vmatpush1.msra.mxu0 0.0
  %301 = vmatprep.subr.mxu0 0.0
  %302 = vmatpush1.msra.mxu0 0.0
  %303 = vmatprep.subr.mxu0 0.0
  %304 = vmatpush1.msra.mxu0 0.0
  %305 = vmatprep.subr.mxu0 0.0
  %306 = vmatpush1.msra.mxu0 0.0
  %307 = vmatprep.mubr.f32.mxu0 %v107
  %308 = vmatmul.mubr.f32.gmra.mrb[0].mxu0 %v17
  %v309 = vpop.f32.mrb[0].mxu0
  %v310 = vadd.f32 0.0, %v309
  %v311 = vpop.f32.mrb[0].mxu0
  %v312 = vadd.f32 0.0, %v311
  %313 = vmatprep.mubr.f32.mxu0 %v110
  %314 = vmatmul.mubr.f32.gmra.mrb[0].mxu0 %v19
  %v315 = vpop.f32.mrb[0].mxu0
  %v316 = vadd.f32 0.0, %v315
  %v317 = vpop.f32.mrb[0].mxu0
  %v318 = vadd.f32 0.0, %v317
  %319 = vmatprep.mubr.f32.mxu0 %v113
  %320 = vmatmul.mubr.f32.gmra.mrb[0].mxu0 %v21
  %v321 = vpop.f32.mrb[0].mxu0
  %v322 = vadd.f32 0.0, %v321
  %v323 = vpop.f32.mrb[0].mxu0
  %v324 = vadd.f32 0.0, %v323
  %325 = vmatprep.mubr.f32.mxu0 %v116
  %326 = vmatmul.mubr.f32.gmra.mrb[0].mxu0 %v23
  %v327 = vpop.f32.mrb[0].mxu0
  %v328 = vadd.f32 0.0, %v327
  %v329 = vpop.f32.mrb[0].mxu0
  %v330 = vadd.f32 0.0, %v329
  %331 = vmatprep.mubr.f32.mxu0 %v119
  %332 = vmatmul.mubr.f32.gmra.mrb[0].mxu0 %v25
  %v333 = vpop.f32.mrb[0].mxu0
  %v334 = vadd.f32 0.0, %v333
  %v335 = vpop.f32.mrb[0].mxu0
  %v336 = vadd.f32 0.0, %v335
  %337 = vmatprep.mubr.f32.mxu0 %v122
  %338 = vmatmul.mubr.f32.gmra.mrb[0].mxu0 %v27
  %v339 = vpop.f32.mrb[0].mxu0
  %v340 = vadd.f32 0.0, %v339
  %v341 = vpop.f32.mrb[0].mxu0
  %v342 = vadd.f32 0.0, %v341
  %343 = vmatprep.mubr.f32.mxu0 %v125
  %344 = vmatmul.mubr.f32.gmra.mrb[0].mxu0 %v29
  %v345 = vpop.f32.mrb[0].mxu0
  %v346 = vadd.f32 0.0, %v345
  %v347 = vpop.f32.mrb[0].mxu0
  %v348 = vadd.f32 0.0, %v347
  %349 = vmatprep.mubr.f32.mxu0 %v128
  %350 = vmatmul.mubr.f32.gmra.mrb[0].mxu0 %v31
  %v351 = vpop.f32.mrb[0].mxu0
  %v352 = vadd.f32 0.0, %v351
  %v353 = vpop.f32.mrb[0].mxu0
  %v354 = vadd.f32 0.0, %v353
  %355 = vdwg.mxu0
  %v356 = vadd.f32 %v197, %v199
  %v357 = vadd.f32 %v356, %v310
  %vm358 = vcmask 64512
  %v359 = vsel %vm358, %v312, 0.0
  %v360 = vadd.f32 %v357, %v359
  %361 = vadd.xlane.f32.xlu0 %v360
  %v362 = vpop.xlane.xlu0 %361
  %v363 = vadd.f32 %v203, %v205
  %v364 = vadd.f32 %v363, %v316
  %v365 = vsel %vm358, %v318, 0.0
  %v366 = vadd.f32 %v364, %v365
  %367 = vadd.xlane.f32.xlu0 %v366
  %v368 = vpop.xlane.xlu0 %367
  %v369 = vadd.f32 %v209, %v211
  %v370 = vadd.f32 %v369, %v322
  %v371 = vsel %vm358, %v324, 0.0
  %v372 = vadd.f32 %v370, %v371
  %373 = vadd.xlane.f32.xlu0 %v372
  %v374 = vpop.xlane.xlu0 %373
  %v375 = vadd.f32 %v215, %v217
  %v376 = vadd.f32 %v375, %v328
  %v377 = vsel %vm358, %v330, 0.0
  %v378 = vadd.f32 %v376, %v377
  %379 = vadd.xlane.f32.xlu0 %v378
  %v380 = vpop.xlane.xlu0 %379
  %v381 = vadd.f32 %v221, %v223
  %v382 = vadd.f32 %v381, %v334
  %v383 = vsel %vm358, %v336, 0.0
  %v384 = vadd.f32 %v382, %v383
  %385 = vadd.xlane.f32.xlu0 %v384
  %v386 = vpop.xlane.xlu0 %385
  %v387 = vadd.f32 %v227, %v229
  %v388 = vadd.f32 %v387, %v340
  %v389 = vsel %vm358, %v342, 0.0
  %v390 = vadd.f32 %v388, %v389
  %391 = vadd.xlane.f32.xlu0 %v390
  %v392 = vpop.xlane.xlu0 %391
  %v393 = vadd.f32 %v233, %v235
  %v394 = vadd.f32 %v393, %v346
  %v395 = vsel %vm358, %v348, 0.0
  %v396 = vadd.f32 %v394, %v395
  %397 = vadd.xlane.f32.xlu0 %v396
  %v398 = vpop.xlane.xlu0 %397
  %v399 = vadd.f32 %v239, %v241
  %v400 = vadd.f32 %v399, %v352
  %v401 = vsel %vm358, %v354, 0.0
  %v402 = vadd.f32 %v400, %v401
  %403 = vadd.xlane.f32.xlu0 %v402
  %v404 = vpop.xlane.xlu0 %403
  %v405 = vrcp.pop 392.0
  %v406 = vmul.f32 %v362, %v405
  %v407 = vmul.f32 %v368, %v405
  %v408 = vmul.f32 %v374, %v405
  %v409 = vmul.f32 %v380, %v405
  %v410 = vmul.f32 %v386, %v405
  %v411 = vmul.f32 %v392, %v405
  %v412 = vmul.f32 %v398, %v405
  %v413 = vmul.f32 %v404, %v405
  %v414 = vsub.f32 %v197, %v406
  %v415 = vsub.f32 %v199, %v406
  %v416 = vsub.f32 %v310, %v406
  %v417 = vsub.f32 %v312, %v406
  %v418 = vsub.f32 %v203, %v407
  %v419 = vsub.f32 %v205, %v407
  %v420 = vsub.f32 %v316, %v407
  %v421 = vsub.f32 %v318, %v407
  %v422 = vsub.f32 %v209, %v408
  %v423 = vsub.f32 %v211, %v408
  %v424 = vsub.f32 %v322, %v408
  %v425 = vsub.f32 %v324, %v408
  %v426 = vsub.f32 %v215, %v409
  %v427 = vsub.f32 %v217, %v409
  %v428 = vsub.f32 %v328, %v409
  %v429 = vsub.f32 %v330, %v409
  %v430 = vsub.f32 %v221, %v410
  %v431 = vsub.f32 %v223, %v410
  %v432 = vsub.f32 %v334, %v410
  %v433 = vsub.f32 %v336, %v410
  %v434 = vsub.f32 %v227, %v411
  %v435 = vsub.f32 %v229, %v411
  %v436 = vsub.f32 %v340, %v411
  %v437 = vsub.f32 %v342, %v411
  %v438 = vsub.f32 %v233, %v412
  %v439 = vsub.f32 %v235, %v412
  %v440 = vsub.f32 %v346, %v412
  %v441 = vsub.f32 %v348, %v412
  %v442 = vsub.f32 %v239, %v413
  %v443 = vsub.f32 %v241, %v413
  %v444 = vsub.f32 %v352, %v413
  %v445 = vsub.f32 %v354, %v413
  %v446 = vmul.f32 %v414, %v414
  %v447 = vmul.f32 %v415, %v415
  %v448 = vmul.f32 %v416, %v416
  %v449 = vmul.f32 %v417, %v417
  %v450 = vmul.f32 %v418, %v418
  %v451 = vmul.f32 %v419, %v419
  %v452 = vmul.f32 %v420, %v420
  %v453 = vmul.f32 %v421, %v421
  %v454 = vmul.f32 %v422, %v422
  %v455 = vmul.f32 %v423, %v423
  %v456 = vmul.f32 %v424, %v424
  %v457 = vmul.f32 %v425, %v425
  %v458 = vmul.f32 %v426, %v426
  %v459 = vmul.f32 %v427, %v427
  %v460 = vmul.f32 %v428, %v428
  %v461 = vmul.f32 %v429, %v429
  %v462 = vmul.f32 %v430, %v430
  %v463 = vmul.f32 %v431, %v431
  %v464 = vmul.f32 %v432, %v432
  %v465 = vmul.f32 %v433, %v433
  %v466 = vmul.f32 %v434, %v434
  %v467 = vmul.f32 %v435, %v435
  %v468 = vmul.f32 %v436, %v436
  %v469 = vmul.f32 %v437, %v437
  %v470 = vmul.f32 %v438, %v438
  %v471 = vmul.f32 %v439, %v439
  %v472 = vmul.f32 %v440, %v440
  %v473 = vmul.f32 %v441, %v441
  %v474 = vmul.f32 %v442, %v442
  %v475 = vmul.f32 %v443, %v443
  %v476 = vmul.f32 %v444, %v444
  %v477 = vmul.f32 %v445, %v445
  %v478 = vadd.f32 %v446, %v447
  %v479 = vadd.f32 %v478, %v448
  %v480 = vsel %vm358, %v449, 0.0
  %v481 = vadd.f32 %v479, %v480
  %482 = vadd.xlane.f32.xlu0 %v481
  %v483 = vpop.xlane.xlu0 %482
  %v484 = vadd.f32 %v450, %v451
  %v485 = vadd.f32 %v484, %v452
  %v486 = vsel %vm358, %v453, 0.0
  %v487 = vadd.f32 %v485, %v486
  %488 = vadd.xlane.f32.xlu0 %v487
  %v489 = vpop.xlane.xlu0 %488
  %v490 = vadd.f32 %v454, %v455
  %v491 = vadd.f32 %v490, %v456
  %v492 = vsel %vm358, %v457, 0.0
  %v493 = vadd.f32 %v491, %v492
  %494 = vadd.xlane.f32.xlu0 %v493
  %v495 = vpop.xlane.xlu0 %494
  %v496 = vadd.f32 %v458, %v459
  %v497 = vadd.f32 %v496, %v460
  %v498 = vsel %vm358, %v461, 0.0
  %v499 = vadd.f32 %v497, %v498
  %500 = vadd.xlane.f32.xlu0 %v499
  %v501 = vpop.xlane.xlu0 %500
  %v502 = vadd.f32 %v462, %v463
  %v503 = vadd.f32 %v502, %v464
  %v504 = vsel %vm358, %v465, 0.0
  %v505 = vadd.f32 %v503, %v504
  %506 = vadd.xlane.f32.xlu0 %v505
  %v507 = vpop.xlane.xlu0 %506
  %v508 = vadd.f32 %v466, %v467
  %v509 = vadd.f32 %v508, %v468
  %v510 = vsel %vm358, %v469, 0.0
  %v511 = vadd.f32 %v509, %v510
  %512 = vadd.xlane.f32.xlu0 %v511
  %v513 = vpop.xlane.xlu0 %512
  %v514 = vadd.f32 %v470, %v471
  %v515 = vadd.f32 %v514, %v472
  %v516 = vsel %vm358, %v473, 0.0
  %v517 = vadd.f32 %v515, %v516
  %518 = vadd.xlane.f32.xlu0 %v517
  %v519 = vpop.xlane.xlu0 %518
  %v520 = vadd.f32 %v474, %v475
  %v521 = vadd.f32 %v520, %v476
  %v522 = vsel %vm358, %v477, 0.0
  %v523 = vadd.f32 %v521, %v522
  %524 = vadd.xlane.f32.xlu0 %v523
  %v525 = vpop.xlane.xlu0 %524
  %v526 = vmul.f32 %v483, %v405
  %v527 = vmul.f32 %v489, %v405
  %v528 = vmul.f32 %v495, %v405
  %v529 = vmul.f32 %v501, %v405
  %v530 = vmul.f32 %v507, %v405
  %v531 = vmul.f32 %v513, %v405
  %v532 = vmul.f32 %v519, %v405
  %v533 = vmul.f32 %v525, %v405
  %v534 = vld [vmem:[%s2] sm:$0xff]
  %v535 = vld [vmem:[%s2 + $0x8] sm:$0xff]
  %v536 = vld [vmem:[%s2 + $0x10] sm:$0xff]
  %v537 = vld [vmem:[%s2 + $0x18] sm:$0xff]
  %v538 = vld [vmem:[%s2 + $0x20] sm:$0xff]
  %v539 = vld [vmem:[%s2 + $0x28] sm:$0xff]
  %v540 = vld [vmem:[%s2 + $0x30] sm:$0xff]
  %v541 = vld [vmem:[%s2 + $0x38] sm:$0xff]
  %v542 = vadd.f32 %v526, 1e-05
  %v543 = vadd.f32 %v527, 1e-05
  %v544 = vadd.f32 %v528, 1e-05
  %v545 = vadd.f32 %v529, 1e-05
  %v546 = vadd.f32 %v530, 1e-05
  %v547 = vadd.f32 %v531, 1e-05
  %v548 = vadd.f32 %v532, 1e-05
  %v549 = vadd.f32 %v533, 1e-05
  %v550 = vrsqrt.pop %v542
  %v551 = vrsqrt.pop %v543
  %v552 = vrsqrt.pop %v544
  %v553 = vrsqrt.pop %v545
  %v554 = vrsqrt.pop %v546
  %v555 = vrsqrt.pop %v547
  %v556 = vrsqrt.pop %v548
  %v557 = vrsqrt.pop %v549
  %v558 = vmul.f32 %v534, %v550
  %v559 = vmul.f32 %v535, %v551
  %v560 = vmul.f32 %v536, %v552
  %v561 = vmul.f32 %v537, %v553
  %v562 = vmul.f32 %v538, %v554
  %v563 = vmul.f32 %v539, %v555
  %v564 = vmul.f32 %v540, %v556
  %v565 = vmul.f32 %v541, %v557
  %v566 = vld [vmem:[%s3] sm:$0xff]
  %v567 = vld [vmem:[%s3 + $0x8] sm:$0xff]
  %v568 = vld [vmem:[%s3 + $0x10] sm:$0xff]
  %v569 = vld [vmem:[%s3 + $0x18] sm:$0xff]
  %v570 = vld [vmem:[%s3 + $0x20] sm:$0xff]
  %v571 = vld [vmem:[%s3 + $0x28] sm:$0xff]
  %v572 = vld [vmem:[%s3 + $0x30] sm:$0xff]
  %v573 = vld [vmem:[%s3 + $0x38] sm:$0xff]
  %v574 = vmul.f32 %v406, %v558
  %v575 = vmul.f32 %v407, %v559
  %v576 = vmul.f32 %v408, %v560
  %v577 = vmul.f32 %v409, %v561
  %v578 = vmul.f32 %v410, %v562
  %v579 = vmul.f32 %v411, %v563
  %v580 = vmul.f32 %v412, %v564
  %v581 = vmul.f32 %v413, %v565
  %v582 = vsub.f32 %v566, %v574
  %v583 = vsub.f32 %v567, %v575
  %v584 = vsub.f32 %v568, %v576
  %v585 = vsub.f32 %v569, %v577
  %v586 = vsub.f32 %v570, %v578
  %v587 = vsub.f32 %v571, %v579
  %v588 = vsub.f32 %v572, %v580
  %v589 = vsub.f32 %v573, %v581
  %591 = vset.pattern.permute.xlu0 0
  %592 = vperm.xlu0 %591, %v558
  %v593 = vpop.permute.xlu0 %592
  %596 = vset.pattern.permute.xlu0 0
  %597 = vperm.xlu0 %596, %v559
  %v598 = vpop.permute.xlu0 %597
  %601 = vset.pattern.permute.xlu0 0
  %602 = vperm.xlu0 %601, %v560
  %v603 = vpop.permute.xlu0 %602
  %606 = vset.pattern.permute.xlu0 0
  %607 = vperm.xlu0 %606, %v561
  %v608 = vpop.permute.xlu0 %607
  %611 = vset.pattern.permute.xlu0 0
  %612 = vperm.xlu0 %611, %v562
  %v613 = vpop.permute.xlu0 %612
  %616 = vset.pattern.permute.xlu0 0
  %617 = vperm.xlu0 %616, %v563
  %v618 = vpop.permute.xlu0 %617
  %621 = vset.pattern.permute.xlu0 0
  %622 = vperm.xlu0 %621, %v564
  %v623 = vpop.permute.xlu0 %622
  %626 = vset.pattern.permute.xlu0 0
  %627 = vperm.xlu0 %626, %v565
  %v628 = vpop.permute.xlu0 %627
  %v630 = vmul.f32 %v197, %v593
  %v631 = vmul.f32 %v199, %v593
  %v632 = vmul.f32 %v310, %v593
  %v633 = vmul.f32 %v312, %v593
  %v634 = vmul.f32 %v203, %v598
  %v635 = vmul.f32 %v205, %v598
  %v636 = vmul.f32 %v316, %v598
  %v637 = vmul.f32 %v318, %v598
  %v638 = vmul.f32 %v209, %v603
  %v639 = vmul.f32 %v211, %v603
  %v640 = vmul.f32 %v322, %v603
  %v641 = vmul.f32 %v324, %v603
  %v642 = vmul.f32 %v215, %v608
  %v643 = vmul.f32 %v217, %v608
  %v644 = vmul.f32 %v328, %v608
  %v645 = vmul.f32 %v330, %v608
  %v646 = vmul.f32 %v221, %v613
  %v647 = vmul.f32 %v223, %v613
  %v648 = vmul.f32 %v334, %v613
  %v649 = vmul.f32 %v336, %v613
  %v650 = vmul.f32 %v227, %v618
  %v651 = vmul.f32 %v229, %v618
  %v652 = vmul.f32 %v340, %v618
  %v653 = vmul.f32 %v342, %v618
  %v654 = vmul.f32 %v233, %v623
  %v655 = vmul.f32 %v235, %v623
  %v656 = vmul.f32 %v346, %v623
  %v657 = vmul.f32 %v348, %v623
  %v658 = vmul.f32 %v239, %v628
  %v659 = vmul.f32 %v241, %v628
  %v660 = vmul.f32 %v352, %v628
  %v661 = vmul.f32 %v354, %v628
  %663 = vset.pattern.permute.xlu0 0
  %664 = vperm.xlu0 %663, %v582
  %v665 = vpop.permute.xlu0 %664
  %668 = vset.pattern.permute.xlu0 0
  %669 = vperm.xlu0 %668, %v583
  %v670 = vpop.permute.xlu0 %669
  %673 = vset.pattern.permute.xlu0 0
  %674 = vperm.xlu0 %673, %v584
  %v675 = vpop.permute.xlu0 %674
  %678 = vset.pattern.permute.xlu0 0
  %679 = vperm.xlu0 %678, %v585
  %v680 = vpop.permute.xlu0 %679
  %683 = vset.pattern.permute.xlu0 0
  %684 = vperm.xlu0 %683, %v586
  %v685 = vpop.permute.xlu0 %684
  %688 = vset.pattern.permute.xlu0 0
  %689 = vperm.xlu0 %688, %v587
  %v690 = vpop.permute.xlu0 %689
  %693 = vset.pattern.permute.xlu0 0
  %694 = vperm.xlu0 %693, %v588
  %v695 = vpop.permute.xlu0 %694
  %698 = vset.pattern.permute.xlu0 0
  %699 = vperm.xlu0 %698, %v589
  %v700 = vpop.permute.xlu0 %699
  %v702 = vadd.f32 %v630, %v665
  %v703 = vadd.f32 %v631, %v665
  %v704 = vadd.f32 %v632, %v665
  %v705 = vadd.f32 %v633, %v665
  %v706 = vadd.f32 %v634, %v670
  %v707 = vadd.f32 %v635, %v670
  %v708 = vadd.f32 %v636, %v670
  %v709 = vadd.f32 %v637, %v670
  %v710 = vadd.f32 %v638, %v675
  %v711 = vadd.f32 %v639, %v675
  %v712 = vadd.f32 %v640, %v675
  %v713 = vadd.f32 %v641, %v675
  %v714 = vadd.f32 %v642, %v680
  %v715 = vadd.f32 %v643, %v680
  %v716 = vadd.f32 %v644, %v680
  %v717 = vadd.f32 %v645, %v680
  %v718 = vadd.f32 %v646, %v685
  %v719 = vadd.f32 %v647, %v685
  %v720 = vadd.f32 %v648, %v685
  %v721 = vadd.f32 %v649, %v685
  %v722 = vadd.f32 %v650, %v690
  %v723 = vadd.f32 %v651, %v690
  %v724 = vadd.f32 %v652, %v690
  %v725 = vadd.f32 %v653, %v690
  %v726 = vadd.f32 %v654, %v695
  %v727 = vadd.f32 %v655, %v695
  %v728 = vadd.f32 %v656, %v695
  %v729 = vadd.f32 %v657, %v695
  %v730 = vadd.f32 %v658, %v700
  %v731 = vadd.f32 %v659, %v700
  %v732 = vadd.f32 %v660, %v700
  %v733 = vadd.f32 %v661, %v700
  %v734 = vmax.f32 %v702, 0.0
  %v735 = vmax.f32 %v703, 0.0
  %v736 = vmax.f32 %v704, 0.0
  %v737 = vmax.f32 %v705, 0.0
  %v738 = vmax.f32 %v706, 0.0
  %v739 = vmax.f32 %v707, 0.0
  %v740 = vmax.f32 %v708, 0.0
  %v741 = vmax.f32 %v709, 0.0
  %v742 = vmax.f32 %v710, 0.0
  %v743 = vmax.f32 %v711, 0.0
  %v744 = vmax.f32 %v712, 0.0
  %v745 = vmax.f32 %v713, 0.0
  %v746 = vmax.f32 %v714, 0.0
  %v747 = vmax.f32 %v715, 0.0
  %v748 = vmax.f32 %v716, 0.0
  %v749 = vmax.f32 %v717, 0.0
  %v750 = vmax.f32 %v718, 0.0
  %v751 = vmax.f32 %v719, 0.0
  %v752 = vmax.f32 %v720, 0.0
  %v753 = vmax.f32 %v721, 0.0
  %v754 = vmax.f32 %v722, 0.0
  %v755 = vmax.f32 %v723, 0.0
  %v756 = vmax.f32 %v724, 0.0
  %v757 = vmax.f32 %v725, 0.0
  %v758 = vmax.f32 %v726, 0.0
  %v759 = vmax.f32 %v727, 0.0
  %v760 = vmax.f32 %v728, 0.0
  %v761 = vmax.f32 %v729, 0.0
  %v762 = vmax.f32 %v730, 0.0
  %v763 = vmax.f32 %v731, 0.0
  %v764 = vmax.f32 %v732, 0.0
  %v765 = vmax.f32 %v733, 0.0
  %766 = vst [vmem:[%s4] sm:$0xff] %v734
  %767 = vst [vmem:[%s4 + $0x8] sm:$0xff] %v735
  %768 = vst [vmem:[%s4 + $0x10] sm:$0xff] %v736
  %769 = vst.msk [vmem:[%s4 + $0x18] sm:$0xff] %vm358, %v737
  %770 = vst [vmem:[%s4 + $0x20] sm:$0xff] %v738
  %771 = vst [vmem:[%s4 + $0x28] sm:$0xff] %v739
  %772 = vst [vmem:[%s4 + $0x30] sm:$0xff] %v740
  %773 = vst.msk [vmem:[%s4 + $0x38] sm:$0xff] %vm358, %v741
  %774 = vst [vmem:[%s4 + $0x40] sm:$0xff] %v742
  %775 = vst [vmem:[%s4 + $0x48] sm:$0xff] %v743
  %776 = vst [vmem:[%s4 + $0x50] sm:$0xff] %v744
  %777 = vst.msk [vmem:[%s4 + $0x58] sm:$0xff] %vm358, %v745
  %778 = vst [vmem:[%s4 + $0x60] sm:$0xff] %v746
  %779 = vst [vmem:[%s4 + $0x68] sm:$0xff] %v747
  %780 = vst [vmem:[%s4 + $0x70] sm:$0xff] %v748
  %781 = vst.msk [vmem:[%s4 + $0x78] sm:$0xff] %vm358, %v749
  %782 = vst [vmem:[%s4 + $0x80] sm:$0xff] %v750
  %783 = vst [vmem:[%s4 + $0x88] sm:$0xff] %v751
  %784 = vst [vmem:[%s4 + $0x90] sm:$0xff] %v752
  %785 = vst.msk [vmem:[%s4 + $0x98] sm:$0xff] %vm358, %v753
  %786 = vst [vmem:[%s4 + $0xa0] sm:$0xff] %v754
  %787 = vst [vmem:[%s4 + $0xa8] sm:$0xff] %v755
  %788 = vst [vmem:[%s4 + $0xb0] sm:$0xff] %v756
  %789 = vst.msk [vmem:[%s4 + $0xb8] sm:$0xff] %vm358, %v757
  %790 = vst [vmem:[%s4 + $0xc0] sm:$0xff] %v758
  %791 = vst [vmem:[%s4 + $0xc8] sm:$0xff] %v759
  %792 = vst [vmem:[%s4 + $0xd0] sm:$0xff] %v760
  %793 = vst.msk [vmem:[%s4 + $0xd8] sm:$0xff] %vm358, %v761
  %794 = vst [vmem:[%s4 + $0xe0] sm:$0xff] %v762
  %795 = vst [vmem:[%s4 + $0xe8] sm:$0xff] %v763
  %796 = vst [vmem:[%s4 + $0xf0] sm:$0xff] %v764
  %797 = vst.msk [vmem:[%s4 + $0xf8] sm:$0xff] %vm358, %v765
  // Predicated region
  $region18: #{vae_cnn_forward.16} parent=0 // pred_check
    _
  $region19: #{vae_cnn_forward.16} parent=0 // pred_check_branch
    %799 = sbr.rel (0) target = $region21
  $region20: #{vae_cnn_forward.16} parent=0 // pred_region
    _
  $region21: #{vae_cnn_forward.16} parent=0 // pred_fallthru
    _
  // Predicated region
  $region22: #{vae_cnn_forward.16} parent=0 // pred_check
    _
  $region23: #{vae_cnn_forward.16} parent=0 // pred_check_branch
    %801 = sbr.rel (0) target = $region25
  $region24: #{vae_cnn_forward.16} parent=0 // pred_region
    _
  $region25: #{vae_cnn_forward.16} parent=0 // pred_fallthru
    _

// kernel: vae_cnn_forward.17
$region0: #{vae_cnn_forward.17}
  #allocation0 [shape = 'u32[]', space=smem, size = 0x4, offset = 0x4, fixed_abs, tag = 'smem constant byte address 0x4 - core index']
  #allocation1 [shape = 'u32[144,128]{1,0:T(1,128)}', space=vmem, size = 0x12000, scoped, tag = 'internal scratch']
  %s0 = inlined_call_operand.vmem [shape: f32[32,576], index: 0, kind: input, shape index: {}]
  %s1 = inlined_call_operand.vmem [shape: f32[576,392], index: 1, kind: input, shape index: {}]
  %s2 = inlined_call_operand.vmem [shape: f32[32,1], index: 2, kind: input, shape index: {}]
  %s3 = inlined_call_operand.vmem [shape: f32[32,1], index: 3, kind: input, shape index: {}]
  %s4 = inlined_call_operand.vmem [shape: f32[32,392], index: 4, kind: output, shape index: {}]
  %s5 = sld [smem:[#allocation0]]
  $region26: #{vae_cnn_forward.17} parent=0
    _
  %s7 = ssub.s32 1, %s5
  %s8 = scalar_select 0, %s7, %s5
  // Predicated region
  $region2: #{vae_cnn_forward.17} parent=0 // pred_check
    _
  $region3: #{vae_cnn_forward.17} parent=0 // pred_check_branch
    %10 = sbr.rel (0) target = $region5
  $region4: #{vae_cnn_forward.17} parent=0 // pred_region
    _
  $region5: #{vae_cnn_forward.17} parent=0 // pred_fallthru
    _
  // Predicated region
  $region6: #{vae_cnn_forward.17} parent=0 // pred_check
    _
  $region7: #{vae_cnn_forward.17} parent=0 // pred_check_branch
    %12 = sbr.rel (0) target = $region9
  $region8: #{vae_cnn_forward.17} parent=0 // pred_region
    _
  $region9: #{vae_cnn_forward.17} parent=0 // pred_fallthru
    _
  // Predicated region
  $region10: #{vae_cnn_forward.17} parent=0 // pred_check
    _
  $region11: #{vae_cnn_forward.17} parent=0 // pred_check_branch
    %14 = sbr.rel (0) target = $region13
  $region12: #{vae_cnn_forward.17} parent=0 // pred_region
    _
  $region13: #{vae_cnn_forward.17} parent=0 // pred_fallthru
    _
  // Predicated region
  $region14: #{vae_cnn_forward.17} parent=0 // pred_check
    _
  $region15: #{vae_cnn_forward.17} parent=0 // pred_check_branch
    %16 = sbr.rel (0) target = $region17
  $region16: #{vae_cnn_forward.17} parent=0 // pred_region
    _
  $region17: #{vae_cnn_forward.17} parent=0 // pred_fallthru
    _
  %v17 = vld [vmem:[%s0] sm:$0xff]
  %v18 = vld [vmem:[%s0 + $0x8] sm:$0xff]
  %v19 = vld [vmem:[%s0 + $0x10] sm:$0xff]
  %v20 = vld [vmem:[%s0 + $0x18] sm:$0xff]
  %v21 = vld [vmem:[%s0 + $0x20] sm:$0xff]
  %v22 = vld [vmem:[%s0 + $0x28] sm:$0xff]
  %v23 = vld [vmem:[%s0 + $0x30] sm:$0xff]
  %v24 = vld [vmem:[%s0 + $0x38] sm:$0xff]
  %v25 = vld [vmem:[%s0 + $0x40] sm:$0xff]
  %v26 = vld [vmem:[%s0 + $0x48] sm:$0xff]
  %v27 = vld [vmem:[%s0 + $0x50] sm:$0xff]
  %v28 = vld [vmem:[%s0 + $0x58] sm:$0xff]
  %v29 = vld [vmem:[%s0 + $0x60] sm:$0xff]
  %v30 = vld [vmem:[%s0 + $0x68] sm:$0xff]
  %v31 = vld [vmem:[%s0 + $0x70] sm:$0xff]
  %v32 = vld [vmem:[%s0 + $0x78] sm:$0xff]
  %v33 = vld [vmem:[%s0 + $0x80] sm:$0xff]
  %v34 = vld [vmem:[%s0 + $0x88] sm:$0xff]
  %v35 = vld [vmem:[%s0 + $0x90] sm:$0xff]
  %v36 = vld [vmem:[%s0 + $0x98] sm:$0xff]
  %v37 = vld [vmem:[%s1] sm:$0xff]
  %v38 = vld [vmem:[%s1 + $0x8] sm:$0xff]
  %v39 = vld [vmem:[%s1 + $0x10] sm:$0xff]
  %v40 = vld [vmem:[%s1 + $0x18] sm:$0xff]
  %v41 = vld [vmem:[%s1 + $0x20] sm:$0xff]
  %v42 = vld [vmem:[%s1 + $0x28] sm:$0xff]
  %v43 = vld [vmem:[%s1 + $0x30] sm:$0xff]
  %v44 = vld [vmem:[%s1 + $0x38] sm:$0xff]
  %v45 = vld [vmem:[%s1 + $0x40] sm:$0xff]
  %v46 = vld [vmem:[%s1 + $0x48] sm:$0xff]
  %v47 = vld [vmem:[%s1 + $0x50] sm:$0xff]
  %v48 = vld [vmem:[%s1 + $0x58] sm:$0xff]
  %v49 = vld [vmem:[%s1 + $0x60] sm:$0xff]
  %v50 = vld [vmem:[%s1 + $0x68] sm:$0xff]
  %v51 = vld [vmem:[%s1 + $0x70] sm:$0xff]
  %v52 = vld [vmem:[%s1 + $0x78] sm:$0xff]
  %v53 = vld [vmem:[%s1 + $0x80] sm:$0xff]
  %v54 = vld [vmem:[%s1 + $0x88] sm:$0xff]
  %v55 = vld [vmem:[%s1 + $0x90] sm:$0xff]
  %v56 = vld [vmem:[%s1 + $0x98] sm:$0xff]
  %v57 = vld [vmem:[%s1 + $0xa0] sm:$0xff]
  %v58 = vld [vmem:[%s1 + $0xa8] sm:$0xff]
  %v59 = vld [vmem:[%s1 + $0xb0] sm:$0xff]
  %v60 = vld [vmem:[%s1 + $0xb8] sm:$0xff]
  %v61 = vld [vmem:[%s1 + $0xc0] sm:$0xff]
  %v62 = vld [vmem:[%s1 + $0xc8] sm:$0xff]
  %v63 = vld [vmem:[%s1 + $0xd0] sm:$0xff]
  %v64 = vld [vmem:[%s1 + $0xd8] sm:$0xff]
  %v65 = vld [vmem:[%s1 + $0xe0] sm:$0xff]
  %v66 = vld [vmem:[%s1 + $0xe8] sm:$0xff]
  %v67 = vld [vmem:[%s1 + $0xf0] sm:$0xff]
  %v68 = vld [vmem:[%s1 + $0xf8] sm:$0xff]
  %v69 = vld [vmem:[%s1 + $0x100] sm:$0xff]
  %v70 = vld [vmem:[%s1 + $0x108] sm:$0xff]
  %v71 = vld [vmem:[%s1 + $0x110] sm:$0xff]
  %v72 = vld [vmem:[%s1 + $0x118] sm:$0xff]
  %v73 = vld [vmem:[%s1 + $0x120] sm:$0xff]
  %v74 = vld [vmem:[%s1 + $0x128] sm:$0xff]
  %v75 = vld [vmem:[%s1 + $0x130] sm:$0xff]
  %v76 = vld [vmem:[%s1 + $0x138] sm:$0xff]
  %v77 = vld [vmem:[%s1 + $0x140] sm:$0xff]
  %v78 = vld [vmem:[%s1 + $0x148] sm:$0xff]
  %v79 = vld [vmem:[%s1 + $0x150] sm:$0xff]
  %v80 = vld [vmem:[%s1 + $0x158] sm:$0xff]
  %v81 = vld [vmem:[%s1 + $0x160] sm:$0xff]
  %v82 = vld [vmem:[%s1 + $0x168] sm:$0xff]
  %v83 = vld [vmem:[%s1 + $0x170] sm:$0xff]
  %v84 = vld [vmem:[%s1 + $0x178] sm:$0xff]
  %v85 = vld [vmem:[%s1 + $0x180] sm:$0xff]
  %v86 = vld [vmem:[%s1 + $0x188] sm:$0xff]
  %v87 = vld [vmem:[%s1 + $0x190] sm:$0xff]
  %v88 = vld [vmem:[%s1 + $0x198] sm:$0xff]
  %v89 = vld [vmem:[%s1 + $0x1a0] sm:$0xff]
  %v90 = vld [vmem:[%s1 + $0x1a8] sm:$0xff]
  %v91 = vld [vmem:[%s1 + $0x1b0] sm:$0xff]
  %v92 = vld [vmem:[%s1 + $0x1b8] sm:$0xff]
  %v93 = vld [vmem:[%s1 + $0x1c0] sm:$0xff]
  %v94 = vld [vmem:[%s1 + $0x1c8] sm:$0xff]
  %v95 = vld [vmem:[%s1 + $0x1d0] sm:$0xff]
  %v96 = vld [vmem:[%s1 + $0x1d8] sm:$0xff]
  %v97 = vld [vmem:[%s1 + $0x1e0] sm:$0xff]
  %v98 = vld [vmem:[%s1 + $0x1e8] sm:$0xff]
  %v99 = vld [vmem:[%s1 + $0x1f0] sm:$0xff]
  %v100 = vld [vmem:[%s1 + $0x1f8] sm:$0xff]
  %v101 = vld [vmem:[%s1 + $0x200] sm:$0xff]
  %v102 = vld [vmem:[%s1 + $0x208] sm:$0xff]
  %v103 = vld [vmem:[%s1 + $0x210] sm:$0xff]
  %v104 = vld [vmem:[%s1 + $0x218] sm:$0xff]
  %v105 = vld [vmem:[%s1 + $0x220] sm:$0xff]
  %v106 = vld [vmem:[%s1 + $0x228] sm:$0xff]
  %v107 = vld [vmem:[%s1 + $0x230] sm:$0xff]
  %v108 = vld [vmem:[%s1 + $0x238] sm:$0xff]
  %v109 = vld [vmem:[%s1 + $0x240] sm:$0xff]
  %v110 = vld [vmem:[%s1 + $0x248] sm:$0xff]
  %v111 = vld [vmem:[%s1 + $0x250] sm:$0xff]
  %v112 = vld [vmem:[%s1 + $0x258] sm:$0xff]
  %v113 = vld [vmem:[%s1 + $0x260] sm:$0xff]
  %v114 = vld [vmem:[%s1 + $0x268] sm:$0xff]
  %v115 = vld [vmem:[%s1 + $0x270] sm:$0xff]
  %v116 = vld [vmem:[%s1 + $0x278] sm:$0xff]
  %v117 = vld [vmem:[%s1 + $0x280] sm:$0xff]
  %v118 = vld [vmem:[%s1 + $0x288] sm:$0xff]
  %v119 = vld [vmem:[%s1 + $0x290] sm:$0xff]
  %v120 = vld [vmem:[%s1 + $0x298] sm:$0xff]
  %v121 = vld [vmem:[%s1 + $0x2a0] sm:$0xff]
  %v122 = vld [vmem:[%s1 + $0x2a8] sm:$0xff]
  %v123 = vld [vmem:[%s1 + $0x2b0] sm:$0xff]
  %v124 = vld [vmem:[%s1 + $0x2b8] sm:$0xff]
  %v125 = vld [vmem:[%s1 + $0x2c0] sm:$0xff]
  %v126 = vld [vmem:[%s1 + $0x2c8] sm:$0xff]
  %v127 = vld [vmem:[%s1 + $0x2d0] sm:$0xff]
  %v128 = vld [vmem:[%s1 + $0x2d8] sm:$0xff]
  %v129 = vld [vmem:[%s1 + $0x2e0] sm:$0xff]
  %v130 = vld [vmem:[%s1 + $0x2e8] sm:$0xff]
  %v131 = vld [vmem:[%s1 + $0x2f0] sm:$0xff]
  %v132 = vld [vmem:[%s1 + $0x2f8] sm:$0xff]
  %v133 = vld [vmem:[%s1 + $0x300] sm:$0xff]
  %v134 = vld [vmem:[%s1 + $0x308] sm:$0xff]
  %v135 = vld [vmem:[%s1 + $0x310] sm:$0xff]
  %v136 = vld [vmem:[%s1 + $0x318] sm:$0xff]
  %v137 = vld [vmem:[%s1 + $0x320] sm:$0xff]
  %v138 = vld [vmem:[%s1 + $0x328] sm:$0xff]
  %v139 = vld [vmem:[%s1 + $0x330] sm:$0xff]
  %v140 = vld [vmem:[%s1 + $0x338] sm:$0xff]
  %v141 = vld [vmem:[%s1 + $0x340] sm:$0xff]
  %v142 = vld [vmem:[%s1 + $0x348] sm:$0xff]
  %v143 = vld [vmem:[%s1 + $0x350] sm:$0xff]
  %v144 = vld [vmem:[%s1 + $0x358] sm:$0xff]
  %v145 = vld [vmem:[%s1 + $0x360] sm:$0xff]
  %v146 = vld [vmem:[%s1 + $0x368] sm:$0xff]
  %v147 = vld [vmem:[%s1 + $0x370] sm:$0xff]
  %v148 = vld [vmem:[%s1 + $0x378] sm:$0xff]
  %v149 = vld [vmem:[%s1 + $0x380] sm:$0xff]
  %v150 = vld [vmem:[%s1 + $0x388] sm:$0xff]
  %v151 = vld [vmem:[%s1 + $0x390] sm:$0xff]
  %v152 = vld [vmem:[%s1 + $0x398] sm:$0xff]
  %v153 = vld [vmem:[%s1 + $0x3a0] sm:$0xff]
  %v154 = vld [vmem:[%s1 + $0x3a8] sm:$0xff]
  %v155 = vld [vmem:[%s1 + $0x3b0] sm:$0xff]
  %v156 = vld [vmem:[%s1 + $0x3b8] sm:$0xff]
  %v157 = vld [vmem:[%s1 + $0x3c0] sm:$0xff]
  %v158 = vld [vmem:[%s1 + $0x3c8] sm:$0xff]
  %v159 = vld [vmem:[%s1 + $0x3d0] sm:$0xff]
  %v160 = vld [vmem:[%s1 + $0x3d8] sm:$0xff]
  %v161 = vld [vmem:[%s1 + $0x3e0] sm:$0xff]
  %v162 = vld [vmem:[%s1 + $0x3e8] sm:$0xff]
  %v163 = vld [vmem:[%s1 + $0x3f0] sm:$0xff]
  %v164 = vld [vmem:[%s1 + $0x3f8] sm:$0xff]
  %v165 = vld [vmem:[%s1 + $0x400] sm:$0xff]
  %v166 = vld [vmem:[%s1 + $0x408] sm:$0xff]
  %v167 = vld [vmem:[%s1 + $0x410] sm:$0xff]
  %v168 = vld [vmem:[%s1 + $0x418] sm:$0xff]
  %v169 = vld [vmem:[%s1 + $0x420] sm:$0xff]
  %v170 = vld [vmem:[%s1 + $0x428] sm:$0xff]
  %v171 = vld [vmem:[%s1 + $0x430] sm:$0xff]
  %v172 = vld [vmem:[%s1 + $0x438] sm:$0xff]
  %v173 = vld [vmem:[%s1 + $0x440] sm:$0xff]
  %v174 = vld [vmem:[%s1 + $0x448] sm:$0xff]
  %v175 = vld [vmem:[%s1 + $0x450] sm:$0xff]
  %v176 = vld [vmem:[%s1 + $0x458] sm:$0xff]
  %v177 = vld [vmem:[%s1 + $0x460] sm:$0xff]
  %v178 = vld [vmem:[%s1 + $0x468] sm:$0xff]
  %v179 = vld [vmem:[%s1 + $0x470] sm:$0xff]
  %v180 = vld [vmem:[%s1 + $0x478] sm:$0xff]
  %v181 = vld [vmem:[%s1 + $0x480] sm:$0xff]
  %v182 = vld [vmem:[%s1 + $0x488] sm:$0xff]
  %v183 = vld [vmem:[%s1 + $0x490] sm:$0xff]
  %v184 = vld [vmem:[%s1 + $0x498] sm:$0xff]
  %v185 = vld [vmem:[%s1 + $0x4a0] sm:$0xff]
  %v186 = vld [vmem:[%s1 + $0x4a8] sm:$0xff]
  %v187 = vld [vmem:[%s1 + $0x4b0] sm:$0xff]
  %v188 = vld [vmem:[%s1 + $0x4b8] sm:$0xff]
  %v189 = vld [vmem:[%s1 + $0x4c0] sm:$0xff]
  %v190 = vld [vmem:[%s1 + $0x4c8] sm:$0xff]
  %v191 = vld [vmem:[%s1 + $0x4d0] sm:$0xff]
  %v192 = vld [vmem:[%s1 + $0x4d8] sm:$0xff]
  %v193 = vld [vmem:[%s1 + $0x4e0] sm:$0xff]
  %v194 = vld [vmem:[%s1 + $0x4e8] sm:$0xff]
  %v195 = vld [vmem:[%s1 + $0x4f0] sm:$0xff]
  %v196 = vld [vmem:[%s1 + $0x4f8] sm:$0xff]
  %v197 = vld [vmem:[%s1 + $0x500] sm:$0xff]
  %v198 = vld [vmem:[%s1 + $0x508] sm:$0xff]
  %v199 = vld [vmem:[%s1 + $0x510] sm:$0xff]
  %v200 = vld [vmem:[%s1 + $0x518] sm:$0xff]
  %v201 = vld [vmem:[%s1 + $0x520] sm:$0xff]
  %v202 = vld [vmem:[%s1 + $0x528] sm:$0xff]
  %v203 = vld [vmem:[%s1 + $0x530] sm:$0xff]
  %v204 = vld [vmem:[%s1 + $0x538] sm:$0xff]
  %v205 = vld [vmem:[%s1 + $0x540] sm:$0xff]
  %v206 = vld [vmem:[%s1 + $0x548] sm:$0xff]
  %v207 = vld [vmem:[%s1 + $0x550] sm:$0xff]
  %v208 = vld [vmem:[%s1 + $0x558] sm:$0xff]
  %v209 = vld [vmem:[%s1 + $0x560] sm:$0xff]
  %v210 = vld [vmem:[%s1 + $0x568] sm:$0xff]
  %v211 = vld [vmem:[%s1 + $0x570] sm:$0xff]
  %v212 = vld [vmem:[%s1 + $0x578] sm:$0xff]
  %v213 = vld [vmem:[%s1 + $0x580] sm:$0xff]
  %v214 = vld [vmem:[%s1 + $0x588] sm:$0xff]
  %v215 = vld [vmem:[%s1 + $0x590] sm:$0xff]
  %v216 = vld [vmem:[%s1 + $0x598] sm:$0xff]
  %v217 = vld [vmem:[%s1 + $0x5a0] sm:$0xff]
  %v218 = vld [vmem:[%s1 + $0x5a8] sm:$0xff]
  %v219 = vld [vmem:[%s1 + $0x5b0] sm:$0xff]
  %v220 = vld [vmem:[%s1 + $0x5b8] sm:$0xff]
  %v221 = vld [vmem:[%s1 + $0x5c0] sm:$0xff]
  %v222 = vld [vmem:[%s1 + $0x5c8] sm:$0xff]
  %v223 = vld [vmem:[%s1 + $0x5d0] sm:$0xff]
  %v224 = vld [vmem:[%s1 + $0x5d8] sm:$0xff]
  %v225 = vld [vmem:[%s1 + $0x5e0] sm:$0xff]
  %v226 = vld [vmem:[%s1 + $0x5e8] sm:$0xff]
  %v227 = vld [vmem:[%s1 + $0x5f0] sm:$0xff]
  %v228 = vld [vmem:[%s1 + $0x5f8] sm:$0xff]
  %v229 = vld [vmem:[%s1 + $0x600] sm:$0xff]
  %v230 = vld [vmem:[%s1 + $0x608] sm:$0xff]
  %v231 = vld [vmem:[%s1 + $0x610] sm:$0xff]
  %v232 = vld [vmem:[%s1 + $0x618] sm:$0xff]
  %v233 = vld [vmem:[%s1 + $0x620] sm:$0xff]
  %v234 = vld [vmem:[%s1 + $0x628] sm:$0xff]
  %v235 = vld [vmem:[%s1 + $0x630] sm:$0xff]
  %v236 = vld [vmem:[%s1 + $0x638] sm:$0xff]
  %v237 = vld [vmem:[%s1 + $0x640] sm:$0xff]
  %v238 = vld [vmem:[%s1 + $0x648] sm:$0xff]
  %v239 = vld [vmem:[%s1 + $0x650] sm:$0xff]
  %v240 = vld [vmem:[%s1 + $0x658] sm:$0xff]
  %v241 = vld [vmem:[%s1 + $0x660] sm:$0xff]
  %v242 = vld [vmem:[%s1 + $0x668] sm:$0xff]
  %v243 = vld [vmem:[%s1 + $0x670] sm:$0xff]
  %v244 = vld [vmem:[%s1 + $0x678] sm:$0xff]
  %v245 = vld [vmem:[%s1 + $0x680] sm:$0xff]
  %v246 = vld [vmem:[%s1 + $0x688] sm:$0xff]
  %v247 = vld [vmem:[%s1 + $0x690] sm:$0xff]
  %v248 = vld [vmem:[%s1 + $0x698] sm:$0xff]
  %v249 = vld [vmem:[%s1 + $0x6a0] sm:$0xff]
  %v250 = vld [vmem:[%s1 + $0x6a8] sm:$0xff]
  %v251 = vld [vmem:[%s1 + $0x6b0] sm:$0xff]
  %v252 = vld [vmem:[%s1 + $0x6b8] sm:$0xff]
  %v253 = vld [vmem:[%s1 + $0x6c0] sm:$0xff]
  %v254 = vld [vmem:[%s1 + $0x6c8] sm:$0xff]
  %v255 = vld [vmem:[%s1 + $0x6d0] sm:$0xff]
  %v256 = vld [vmem:[%s1 + $0x6d8] sm:$0xff]
  %v257 = vld [vmem:[%s1 + $0x6e0] sm:$0xff]
  %v258 = vld [vmem:[%s1 + $0x6e8] sm:$0xff]
  %v259 = vld [vmem:[%s1 + $0x6f0] sm:$0xff]
  %v260 = vld [vmem:[%s1 + $0x6f8] sm:$0xff]
  %v261 = vld [vmem:[%s1 + $0x700] sm:$0xff]
  %v262 = vld [vmem:[%s1 + $0x708] sm:$0xff]
  %v263 = vld [vmem:[%s1 + $0x710] sm:$0xff]
  %v264 = vld [vmem:[%s1 + $0x718] sm:$0xff]
  %v265 = vld [vmem:[%s1 + $0x720] sm:$0xff]
  %v266 = vld [vmem:[%s1 + $0x728] sm:$0xff]
  %v267 = vld [vmem:[%s1 + $0x730] sm:$0xff]
  %v268 = vld [vmem:[%s1 + $0x738] sm:$0xff]
  %v269 = vld [vmem:[%s1 + $0x740] sm:$0xff]
  %v270 = vld [vmem:[%s1 + $0x748] sm:$0xff]
  %v271 = vld [vmem:[%s1 + $0x750] sm:$0xff]
  %v272 = vld [vmem:[%s1 + $0x758] sm:$0xff]
  %v273 = vld [vmem:[%s1 + $0x760] sm:$0xff]
  %v274 = vld [vmem:[%s1 + $0x768] sm:$0xff]
  %v275 = vld [vmem:[%s1 + $0x770] sm:$0xff]
  %v276 = vld [vmem:[%s1 + $0x778] sm:$0xff]
  %v277 = vld [vmem:[%s1 + $0x780] sm:$0xff]
  %v278 = vld [vmem:[%s1 + $0x788] sm:$0xff]
  %v279 = vld [vmem:[%s1 + $0x790] sm:$0xff]
  %v280 = vld [vmem:[%s1 + $0x798] sm:$0xff]
  %v281 = vld [vmem:[%s1 + $0x7a0] sm:$0xff]
  %v282 = vld [vmem:[%s1 + $0x7a8] sm:$0xff]
  %v283 = vld [vmem:[%s1 + $0x7b0] sm:$0xff]
  %v284 = vld [vmem:[%s1 + $0x7b8] sm:$0xff]
  %v285 = vld [vmem:[%s1 + $0x7c0] sm:$0xff]
  %v286 = vld [vmem:[%s1 + $0x7c8] sm:$0xff]
  %v287 = vld [vmem:[%s1 + $0x7d0] sm:$0xff]
  %v288 = vld [vmem:[%s1 + $0x7d8] sm:$0xff]
  %v289 = vld [vmem:[%s1 + $0x7e0] sm:$0xff]
  %v290 = vld [vmem:[%s1 + $0x7e8] sm:$0xff]
  %v291 = vld [vmem:[%s1 + $0x7f0] sm:$0xff]
  %v292 = vld [vmem:[%s1 + $0x7f8] sm:$0xff]
  %v293 = vld [vmem:[%s1 + $0x800] sm:$0xff]
  %v294 = vld [vmem:[%s1 + $0x808] sm:$0xff]
  %v295 = vld [vmem:[%s1 + $0x810] sm:$0xff]
  %v296 = vld [vmem:[%s1 + $0x818] sm:$0xff]
  %v297 = vld [vmem:[%s1 + $0x820] sm:$0xff]
  %v298 = vld [vmem:[%s1 + $0x828] sm:$0xff]
  %v299 = vld [vmem:[%s1 + $0x830] sm:$0xff]
  %v300 = vld [vmem:[%s1 + $0x838] sm:$0xff]
  %v301 = vld [vmem:[%s1 + $0x840] sm:$0xff]
  %v302 = vld [vmem:[%s1 + $0x848] sm:$0xff]
  %v303 = vld [vmem:[%s1 + $0x850] sm:$0xff]
  %v304 = vld [vmem:[%s1 + $0x858] sm:$0xff]
  %v305 = vld [vmem:[%s1 + $0x860] sm:$0xff]
  %v306 = vld [vmem:[%s1 + $0x868] sm:$0xff]
  %v307 = vld [vmem:[%s1 + $0x870] sm:$0xff]
  %v308 = vld [vmem:[%s1 + $0x878] sm:$0xff]
  %v309 = vld [vmem:[%s1 + $0x880] sm:$0xff]
  %v310 = vld [vmem:[%s1 + $0x888] sm:$0xff]
  %v311 = vld [vmem:[%s1 + $0x890] sm:$0xff]
  %v312 = vld [vmem:[%s1 + $0x898] sm:$0xff]
  %v313 = vld [vmem:[%s1 + $0x8a0] sm:$0xff]
  %v314 = vld [vmem:[%s1 + $0x8a8] sm:$0xff]
  %v315 = vld [vmem:[%s1 + $0x8b0] sm:$0xff]
  %v316 = vld [vmem:[%s1 + $0x8b8] sm:$0xff]
  %v317 = vld [vmem:[%s1 + $0x8c0] sm:$0xff]
  %v318 = vld [vmem:[%s1 + $0x8c8] sm:$0xff]
  %v319 = vld [vmem:[%s1 + $0x8d0] sm:$0xff]
  %v320 = vld [vmem:[%s1 + $0x8d8] sm:$0xff]
  %v321 = vld [vmem:[%s1 + $0x8e0] sm:$0xff]
  %v322 = vld [vmem:[%s1 + $0x8e8] sm:$0xff]
  %v323 = vld [vmem:[%s1 + $0x8f0] sm:$0xff]
  %v324 = vld [vmem:[%s1 + $0x8f8] sm:$0xff]
  %vm325 = vcmask 523264
  %v327 = vsel %vm325, %v21, 0
  %v330 = vsel %vm325, %v26, 0
  %v333 = vsel %vm325, %v31, 0
  %v336 = vsel %vm325, %v36, 0
  %338 = vmatprep.subr.mxu0 %v38
  %339 = vmatpush1.msra.mxu0 %v37
  %340 = vmatprep.subr.mxu0 %v42
  %341 = vmatpush1.msra.mxu0 %v41
  %342 = vmatprep.subr.mxu0 %v46
  %343 = vmatpush1.msra.mxu0 %v45
  %344 = vmatprep.subr.mxu0 %v50
  %345 = vmatpush1.msra.mxu0 %v49
  %346 = vmatprep.subr.mxu0 %v54
  %347 = vmatpush1.msra.mxu0 %v53
  %348 = vmatprep.subr.mxu0 %v58
  %349 = vmatpush1.msra.mxu0 %v57
  %350 = vmatprep.subr.mxu0 %v62
  %351 = vmatpush1.msra.mxu0 %v61
  %352 = vmatprep.subr.mxu0 %v66
  %353 = vmatpush1.msra.mxu0 %v65
  %354 = vmatprep.subr.mxu0 %v70
  %355 = vmatpush1.msra.mxu0 %v69
  %356 = vmatprep.subr.mxu0 %v74
  %357 = vmatpush1.msra.mxu0 %v73
  %358 = vmatprep.subr.mxu0 %v78
  %359 = vmatpush1.msra.mxu0 %v77
  %360 = vmatprep.subr.mxu0 %v82
  %361 = vmatpush1.msra.mxu0 %v81
  %362 = vmatprep.subr.mxu0 %v86
  %363 = vmatpush1.msra.mxu0 %v85
  %364 = vmatprep.subr.mxu0 %v90
  %365 = vmatpush1.msra.mxu0 %v89
  %366 = vmatprep.subr.mxu0 %v94
  %367 = vmatpush1.msra.mxu0 %v93
  %368 = vmatprep.subr.mxu0 %v98
  %369 = vmatpush1.msra.mxu0 %v97
  %370 = vmatprep.subr.mxu0 %v102
  %371 = vmatpush1.msra.mxu0 %v101
  %372 = vmatprep.subr.mxu0 %v106
  %373 = vmatpush1.msra.mxu0 %v105
  %374 = vmatprep.subr.mxu0 %v110
  %375 = vmatpush1.msra.mxu0 %v109
  %376 = vmatprep.subr.mxu0 %v114
  %377 = vmatpush1.msra.mxu0 %v113
  %378 = vmatprep.subr.mxu0 %v118
  %379 = vmatpush1.msra.mxu0 %v117
  %380 = vmatprep.subr.mxu0 %v122
  %381 = vmatpush1.msra.mxu0 %v121
  %382 = vmatprep.subr.mxu0 %v126
  %383 = vmatpush1.msra.mxu0 %v125
  %384 = vmatprep.subr.mxu0 %v130
  %385 = vmatpush1.msra.mxu0 %v129
  %386 = vmatprep.subr.mxu0 %v134
  %387 = vmatpush1.msra.mxu0 %v133
  %388 = vmatprep.subr.mxu0 %v138
  %389 = vmatpush1.msra.mxu0 %v137
  %390 = vmatprep.subr.mxu0 %v142
  %391 = vmatpush1.msra.mxu0 %v141
  %392 = vmatprep.subr.mxu0 %v146
  %393 = vmatpush1.msra.mxu0 %v145
  %394 = vmatprep.subr.mxu0 %v150
  %395 = vmatpush1.msra.mxu0 %v149
  %396 = vmatprep.subr.mxu0 %v154
  %397 = vmatpush1.msra.mxu0 %v153
  %398 = vmatprep.subr.mxu0 %v158
  %399 = vmatpush1.msra.mxu0 %v157
  %400 = vmatprep.subr.mxu0 %v162
  %401 = vmatpush1.msra.mxu0 %v161
  %402 = vmatprep.mubr.f32.mxu0 %v18
  %403 = vmatmul.mubr.f32.gmra.mrb[0].mxu0 %v17
  %v404 = vpop.f32.mrb[0].mxu0
  %v405 = vadd.f32 0.0, %v404
  %v406 = vpop.f32.mrb[0].mxu0
  %v407 = vadd.f32 0.0, %v406
  %408 = vmatprep.mubr.f32.mxu0 %v23
  %409 = vmatmul.mubr.f32.gmra.mrb[0].mxu0 %v22
  %v410 = vpop.f32.mrb[0].mxu0
  %v411 = vadd.f32 0.0, %v410
  %v412 = vpop.f32.mrb[0].mxu0
  %v413 = vadd.f32 0.0, %v412
  %414 = vmatprep.mubr.f32.mxu0 %v28
  %415 = vmatmul.mubr.f32.gmra.mrb[0].mxu0 %v27
  %v416 = vpop.f32.mrb[0].mxu0
  %v417 = vadd.f32 0.0, %v416
  %v418 = vpop.f32.mrb[0].mxu0
  %v419 = vadd.f32 0.0, %v418
  %420 = vmatprep.mubr.f32.mxu0 %v33
  %421 = vmatmul.mubr.f32.gmra.mrb[0].mxu0 %v32
  %v422 = vpop.f32.mrb[0].mxu0
  %v423 = vadd.f32 0.0, %v422
  %v424 = vpop.f32.mrb[0].mxu0
  %v425 = vadd.f32 0.0, %v424
  %426 = vdwg.mxu0
  %427 = vmatprep.subr.mxu0 %v166
  %428 = vmatpush1.msra.mxu0 %v165
  %429 = vmatprep.subr.mxu0 %v170
  %430 = vmatpush1.msra.mxu0 %v169
  %431 = vmatprep.subr.mxu0 %v174
  %432 = vmatpush1.msra.mxu0 %v173
  %433 = vmatprep.subr.mxu0 %v178
  %434 = vmatpush1.msra.mxu0 %v177
  %435 = vmatprep.subr.mxu0 %v182
  %436 = vmatpush1.msra.mxu0 %v181
  %437 = vmatprep.subr.mxu0 %v186
  %438 = vmatpush1.msra.mxu0 %v185
  %439 = vmatprep.subr.mxu0 %v190
  %440 = vmatpush1.msra.mxu0 %v189
  %441 = vmatprep.subr.mxu0 %v194
  %442 = vmatpush1.msra.mxu0 %v193
  %443 = vmatprep.subr.mxu0 %v198
  %444 = vmatpush1.msra.mxu0 %v197
  %445 = vmatprep.subr.mxu0 %v202
  %446 = vmatpush1.msra.mxu0 %v201
  %447 = vmatprep.subr.mxu0 %v206
  %448 = vmatpush1.msra.mxu0 %v205
  %449 = vmatprep.subr.mxu0 %v210
  %450 = vmatpush1.msra.mxu0 %v209
  %451 = vmatprep.subr.mxu0 %v214
  %452 = vmatpush1.msra.mxu0 %v213
  %453 = vmatprep.subr.mxu0 %v218
  %454 = vmatpush1.msra.mxu0 %v217
  %455 = vmatprep.subr.mxu0 %v222
  %456 = vmatpush1.msra.mxu0 %v221
  %457 = vmatprep.subr.mxu0 %v226
  %458 = vmatpush1.msra.mxu0 %v225
  %459 = vmatprep.subr.mxu0 %v230
  %460 = vmatpush1.msra.mxu0 %v229
  %461 = vmatprep.subr.mxu0 %v234
  %462 = vmatpush1.msra.mxu0 %v233
  %463 = vmatprep.subr.mxu0 %v238
  %464 = vmatpush1.msra.mxu0 %v237
  %465 = vmatprep.subr.mxu0 %v242
  %466 = vmatpush1.msra.mxu0 %v241
  %467 = vmatprep.subr.mxu0 %v246
  %468 = vmatpush1.msra.mxu0 %v245
  %469 = vmatprep.subr.mxu0 %v250
  %470 = vmatpush1.msra.mxu0 %v249
  %471 = vmatprep.subr.mxu0 %v254
  %472 = vmatpush1.msra.mxu0 %v253
  %473 = vmatprep.subr.mxu0 %v258
  %474 = vmatpush1.msra.mxu0 %v257
  %475 = vmatprep.subr.mxu0 %v262
  %476 = vmatpush1.msra.mxu0 %v261
  %477 = vmatprep.subr.mxu0 %v266
  %478 = vmatpush1.msra.mxu0 %v265
  %479 = vmatprep.subr.mxu0 %v270
  %480 = vmatpush1.msra.mxu0 %v269
  %481 = vmatprep.subr.mxu0 %v274
  %482 = vmatpush1.msra.mxu0 %v273
  %483 = vmatprep.subr.mxu0 %v278
  %484 = vmatpush1.msra.mxu0 %v277
  %485 = vmatprep.subr.mxu0 %v282
  %486 = vmatpush1.msra.mxu0 %v281
  %487 = vmatprep.subr.mxu0 %v286
  %488 = vmatpush1.msra.mxu0 %v285
  %489 = vmatprep.subr.mxu0 %v290
  %490 = vmatpush1.msra.mxu0 %v289
  %491 = vmatprep.mubr.f32.mxu0 %v20
  %492 = vmatmul.mubr.f32.gmra.mrb[0].mxu0 %v19
  %v493 = vpop.f32.mrb[0].mxu0
  %v494 = vadd.f32 %v405, %v493
  %v495 = vpop.f32.mrb[0].mxu0
  %v496 = vadd.f32 %v407, %v495
  %497 = vmatprep.mubr.f32.mxu0 %v25
  %498 = vmatmul.mubr.f32.gmra.mrb[0].mxu0 %v24
  %v499 = vpop.f32.mrb[0].mxu0
  %v500 = vadd.f32 %v411, %v499
  %v501 = vpop.f32.mrb[0].mxu0
  %v502 = vadd.f32 %v413, %v501
  %503 = vmatprep.mubr.f32.mxu0 %v30
  %504 = vmatmul.mubr.f32.gmra.mrb[0].mxu0 %v29
  %v505 = vpop.f32.mrb[0].mxu0
  %v506 = vadd.f32 %v417, %v505
  %v507 = vpop.f32.mrb[0].mxu0
  %v508 = vadd.f32 %v419, %v507
  %509 = vmatprep.mubr.f32.mxu0 %v35
  %510 = vmatmul.mubr.f32.gmra.mrb[0].mxu0 %v34
  %v511 = vpop.f32.mrb[0].mxu0
  %v512 = vadd.f32 %v423, %v511
  %v513 = vpop.f32.mrb[0].mxu0
  %v514 = vadd.f32 %v425, %v513
  %515 = vdwg.mxu0
  %516 = vmatprep.subr.mxu0 %v294
  %517 = vmatpush1.msra.mxu0 %v293
  %518 = vmatprep.subr.mxu0 %v298
  %519 = vmatpush1.msra.mxu0 %v297
  %520 = vmatprep.subr.mxu0 %v302
  %521 = vmatpush1.msra.mxu0 %v301
  %522 = vmatprep.subr.mxu0 %v306
  %523 = vmatpush1.msra.mxu0 %v305
  %524 = vmatprep.subr.mxu0 %v310
  %525 = vmatpush1.msra.mxu0 %v309
  %526 = vmatprep.subr.mxu0 %v314
  %527 = vmatpush1.msra.mxu0 %v313
  %528 = vmatprep.subr.mxu0 %v318
  %529 = vmatpush1.msra.mxu0 %v317
  %530 = vmatprep.subr.mxu0 %v322
  %531 = vmatpush1.msra.mxu0 %v321
  %532 = vmatprep.subr.mxu0 0.0
  %533 = vmatpush1.msra.mxu0 0.0
  %534 = vmatprep.subr.mxu0 0.0
  %535 = vmatpush1.msra.mxu0 0.0
  %536 = vmatprep.subr.mxu0 0.0
  %537 = vmatpush1.msra.mxu0 0.0
  %538 = vmatprep.subr.mxu0 0.0
  %539 = vmatpush1.msra.mxu0 0.0
  %540 = vmatprep.subr.mxu0 0.0
  %541 = vmatpush1.msra.mxu0 0.0
  %542 = vmatprep.subr.mxu0 0.0
  %543 = vmatpush1.msra.mxu0 0.0
  %544 = vmatprep.subr.mxu0 0.0
  %545 = vmatpush1.msra.mxu0 0.0
  %546 = vmatprep.subr.mxu0 0.0
  %547 = vmatpush1.msra.mxu0 0.0
  %548 = vmatprep.subr.mxu0 0.0
  %549 = vmatpush1.msra.mxu0 0.0
  %550 = vmatprep.subr.mxu0 0.0
  %551 = vmatpush1.msra.mxu0 0.0
  %552 = vmatprep.subr.mxu0 0.0
  %553 = vmatpush1.msra.mxu0 0.0
  %554 = vmatprep.subr.mxu0 0.0
  %555 = vmatpush1.msra.mxu0 0.0
  %556 = vmatprep.subr.mxu0 0.0
  %557 = vmatpush1.msra.mxu0 0.0
  %558 = vmatprep.subr.mxu0 0.0
  %559 = vmatpush1.msra.mxu0 0.0
  %560 = vmatprep.subr.mxu0 0.0
  %561 = vmatpush1.msra.mxu0 0.0
  %562 = vmatprep.subr.mxu0 0.0
  %563 = vmatpush1.msra.mxu0 0.0
  %564 = vmatprep.subr.mxu0 0.0
  %565 = vmatpush1.msra.mxu0 0.0
  %566 = vmatprep.subr.mxu0 0.0
  %567 = vmatpush1.msra.mxu0 0.0
  %568 = vmatprep.subr.mxu0 0.0
  %569 = vmatpush1.msra.mxu0 0.0
  %570 = vmatprep.subr.mxu0 0.0
  %571 = vmatpush1.msra.mxu0 0.0
  %572 = vmatprep.subr.mxu0 0.0
  %573 = vmatpush1.msra.mxu0 0.0
  %574 = vmatprep.subr.mxu0 0.0
  %575 = vmatpush1.msra.mxu0 0.0
  %576 = vmatprep.subr.mxu0 0.0
  %577 = vmatpush1.msra.mxu0 0.0
  %578 = vmatprep.subr.mxu0 0.0
  %579 = vmatpush1.msra.mxu0 0.0
  %580 = vmatprep.mubr.f32.mxu0 0.0
  %581 = vmatmul.mubr.f32.gmra.mrb[0].mxu0 %v327
  %v582 = vpop.f32.mrb[0].mxu0
  %v583 = vadd.f32 %v494, %v582
  %v584 = vpop.f32.mrb[0].mxu0
  %v585 = vadd.f32 %v496, %v584
  %586 = vmatprep.mubr.f32.mxu0 0.0
  %587 = vmatmul.mubr.f32.gmra.mrb[0].mxu0 %v330
  %v588 = vpop.f32.mrb[0].mxu0
  %v589 = vadd.f32 %v500, %v588
  %v590 = vpop.f32.mrb[0].mxu0
  %v591 = vadd.f32 %v502, %v590
  %592 = vmatprep.mubr.f32.mxu0 0.0
  %593 = vmatmul.mubr.f32.gmra.mrb[0].mxu0 %v333
  %v594 = vpop.f32.mrb[0].mxu0
  %v595 = vadd.f32 %v506, %v594
  %v596 = vpop.f32.mrb[0].mxu0
  %v597 = vadd.f32 %v508, %v596
  %598 = vmatprep.mubr.f32.mxu0 0.0
  %599 = vmatmul.mubr.f32.gmra.mrb[0].mxu0 %v336
  %v600 = vpop.f32.mrb[0].mxu0
  %v601 = vadd.f32 %v512, %v600
  %v602 = vpop.f32.mrb[0].mxu0
  %v603 = vadd.f32 %v514, %v602
  %604 = vdwg.mxu0
  %605 = vmatprep.subr.mxu0 %v40
  %606 = vmatpush1.msra.mxu0 %v39
  %607 = vmatprep.subr.mxu0 %v44
  %608 = vmatpush1.msra.mxu0 %v43
  %609 = vmatprep.subr.mxu0 %v48
  %610 = vmatpush1.msra.mxu0 %v47
  %611 = vmatprep.subr.mxu0 %v52
  %612 = vmatpush1.msra.mxu0 %v51
  %613 = vmatprep.subr.mxu0 %v56
  %614 = vmatpush1.msra.mxu0 %v55
  %615 = vmatprep.subr.mxu0 %v60
  %616 = vmatpush1.msra.mxu0 %v59
  %617 = vmatprep.subr.mxu0 %v64
  %618 = vmatpush1.msra.mxu0 %v63
  %619 = vmatprep.subr.mxu0 %v68
  %620 = vmatpush1.msra.mxu0 %v67
  %621 = vmatprep.subr.mxu0 %v72
  %622 = vmatpush1.msra.mxu0 %v71
  %623 = vmatprep.subr.mxu0 %v76
  %624 = vmatpush1.msra.mxu0 %v75
  %625 = vmatprep.subr.mxu0 %v80
  %626 = vmatpush1.msra.mxu0 %v79
  %627 = vmatprep.subr.mxu0 %v84
  %628 = vmatpush1.msra.mxu0 %v83
  %629 = vmatprep.subr.mxu0 %v88
  %630 = vmatpush1.msra.mxu0 %v87
  %631 = vmatprep.subr.mxu0 %v92
  %632 = vmatpush1.msra.mxu0 %v91
  %633 = vmatprep.subr.mxu0 %v96
  %634 = vmatpush1.msra.mxu0 %v95
  %635 = vmatprep.subr.mxu0 %v100
  %636 = vmatpush1.msra.mxu0 %v99
  %637 = vmatprep.subr.mxu0 %v104
  %638 = vmatpush1.msra.mxu0 %v103
  %639 = vmatprep.subr.mxu0 %v108
  %640 = vmatpush1.msra.mxu0 %v107
  %641 = vmatprep.subr.mxu0 %v112
  %642 = vmatpush1.msra.mxu0 %v111
  %643 = vmatprep.subr.mxu0 %v116
  %644 = vmatpush1.msra.mxu0 %v115
  %645 = vmatprep.subr.mxu0 %v120
  %646 = vmatpush1.msra.mxu0 %v119
  %647 = vmatprep.subr.mxu0 %v124
  %648 = vmatpush1.msra.mxu0 %v123
  %649 = vmatprep.subr.mxu0 %v128
  %650 = vmatpush1.msra.mxu0 %v127
  %651 = vmatprep.subr.mxu0 %v132
  %652 = vmatpush1.msra.mxu0 %v131
  %653 = vmatprep.subr.mxu0 %v136
  %654 = vmatpush1.msra.mxu0 %v135
  %655 = vmatprep.subr.mxu0 %v140
  %656 = vmatpush1.msra.mxu0 %v139
  %657 = vmatprep.subr.mxu0 %v144
  %658 = vmatpush1.msra.mxu0 %v143
  %659 = vmatprep.subr.mxu0 %v148
  %660 = vmatpush1.msra.mxu0 %v147
  %661 = vmatprep.subr.mxu0 %v152
  %662 = vmatpush1.msra.mxu0 %v151
  %663 = vmatprep.subr.mxu0 %v156
  %664 = vmatpush1.msra.mxu0 %v155
  %665 = vmatprep.subr.mxu0 %v160
  %666 = vmatpush1.msra.mxu0 %v159
  %667 = vmatprep.subr.mxu0 %v164
  %668 = vmatpush1.msra.mxu0 %v163
  %669 = vmatprep.mubr.f32.mxu0 %v18
  %670 = vmatmul.mubr.f32.gmra.mrb[0].mxu0 %v17
  %v671 = vpop.f32.mrb[0].mxu0
  %v672 = vadd.f32 0.0, %v671
  %v673 = vpop.f32.mrb[0].mxu0
  %v674 = vadd.f32 0.0, %v673
  %675 = vmatprep.mubr.f32.mxu0 %v23
  %676 = vmatmul.mubr.f32.gmra.mrb[0].mxu0 %v22
  %v677 = vpop.f32.mrb[0].mxu0
  %v678 = vadd.f32 0.0, %v677
  %v679 = vpop.f32.mrb[0].mxu0
  %v680 = vadd.f32 0.0, %v679
  %681 = vmatprep.mubr.f32.mxu0 %v28
  %682 = vmatmul.mubr.f32.gmra.mrb[0].mxu0 %v27
  %v683 = vpop.f32.mrb[0].mxu0
  %v684 = vadd.f32 0.0, %v683
  %v685 = vpop.f32.mrb[0].mxu0
  %v686 = vadd.f32 0.0, %v685
  %687 = vmatprep.mubr.f32.mxu0 %v33
  %688 = vmatmul.mubr.f32.gmra.mrb[0].mxu0 %v32
  %v689 = vpop.f32.mrb[0].mxu0
  %v690 = vadd.f32 0.0, %v689
  %v691 = vpop.f32.mrb[0].mxu0
  %v692 = vadd.f32 0.0, %v691
  %693 = vdwg.mxu0
  %694 = vmatprep.subr.mxu0 %v168
  %695 = vmatpush1.msra.mxu0 %v167
  %696 = vmatprep.subr.mxu0 %v172
  %697 = vmatpush1.msra.mxu0 %v171
  %698 = vmatprep.subr.mxu0 %v176
  %699 = vmatpush1.msra.mxu0 %v175
  %700 = vmatprep.subr.mxu0 %v180
  %701 = vmatpush1.msra.mxu0 %v179
  %702 = vmatprep.subr.mxu0 %v184
  %703 = vmatpush1.msra.mxu0 %v183
  %704 = vmatprep.subr.mxu0 %v188
  %705 = vmatpush1.msra.mxu0 %v187
  %706 = vmatprep.subr.mxu0 %v192
  %707 = vmatpush1.msra.mxu0 %v191
  %708 = vmatprep.subr.mxu0 %v196
  %709 = vmatpush1.msra.mxu0 %v195
  %710 = vmatprep.subr.mxu0 %v200
  %711 = vmatpush1.msra.mxu0 %v199
  %712 = vmatprep.subr.mxu0 %v204
  %713 = vmatpush1.msra.mxu0 %v203
  %714 = vmatprep.subr.mxu0 %v208
  %715 = vmatpush1.msra.mxu0 %v207
  %716 = vmatprep.subr.mxu0 %v212
  %717 = vmatpush1.msra.mxu0 %v211
  %718 = vmatprep.subr.mxu0 %v216
  %719 = vmatpush1.msra.mxu0 %v215
  %720 = vmatprep.subr.mxu0 %v220
  %721 = vmatpush1.msra.mxu0 %v219
  %722 = vmatprep.subr.mxu0 %v224
  %723 = vmatpush1.msra.mxu0 %v223
  %724 = vmatprep.subr.mxu0 %v228
  %725 = vmatpush1.msra.mxu0 %v227
  %726 = vmatprep.subr.mxu0 %v232
  %727 = vmatpush1.msra.mxu0 %v231
  %728 = vmatprep.subr.mxu0 %v236
  %729 = vmatpush1.msra.mxu0 %v235
  %730 = vmatprep.subr.mxu0 %v240
  %731 = vmatpush1.msra.mxu0 %v239
  %732 = vmatprep.subr.mxu0 %v244
  %733 = vmatpush1.msra.mxu0 %v243
  %734 = vmatprep.subr.mxu0 %v248
  %735 = vmatpush1.msra.mxu0 %v247
  %736 = vmatprep.subr.mxu0 %v252
  %737 = vmatpush1.msra.mxu0 %v251
  %738 = vmatprep.subr.mxu0 %v256
  %739 = vmatpush1.msra.mxu0 %v255
  %740 = vmatprep.subr.mxu0 %v260
  %741 = vmatpush1.msra.mxu0 %v259
  %742 = vmatprep.subr.mxu0 %v264
  %743 = vmatpush1.msra.mxu0 %v263
  %744 = vmatprep.subr.mxu0 %v268
  %745 = vmatpush1.msra.mxu0 %v267
  %746 = vmatprep.subr.mxu0 %v272
  %747 = vmatpush1.msra.mxu0 %v271
  %748 = vmatprep.subr.mxu0 %v276
  %749 = vmatpush1.msra.mxu0 %v275
  %750 = vmatprep.subr.mxu0 %v280
  %751 = vmatpush1.msra.mxu0 %v279
  %752 = vmatprep.subr.mxu0 %v284
  %753 = vmatpush1.msra.mxu0 %v283
  %754 = vmatprep.subr.mxu0 %v288
  %755 = vmatpush1.msra.mxu0 %v287
  %756 = vmatprep.subr.mxu0 %v292
  %757 = vmatpush1.msra.mxu0 %v291
  %758 = vmatprep.mubr.f32.mxu0 %v20
  %759 = vmatmul.mubr.f32.gmra.mrb[0].mxu0 %v19
  %v760 = vpop.f32.mrb[0].mxu0
  %v761 = vadd.f32 %v672, %v760
  %v762 = vpop.f32.mrb[0].mxu0
  %v763 = vadd.f32 %v674, %v762
  %764 = vmatprep.mubr.f32.mxu0 %v25
  %765 = vmatmul.mubr.f32.gmra.mrb[0].mxu0 %v24
  %v766 = vpop.f32.mrb[0].mxu0
  %v767 = vadd.f32 %v678, %v766
  %v768 = vpop.f32.mrb[0].mxu0
  %v769 = vadd.f32 %v680, %v768
  %770 = vmatprep.mubr.f32.mxu0 %v30
  %771 = vmatmul.mubr.f32.gmra.mrb[0].mxu0 %v29
  %v772 = vpop.f32.mrb[0].mxu0
  %v773 = vadd.f32 %v684, %v772
  %v774 = vpop.f32.mrb[0].mxu0
  %v775 = vadd.f32 %v686, %v774
  %776 = vmatprep.mubr.f32.mxu0 %v35
  %777 = vmatmul.mubr.f32.gmra.mrb[0].mxu0 %v34
  %v778 = vpop.f32.mrb[0].mxu0
  %v779 = vadd.f32 %v690, %v778
  %v780 = vpop.f32.mrb[0].mxu0
  %v781 = vadd.f32 %v692, %v780
  %782 = vdwg.mxu0
  %783 = vmatprep.subr.mxu0 %v296
  %784 = vmatpush1.msra.mxu0 %v295
  %785 = vmatprep.subr.mxu0 %v300
  %786 = vmatpush1.msra.mxu0 %v299
  %787 = vmatprep.subr.mxu0 %v304
  %788 = vmatpush1.msra.mxu0 %v303
  %789 = vmatprep.subr.mxu0 %v308
  %790 = vmatpush1.msra.mxu0 %v307
  %791 = vmatprep.subr.mxu0 %v312
  %792 = vmatpush1.msra.mxu0 %v311
  %793 = vmatprep.subr.mxu0 %v316
  %794 = vmatpush1.msra.mxu0 %v315
  %795 = vmatprep.subr.mxu0 %v320
  %796 = vmatpush1.msra.mxu0 %v319
  %797 = vmatprep.subr.mxu0 %v324
  %798 = vmatpush1.msra.mxu0 %v323
  %799 = vmatprep.subr.mxu0 0.0
  %800 = vmatpush1.msra.mxu0 0.0
  %801 = vmatprep.subr.mxu0 0.0
  %802 = vmatpush1.msra.mxu0 0.0
  %803 = vmatprep.subr.mxu0 0.0
  %804 = vmatpush1.msra.mxu0 0.0
  %805 = vmatprep.subr.mxu0 0.0
  %806 = vmatpush1.msra.mxu0 0.0
  %807 = vmatprep.subr.mxu0 0.0
  %808 = vmatpush1.msra.mxu0 0.0
  %809 = vmatprep.subr.mxu0 0.0
  %810 = vmatpush1.msra.mxu0 0.0
  %811 = vmatprep.subr.mxu0 0.0
  %812 = vmatpush1.msra.mxu0 0.0
  %813 = vmatprep.subr.mxu0 0.0
  %814 = vmatpush1.msra.mxu0 0.0
  %815 = vmatprep.subr.mxu0 0.0
  %816 = vmatpush1.msra.mxu0 0.0
  %817 = vmatprep.subr.mxu0 0.0
  %818 = vmatpush1.msra.mxu0 0.0
  %819 = vmatprep.subr.mxu0 0.0
  %820 = vmatpush1.msra.mxu0 0.0
  %821 = vmatprep.subr.mxu0 0.0
  %822 = vmatpush1.msra.mxu0 0.0
  %823 = vmatprep.subr.mxu0 0.0
  %824 = vmatpush1.msra.mxu0 0.0
  %825 = vmatprep.subr.mxu0 0.0
  %826 = vmatpush1.msra.mxu0 0.0
  %827 = vmatprep.subr.mxu0 0.0
  %828 = vmatpush1.msra.mxu0 0.0
  %829 = vmatprep.subr.mxu0 0.0
  %830 = vmatpush1.msra.mxu0 0.0
  %831 = vmatprep.subr.mxu0 0.0
  %832 = vmatpush1.msra.mxu0 0.0
  %833 = vmatprep.subr.mxu0 0.0
  %834 = vmatpush1.msra.mxu0 0.0
  %835 = vmatprep.subr.mxu0 0.0
  %836 = vmatpush1.msra.mxu0 0.0
  %837 = vmatprep.subr.mxu0 0.0
  %838 = vmatpush1.msra.mxu0 0.0
  %839 = vmatprep.subr.mxu0 0.0
  %840 = vmatpush1.msra.mxu0 0.0
  %841 = vmatprep.subr.mxu0 0.0
  %842 = vmatpush1.msra.mxu0 0.0
  %843 = vmatprep.subr.mxu0 0.0
  %844 = vmatpush1.msra.mxu0 0.0
  %845 = vmatprep.subr.mxu0 0.0
  %846 = vmatpush1.msra.mxu0 0.0
  %847 = vmatprep.mubr.f32.mxu0 0.0
  %848 = vmatmul.mubr.f32.gmra.mrb[0].mxu0 %v327
  %v849 = vpop.f32.mrb[0].mxu0
  %v850 = vadd.f32 %v761, %v849
  %v851 = vpop.f32.mrb[0].mxu0
  %v852 = vadd.f32 %v763, %v851
  %853 = vmatprep.mubr.f32.mxu0 0.0
  %854 = vmatmul.mubr.f32.gmra.mrb[0].mxu0 %v330
  %v855 = vpop.f32.mrb[0].mxu0
  %v856 = vadd.f32 %v767, %v855
  %v857 = vpop.f32.mrb[0].mxu0
  %v858 = vadd.f32 %v769, %v857
  %859 = vmatprep.mubr.f32.mxu0 0.0
  %860 = vmatmul.mubr.f32.gmra.mrb[0].mxu0 %v333
  %v861 = vpop.f32.mrb[0].mxu0
  %v862 = vadd.f32 %v773, %v861
  %v863 = vpop.f32.mrb[0].mxu0
  %v864 = vadd.f32 %v775, %v863
  %865 = vmatprep.mubr.f32.mxu0 0.0
  %866 = vmatmul.mubr.f32.gmra.mrb[0].mxu0 %v336
  %v867 = vpop.f32.mrb[0].mxu0
  %v868 = vadd.f32 %v779, %v867
  %v869 = vpop.f32.mrb[0].mxu0
  %v870 = vadd.f32 %v781, %v869
  %871 = vdwg.mxu0
  %v872 = vadd.f32 %v583, %v585
  %v873 = vadd.f32 %v872, %v850
  %vm874 = vcmask 64512
  %v875 = vsel %vm874, %v852, 0.0
  %v876 = vadd.f32 %v873, %v875
  %877 = vadd.xlane.f32.xlu0 %v876
  %v878 = vpop.xlane.xlu0 %877
  %v879 = vadd.f32 %v589, %v591
  %v880 = vadd.f32 %v879, %v856
  %v881 = vsel %vm874, %v858, 0.0
  %v882 = vadd.f32 %v880, %v881
  %883 = vadd.xlane.f32.xlu0 %v882
  %v884 = vpop.xlane.xlu0 %883
  %v885 = vadd.f32 %v595, %v597
  %v886 = vadd.f32 %v885, %v862
  %v887 = vsel %vm874, %v864, 0.0
  %v888 = vadd.f32 %v886, %v887
  %889 = vadd.xlane.f32.xlu0 %v888
  %v890 = vpop.xlane.xlu0 %889
  %v891 = vadd.f32 %v601, %v603
  %v892 = vadd.f32 %v891, %v868
  %v893 = vsel %vm874, %v870, 0.0
  %v894 = vadd.f32 %v892, %v893
  %895 = vadd.xlane.f32.xlu0 %v894
  %v896 = vpop.xlane.xlu0 %895
  %v897 = vrcp.pop 392.0
  %v898 = vmul.f32 %v878, %v897
  %v899 = vmul.f32 %v884, %v897
  %v900 = vmul.f32 %v890, %v897
  %v901 = vmul.f32 %v896, %v897
  %v902 = vsub.f32 %v583, %v898
  %v903 = vsub.f32 %v585, %v898
  %v904 = vsub.f32 %v850, %v898
  %v905 = vsub.f32 %v852, %v898
  %v906 = vsub.f32 %v589, %v899
  %v907 = vsub.f32 %v591, %v899
  %v908 = vsub.f32 %v856, %v899
  %v909 = vsub.f32 %v858, %v899
  %v910 = vsub.f32 %v595, %v900
  %v911 = vsub.f32 %v597, %v900
  %v912 = vsub.f32 %v862, %v900
  %v913 = vsub.f32 %v864, %v900
  %v914 = vsub.f32 %v601, %v901
  %v915 = vsub.f32 %v603, %v901
  %v916 = vsub.f32 %v868, %v901
  %v917 = vsub.f32 %v870, %v901
  %v918 = vmul.f32 %v902, %v902
  %v919 = vmul.f32 %v903, %v903
  %v920 = vmul.f32 %v904, %v904
  %v921 = vmul.f32 %v905, %v905
  %v922 = vmul.f32 %v906, %v906
  %v923 = vmul.f32 %v907, %v907
  %v924 = vmul.f32 %v908, %v908
  %v925 = vmul.f32 %v909, %v909
  %v926 = vmul.f32 %v910, %v910
  %v927 = vmul.f32 %v911, %v911
  %v928 = vmul.f32 %v912, %v912
  %v929 = vmul.f32 %v913, %v913
  %v930 = vmul.f32 %v914, %v914
  %v931 = vmul.f32 %v915, %v915
  %v932 = vmul.f32 %v916, %v916
  %v933 = vmul.f32 %v917, %v917
  %v934 = vadd.f32 %v918, %v919
  %v935 = vadd.f32 %v934, %v920
  %v936 = vsel %vm874, %v921, 0.0
  %v937 = vadd.f32 %v935, %v936
  %938 = vadd.xlane.f32.xlu0 %v937
  %v939 = vpop.xlane.xlu0 %938
  %v940 = vadd.f32 %v922, %v923
  %v941 = vadd.f32 %v940, %v924
  %v942 = vsel %vm874, %v925, 0.0
  %v943 = vadd.f32 %v941, %v942
  %944 = vadd.xlane.f32.xlu0 %v943
  %v945 = vpop.xlane.xlu0 %944
  %v946 = vadd.f32 %v926, %v927
  %v947 = vadd.f32 %v946, %v928
  %v948 = vsel %vm874, %v929, 0.0
  %v949 = vadd.f32 %v947, %v948
  %950 = vadd.xlane.f32.xlu0 %v949
  %v951 = vpop.xlane.xlu0 %950
  %v952 = vadd.f32 %v930, %v931
  %v953 = vadd.f32 %v952, %v932
  %v954 = vsel %vm874, %v933, 0.0
  %v955 = vadd.f32 %v953, %v954
  %956 = vadd.xlane.f32.xlu0 %v955
  %v957 = vpop.xlane.xlu0 %956
  %v958 = vmul.f32 %v939, %v897
  %v959 = vmul.f32 %v945, %v897
  %v960 = vmul.f32 %v951, %v897
  %v961 = vmul.f32 %v957, %v897
  %v962 = vld [vmem:[%s2] sm:$0xff]
  %v963 = vld [vmem:[%s2 + $0x8] sm:$0xff]
  %v964 = vld [vmem:[%s2 + $0x10] sm:$0xff]
  %v965 = vld [vmem:[%s2 + $0x18] sm:$0xff]
  %v966 = vadd.f32 %v958, 1e-05
  %v967 = vadd.f32 %v959, 1e-05
  %v968 = vadd.f32 %v960, 1e-05
  %v969 = vadd.f32 %v961, 1e-05
  %v970 = vrsqrt.pop %v966
  %v971 = vrsqrt.pop %v967
  %v972 = vrsqrt.pop %v968
  %v973 = vrsqrt.pop %v969
  %v974 = vmul.f32 %v962, %v970
  %v975 = vmul.f32 %v963, %v971
  %v976 = vmul.f32 %v964, %v972
  %v977 = vmul.f32 %v965, %v973
  %v978 = vld [vmem:[%s3] sm:$0xff]
  %v979 = vld [vmem:[%s3 + $0x8] sm:$0xff]
  %v980 = vld [vmem:[%s3 + $0x10] sm:$0xff]
  %v981 = vld [vmem:[%s3 + $0x18] sm:$0xff]
  %v982 = vmul.f32 %v898, %v974
  %v983 = vmul.f32 %v899, %v975
  %v984 = vmul.f32 %v900, %v976
  %v985 = vmul.f32 %v901, %v977
  %v986 = vsub.f32 %v978, %v982
  %v987 = vsub.f32 %v979, %v983
  %v988 = vsub.f32 %v980, %v984
  %v989 = vsub.f32 %v981, %v985
  %991 = vset.pattern.permute.xlu0 0
  %992 = vperm.xlu0 %991, %v974
  %v993 = vpop.permute.xlu0 %992
  %996 = vset.pattern.permute.xlu0 0
  %997 = vperm.xlu0 %996, %v975
  %v998 = vpop.permute.xlu0 %997
  %1001 = vset.pattern.permute.xlu0 0
  %1002 = vperm.xlu0 %1001, %v976
  %v1003 = vpop.permute.xlu0 %1002
  %1006 = vset.pattern.permute.xlu0 0
  %1007 = vperm.xlu0 %1006, %v977
  %v1008 = vpop.permute.xlu0 %1007
  %v1010 = vmul.f32 %v583, %v993
  %v1011 = vmul.f32 %v585, %v993
  %v1012 = vmul.f32 %v850, %v993
  %v1013 = vmul.f32 %v852, %v993
  %v1014 = vmul.f32 %v589, %v998
  %v1015 = vmul.f32 %v591, %v998
  %v1016 = vmul.f32 %v856, %v998
  %v1017 = vmul.f32 %v858, %v998
  %v1018 = vmul.f32 %v595, %v1003
  %v1019 = vmul.f32 %v597, %v1003
  %v1020 = vmul.f32 %v862, %v1003
  %v1021 = vmul.f32 %v864, %v1003
  %v1022 = vmul.f32 %v601, %v1008
  %v1023 = vmul.f32 %v603, %v1008
  %v1024 = vmul.f32 %v868, %v1008
  %v1025 = vmul.f32 %v870, %v1008
  %1027 = vset.pattern.permute.xlu0 0
  %1028 = vperm.xlu0 %1027, %v986
  %v1029 = vpop.permute.xlu0 %1028
  %1032 = vset.pattern.permute.xlu0 0
  %1033 = vperm.xlu0 %1032, %v987
  %v1034 = vpop.permute.xlu0 %1033
  %1037 = vset.pattern.permute.xlu0 0
  %1038 = vperm.xlu0 %1037, %v988
  %v1039 = vpop.permute.xlu0 %1038
  %1042 = vset.pattern.permute.xlu0 0
  %1043 = vperm.xlu0 %1042, %v989
  %v1044 = vpop.permute.xlu0 %1043
  %v1046 = vadd.f32 %v1010, %v1029
  %v1047 = vadd.f32 %v1011, %v1029
  %v1048 = vadd.f32 %v1012, %v1029
  %v1049 = vadd.f32 %v1013, %v1029
  %v1050 = vadd.f32 %v1014, %v1034
  %v1051 = vadd.f32 %v1015, %v1034
  %v1052 = vadd.f32 %v1016, %v1034
  %v1053 = vadd.f32 %v1017, %v1034
  %v1054 = vadd.f32 %v1018, %v1039
  %v1055 = vadd.f32 %v1019, %v1039
  %v1056 = vadd.f32 %v1020, %v1039
  %v1057 = vadd.f32 %v1021, %v1039
  %v1058 = vadd.f32 %v1022, %v1044
  %v1059 = vadd.f32 %v1023, %v1044
  %v1060 = vadd.f32 %v1024, %v1044
  %v1061 = vadd.f32 %v1025, %v1044
  %v1062 = vmax.f32 %v1046, 0.0
  %v1063 = vmax.f32 %v1047, 0.0
  %v1064 = vmax.f32 %v1048, 0.0
  %v1065 = vmax.f32 %v1049, 0.0
  %v1066 = vmax.f32 %v1050, 0.0
  %v1067 = vmax.f32 %v1051, 0.0
  %v1068 = vmax.f32 %v1052, 0.0
  %v1069 = vmax.f32 %v1053, 0.0
  %v1070 = vmax.f32 %v1054, 0.0
  %v1071 = vmax.f32 %v1055, 0.0
  %v1072 = vmax.f32 %v1056, 0.0
  %v1073 = vmax.f32 %v1057, 0.0
  %v1074 = vmax.f32 %v1058, 0.0
  %v1075 = vmax.f32 %v1059, 0.0
  %v1076 = vmax.f32 %v1060, 0.0
  %v1077 = vmax.f32 %v1061, 0.0
  %1078 = vst [vmem:[%s4] sm:$0xff] %v1062
  %1079 = vst [vmem:[%s4 + $0x8] sm:$0xff] %v1063
  %1080 = vst [vmem:[%s4 + $0x10] sm:$0xff] %v1064
  %1081 = vst.msk [vmem:[%s4 + $0x18] sm:$0xff] %vm874, %v1065
  %1082 = vst [vmem:[%s4 + $0x20] sm:$0xff] %v1066
  %1083 = vst [vmem:[%s4 + $0x28] sm:$0xff] %v1067
  %1084 = vst [vmem:[%s4 + $0x30] sm:$0xff] %v1068
  %1085 = vst.msk [vmem:[%s4 + $0x38] sm:$0xff] %vm874, %v1069
  %1086 = vst [vmem:[%s4 + $0x40] sm:$0xff] %v1070
  %1087 = vst [vmem:[%s4 + $0x48] sm:$0xff] %v1071
  %1088 = vst [vmem:[%s4 + $0x50] sm:$0xff] %v1072
  %1089 = vst.msk [vmem:[%s4 + $0x58] sm:$0xff] %vm874, %v1073
  %1090 = vst [vmem:[%s4 + $0x60] sm:$0xff] %v1074
  %1091 = vst [vmem:[%s4 + $0x68] sm:$0xff] %v1075
  %1092 = vst [vmem:[%s4 + $0x70] sm:$0xff] %v1076
  %1093 = vst.msk [vmem:[%s4 + $0x78] sm:$0xff] %vm874, %v1077
  // Predicated region
  $region18: #{vae_cnn_forward.17} parent=0 // pred_check
    _
  $region19: #{vae_cnn_forward.17} parent=0 // pred_check_branch
    %1095 = sbr.rel (0) target = $region21
  $region20: #{vae_cnn_forward.17} parent=0 // pred_region
    _
  $region21: #{vae_cnn_forward.17} parent=0 // pred_fallthru
    _
  // Predicated region
  $region22: #{vae_cnn_forward.17} parent=0 // pred_check
    _
  $region23: #{vae_cnn_forward.17} parent=0 // pred_check_branch
    %1097 = sbr.rel (0) target = $region25
  $region24: #{vae_cnn_forward.17} parent=0 // pred_region
    _
  $region25: #{vae_cnn_forward.17} parent=0 // pred_fallthru
    _

// kernel: vae_cnn_forward.18
$region0: #{vae_cnn_forward.18}
  #allocation0 [shape = 'u32[]', space=smem, size = 0x4, offset = 0x4, fixed_abs, tag = 'smem constant byte address 0x4 - core index']
  #allocation1 [shape = 'u32[144,128]{1,0:T(1,128)}', space=vmem, size = 0x12000, scoped, tag = 'internal scratch']
  %s0 = inlined_call_operand.vmem [shape: f32[16,288], index: 0, kind: input, shape index: {}]
  %s1 = inlined_call_operand.vmem [shape: f32[288,1568], index: 1, kind: input, shape index: {}]
  %s2 = inlined_call_operand.vmem [shape: f32[16,1], index: 2, kind: input, shape index: {}]
  %s3 = inlined_call_operand.vmem [shape: f32[16,1], index: 3, kind: input, shape index: {}]
  %s4 = inlined_call_operand.vmem [shape: f32[16,1568], index: 4, kind: output, shape index: {}]
  %s5 = sld [smem:[#allocation0]]
  $region26: #{vae_cnn_forward.18} parent=0
    _
  %s7 = ssub.s32 1, %s5
  %s8 = scalar_select 0, %s7, %s5
  // Predicated region
  $region2: #{vae_cnn_forward.18} parent=0 // pred_check
    _
  $region3: #{vae_cnn_forward.18} parent=0 // pred_check_branch
    %10 = sbr.rel (0) target = $region5
  $region4: #{vae_cnn_forward.18} parent=0 // pred_region
    _
  $region5: #{vae_cnn_forward.18} parent=0 // pred_fallthru
    _
  // Predicated region
  $region6: #{vae_cnn_forward.18} parent=0 // pred_check
    _
  $region7: #{vae_cnn_forward.18} parent=0 // pred_check_branch
    %12 = sbr.rel (0) target = $region9
  $region8: #{vae_cnn_forward.18} parent=0 // pred_region
    _
  $region9: #{vae_cnn_forward.18} parent=0 // pred_fallthru
    _
  // Predicated region
  $region10: #{vae_cnn_forward.18} parent=0 // pred_check
    _
  $region11: #{vae_cnn_forward.18} parent=0 // pred_check_branch
    %14 = sbr.rel (0) target = $region13
  $region12: #{vae_cnn_forward.18} parent=0 // pred_region
    _
  $region13: #{vae_cnn_forward.18} parent=0 // pred_fallthru
    _
  // Predicated region
  $region14: #{vae_cnn_forward.18} parent=0 // pred_check
    _
  $region15: #{vae_cnn_forward.18} parent=0 // pred_check_branch
    %16 = sbr.rel (0) target = $region17
  $region16: #{vae_cnn_forward.18} parent=0 // pred_region
    _
  $region17: #{vae_cnn_forward.18} parent=0 // pred_fallthru
    _
  %v17 = vld [vmem:[%s0] sm:$0xff]
  %v18 = vld [vmem:[%s0 + $0x8] sm:$0xff]
  %v19 = vld [vmem:[%s0 + $0x10] sm:$0xff]
  %v20 = vld [vmem:[%s0 + $0x18] sm:$0xff]
  %v21 = vld [vmem:[%s0 + $0x20] sm:$0xff]
  %v22 = vld [vmem:[%s0 + $0x28] sm:$0xff]
  %v23 = vld [vmem:[%s1] sm:$0xff]
  %v24 = vld [vmem:[%s1 + $0x8] sm:$0xff]
  %v25 = vld [vmem:[%s1 + $0x10] sm:$0xff]
  %v26 = vld [vmem:[%s1 + $0x18] sm:$0xff]
  %v27 = vld [vmem:[%s1 + $0x20] sm:$0xff]
  %v28 = vld [vmem:[%s1 + $0x28] sm:$0xff]
  %v29 = vld [vmem:[%s1 + $0x30] sm:$0xff]
  %v30 = vld [vmem:[%s1 + $0x38] sm:$0xff]
  %v31 = vld [vmem:[%s1 + $0x40] sm:$0xff]
  %v32 = vld [vmem:[%s1 + $0x48] sm:$0xff]
  %v33 = vld [vmem:[%s1 + $0x50] sm:$0xff]
  %v34 = vld [vmem:[%s1 + $0x58] sm:$0xff]
  %v35 = vld [vmem:[%s1 + $0x60] sm:$0xff]
  %v36 = vld [vmem:[%s1 + $0x68] sm:$0xff]
  %v37 = vld [vmem:[%s1 + $0x70] sm:$0xff]
  %v38 = vld [vmem:[%s1 + $0x78] sm:$0xff]
  %v39 = vld [vmem:[%s1 + $0x80] sm:$0xff]
  %v40 = vld [vmem:[%s1 + $0x88] sm:$0xff]
  %v41 = vld [vmem:[%s1 + $0x90] sm:$0xff]
  %v42 = vld [vmem:[%s1 + $0x98] sm:$0xff]
  %v43 = vld [vmem:[%s1 + $0xa0] sm:$0xff]
  %v44 = vld [vmem:[%s1 + $0xa8] sm:$0xff]
  %v45 = vld [vmem:[%s1 + $0xb0] sm:$0xff]
  %v46 = vld [vmem:[%s1 + $0xb8] sm:$0xff]
  %v47 = vld [vmem:[%s1 + $0xc0] sm:$0xff]
  %v48 = vld [vmem:[%s1 + $0xc8] sm:$0xff]
  %v49 = vld [vmem:[%s1 + $0xd0] sm:$0xff]
  %v50 = vld [vmem:[%s1 + $0xd8] sm:$0xff]
  %v51 = vld [vmem:[%s1 + $0xe0] sm:$0xff]
  %v52 = vld [vmem:[%s1 + $0xe8] sm:$0xff]
  %v53 = vld [vmem:[%s1 + $0xf0] sm:$0xff]
  %v54 = vld [vmem:[%s1 + $0xf8] sm:$0xff]
  %v55 = vld [vmem:[%s1 + $0x100] sm:$0xff]
  %v56 = vld [vmem:[%s1 + $0x108] sm:$0xff]
  %v57 = vld [vmem:[%s1 + $0x110] sm:$0xff]
  %v58 = vld [vmem:[%s1 + $0x118] sm:$0xff]
  %v59 = vld [vmem:[%s1 + $0x120] sm:$0xff]
  %v60 = vld [vmem:[%s1 + $0x128] sm:$0xff]
  %v61 = vld [vmem:[%s1 + $0x130] sm:$0xff]
  %v62 = vld [vmem:[%s1 + $0x138] sm:$0xff]
  %v63 = vld [vmem:[%s1 + $0x140] sm:$0xff]
  %v64 = vld [vmem:[%s1 + $0x148] sm:$0xff]
  %v65 = vld [vmem:[%s1 + $0x150] sm:$0xff]
  %v66 = vld [vmem:[%s1 + $0x158] sm:$0xff]
  %v67 = vld [vmem:[%s1 + $0x160] sm:$0xff]
  %v68 = vld [vmem:[%s1 + $0x168] sm:$0xff]
  %v69 = vld [vmem:[%s1 + $0x170] sm:$0xff]
  %v70 = vld [vmem:[%s1 + $0x178] sm:$0xff]
  %v71 = vld [vmem:[%s1 + $0x180] sm:$0xff]
  %v72 = vld [vmem:[%s1 + $0x188] sm:$0xff]
  %v73 = vld [vmem:[%s1 + $0x190] sm:$0xff]
  %v74 = vld [vmem:[%s1 + $0x198] sm:$0xff]
  %v75 = vld [vmem:[%s1 + $0x1a0] sm:$0xff]
  %v76 = vld [vmem:[%s1 + $0x1a8] sm:$0xff]
  %v77 = vld [vmem:[%s1 + $0x1b0] sm:$0xff]
  %v78 = vld [vmem:[%s1 + $0x1b8] sm:$0xff]
  %v79 = vld [vmem:[%s1 + $0x1c0] sm:$0xff]
  %v80 = vld [vmem:[%s1 + $0x1c8] sm:$0xff]
  %v81 = vld [vmem:[%s1 + $0x1d0] sm:$0xff]
  %v82 = vld [vmem:[%s1 + $0x1d8] sm:$0xff]
  %v83 = vld [vmem:[%s1 + $0x1e0] sm:$0xff]
  %v84 = vld [vmem:[%s1 + $0x1e8] sm:$0xff]
  %v85 = vld [vmem:[%s1 + $0x1f0] sm:$0xff]
  %v86 = vld [vmem:[%s1 + $0x1f8] sm:$0xff]
  %v87 = vld [vmem:[%s1 + $0x200] sm:$0xff]
  %v88 = vld [vmem:[%s1 + $0x208] sm:$0xff]
  %v89 = vld [vmem:[%s1 + $0x210] sm:$0xff]
  %v90 = vld [vmem:[%s1 + $0x218] sm:$0xff]
  %v91 = vld [vmem:[%s1 + $0x220] sm:$0xff]
  %v92 = vld [vmem:[%s1 + $0x228] sm:$0xff]
  %v93 = vld [vmem:[%s1 + $0x230] sm:$0xff]
  %v94 = vld [vmem:[%s1 + $0x238] sm:$0xff]
  %v95 = vld [vmem:[%s1 + $0x240] sm:$0xff]
  %v96 = vld [vmem:[%s1 + $0x248] sm:$0xff]
  %v97 = vld [vmem:[%s1 + $0x250] sm:$0xff]
  %v98 = vld [vmem:[%s1 + $0x258] sm:$0xff]
  %v99 = vld [vmem:[%s1 + $0x260] sm:$0xff]
  %v100 = vld [vmem:[%s1 + $0x268] sm:$0xff]
  %v101 = vld [vmem:[%s1 + $0x270] sm:$0xff]
  %v102 = vld [vmem:[%s1 + $0x278] sm:$0xff]
  %v103 = vld [vmem:[%s1 + $0x280] sm:$0xff]
  %v104 = vld [vmem:[%s1 + $0x288] sm:$0xff]
  %v105 = vld [vmem:[%s1 + $0x290] sm:$0xff]
  %v106 = vld [vmem:[%s1 + $0x298] sm:$0xff]
  %v107 = vld [vmem:[%s1 + $0x2a0] sm:$0xff]
  %v108 = vld [vmem:[%s1 + $0x2a8] sm:$0xff]
  %v109 = vld [vmem:[%s1 + $0x2b0] sm:$0xff]
  %v110 = vld [vmem:[%s1 + $0x2b8] sm:$0xff]
  %v111 = vld [vmem:[%s1 + $0x2c0] sm:$0xff]
  %v112 = vld [vmem:[%s1 + $0x2c8] sm:$0xff]
  %v113 = vld [vmem:[%s1 + $0x2d0] sm:$0xff]
  %v114 = vld [vmem:[%s1 + $0x2d8] sm:$0xff]
  %v115 = vld [vmem:[%s1 + $0x2e0] sm:$0xff]
  %v116 = vld [vmem:[%s1 + $0x2e8] sm:$0xff]
  %v117 = vld [vmem:[%s1 + $0x2f0] sm:$0xff]
  %v118 = vld [vmem:[%s1 + $0x2f8] sm:$0xff]
  %v119 = vld [vmem:[%s1 + $0x300] sm:$0xff]
  %v120 = vld [vmem:[%s1 + $0x308] sm:$0xff]
  %v121 = vld [vmem:[%s1 + $0x310] sm:$0xff]
  %v122 = vld [vmem:[%s1 + $0x318] sm:$0xff]
  %v123 = vld [vmem:[%s1 + $0x320] sm:$0xff]
  %v124 = vld [vmem:[%s1 + $0x328] sm:$0xff]
  %v125 = vld [vmem:[%s1 + $0x330] sm:$0xff]
  %v126 = vld [vmem:[%s1 + $0x338] sm:$0xff]
  %v127 = vld [vmem:[%s1 + $0x340] sm:$0xff]
  %v128 = vld [vmem:[%s1 + $0x348] sm:$0xff]
  %v129 = vld [vmem:[%s1 + $0x350] sm:$0xff]
  %v130 = vld [vmem:[%s1 + $0x358] sm:$0xff]
  %v131 = vld [vmem:[%s1 + $0x360] sm:$0xff]
  %v132 = vld [vmem:[%s1 + $0x368] sm:$0xff]
  %v133 = vld [vmem:[%s1 + $0x370] sm:$0xff]
  %v134 = vld [vmem:[%s1 + $0x378] sm:$0xff]
  %v135 = vld [vmem:[%s1 + $0x380] sm:$0xff]
  %v136 = vld [vmem:[%s1 + $0x388] sm:$0xff]
  %v137 = vld [vmem:[%s1 + $0x390] sm:$0xff]
  %v138 = vld [vmem:[%s1 + $0x398] sm:$0xff]
  %v139 = vld [vmem:[%s1 + $0x3a0] sm:$0xff]
  %v140 = vld [vmem:[%s1 + $0x3a8] sm:$0xff]
  %v141 = vld [vmem:[%s1 + $0x3b0] sm:$0xff]
  %v142 = vld [vmem:[%s1 + $0x3b8] sm:$0xff]
  %v143 = vld [vmem:[%s1 + $0x3c0] sm:$0xff]
  %v144 = vld [vmem:[%s1 + $0x3c8] sm:$0xff]
  %v145 = vld [vmem:[%s1 + $0x3d0] sm:$0xff]
  %v146 = vld [vmem:[%s1 + $0x3d8] sm:$0xff]
  %v147 = vld [vmem:[%s1 + $0x3e0] sm:$0xff]
  %v148 = vld [vmem:[%s1 + $0x3e8] sm:$0xff]
  %v149 = vld [vmem:[%s1 + $0x3f0] sm:$0xff]
  %v150 = vld [vmem:[%s1 + $0x3f8] sm:$0xff]
  %v151 = vld [vmem:[%s1 + $0x400] sm:$0xff]
  %v152 = vld [vmem:[%s1 + $0x408] sm:$0xff]
  %v153 = vld [vmem:[%s1 + $0x410] sm:$0xff]
  %v154 = vld [vmem:[%s1 + $0x418] sm:$0xff]
  %v155 = vld [vmem:[%s1 + $0x420] sm:$0xff]
  %v156 = vld [vmem:[%s1 + $0x428] sm:$0xff]
  %v157 = vld [vmem:[%s1 + $0x430] sm:$0xff]
  %v158 = vld [vmem:[%s1 + $0x438] sm:$0xff]
  %v159 = vld [vmem:[%s1 + $0x440] sm:$0xff]
  %v160 = vld [vmem:[%s1 + $0x448] sm:$0xff]
  %v161 = vld [vmem:[%s1 + $0x450] sm:$0xff]
  %v162 = vld [vmem:[%s1 + $0x458] sm:$0xff]
  %v163 = vld [vmem:[%s1 + $0x460] sm:$0xff]
  %v164 = vld [vmem:[%s1 + $0x468] sm:$0xff]
  %v165 = vld [vmem:[%s1 + $0x470] sm:$0xff]
  %v166 = vld [vmem:[%s1 + $0x478] sm:$0xff]
  %v167 = vld [vmem:[%s1 + $0x480] sm:$0xff]
  %v168 = vld [vmem:[%s1 + $0x488] sm:$0xff]
  %v169 = vld [vmem:[%s1 + $0x490] sm:$0xff]
  %v170 = vld [vmem:[%s1 + $0x498] sm:$0xff]
  %v171 = vld [vmem:[%s1 + $0x4a0] sm:$0xff]
  %v172 = vld [vmem:[%s1 + $0x4a8] sm:$0xff]
  %v173 = vld [vmem:[%s1 + $0x4b0] sm:$0xff]
  %v174 = vld [vmem:[%s1 + $0x4b8] sm:$0xff]
  %v175 = vld [vmem:[%s1 + $0x4c0] sm:$0xff]
  %v176 = vld [vmem:[%s1 + $0x4c8] sm:$0xff]
  %v177 = vld [vmem:[%s1 + $0x4d0] sm:$0xff]
  %v178 = vld [vmem:[%s1 + $0x4d8] sm:$0xff]
  %v179 = vld [vmem:[%s1 + $0x4e0] sm:$0xff]
  %v180 = vld [vmem:[%s1 + $0x4e8] sm:$0xff]
  %v181 = vld [vmem:[%s1 + $0x4f0] sm:$0xff]
  %v182 = vld [vmem:[%s1 + $0x4f8] sm:$0xff]
  %v183 = vld [vmem:[%s1 + $0x500] sm:$0xff]
  %v184 = vld [vmem:[%s1 + $0x508] sm:$0xff]
  %v185 = vld [vmem:[%s1 + $0x510] sm:$0xff]
  %v186 = vld [vmem:[%s1 + $0x518] sm:$0xff]
  %v187 = vld [vmem:[%s1 + $0x520] sm:$0xff]
  %v188 = vld [vmem:[%s1 + $0x528] sm:$0xff]
  %v189 = vld [vmem:[%s1 + $0x530] sm:$0xff]
  %v190 = vld [vmem:[%s1 + $0x538] sm:$0xff]
  %v191 = vld [vmem:[%s1 + $0x540] sm:$0xff]
  %v192 = vld [vmem:[%s1 + $0x548] sm:$0xff]
  %v193 = vld [vmem:[%s1 + $0x550] sm:$0xff]
  %v194 = vld [vmem:[%s1 + $0x558] sm:$0xff]
  %v195 = vld [vmem:[%s1 + $0x560] sm:$0xff]
  %v196 = vld [vmem:[%s1 + $0x568] sm:$0xff]
  %v197 = vld [vmem:[%s1 + $0x570] sm:$0xff]
  %v198 = vld [vmem:[%s1 + $0x578] sm:$0xff]
  %v199 = vld [vmem:[%s1 + $0x580] sm:$0xff]
  %v200 = vld [vmem:[%s1 + $0x588] sm:$0xff]
  %v201 = vld [vmem:[%s1 + $0x590] sm:$0xff]
  %v202 = vld [vmem:[%s1 + $0x598] sm:$0xff]
  %v203 = vld [vmem:[%s1 + $0x5a0] sm:$0xff]
  %v204 = vld [vmem:[%s1 + $0x5a8] sm:$0xff]
  %v205 = vld [vmem:[%s1 + $0x5b0] sm:$0xff]
  %v206 = vld [vmem:[%s1 + $0x5b8] sm:$0xff]
  %v207 = vld [vmem:[%s1 + $0x5c0] sm:$0xff]
  %v208 = vld [vmem:[%s1 + $0x5c8] sm:$0xff]
  %v209 = vld [vmem:[%s1 + $0x5d0] sm:$0xff]
  %v210 = vld [vmem:[%s1 + $0x5d8] sm:$0xff]
  %v211 = vld [vmem:[%s1 + $0x5e0] sm:$0xff]
  %v212 = vld [vmem:[%s1 + $0x5e8] sm:$0xff]
  %v213 = vld [vmem:[%s1 + $0x5f0] sm:$0xff]
  %v214 = vld [vmem:[%s1 + $0x5f8] sm:$0xff]
  %v215 = vld [vmem:[%s1 + $0x600] sm:$0xff]
  %v216 = vld [vmem:[%s1 + $0x608] sm:$0xff]
  %v217 = vld [vmem:[%s1 + $0x610] sm:$0xff]
  %v218 = vld [vmem:[%s1 + $0x618] sm:$0xff]
  %v219 = vld [vmem:[%s1 + $0x620] sm:$0xff]
  %v220 = vld [vmem:[%s1 + $0x628] sm:$0xff]
  %v221 = vld [vmem:[%s1 + $0x630] sm:$0xff]
  %v222 = vld [vmem:[%s1 + $0x638] sm:$0xff]
  %v223 = vld [vmem:[%s1 + $0x640] sm:$0xff]
  %v224 = vld [vmem:[%s1 + $0x648] sm:$0xff]
  %v225 = vld [vmem:[%s1 + $0x650] sm:$0xff]
  %v226 = vld [vmem:[%s1 + $0x658] sm:$0xff]
  %v227 = vld [vmem:[%s1 + $0x660] sm:$0xff]
  %v228 = vld [vmem:[%s1 + $0x668] sm:$0xff]
  %v229 = vld [vmem:[%s1 + $0x670] sm:$0xff]
  %v230 = vld [vmem:[%s1 + $0x678] sm:$0xff]
  %v231 = vld [vmem:[%s1 + $0x680] sm:$0xff]
  %v232 = vld [vmem:[%s1 + $0x688] sm:$0xff]
  %v233 = vld [vmem:[%s1 + $0x690] sm:$0xff]
  %v234 = vld [vmem:[%s1 + $0x698] sm:$0xff]
  %v235 = vld [vmem:[%s1 + $0x6a0] sm:$0xff]
  %v236 = vld [vmem:[%s1 + $0x6a8] sm:$0xff]
  %v237 = vld [vmem:[%s1 + $0x6b0] sm:$0xff]
  %v238 = vld [vmem:[%s1 + $0x6b8] sm:$0xff]
  %v239 = vld [vmem:[%s1 + $0x6c0] sm:$0xff]
  %v240 = vld [vmem:[%s1 + $0x6c8] sm:$0xff]
  %v241 = vld [vmem:[%s1 + $0x6d0] sm:$0xff]
  %v242 = vld [vmem:[%s1 + $0x6d8] sm:$0xff]
  %v243 = vld [vmem:[%s1 + $0x6e0] sm:$0xff]
  %v244 = vld [vmem:[%s1 + $0x6e8] sm:$0xff]
  %v245 = vld [vmem:[%s1 + $0x6f0] sm:$0xff]
  %v246 = vld [vmem:[%s1 + $0x6f8] sm:$0xff]
  %v247 = vld [vmem:[%s1 + $0x700] sm:$0xff]
  %v248 = vld [vmem:[%s1 + $0x708] sm:$0xff]
  %v249 = vld [vmem:[%s1 + $0x710] sm:$0xff]
  %v250 = vld [vmem:[%s1 + $0x718] sm:$0xff]
  %v251 = vld [vmem:[%s1 + $0x720] sm:$0xff]
  %v252 = vld [vmem:[%s1 + $0x728] sm:$0xff]
  %v253 = vld [vmem:[%s1 + $0x730] sm:$0xff]
  %v254 = vld [vmem:[%s1 + $0x738] sm:$0xff]
  %v255 = vld [vmem:[%s1 + $0x740] sm:$0xff]
  %v256 = vld [vmem:[%s1 + $0x748] sm:$0xff]
  %v257 = vld [vmem:[%s1 + $0x750] sm:$0xff]
  %v258 = vld [vmem:[%s1 + $0x758] sm:$0xff]
  %v259 = vld [vmem:[%s1 + $0x760] sm:$0xff]
  %v260 = vld [vmem:[%s1 + $0x768] sm:$0xff]
  %v261 = vld [vmem:[%s1 + $0x770] sm:$0xff]
  %v262 = vld [vmem:[%s1 + $0x778] sm:$0xff]
  %v263 = vld [vmem:[%s1 + $0x780] sm:$0xff]
  %v264 = vld [vmem:[%s1 + $0x788] sm:$0xff]
  %v265 = vld [vmem:[%s1 + $0x790] sm:$0xff]
  %v266 = vld [vmem:[%s1 + $0x798] sm:$0xff]
  %v267 = vld [vmem:[%s1 + $0x7a0] sm:$0xff]
  %v268 = vld [vmem:[%s1 + $0x7a8] sm:$0xff]
  %v269 = vld [vmem:[%s1 + $0x7b0] sm:$0xff]
  %v270 = vld [vmem:[%s1 + $0x7b8] sm:$0xff]
  %v271 = vld [vmem:[%s1 + $0x7c0] sm:$0xff]
  %v272 = vld [vmem:[%s1 + $0x7c8] sm:$0xff]
  %v273 = vld [vmem:[%s1 + $0x7d0] sm:$0xff]
  %v274 = vld [vmem:[%s1 + $0x7d8] sm:$0xff]
  %v275 = vld [vmem:[%s1 + $0x7e0] sm:$0xff]
  %v276 = vld [vmem:[%s1 + $0x7e8] sm:$0xff]
  %v277 = vld [vmem:[%s1 + $0x7f0] sm:$0xff]
  %v278 = vld [vmem:[%s1 + $0x7f8] sm:$0xff]
  %v279 = vld [vmem:[%s1 + $0x800] sm:$0xff]
  %v280 = vld [vmem:[%s1 + $0x808] sm:$0xff]
  %v281 = vld [vmem:[%s1 + $0x810] sm:$0xff]
  %v282 = vld [vmem:[%s1 + $0x818] sm:$0xff]
  %v283 = vld [vmem:[%s1 + $0x820] sm:$0xff]
  %v284 = vld [vmem:[%s1 + $0x828] sm:$0xff]
  %v285 = vld [vmem:[%s1 + $0x830] sm:$0xff]
  %v286 = vld [vmem:[%s1 + $0x838] sm:$0xff]
  %v287 = vld [vmem:[%s1 + $0x840] sm:$0xff]
  %v288 = vld [vmem:[%s1 + $0x848] sm:$0xff]
  %v289 = vld [vmem:[%s1 + $0x850] sm:$0xff]
  %v290 = vld [vmem:[%s1 + $0x858] sm:$0xff]
  %v291 = vld [vmem:[%s1 + $0x860] sm:$0xff]
  %v292 = vld [vmem:[%s1 + $0x868] sm:$0xff]
  %v293 = vld [vmem:[%s1 + $0x870] sm:$0xff]
  %v294 = vld [vmem:[%s1 + $0x878] sm:$0xff]
  %v295 = vld [vmem:[%s1 + $0x880] sm:$0xff]
  %v296 = vld [vmem:[%s1 + $0x888] sm:$0xff]
  %v297 = vld [vmem:[%s1 + $0x890] sm:$0xff]
  %v298 = vld [vmem:[%s1 + $0x898] sm:$0xff]
  %v299 = vld [vmem:[%s1 + $0x8a0] sm:$0xff]
  %v300 = vld [vmem:[%s1 + $0x8a8] sm:$0xff]
  %v301 = vld [vmem:[%s1 + $0x8b0] sm:$0xff]
  %v302 = vld [vmem:[%s1 + $0x8b8] sm:$0xff]
  %v303 = vld [vmem:[%s1 + $0x8c0] sm:$0xff]
  %v304 = vld [vmem:[%s1 + $0x8c8] sm:$0xff]
  %v305 = vld [vmem:[%s1 + $0x8d0] sm:$0xff]
  %v306 = vld [vmem:[%s1 + $0x8d8] sm:$0xff]
  %v307 = vld [vmem:[%s1 + $0x8e0] sm:$0xff]
  %v308 = vld [vmem:[%s1 + $0x8e8] sm:$0xff]
  %v309 = vld [vmem:[%s1 + $0x8f0] sm:$0xff]
  %v310 = vld [vmem:[%s1 + $0x8f8] sm:$0xff]
  %v311 = vld [vmem:[%s1 + $0x900] sm:$0xff]
  %v312 = vld [vmem:[%s1 + $0x908] sm:$0xff]
  %v313 = vld [vmem:[%s1 + $0x910] sm:$0xff]
  %v314 = vld [vmem:[%s1 + $0x918] sm:$0xff]
  %v315 = vld [vmem:[%s1 + $0x920] sm:$0xff]
  %v316 = vld [vmem:[%s1 + $0x928] sm:$0xff]
  %v317 = vld [vmem:[%s1 + $0x930] sm:$0xff]
  %v318 = vld [vmem:[%s1 + $0x938] sm:$0xff]
  %v319 = vld [vmem:[%s1 + $0x940] sm:$0xff]
  %v320 = vld [vmem:[%s1 + $0x948] sm:$0xff]
  %v321 = vld [vmem:[%s1 + $0x950] sm:$0xff]
  %v322 = vld [vmem:[%s1 + $0x958] sm:$0xff]
  %v323 = vld [vmem:[%s1 + $0x960] sm:$0xff]
  %v324 = vld [vmem:[%s1 + $0x968] sm:$0xff]
  %v325 = vld [vmem:[%s1 + $0x970] sm:$0xff]
  %v326 = vld [vmem:[%s1 + $0x978] sm:$0xff]
  %v327 = vld [vmem:[%s1 + $0x980] sm:$0xff]
  %v328 = vld [vmem:[%s1 + $0x988] sm:$0xff]
  %v329 = vld [vmem:[%s1 + $0x990] sm:$0xff]
  %v330 = vld [vmem:[%s1 + $0x998] sm:$0xff]
  %v331 = vld [vmem:[%s1 + $0x9a0] sm:$0xff]
  %v332 = vld [vmem:[%s1 + $0x9a8] sm:$0xff]
  %v333 = vld [vmem:[%s1 + $0x9b0] sm:$0xff]
  %v334 = vld [vmem:[%s1 + $0x9b8] sm:$0xff]
  %v335 = vld [vmem:[%s1 + $0x9c0] sm:$0xff]
  %v336 = vld [vmem:[%s1 + $0x9c8] sm:$0xff]
  %v337 = vld [vmem:[%s1 + $0x9d0] sm:$0xff]
  %v338 = vld [vmem:[%s1 + $0x9d8] sm:$0xff]
  %v339 = vld [vmem:[%s1 + $0x9e0] sm:$0xff]
  %v340 = vld [vmem:[%s1 + $0x9e8] sm:$0xff]
  %v341 = vld [vmem:[%s1 + $0x9f0] sm:$0xff]
  %v342 = vld [vmem:[%s1 + $0x9f8] sm:$0xff]
  %v343 = vld [vmem:[%s1 + $0xa00] sm:$0xff]
  %v344 = vld [vmem:[%s1 + $0xa08] sm:$0xff]
  %v345 = vld [vmem:[%s1 + $0xa10] sm:$0xff]
  %v346 = vld [vmem:[%s1 + $0xa18] sm:$0xff]
  %v347 = vld [vmem:[%s1 + $0xa20] sm:$0xff]
  %v348 = vld [vmem:[%s1 + $0xa28] sm:$0xff]
  %v349 = vld [vmem:[%s1 + $0xa30] sm:$0xff]
  %v350 = vld [vmem:[%s1 + $0xa38] sm:$0xff]
  %v351 = vld [vmem:[%s1 + $0xa40] sm:$0xff]
  %v352 = vld [vmem:[%s1 + $0xa48] sm:$0xff]
  %v353 = vld [vmem:[%s1 + $0xa50] sm:$0xff]
  %v354 = vld [vmem:[%s1 + $0xa58] sm:$0xff]
  %v355 = vld [vmem:[%s1 + $0xa60] sm:$0xff]
  %v356 = vld [vmem:[%s1 + $0xa68] sm:$0xff]
  %v357 = vld [vmem:[%s1 + $0xa70] sm:$0xff]
  %v358 = vld [vmem:[%s1 + $0xa78] sm:$0xff]
  %v359 = vld [vmem:[%s1 + $0xa80] sm:$0xff]
  %v360 = vld [vmem:[%s1 + $0xa88] sm:$0xff]
  %v361 = vld [vmem:[%s1 + $0xa90] sm:$0xff]
  %v362 = vld [vmem:[%s1 + $0xa98] sm:$0xff]
  %v363 = vld [vmem:[%s1 + $0xaa0] sm:$0xff]
  %v364 = vld [vmem:[%s1 + $0xaa8] sm:$0xff]
  %v365 = vld [vmem:[%s1 + $0xab0] sm:$0xff]
  %v366 = vld [vmem:[%s1 + $0xab8] sm:$0xff]
  %v367 = vld [vmem:[%s1 + $0xac0] sm:$0xff]
  %v368 = vld [vmem:[%s1 + $0xac8] sm:$0xff]
  %v369 = vld [vmem:[%s1 + $0xad0] sm:$0xff]
  %v370 = vld [vmem:[%s1 + $0xad8] sm:$0xff]
  %v371 = vld [vmem:[%s1 + $0xae0] sm:$0xff]
  %v372 = vld [vmem:[%s1 + $0xae8] sm:$0xff]
  %v373 = vld [vmem:[%s1 + $0xaf0] sm:$0xff]
  %v374 = vld [vmem:[%s1 + $0xaf8] sm:$0xff]
  %v375 = vld [vmem:[%s1 + $0xb00] sm:$0xff]
  %v376 = vld [vmem:[%s1 + $0xb08] sm:$0xff]
  %v377 = vld [vmem:[%s1 + $0xb10] sm:$0xff]
  %v378 = vld [vmem:[%s1 + $0xb18] sm:$0xff]
  %v379 = vld [vmem:[%s1 + $0xb20] sm:$0xff]
  %v380 = vld [vmem:[%s1 + $0xb28] sm:$0xff]
  %v381 = vld [vmem:[%s1 + $0xb30] sm:$0xff]
  %v382 = vld [vmem:[%s1 + $0xb38] sm:$0xff]
  %v383 = vld [vmem:[%s1 + $0xb40] sm:$0xff]
  %v384 = vld [vmem:[%s1 + $0xb48] sm:$0xff]
  %v385 = vld [vmem:[%s1 + $0xb50] sm:$0xff]
  %v386 = vld [vmem:[%s1 + $0xb58] sm:$0xff]
  %v387 = vld [vmem:[%s1 + $0xb60] sm:$0xff]
  %v388 = vld [vmem:[%s1 + $0xb68] sm:$0xff]
  %v389 = vld [vmem:[%s1 + $0xb70] sm:$0xff]
  %v390 = vld [vmem:[%s1 + $0xb78] sm:$0xff]
  %v391 = vld [vmem:[%s1 + $0xb80] sm:$0xff]
  %v392 = vld [vmem:[%s1 + $0xb88] sm:$0xff]
  %v393 = vld [vmem:[%s1 + $0xb90] sm:$0xff]
  %v394 = vld [vmem:[%s1 + $0xb98] sm:$0xff]
  %v395 = vld [vmem:[%s1 + $0xba0] sm:$0xff]
  %v396 = vld [vmem:[%s1 + $0xba8] sm:$0xff]
  %v397 = vld [vmem:[%s1 + $0xbb0] sm:$0xff]
  %v398 = vld [vmem:[%s1 + $0xbb8] sm:$0xff]
  %v399 = vld [vmem:[%s1 + $0xbc0] sm:$0xff]
  %v400 = vld [vmem:[%s1 + $0xbc8] sm:$0xff]
  %v401 = vld [vmem:[%s1 + $0xbd0] sm:$0xff]
  %v402 = vld [vmem:[%s1 + $0xbd8] sm:$0xff]
  %v403 = vld [vmem:[%s1 + $0xbe0] sm:$0xff]
  %v404 = vld [vmem:[%s1 + $0xbe8] sm:$0xff]
  %v405 = vld [vmem:[%s1 + $0xbf0] sm:$0xff]
  %v406 = vld [vmem:[%s1 + $0xbf8] sm:$0xff]
  %v407 = vld [vmem:[%s1 + $0xc00] sm:$0xff]
  %v408 = vld [vmem:[%s1 + $0xc08] sm:$0xff]
  %v409 = vld [vmem:[%s1 + $0xc10] sm:$0xff]
  %v410 = vld [vmem:[%s1 + $0xc18] sm:$0xff]
  %v411 = vld [vmem:[%s1 + $0xc20] sm:$0xff]
  %v412 = vld [vmem:[%s1 + $0xc28] sm:$0xff]
  %v413 = vld [vmem:[%s1 + $0xc30] sm:$0xff]
  %v414 = vld [vmem:[%s1 + $0xc38] sm:$0xff]
  %v415 = vld [vmem:[%s1 + $0xc40] sm:$0xff]
  %v416 = vld [vmem:[%s1 + $0xc48] sm:$0xff]
  %v417 = vld [vmem:[%s1 + $0xc50] sm:$0xff]
  %v418 = vld [vmem:[%s1 + $0xc58] sm:$0xff]
  %v419 = vld [vmem:[%s1 + $0xc60] sm:$0xff]
  %v420 = vld [vmem:[%s1 + $0xc68] sm:$0xff]
  %v421 = vld [vmem:[%s1 + $0xc70] sm:$0xff]
  %v422 = vld [vmem:[%s1 + $0xc78] sm:$0xff]
  %v423 = vld [vmem:[%s1 + $0xc80] sm:$0xff]
  %v424 = vld [vmem:[%s1 + $0xc88] sm:$0xff]
  %v425 = vld [vmem:[%s1 + $0xc90] sm:$0xff]
  %v426 = vld [vmem:[%s1 + $0xc98] sm:$0xff]
  %v427 = vld [vmem:[%s1 + $0xca0] sm:$0xff]
  %v428 = vld [vmem:[%s1 + $0xca8] sm:$0xff]
  %v429 = vld [vmem:[%s1 + $0xcb0] sm:$0xff]
  %v430 = vld [vmem:[%s1 + $0xcb8] sm:$0xff]
  %v431 = vld [vmem:[%s1 + $0xcc0] sm:$0xff]
  %v432 = vld [vmem:[%s1 + $0xcc8] sm:$0xff]
  %v433 = vld [vmem:[%s1 + $0xcd0] sm:$0xff]
  %v434 = vld [vmem:[%s1 + $0xcd8] sm:$0xff]
  %v435 = vld [vmem:[%s1 + $0xce0] sm:$0xff]
  %v436 = vld [vmem:[%s1 + $0xce8] sm:$0xff]
  %v437 = vld [vmem:[%s1 + $0xcf0] sm:$0xff]
  %v438 = vld [vmem:[%s1 + $0xcf8] sm:$0xff]
  %v439 = vld [vmem:[%s1 + $0xd00] sm:$0xff]
  %v440 = vld [vmem:[%s1 + $0xd08] sm:$0xff]
  %v441 = vld [vmem:[%s1 + $0xd10] sm:$0xff]
  %v442 = vld [vmem:[%s1 + $0xd18] sm:$0xff]
  %v443 = vld [vmem:[%s1 + $0xd20] sm:$0xff]
  %v444 = vld [vmem:[%s1 + $0xd28] sm:$0xff]
  %v445 = vld [vmem:[%s1 + $0xd30] sm:$0xff]
  %v446 = vld [vmem:[%s1 + $0xd38] sm:$0xff]
  %v447 = vld [vmem:[%s1 + $0xd40] sm:$0xff]
  %v448 = vld [vmem:[%s1 + $0xd48] sm:$0xff]
  %v449 = vld [vmem:[%s1 + $0xd50] sm:$0xff]
  %v450 = vld [vmem:[%s1 + $0xd58] sm:$0xff]
  %v451 = vld [vmem:[%s1 + $0xd60] sm:$0xff]
  %v452 = vld [vmem:[%s1 + $0xd68] sm:$0xff]
  %v453 = vld [vmem:[%s1 + $0xd70] sm:$0xff]
  %v454 = vld [vmem:[%s1 + $0xd78] sm:$0xff]
  %v455 = vld [vmem:[%s1 + $0xd80] sm:$0xff]
  %v456 = vld [vmem:[%s1 + $0xd88] sm:$0xff]
  %v457 = vld [vmem:[%s1 + $0xd90] sm:$0xff]
  %v458 = vld [vmem:[%s1 + $0xd98] sm:$0xff]
  %v459 = vld [vmem:[%s1 + $0xda0] sm:$0xff]
  %v460 = vld [vmem:[%s1 + $0xda8] sm:$0xff]
  %v461 = vld [vmem:[%s1 + $0xdb0] sm:$0xff]
  %v462 = vld [vmem:[%s1 + $0xdb8] sm:$0xff]
  %v463 = vld [vmem:[%s1 + $0xdc0] sm:$0xff]
  %v464 = vld [vmem:[%s1 + $0xdc8] sm:$0xff]
  %v465 = vld [vmem:[%s1 + $0xdd0] sm:$0xff]
  %v466 = vld [vmem:[%s1 + $0xdd8] sm:$0xff]
  %v467 = vld [vmem:[%s1 + $0xde0] sm:$0xff]
  %v468 = vld [vmem:[%s1 + $0xde8] sm:$0xff]
  %v469 = vld [vmem:[%s1 + $0xdf0] sm:$0xff]
  %v470 = vld [vmem:[%s1 + $0xdf8] sm:$0xff]
  %v471 = vld [vmem:[%s1 + $0xe00] sm:$0xff]
  %v472 = vld [vmem:[%s1 + $0xe08] sm:$0xff]
  %v473 = vld [vmem:[%s1 + $0xe10] sm:$0xff]
  %v474 = vld [vmem:[%s1 + $0xe18] sm:$0xff]
  %v475 = vld [vmem:[%s1 + $0xe20] sm:$0xff]
  %v476 = vld [vmem:[%s1 + $0xe28] sm:$0xff]
  %v477 = vld [vmem:[%s1 + $0xe30] sm:$0xff]
  %v478 = vld [vmem:[%s1 + $0xe38] sm:$0xff]
  %v479 = vld [vmem:[%s1 + $0xe40] sm:$0xff]
  %v480 = vld [vmem:[%s1 + $0xe48] sm:$0xff]
  %v481 = vld [vmem:[%s1 + $0xe50] sm:$0xff]
  %v482 = vld [vmem:[%s1 + $0xe58] sm:$0xff]
  %v483 = vld [vmem:[%s1 + $0xe60] sm:$0xff]
  %v484 = vld [vmem:[%s1 + $0xe68] sm:$0xff]
  %v485 = vld [vmem:[%s1 + $0xe70] sm:$0xff]
  %v486 = vld [vmem:[%s1 + $0xe78] sm:$0xff]
  %v487 = vld [vmem:[%s1 + $0xe80] sm:$0xff]
  %v488 = vld [vmem:[%s1 + $0xe88] sm:$0xff]
  %v489 = vld [vmem:[%s1 + $0xe90] sm:$0xff]
  %v490 = vld [vmem:[%s1 + $0xe98] sm:$0xff]
  %vm491 = vcmask 261120
  %v493 = vsel %vm491, %v19, 0
  %v496 = vsel %vm491, %v22, 0
  %498 = vmatprep.subr.mxu0 %v24
  %499 = vmatpush1.msra.mxu0 %v23
  %500 = vmatprep.subr.mxu0 %v37
  %501 = vmatpush1.msra.mxu0 %v36
  %502 = vmatprep.subr.mxu0 %v50
  %503 = vmatpush1.msra.mxu0 %v49
  %504 = vmatprep.subr.mxu0 %v63
  %505 = vmatpush1.msra.mxu0 %v62
  %506 = vmatprep.subr.mxu0 %v76
  %507 = vmatpush1.msra.mxu0 %v75
  %508 = vmatprep.subr.mxu0 %v89
  %509 = vmatpush1.msra.mxu0 %v88
  %510 = vmatprep.subr.mxu0 %v102
  %511 = vmatpush1.msra.mxu0 %v101
  %512 = vmatprep.subr.mxu0 %v115
  %513 = vmatpush1.msra.mxu0 %v114
  %514 = vmatprep.subr.mxu0 %v128
  %515 = vmatpush1.msra.mxu0 %v127
  %516 = vmatprep.subr.mxu0 %v141
  %517 = vmatpush1.msra.mxu0 %v140
  %518 = vmatprep.subr.mxu0 %v154
  %519 = vmatpush1.msra.mxu0 %v153
  %520 = vmatprep.subr.mxu0 %v167
  %521 = vmatpush1.msra.mxu0 %v166
  %522 = vmatprep.subr.mxu0 %v180
  %523 = vmatpush1.msra.mxu0 %v179
  %524 = vmatprep.subr.mxu0 %v193
  %525 = vmatpush1.msra.mxu0 %v192
  %526 = vmatprep.subr.mxu0 %v206
  %527 = vmatpush1.msra.mxu0 %v205
  %528 = vmatprep.subr.mxu0 %v219
  %529 = vmatpush1.msra.mxu0 %v218
  %530 = vmatprep.subr.mxu0 %v232
  %531 = vmatpush1.msra.mxu0 %v231
  %532 = vmatprep.subr.mxu0 %v245
  %533 = vmatpush1.msra.mxu0 %v244
  %534 = vmatprep.subr.mxu0 %v258
  %535 = vmatpush1.msra.mxu0 %v257
  %536 = vmatprep.subr.mxu0 %v271
  %537 = vmatpush1.msra.mxu0 %v270
  %538 = vmatprep.subr.mxu0 %v284
  %539 = vmatpush1.msra.mxu0 %v283
  %540 = vmatprep.subr.mxu0 %v297
  %541 = vmatpush1.msra.mxu0 %v296
  %542 = vmatprep.subr.mxu0 %v310
  %543 = vmatpush1.msra.mxu0 %v309
  %544 = vmatprep.subr.mxu0 %v323
  %545 = vmatpush1.msra.mxu0 %v322
  %546 = vmatprep.subr.mxu0 %v336
  %547 = vmatpush1.msra.mxu0 %v335
  %548 = vmatprep.subr.mxu0 %v349
  %549 = vmatpush1.msra.mxu0 %v348
  %550 = vmatprep.subr.mxu0 %v362
  %551 = vmatpush1.msra.mxu0 %v361
  %552 = vmatprep.subr.mxu0 %v375
  %553 = vmatpush1.msra.mxu0 %v374
  %554 = vmatprep.subr.mxu0 %v388
  %555 = vmatpush1.msra.mxu0 %v387
  %556 = vmatprep.subr.mxu0 %v401
  %557 = vmatpush1.msra.mxu0 %v400
  %558 = vmatprep.subr.mxu0 %v414
  %559 = vmatpush1.msra.mxu0 %v413
  %560 = vmatprep.subr.mxu0 %v427
  %561 = vmatpush1.msra.mxu0 %v426
  %562 = vmatprep.mubr.f32.mxu0 %v18
  %563 = vmatmul.mubr.f32.gmra.mrb[0].mxu0 %v17
  %v564 = vpop.f32.mrb[0].mxu0
  %v565 = vadd.f32 0.0, %v564
  %v566 = vpop.f32.mrb[0].mxu0
  %v567 = vadd.f32 0.0, %v566
  %568 = vmatprep.mubr.f32.mxu0 %v21
  %569 = vmatmul.mubr.f32.gmra.mrb[0].mxu0 %v20
  %v570 = vpop.f32.mrb[0].mxu0
  %v571 = vadd.f32 0.0, %v570
  %v572 = vpop.f32.mrb[0].mxu0
  %v573 = vadd.f32 0.0, %v572
  %574 = vdwg.mxu0
  %575 = vmatprep.subr.mxu0 %v440
  %576 = vmatpush1.msra.mxu0 %v439
  %577 = vmatprep.subr.mxu0 %v453
  %578 = vmatpush1.msra.mxu0 %v452
  %579 = vmatprep.subr.mxu0 %v466
  %580 = vmatpush1.msra.mxu0 %v465
  %581 = vmatprep.subr.mxu0 %v479
  %582 = vmatpush1.msra.mxu0 %v478
  %583 = vmatprep.subr.mxu0 0.0
  %584 = vmatpush1.msra.mxu0 0.0
  %585 = vmatprep.subr.mxu0 0.0
  %586 = vmatpush1.msra.mxu0 0.0
  %587 = vmatprep.subr.mxu0 0.0
  %588 = vmatpush1.msra.mxu0 0.0
  %589 = vmatprep.subr.mxu0 0.0
  %590 = vmatpush1.msra.mxu0 0.0
  %591 = vmatprep.subr.mxu0 0.0
  %592 = vmatpush1.msra.mxu0 0.0
  %593 = vmatprep.subr.mxu0 0.0
  %594 = vmatpush1.msra.mxu0 0.0
  %595 = vmatprep.subr.mxu0 0.0
  %596 = vmatpush1.msra.mxu0 0.0
  %597 = vmatprep.subr.mxu0 0.0
  %598 = vmatpush1.msra.mxu0 0.0
  %599 = vmatprep.subr.mxu0 0.0
  %600 = vmatpush1.msra.mxu0 0.0
  %601 = vmatprep.subr.mxu0 0.0
  %602 = vmatpush1.msra.mxu0 0.0
  %603 = vmatprep.subr.mxu0 0.0
  %604 = vmatpush1.msra.mxu0 0.0
  %605 = vmatprep.subr.mxu0 0.0
  %606 = vmatpush1.msra.mxu0 0.0
  %607 = vmatprep.subr.mxu0 0.0
  %608 = vmatpush1.msra.mxu0 0.0
  %609 = vmatprep.subr.mxu0 0.0
  %610 = vmatpush1.msra.mxu0 0.0
  %611 = vmatprep.subr.mxu0 0.0
  %612 = vmatpush1.msra.mxu0 0.0
  %613 = vmatprep.subr.mxu0 0.0
  %614 = vmatpush1.msra.mxu0 0.0
  %615 = vmatprep.subr.mxu0 0.0
  %616 = vmatpush1.msra.mxu0 0.0
  %617 = vmatprep.subr.mxu0 0.0
  %618 = vmatpush1.msra.mxu0 0.0
  %619 = vmatprep.subr.mxu0 0.0
  %620 = vmatpush1.msra.mxu0 0.0
  %621 = vmatprep.subr.mxu0 0.0
  %622 = vmatpush1.msra.mxu0 0.0
  %623 = vmatprep.subr.mxu0 0.0
  %624 = vmatpush1.msra.mxu0 0.0
  %625 = vmatprep.subr.mxu0 0.0
  %626 = vmatpush1.msra.mxu0 0.0
  %627 = vmatprep.subr.mxu0 0.0
  %628 = vmatpush1.msra.mxu0 0.0
  %629 = vmatprep.subr.mxu0 0.0
  %630 = vmatpush1.msra.mxu0 0.0
  %631 = vmatprep.subr.mxu0 0.0
  %632 = vmatpush1.msra.mxu0 0.0
  %633 = vmatprep.subr.mxu0 0.0
  %634 = vmatpush1.msra.mxu0 0.0
  %635 = vmatprep.subr.mxu0 0.0
  %636 = vmatpush1.msra.mxu0 0.0
  %637 = vmatprep.subr.mxu0 0.0
  %638 = vmatpush1.msra.mxu0 0.0
  %639 = vmatprep.mubr.f32.mxu0 0.0
  %640 = vmatmul.mubr.f32.gmra.mrb[0].mxu0 %v493
  %v641 = vpop.f32.mrb[0].mxu0
  %v642 = vadd.f32 %v565, %v641
  %v643 = vpop.f32.mrb[0].mxu0
  %v644 = vadd.f32 %v567, %v643
  %645 = vmatprep.mubr.f32.mxu0 0.0
  %646 = vmatmul.mubr.f32.gmra.mrb[0].mxu0 %v496
  %v647 = vpop.f32.mrb[0].mxu0
  %v648 = vadd.f32 %v571, %v647
  %v649 = vpop.f32.mrb[0].mxu0
  %v650 = vadd.f32 %v573, %v649
  %651 = vdwg.mxu0
  %652 = vmatprep.subr.mxu0 %v26
  %653 = vmatpush1.msra.mxu0 %v25
  %654 = vmatprep.subr.mxu0 %v39
  %655 = vmatpush1.msra.mxu0 %v38
  %656 = vmatprep.subr.mxu0 %v52
  %657 = vmatpush1.msra.mxu0 %v51
  %658 = vmatprep.subr.mxu0 %v65
  %659 = vmatpush1.msra.mxu0 %v64
  %660 = vmatprep.subr.mxu0 %v78
  %661 = vmatpush1.msra.mxu0 %v77
  %662 = vmatprep.subr.mxu0 %v91
  %663 = vmatpush1.msra.mxu0 %v90
  %664 = vmatprep.subr.mxu0 %v104
  %665 = vmatpush1.msra.mxu0 %v103
  %666 = vmatprep.subr.mxu0 %v117
  %667 = vmatpush1.msra.mxu0 %v116
  %668 = vmatprep.subr.mxu0 %v130
  %669 = vmatpush1.msra.mxu0 %v129
  %670 = vmatprep.subr.mxu0 %v143
  %671 = vmatpush1.msra.mxu0 %v142
  %672 = vmatprep.subr.mxu0 %v156
  %673 = vmatpush1.msra.mxu0 %v155
  %674 = vmatprep.subr.mxu0 %v169
  %675 = vmatpush1.msra.mxu0 %v168
  %676 = vmatprep.subr.mxu0 %v182
  %677 = vmatpush1.msra.mxu0 %v181
  %678 = vmatprep.subr.mxu0 %v195
  %679 = vmatpush1.msra.mxu0 %v194
  %680 = vmatprep.subr.mxu0 %v208
  %681 = vmatpush1.msra.mxu0 %v207
  %682 = vmatprep.subr.mxu0 %v221
  %683 = vmatpush1.msra.mxu0 %v220
  %684 = vmatprep.subr.mxu0 %v234
  %685 = vmatpush1.msra.mxu0 %v233
  %686 = vmatprep.subr.mxu0 %v247
  %687 = vmatpush1.msra.mxu0 %v246
  %688 = vmatprep.subr.mxu0 %v260
  %689 = vmatpush1.msra.mxu0 %v259
  %690 = vmatprep.subr.mxu0 %v273
  %691 = vmatpush1.msra.mxu0 %v272
  %692 = vmatprep.subr.mxu0 %v286
  %693 = vmatpush1.msra.mxu0 %v285
  %694 = vmatprep.subr.mxu0 %v299
  %695 = vmatpush1.msra.mxu0 %v298
  %696 = vmatprep.subr.mxu0 %v312
  %697 = vmatpush1.msra.mxu0 %v311
  %698 = vmatprep.subr.mxu0 %v325
  %699 = vmatpush1.msra.mxu0 %v324
  %700 = vmatprep.subr.mxu0 %v338
  %701 = vmatpush1.msra.mxu0 %v337
  %702 = vmatprep.subr.mxu0 %v351
  %703 = vmatpush1.msra.mxu0 %v350
  %704 = vmatprep.subr.mxu0 %v364
  %705 = vmatpush1.msra.mxu0 %v363
  %706 = vmatprep.subr.mxu0 %v377
  %707 = vmatpush1.msra.mxu0 %v376
  %708 = vmatprep.subr.mxu0 %v390
  %709 = vmatpush1.msra.mxu0 %v389
  %710 = vmatprep.subr.mxu0 %v403
  %711 = vmatpush1.msra.mxu0 %v402
  %712 = vmatprep.subr.mxu0 %v416
  %713 = vmatpush1.msra.mxu0 %v415
  %714 = vmatprep.subr.mxu0 %v429
  %715 = vmatpush1.msra.mxu0 %v428
  %716 = vmatprep.mubr.f32.mxu0 %v18
  %717 = vmatmul.mubr.f32.gmra.mrb[0].mxu0 %v17
  %v718 = vpop.f32.mrb[0].mxu0
  %v719 = vadd.f32 0.0, %v718
  %v720 = vpop.f32.mrb[0].mxu0
  %v721 = vadd.f32 0.0, %v720
  %722 = vmatprep.mubr.f32.mxu0 %v21
  %723 = vmatmul.mubr.f32.gmra.mrb[0].mxu0 %v20
  %v724 = vpop.f32.mrb[0].mxu0
  %v725 = vadd.f32 0.0, %v724
  %v726 = vpop.f32.mrb[0].mxu0
  %v727 = vadd.f32 0.0, %v726
  %728 = vdwg.mxu0
  %729 = vmatprep.subr.mxu0 %v442
  %730 = vmatpush1.msra.mxu0 %v441
  %731 = vmatprep.subr.mxu0 %v455
  %732 = vmatpush1.msra.mxu0 %v454
  %733 = vmatprep.subr.mxu0 %v468
  %734 = vmatpush1.msra.mxu0 %v467
  %735 = vmatprep.subr.mxu0 %v481
  %736 = vmatpush1.msra.mxu0 %v480
  %737 = vmatprep.subr.mxu0 0.0
  %738 = vmatpush1.msra.mxu0 0.0
  %739 = vmatprep.subr.mxu0 0.0
  %740 = vmatpush1.msra.mxu0 0.0
  %741 = vmatprep.subr.mxu0 0.0
  %742 = vmatpush1.msra.mxu0 0.0
  %743 = vmatprep.subr.mxu0 0.0
  %744 = vmatpush1.msra.mxu0 0.0
  %745 = vmatprep.subr.mxu0 0.0
  %746 = vmatpush1.msra.mxu0 0.0
  %747 = vmatprep.subr.mxu0 0.0
  %748 = vmatpush1.msra.mxu0 0.0
  %749 = vmatprep.subr.mxu0 0.0
  %750 = vmatpush1.msra.mxu0 0.0
  %751 = vmatprep.subr.mxu0 0.0
  %752 = vmatpush1.msra.mxu0 0.0
  %753 = vmatprep.subr.mxu0 0.0
  %754 = vmatpush1.msra.mxu0 0.0
  %755 = vmatprep.subr.mxu0 0.0
  %756 = vmatpush1.msra.mxu0 0.0
  %757 = vmatprep.subr.mxu0 0.0
  %758 = vmatpush1.msra.mxu0 0.0
  %759 = vmatprep.subr.mxu0 0.0
  %760 = vmatpush1.msra.mxu0 0.0
  %761 = vmatprep.subr.mxu0 0.0
  %762 = vmatpush1.msra.mxu0 0.0
  %763 = vmatprep.subr.mxu0 0.0
  %764 = vmatpush1.msra.mxu0 0.0
  %765 = vmatprep.subr.mxu0 0.0
  %766 = vmatpush1.msra.mxu0 0.0
  %767 = vmatprep.subr.mxu0 0.0
  %768 = vmatpush1.msra.mxu0 0.0
  %769 = vmatprep.subr.mxu0 0.0
  %770 = vmatpush1.msra.mxu0 0.0
  %771 = vmatprep.subr.mxu0 0.0
  %772 = vmatpush1.msra.mxu0 0.0
  %773 = vmatprep.subr.mxu0 0.0
  %774 = vmatpush1.msra.mxu0 0.0
  %775 = vmatprep.subr.mxu0 0.0
  %776 = vmatpush1.msra.mxu0 0.0
  %777 = vmatprep.subr.mxu0 0.0
  %778 = vmatpush1.msra.mxu0 0.0
  %779 = vmatprep.subr.mxu0 0.0
  %780 = vmatpush1.msra.mxu0 0.0
  %781 = vmatprep.subr.mxu0 0.0
  %782 = vmatpush1.msra.mxu0 0.0
  %783 = vmatprep.subr.mxu0 0.0
  %784 = vmatpush1.msra.mxu0 0.0
  %785 = vmatprep.subr.mxu0 0.0
  %786 = vmatpush1.msra.mxu0 0.0
  %787 = vmatprep.subr.mxu0 0.0
  %788 = vmatpush1.msra.mxu0 0.0
  %789 = vmatprep.subr.mxu0 0.0
  %790 = vmatpush1.msra.mxu0 0.0
  %791 = vmatprep.subr.mxu0 0.0
  %792 = vmatpush1.msra.mxu0 0.0
  %793 = vmatprep.mubr.f32.mxu0 0.0
  %794 = vmatmul.mubr.f32.gmra.mrb[0].mxu0 %v493
  %v795 = vpop.f32.mrb[0].mxu0
  %v796 = vadd.f32 %v719, %v795
  %v797 = vpop.f32.mrb[0].mxu0
  %v798 = vadd.f32 %v721, %v797
  %799 = vmatprep.mubr.f32.mxu0 0.0
  %800 = vmatmul.mubr.f32.gmra.mrb[0].mxu0 %v496
  %v801 = vpop.f32.mrb[0].mxu0
  %v802 = vadd.f32 %v725, %v801
  %v803 = vpop.f32.mrb[0].mxu0
  %v804 = vadd.f32 %v727, %v803
  %805 = vdwg.mxu0
  %806 = vmatprep.subr.mxu0 %v28
  %807 = vmatpush1.msra.mxu0 %v27
  %808 = vmatprep.subr.mxu0 %v41
  %809 = vmatpush1.msra.mxu0 %v40
  %810 = vmatprep.subr.mxu0 %v54
  %811 = vmatpush1.msra.mxu0 %v53
  %812 = vmatprep.subr.mxu0 %v67
  %813 = vmatpush1.msra.mxu0 %v66
  %814 = vmatprep.subr.mxu0 %v80
  %815 = vmatpush1.msra.mxu0 %v79
  %816 = vmatprep.subr.mxu0 %v93
  %817 = vmatpush1.msra.mxu0 %v92
  %818 = vmatprep.subr.mxu0 %v106
  %819 = vmatpush1.msra.mxu0 %v105
  %820 = vmatprep.subr.mxu0 %v119
  %821 = vmatpush1.msra.mxu0 %v118
  %822 = vmatprep.subr.mxu0 %v132
  %823 = vmatpush1.msra.mxu0 %v131
  %824 = vmatprep.subr.mxu0 %v145
  %825 = vmatpush1.msra.mxu0 %v144
  %826 = vmatprep.subr.mxu0 %v158
  %827 = vmatpush1.msra.mxu0 %v157
  %828 = vmatprep.subr.mxu0 %v171
  %829 = vmatpush1.msra.mxu0 %v170
  %830 = vmatprep.subr.mxu0 %v184
  %831 = vmatpush1.msra.mxu0 %v183
  %832 = vmatprep.subr.mxu0 %v197
  %833 = vmatpush1.msra.mxu0 %v196
  %834 = vmatprep.subr.mxu0 %v210
  %835 = vmatpush1.msra.mxu0 %v209
  %836 = vmatprep.subr.mxu0 %v223
  %837 = vmatpush1.msra.mxu0 %v222
  %838 = vmatprep.subr.mxu0 %v236
  %839 = vmatpush1.msra.mxu0 %v235
  %840 = vmatprep.subr.mxu0 %v249
  %841 = vmatpush1.msra.mxu0 %v248
  %842 = vmatprep.subr.mxu0 %v262
  %843 = vmatpush1.msra.mxu0 %v261
  %844 = vmatprep.subr.mxu0 %v275
  %845 = vmatpush1.msra.mxu0 %v274
  %846 = vmatprep.subr.mxu0 %v288
  %847 = vmatpush1.msra.mxu0 %v287
  %848 = vmatprep.subr.mxu0 %v301
  %849 = vmatpush1.msra.mxu0 %v300
  %850 = vmatprep.subr.mxu0 %v314
  %851 = vmatpush1.msra.mxu0 %v313
  %852 = vmatprep.subr.mxu0 %v327
  %853 = vmatpush1.msra.mxu0 %v326
  %854 = vmatprep.subr.mxu0 %v340
  %855 = vmatpush1.msra.mxu0 %v339
  %856 = vmatprep.subr.mxu0 %v353
  %857 = vmatpush1.msra.mxu0 %v352
  %858 = vmatprep.subr.mxu0 %v366
  %859 = vmatpush1.msra.mxu0 %v365
  %860 = vmatprep.subr.mxu0 %v379
  %861 = vmatpush1.msra.mxu0 %v378
  %862 = vmatprep.subr.mxu0 %v392
  %863 = vmatpush1.msra.mxu0 %v391
  %864 = vmatprep.subr.mxu0 %v405
  %865 = vmatpush1.msra.mxu0 %v404
  %866 = vmatprep.subr.mxu0 %v418
  %867 = vmatpush1.msra.mxu0 %v417
  %868 = vmatprep.subr.mxu0 %v431
  %869 = vmatpush1.msra.mxu0 %v430
  %870 = vmatprep.mubr.f32.mxu0 %v18
  %871 = vmatmul.mubr.f32.gmra.mrb[0].mxu0 %v17
  %v872 = vpop.f32.mrb[0].mxu0
  %v873 = vadd.f32 0.0, %v872
  %v874 = vpop.f32.mrb[0].mxu0
  %v875 = vadd.f32 0.0, %v874
  %876 = vmatprep.mubr.f32.mxu0 %v21
  %877 = vmatmul.mubr.f32.gmra.mrb[0].mxu0 %v20
  %v878 = vpop.f32.mrb[0].mxu0
  %v879 = vadd.f32 0.0, %v878
  %v880 = vpop.f32.mrb[0].mxu0
  %v881 = vadd.f32 0.0, %v880
  %882 = vdwg.mxu0
  %883 = vmatprep.subr.mxu0 %v444
  %884 = vmatpush1.msra.mxu0 %v443
  %885 = vmatprep.subr.mxu0 %v457
  %886 = vmatpush1.msra.mxu0 %v456
  %887 = vmatprep.subr.mxu0 %v470
  %888 = vmatpush1.msra.mxu0 %v469
  %889 = vmatprep.subr.mxu0 %v483
  %890 = vmatpush1.msra.mxu0 %v482
  %891 = vmatprep.subr.mxu0 0.0
  %892 = vmatpush1.msra.mxu0 0.0
  %893 = vmatprep.subr.mxu0 0.0
  %894 = vmatpush1.msra.mxu0 0.0
  %895 = vmatprep.subr.mxu0 0.0
  %896 = vmatpush1.msra.mxu0 0.0
  %897 = vmatprep.subr.mxu0 0.0
  %898 = vmatpush1.msra.mxu0 0.0
  %899 = vmatprep.subr.mxu0 0.0
  %900 = vmatpush1.msra.mxu0 0.0
  %901 = vmatprep.subr.mxu0 0.0
  %902 = vmatpush1.msra.mxu0 0.0
  %903 = vmatprep.subr.mxu0 0.0
  %904 = vmatpush1.msra.mxu0 0.0
  %905 = vmatprep.subr.mxu0 0.0
  %906 = vmatpush1.msra.mxu0 0.0
  %907 = vmatprep.subr.mxu0 0.0
  %908 = vmatpush1.msra.mxu0 0.0
  %909 = vmatprep.subr.mxu0 0.0
  %910 = vmatpush1.msra.mxu0 0.0
  %911 = vmatprep.subr.mxu0 0.0
  %912 = vmatpush1.msra.mxu0 0.0
  %913 = vmatprep.subr.mxu0 0.0
  %914 = vmatpush1.msra.mxu0 0.0
  %915 = vmatprep.subr.mxu0 0.0
  %916 = vmatpush1.msra.mxu0 0.0
  %917 = vmatprep.subr.mxu0 0.0
  %918 = vmatpush1.msra.mxu0 0.0
  %919 = vmatprep.subr.mxu0 0.0
  %920 = vmatpush1.msra.mxu0 0.0
  %921 = vmatprep.subr.mxu0 0.0
  %922 = vmatpush1.msra.mxu0 0.0
  %923 = vmatprep.subr.mxu0 0.0
  %924 = vmatpush1.msra.mxu0 0.0
  %925 = vmatprep.subr.mxu0 0.0
  %926 = vmatpush1.msra.mxu0 0.0
  %927 = vmatprep.subr.mxu0 0.0
  %928 = vmatpush1.msra.mxu0 0.0
  %929 = vmatprep.subr.mxu0 0.0
  %930 = vmatpush1.msra.mxu0 0.0
  %931 = vmatprep.subr.mxu0 0.0
  %932 = vmatpush1.msra.mxu0 0.0
  %933 = vmatprep.subr.mxu0 0.0
  %934 = vmatpush1.msra.mxu0 0.0
  %935 = vmatprep.subr.mxu0 0.0
  %936 = vmatpush1.msra.mxu0 0.0
  %937 = vmatprep.subr.mxu0 0.0
  %938 = vmatpush1.msra.mxu0 0.0
  %939 = vmatprep.subr.mxu0 0.0
  %940 = vmatpush1.msra.mxu0 0.0
  %941 = vmatprep.subr.mxu0 0.0
  %942 = vmatpush1.msra.mxu0 0.0
  %943 = vmatprep.subr.mxu0 0.0
  %944 = vmatpush1.msra.mxu0 0.0
  %945 = vmatprep.subr.mxu0 0.0
  %946 = vmatpush1.msra.mxu0 0.0
  %947 = vmatprep.mubr.f32.mxu0 0.0
  %948 = vmatmul.mubr.f32.gmra.mrb[0].mxu0 %v493
  %v949 = vpop.f32.mrb[0].mxu0
  %v950 = vadd.f32 %v873, %v949
  %v951 = vpop.f32.mrb[0].mxu0
  %v952 = vadd.f32 %v875, %v951
  %953 = vmatprep.mubr.f32.mxu0 0.0
  %954 = vmatmul.mubr.f32.gmra.mrb[0].mxu0 %v496
  %v955 = vpop.f32.mrb[0].mxu0
  %v956 = vadd.f32 %v879, %v955
  %v957 = vpop.f32.mrb[0].mxu0
  %v958 = vadd.f32 %v881, %v957
  %959 = vdwg.mxu0
  %960 = vmatprep.subr.mxu0 %v30
  %961 = vmatpush1.msra.mxu0 %v29
  %962 = vmatprep.subr.mxu0 %v43
  %963 = vmatpush1.msra.mxu0 %v42
  %964 = vmatprep.subr.mxu0 %v56
  %965 = vmatpush1.msra.mxu0 %v55
  %966 = vmatprep.subr.mxu0 %v69
  %967 = vmatpush1.msra.mxu0 %v68
  %968 = vmatprep.subr.mxu0 %v82
  %969 = vmatpush1.msra.mxu0 %v81
  %970 = vmatprep.subr.mxu0 %v95
  %971 = vmatpush1.msra.mxu0 %v94
  %972 = vmatprep.subr.mxu0 %v108
  %973 = vmatpush1.msra.mxu0 %v107
  %974 = vmatprep.subr.mxu0 %v121
  %975 = vmatpush1.msra.mxu0 %v120
  %976 = vmatprep.subr.mxu0 %v134
  %977 = vmatpush1.msra.mxu0 %v133
  %978 = vmatprep.subr.mxu0 %v147
  %979 = vmatpush1.msra.mxu0 %v146
  %980 = vmatprep.subr.mxu0 %v160
  %981 = vmatpush1.msra.mxu0 %v159
  %982 = vmatprep.subr.mxu0 %v173
  %983 = vmatpush1.msra.mxu0 %v172
  %984 = vmatprep.subr.mxu0 %v186
  %985 = vmatpush1.msra.mxu0 %v185
  %986 = vmatprep.subr.mxu0 %v199
  %987 = vmatpush1.msra.mxu0 %v198
  %988 = vmatprep.subr.mxu0 %v212
  %989 = vmatpush1.msra.mxu0 %v211
  %990 = vmatprep.subr.mxu0 %v225
  %991 = vmatpush1.msra.mxu0 %v224
  %992 = vmatprep.subr.mxu0 %v238
  %993 = vmatpush1.msra.mxu0 %v237
  %994 = vmatprep.subr.mxu0 %v251
  %995 = vmatpush1.msra.mxu0 %v250
  %996 = vmatprep.subr.mxu0 %v264
  %997 = vmatpush1.msra.mxu0 %v263
  %998 = vmatprep.subr.mxu0 %v277
  %999 = vmatpush1.msra.mxu0 %v276
  %1000 = vmatprep.subr.mxu0 %v290
  %1001 = vmatpush1.msra.mxu0 %v289
  %1002 = vmatprep.subr.mxu0 %v303
  %1003 = vmatpush1.msra.mxu0 %v302
  %1004 = vmatprep.subr.mxu0 %v316
  %1005 = vmatpush1.msra.mxu0 %v315
  %1006 = vmatprep.subr.mxu0 %v329
  %1007 = vmatpush1.msra.mxu0 %v328
  %1008 = vmatprep.subr.mxu0 %v342
  %1009 = vmatpush1.msra.mxu0 %v341
  %1010 = vmatprep.subr.mxu0 %v355
  %1011 = vmatpush1.msra.mxu0 %v354
  %1012 = vmatprep.subr.mxu0 %v368
  %1013 = vmatpush1.msra.mxu0 %v367
  %1014 = vmatprep.subr.mxu0 %v381
  %1015 = vmatpush1.msra.mxu0 %v380
  %1016 = vmatprep.subr.mxu0 %v394
  %1017 = vmatpush1.msra.mxu0 %v393
  %1018 = vmatprep.subr.mxu0 %v407
  %1019 = vmatpush1.msra.mxu0 %v406
  %1020 = vmatprep.subr.mxu0 %v420
  %1021 = vmatpush1.msra.mxu0 %v419
  %1022 = vmatprep.subr.mxu0 %v433
  %1023 = vmatpush1.msra.mxu0 %v432
  %1024 = vmatprep.mubr.f32.mxu0 %v18
  %1025 = vmatmul.mubr.f32.gmra.mrb[0].mxu0 %v17
  %v1026 = vpop.f32.mrb[0].mxu0
  %v1027 = vadd.f32 0.0, %v1026
  %v1028 = vpop.f32.mrb[0].mxu0
  %v1029 = vadd.f32 0.0, %v1028
  %1030 = vmatprep.mubr.f32.mxu0 %v21
  %1031 = vmatmul.mubr.f32.gmra.mrb[0].mxu0 %v20
  %v1032 = vpop.f32.mrb[0].mxu0
  %v1033 = vadd.f32 0.0, %v1032
  %v1034 = vpop.f32.mrb[0].mxu0
  %v1035 = vadd.f32 0.0, %v1034
  %1036 = vdwg.mxu0
  %1037 = vmatprep.subr.mxu0 %v446
  %1038 = vmatpush1.msra.mxu0 %v445
  %1039 = vmatprep.subr.mxu0 %v459
  %1040 = vmatpush1.msra.mxu0 %v458
  %1041 = vmatprep.subr.mxu0 %v472
  %1042 = vmatpush1.msra.mxu0 %v471
  %1043 = vmatprep.subr.mxu0 %v485
  %1044 = vmatpush1.msra.mxu0 %v484
  %1045 = vmatprep.subr.mxu0 0.0
  %1046 = vmatpush1.msra.mxu0 0.0
  %1047 = vmatprep.subr.mxu0 0.0
  %1048 = vmatpush1.msra.mxu0 0.0
  %1049 = vmatprep.subr.mxu0 0.0
  %1050 = vmatpush1.msra.mxu0 0.0
  %1051 = vmatprep.subr.mxu0 0.0
  %1052 = vmatpush1.msra.mxu0 0.0
  %1053 = vmatprep.subr.mxu0 0.0
  %1054 = vmatpush1.msra.mxu0 0.0
  %1055 = vmatprep.subr.mxu0 0.0
  %1056 = vmatpush1.msra.mxu0 0.0
  %1057 = vmatprep.subr.mxu0 0.0
  %1058 = vmatpush1.msra.mxu0 0.0
  %1059 = vmatprep.subr.mxu0 0.0
  %1060 = vmatpush1.msra.mxu0 0.0
  %1061 = vmatprep.subr.mxu0 0.0
  %1062 = vmatpush1.msra.mxu0 0.0
  %1063 = vmatprep.subr.mxu0 0.0
  %1064 = vmatpush1.msra.mxu0 0.0
  %1065 = vmatprep.subr.mxu0 0.0
  %1066 = vmatpush1.msra.mxu0 0.0
  %1067 = vmatprep.subr.mxu0 0.0
  %1068 = vmatpush1.msra.mxu0 0.0
  %1069 = vmatprep.subr.mxu0 0.0
  %1070 = vmatpush1.msra.mxu0 0.0
  %1071 = vmatprep.subr.mxu0 0.0
  %1072 = vmatpush1.msra.mxu0 0.0
  %1073 = vmatprep.subr.mxu0 0.0
  %1074 = vmatpush1.msra.mxu0 0.0
  %1075 = vmatprep.subr.mxu0 0.0
  %1076 = vmatpush1.msra.mxu0 0.0
  %1077 = vmatprep.subr.mxu0 0.0
  %1078 = vmatpush1.msra.mxu0 0.0
  %1079 = vmatprep.subr.mxu0 0.0
  %1080 = vmatpush1.msra.mxu0 0.0
  %1081 = vmatprep.subr.mxu0 0.0
  %1082 = vmatpush1.msra.mxu0 0.0
  %1083 = vmatprep.subr.mxu0 0.0
  %1084 = vmatpush1.msra.mxu0 0.0
  %1085 = vmatprep.subr.mxu0 0.0
  %1086 = vmatpush1.msra.mxu0 0.0
  %1087 = vmatprep.subr.mxu0 0.0
  %1088 = vmatpush1.msra.mxu0 0.0
  %1089 = vmatprep.subr.mxu0 0.0
  %1090 = vmatpush1.msra.mxu0 0.0
  %1091 = vmatprep.subr.mxu0 0.0
  %1092 = vmatpush1.msra.mxu0 0.0
  %1093 = vmatprep.subr.mxu0 0.0
  %1094 = vmatpush1.msra.mxu0 0.0
  %1095 = vmatprep.subr.mxu0 0.0
  %1096 = vmatpush1.msra.mxu0 0.0
  %1097 = vmatprep.subr.mxu0 0.0
  %1098 = vmatpush1.msra.mxu0 0.0
  %1099 = vmatprep.subr.mxu0 0.0
  %1100 = vmatpush1.msra.mxu0 0.0
  %1101 = vmatprep.mubr.f32.mxu0 0.0
  %1102 = vmatmul.mubr.f32.gmra.mrb[0].mxu0 %v493
  %v1103 = vpop.f32.mrb[0].mxu0
  %v1104 = vadd.f32 %v1027, %v1103
  %v1105 = vpop.f32.mrb[0].mxu0
  %v1106 = vadd.f32 %v1029, %v1105
  %1107 = vmatprep.mubr.f32.mxu0 0.0
  %1108 = vmatmul.mubr.f32.gmra.mrb[0].mxu0 %v496
  %v1109 = vpop.f32.mrb[0].mxu0
  %v1110 = vadd.f32 %v1033, %v1109
  %v1111 = vpop.f32.mrb[0].mxu0
  %v1112 = vadd.f32 %v1035, %v1111
  %1113 = vdwg.mxu0
  %1114 = vmatprep.subr.mxu0 %v32
  %1115 = vmatpush1.msra.mxu0 %v31
  %1116 = vmatprep.subr.mxu0 %v45
  %1117 = vmatpush1.msra.mxu0 %v44
  %1118 = vmatprep.subr.mxu0 %v58
  %1119 = vmatpush1.msra.mxu0 %v57
  %1120 = vmatprep.subr.mxu0 %v71
  %1121 = vmatpush1.msra.mxu0 %v70
  %1122 = vmatprep.subr.mxu0 %v84
  %1123 = vmatpush1.msra.mxu0 %v83
  %1124 = vmatprep.subr.mxu0 %v97
  %1125 = vmatpush1.msra.mxu0 %v96
  %1126 = vmatprep.subr.mxu0 %v110
  %1127 = vmatpush1.msra.mxu0 %v109
  %1128 = vmatprep.subr.mxu0 %v123
  %1129 = vmatpush1.msra.mxu0 %v122
  %1130 = vmatprep.subr.mxu0 %v136
  %1131 = vmatpush1.msra.mxu0 %v135
  %1132 = vmatprep.subr.mxu0 %v149
  %1133 = vmatpush1.msra.mxu0 %v148
  %1134 = vmatprep.subr.mxu0 %v162
  %1135 = vmatpush1.msra.mxu0 %v161
  %1136 = vmatprep.subr.mxu0 %v175
  %1137 = vmatpush1.msra.mxu0 %v174
  %1138 = vmatprep.subr.mxu0 %v188
  %1139 = vmatpush1.msra.mxu0 %v187
  %1140 = vmatprep.subr.mxu0 %v201
  %1141 = vmatpush1.msra.mxu0 %v200
  %1142 = vmatprep.subr.mxu0 %v214
  %1143 = vmatpush1.msra.mxu0 %v213
  %1144 = vmatprep.subr.mxu0 %v227
  %1145 = vmatpush1.msra.mxu0 %v226
  %1146 = vmatprep.subr.mxu0 %v240
  %1147 = vmatpush1.msra.mxu0 %v239
  %1148 = vmatprep.subr.mxu0 %v253
  %1149 = vmatpush1.msra.mxu0 %v252
  %1150 = vmatprep.subr.mxu0 %v266
  %1151 = vmatpush1.msra.mxu0 %v265
  %1152 = vmatprep.subr.mxu0 %v279
  %1153 = vmatpush1.msra.mxu0 %v278
  %1154 = vmatprep.subr.mxu0 %v292
  %1155 = vmatpush1.msra.mxu0 %v291
  %1156 = vmatprep.subr.mxu0 %v305
  %1157 = vmatpush1.msra.mxu0 %v304
  %1158 = vmatprep.subr.mxu0 %v318
  %1159 = vmatpush1.msra.mxu0 %v317
  %1160 = vmatprep.subr.mxu0 %v331
  %1161 = vmatpush1.msra.mxu0 %v330
  %1162 = vmatprep.subr.mxu0 %v344
  %1163 = vmatpush1.msra.mxu0 %v343
  %1164 = vmatprep.subr.mxu0 %v357
  %1165 = vmatpush1.msra.mxu0 %v356
  %1166 = vmatprep.subr.mxu0 %v370
  %1167 = vmatpush1.msra.mxu0 %v369
  %1168 = vmatprep.subr.mxu0 %v383
  %1169 = vmatpush1.msra.mxu0 %v382
  %1170 = vmatprep.subr.mxu0 %v396
  %1171 = vmatpush1.msra.mxu0 %v395
  %1172 = vmatprep.subr.mxu0 %v409
  %1173 = vmatpush1.msra.mxu0 %v408
  %1174 = vmatprep.subr.mxu0 %v422
  %1175 = vmatpush1.msra.mxu0 %v421
  %1176 = vmatprep.subr.mxu0 %v435
  %1177 = vmatpush1.msra.mxu0 %v434
  %1178 = vmatprep.mubr.f32.mxu0 %v18
  %1179 = vmatmul.mubr.f32.gmra.mrb[0].mxu0 %v17
  %v1180 = vpop.f32.mrb[0].mxu0
  %v1181 = vadd.f32 0.0, %v1180
  %v1182 = vpop.f32.mrb[0].mxu0
  %v1183 = vadd.f32 0.0, %v1182
  %1184 = vmatprep.mubr.f32.mxu0 %v21
  %1185 = vmatmul.mubr.f32.gmra.mrb[0].mxu0 %v20
  %v1186 = vpop.f32.mrb[0].mxu0
  %v1187 = vadd.f32 0.0, %v1186
  %v1188 = vpop.f32.mrb[0].mxu0
  %v1189 = vadd.f32 0.0, %v1188
  %1190 = vdwg.mxu0
  %1191 = vmatprep.subr.mxu0 %v448
  %1192 = vmatpush1.msra.mxu0 %v447
  %1193 = vmatprep.subr.mxu0 %v461
  %1194 = vmatpush1.msra.mxu0 %v460
  %1195 = vmatprep.subr.mxu0 %v474
  %1196 = vmatpush1.msra.mxu0 %v473
  %1197 = vmatprep.subr.mxu0 %v487
  %1198 = vmatpush1.msra.mxu0 %v486
  %1199 = vmatprep.subr.mxu0 0.0
  %1200 = vmatpush1.msra.mxu0 0.0
  %1201 = vmatprep.subr.mxu0 0.0
  %1202 = vmatpush1.msra.mxu0 0.0
  %1203 = vmatprep.subr.mxu0 0.0
  %1204 = vmatpush1.msra.mxu0 0.0
  %1205 = vmatprep.subr.mxu0 0.0
  %1206 = vmatpush1.msra.mxu0 0.0
  %1207 = vmatprep.subr.mxu0 0.0
  %1208 = vmatpush1.msra.mxu0 0.0
  %1209 = vmatprep.subr.mxu0 0.0
  %1210 = vmatpush1.msra.mxu0 0.0
  %1211 = vmatprep.subr.mxu0 0.0
  %1212 = vmatpush1.msra.mxu0 0.0
  %1213 = vmatprep.subr.mxu0 0.0
  %1214 = vmatpush1.msra.mxu0 0.0
  %1215 = vmatprep.subr.mxu0 0.0
  %1216 = vmatpush1.msra.mxu0 0.0
  %1217 = vmatprep.subr.mxu0 0.0
  %1218 = vmatpush1.msra.mxu0 0.0
  %1219 = vmatprep.subr.mxu0 0.0
  %1220 = vmatpush1.msra.mxu0 0.0
  %1221 = vmatprep.subr.mxu0 0.0
  %1222 = vmatpush1.msra.mxu0 0.0
  %1223 = vmatprep.subr.mxu0 0.0
  %1224 = vmatpush1.msra.mxu0 0.0
  %1225 = vmatprep.subr.mxu0 0.0
  %1226 = vmatpush1.msra.mxu0 0.0
  %1227 = vmatprep.subr.mxu0 0.0
  %1228 = vmatpush1.msra.mxu0 0.0
  %1229 = vmatprep.subr.mxu0 0.0
  %1230 = vmatpush1.msra.mxu0 0.0
  %1231 = vmatprep.subr.mxu0 0.0
  %1232 = vmatpush1.msra.mxu0 0.0
  %1233 = vmatprep.subr.mxu0 0.0
  %1234 = vmatpush1.msra.mxu0 0.0
  %1235 = vmatprep.subr.mxu0 0.0
  %1236 = vmatpush1.msra.mxu0 0.0
  %1237 = vmatprep.subr.mxu0 0.0
  %1238 = vmatpush1.msra.mxu0 0.0
  %1239 = vmatprep.subr.mxu0 0.0
  %1240 = vmatpush1.msra.mxu0 0.0
  %1241 = vmatprep.subr.mxu0 0.0
  %1242 = vmatpush1.msra.mxu0 0.0
  %1243 = vmatprep.subr.mxu0 0.0
  %1244 = vmatpush1.msra.mxu0 0.0
  %1245 = vmatprep.subr.mxu0 0.0
  %1246 = vmatpush1.msra.mxu0 0.0
  %1247 = vmatprep.subr.mxu0 0.0
  %1248 = vmatpush1.msra.mxu0 0.0
  %1249 = vmatprep.subr.mxu0 0.0
  %1250 = vmatpush1.msra.mxu0 0.0
  %1251 = vmatprep.subr.mxu0 0.0
  %1252 = vmatpush1.msra.mxu0 0.0
  %1253 = vmatprep.subr.mxu0 0.0
  %1254 = vmatpush1.msra.mxu0 0.0
  %1255 = vmatprep.mubr.f32.mxu0 0.0
  %1256 = vmatmul.mubr.f32.gmra.mrb[0].mxu0 %v493
  %v1257 = vpop.f32.mrb[0].mxu0
  %v1258 = vadd.f32 %v1181, %v1257
  %v1259 = vpop.f32.mrb[0].mxu0
  %v1260 = vadd.f32 %v1183, %v1259
  %1261 = vmatprep.mubr.f32.mxu0 0.0
  %1262 = vmatmul.mubr.f32.gmra.mrb[0].mxu0 %v496
  %v1263 = vpop.f32.mrb[0].mxu0
  %v1264 = vadd.f32 %v1187, %v1263
  %v1265 = vpop.f32.mrb[0].mxu0
  %v1266 = vadd.f32 %v1189, %v1265
  %1267 = vdwg.mxu0
  %1268 = vmatprep.subr.mxu0 %v34
  %1269 = vmatpush1.msra.mxu0 %v33
  %1270 = vmatprep.subr.mxu0 %v47
  %1271 = vmatpush1.msra.mxu0 %v46
  %1272 = vmatprep.subr.mxu0 %v60
  %1273 = vmatpush1.msra.mxu0 %v59
  %1274 = vmatprep.subr.mxu0 %v73
  %1275 = vmatpush1.msra.mxu0 %v72
  %1276 = vmatprep.subr.mxu0 %v86
  %1277 = vmatpush1.msra.mxu0 %v85
  %1278 = vmatprep.subr.mxu0 %v99
  %1279 = vmatpush1.msra.mxu0 %v98
  %1280 = vmatprep.subr.mxu0 %v112
  %1281 = vmatpush1.msra.mxu0 %v111
  %1282 = vmatprep.subr.mxu0 %v125
  %1283 = vmatpush1.msra.mxu0 %v124
  %1284 = vmatprep.subr.mxu0 %v138
  %1285 = vmatpush1.msra.mxu0 %v137
  %1286 = vmatprep.subr.mxu0 %v151
  %1287 = vmatpush1.msra.mxu0 %v150
  %1288 = vmatprep.subr.mxu0 %v164
  %1289 = vmatpush1.msra.mxu0 %v163
  %1290 = vmatprep.subr.mxu0 %v177
  %1291 = vmatpush1.msra.mxu0 %v176
  %1292 = vmatprep.subr.mxu0 %v190
  %1293 = vmatpush1.msra.mxu0 %v189
  %1294 = vmatprep.subr.mxu0 %v203
  %1295 = vmatpush1.msra.mxu0 %v202
  %1296 = vmatprep.subr.mxu0 %v216
  %1297 = vmatpush1.msra.mxu0 %v215
  %1298 = vmatprep.subr.mxu0 %v229
  %1299 = vmatpush1.msra.mxu0 %v228
  %1300 = vmatprep.subr.mxu0 %v242
  %1301 = vmatpush1.msra.mxu0 %v241
  %1302 = vmatprep.subr.mxu0 %v255
  %1303 = vmatpush1.msra.mxu0 %v254
  %1304 = vmatprep.subr.mxu0 %v268
  %1305 = vmatpush1.msra.mxu0 %v267
  %1306 = vmatprep.subr.mxu0 %v281
  %1307 = vmatpush1.msra.mxu0 %v280
  %1308 = vmatprep.subr.mxu0 %v294
  %1309 = vmatpush1.msra.mxu0 %v293
  %1310 = vmatprep.subr.mxu0 %v307
  %1311 = vmatpush1.msra.mxu0 %v306
  %1312 = vmatprep.subr.mxu0 %v320
  %1313 = vmatpush1.msra.mxu0 %v319
  %1314 = vmatprep.subr.mxu0 %v333
  %1315 = vmatpush1.msra.mxu0 %v332
  %1316 = vmatprep.subr.mxu0 %v346
  %1317 = vmatpush1.msra.mxu0 %v345
  %1318 = vmatprep.subr.mxu0 %v359
  %1319 = vmatpush1.msra.mxu0 %v358
  %1320 = vmatprep.subr.mxu0 %v372
  %1321 = vmatpush1.msra.mxu0 %v371
  %1322 = vmatprep.subr.mxu0 %v385
  %1323 = vmatpush1.msra.mxu0 %v384
  %1324 = vmatprep.subr.mxu0 %v398
  %1325 = vmatpush1.msra.mxu0 %v397
  %1326 = vmatprep.subr.mxu0 %v411
  %1327 = vmatpush1.msra.mxu0 %v410
  %1328 = vmatprep.subr.mxu0 %v424
  %1329 = vmatpush1.msra.mxu0 %v423
  %1330 = vmatprep.subr.mxu0 %v437
  %1331 = vmatpush1.msra.mxu0 %v436
  %1332 = vmatprep.mubr.f32.mxu0 %v18
  %1333 = vmatmul.mubr.f32.gmra.mrb[0].mxu0 %v17
  %v1334 = vpop.f32.mrb[0].mxu0
  %v1335 = vadd.f32 0.0, %v1334
  %v1336 = vpop.f32.mrb[0].mxu0
  %v1337 = vadd.f32 0.0, %v1336
  %1338 = vmatprep.mubr.f32.mxu0 %v21
  %1339 = vmatmul.mubr.f32.gmra.mrb[0].mxu0 %v20
  %v1340 = vpop.f32.mrb[0].mxu0
  %v1341 = vadd.f32 0.0, %v1340
  %v1342 = vpop.f32.mrb[0].mxu0
  %v1343 = vadd.f32 0.0, %v1342
  %1344 = vdwg.mxu0
  %1345 = vmatprep.subr.mxu0 %v450
  %1346 = vmatpush1.msra.mxu0 %v449
  %1347 = vmatprep.subr.mxu0 %v463
  %1348 = vmatpush1.msra.mxu0 %v462
  %1349 = vmatprep.subr.mxu0 %v476
  %1350 = vmatpush1.msra.mxu0 %v475
  %1351 = vmatprep.subr.mxu0 %v489
  %1352 = vmatpush1.msra.mxu0 %v488
  %1353 = vmatprep.subr.mxu0 0.0
  %1354 = vmatpush1.msra.mxu0 0.0
  %1355 = vmatprep.subr.mxu0 0.0
  %1356 = vmatpush1.msra.mxu0 0.0
  %1357 = vmatprep.subr.mxu0 0.0
  %1358 = vmatpush1.msra.mxu0 0.0
  %1359 = vmatprep.subr.mxu0 0.0
  %1360 = vmatpush1.msra.mxu0 0.0
  %1361 = vmatprep.subr.mxu0 0.0
  %1362 = vmatpush1.msra.mxu0 0.0
  %1363 = vmatprep.subr.mxu0 0.0
  %1364 = vmatpush1.msra.mxu0 0.0
  %1365 = vmatprep.subr.mxu0 0.0
  %1366 = vmatpush1.msra.mxu0 0.0
  %1367 = vmatprep.subr.mxu0 0.0
  %1368 = vmatpush1.msra.mxu0 0.0
  %1369 = vmatprep.subr.mxu0 0.0
  %1370 = vmatpush1.msra.mxu0 0.0
  %1371 = vmatprep.subr.mxu0 0.0
  %1372 = vmatpush1.msra.mxu0 0.0
  %1373 = vmatprep.subr.mxu0 0.0
  %1374 = vmatpush1.msra.mxu0 0.0
  %1375 = vmatprep.subr.mxu0 0.0
  %1376 = vmatpush1.msra.mxu0 0.0
  %1377 = vmatprep.subr.mxu0 0.0
  %1378 = vmatpush1.msra.mxu0 0.0
  %1379 = vmatprep.subr.mxu0 0.0
  %1380 = vmatpush1.msra.mxu0 0.0
  %1381 = vmatprep.subr.mxu0 0.0
  %1382 = vmatpush1.msra.mxu0 0.0
  %1383 = vmatprep.subr.mxu0 0.0
  %1384 = vmatpush1.msra.mxu0 0.0
  %1385 = vmatprep.subr.mxu0 0.0
  %1386 = vmatpush1.msra.mxu0 0.0
  %1387 = vmatprep.subr.mxu0 0.0
  %1388 = vmatpush1.msra.mxu0 0.0
  %1389 = vmatprep.subr.mxu0 0.0
  %1390 = vmatpush1.msra.mxu0 0.0
  %1391 = vmatprep.subr.mxu0 0.0
  %1392 = vmatpush1.msra.mxu0 0.0
  %1393 = vmatprep.subr.mxu0 0.0
  %1394 = vmatpush1.msra.mxu0 0.0
  %1395 = vmatprep.subr.mxu0 0.0
  %1396 = vmatpush1.msra.mxu0 0.0
  %1397 = vmatprep.subr.mxu0 0.0
  %1398 = vmatpush1.msra.mxu0 0.0
  %1399 = vmatprep.subr.mxu0 0.0
  %1400 = vmatpush1.msra.mxu0 0.0
  %1401 = vmatprep.subr.mxu0 0.0
  %1402 = vmatpush1.msra.mxu0 0.0
  %1403 = vmatprep.subr.mxu0 0.0
  %1404 = vmatpush1.msra.mxu0 0.0
  %1405 = vmatprep.subr.mxu0 0.0
  %1406 = vmatpush1.msra.mxu0 0.0
  %1407 = vmatprep.subr.mxu0 0.0
  %1408 = vmatpush1.msra.mxu0 0.0
  %1409 = vmatprep.mubr.f32.mxu0 0.0
  %1410 = vmatmul.mubr.f32.gmra.mrb[0].mxu0 %v493
  %v1411 = vpop.f32.mrb[0].mxu0
  %v1412 = vadd.f32 %v1335, %v1411
  %v1413 = vpop.f32.mrb[0].mxu0
  %v1414 = vadd.f32 %v1337, %v1413
  %1415 = vmatprep.mubr.f32.mxu0 0.0
  %1416 = vmatmul.mubr.f32.gmra.mrb[0].mxu0 %v496
  %v1417 = vpop.f32.mrb[0].mxu0
  %v1418 = vadd.f32 %v1341, %v1417
  %v1419 = vpop.f32.mrb[0].mxu0
  %v1420 = vadd.f32 %v1343, %v1419
  %1421 = vdwg.mxu0
  %1422 = vmatprep.subr.mxu0 0.0
  %1423 = vmatpush1.msra.mxu0 %v35
  %1424 = vmatprep.subr.mxu0 0.0
  %1425 = vmatpush1.msra.mxu0 %v48
  %1426 = vmatprep.subr.mxu0 0.0
  %1427 = vmatpush1.msra.mxu0 %v61
  %1428 = vmatprep.subr.mxu0 0.0
  %1429 = vmatpush1.msra.mxu0 %v74
  %1430 = vmatprep.subr.mxu0 0.0
  %1431 = vmatpush1.msra.mxu0 %v87
  %1432 = vmatprep.subr.mxu0 0.0
  %1433 = vmatpush1.msra.mxu0 %v100
  %1434 = vmatprep.subr.mxu0 0.0
  %1435 = vmatpush1.msra.mxu0 %v113
  %1436 = vmatprep.subr.mxu0 0.0
  %1437 = vmatpush1.msra.mxu0 %v126
  %1438 = vmatprep.subr.mxu0 0.0
  %1439 = vmatpush1.msra.mxu0 %v139
  %1440 = vmatprep.subr.mxu0 0.0
  %1441 = vmatpush1.msra.mxu0 %v152
  %1442 = vmatprep.subr.mxu0 0.0
  %1443 = vmatpush1.msra.mxu0 %v165
  %1444 = vmatprep.subr.mxu0 0.0
  %1445 = vmatpush1.msra.mxu0 %v178
  %1446 = vmatprep.subr.mxu0 0.0
  %1447 = vmatpush1.msra.mxu0 %v191
  %1448 = vmatprep.subr.mxu0 0.0
  %1449 = vmatpush1.msra.mxu0 %v204
  %1450 = vmatprep.subr.mxu0 0.0
  %1451 = vmatpush1.msra.mxu0 %v217
  %1452 = vmatprep.subr.mxu0 0.0
  %1453 = vmatpush1.msra.mxu0 %v230
  %1454 = vmatprep.subr.mxu0 0.0
  %1455 = vmatpush1.msra.mxu0 %v243
  %1456 = vmatprep.subr.mxu0 0.0
  %1457 = vmatpush1.msra.mxu0 %v256
  %1458 = vmatprep.subr.mxu0 0.0
  %1459 = vmatpush1.msra.mxu0 %v269
  %1460 = vmatprep.subr.mxu0 0.0
  %1461 = vmatpush1.msra.mxu0 %v282
  %1462 = vmatprep.subr.mxu0 0.0
  %1463 = vmatpush1.msra.mxu0 %v295
  %1464 = vmatprep.subr.mxu0 0.0
  %1465 = vmatpush1.msra.mxu0 %v308
  %1466 = vmatprep.subr.mxu0 0.0
  %1467 = vmatpush1.msra.mxu0 %v321
  %1468 = vmatprep.subr.mxu0 0.0
  %1469 = vmatpush1.msra.mxu0 %v334
  %1470 = vmatprep.subr.mxu0 0.0
  %1471 = vmatpush1.msra.mxu0 %v347
  %1472 = vmatprep.subr.mxu0 0.0
  %1473 = vmatpush1.msra.mxu0 %v360
  %1474 = vmatprep.subr.mxu0 0.0
  %1475 = vmatpush1.msra.mxu0 %v373
  %1476 = vmatprep.subr.mxu0 0.0
  %1477 = vmatpush1.msra.mxu0 %v386
  %1478 = vmatprep.subr.mxu0 0.0
  %1479 = vmatpush1.msra.mxu0 %v399
  %1480 = vmatprep.subr.mxu0 0.0
  %1481 = vmatpush1.msra.mxu0 %v412
  %1482 = vmatprep.subr.mxu0 0.0
  %1483 = vmatpush1.msra.mxu0 %v425
  %1484 = vmatprep.subr.mxu0 0.0
  %1485 = vmatpush1.msra.mxu0 %v438
  %1486 = vmatprep.mubr.f32.mxu0 %v18
  %1487 = vmatmul.mubr.f32.gmra.mrb[0].mxu0 %v17
  %v1488 = vpop.f32.mrb[0].mxu0
  %v1489 = vadd.f32 0.0, %v1488
  %v1490 = vpop.f32.mrb[0].mxu0
  %1491 = vmatprep.mubr.f32.mxu0 %v21
  %1492 = vmatmul.mubr.f32.gmra.mrb[0].mxu0 %v20
  %v1493 = vpop.f32.mrb[0].mxu0
  %v1494 = vadd.f32 0.0, %v1493
  %v1495 = vpop.f32.mrb[0].mxu0
  %1496 = vdwg.mxu0
  %1497 = vmatprep.subr.mxu0 0.0
  %1498 = vmatpush1.msra.mxu0 %v451
  %1499 = vmatprep.subr.mxu0 0.0
  %1500 = vmatpush1.msra.mxu0 %v464
  %1501 = vmatprep.subr.mxu0 0.0
  %1502 = vmatpush1.msra.mxu0 %v477
  %1503 = vmatprep.subr.mxu0 0.0
  %1504 = vmatpush1.msra.mxu0 %v490
  %1505 = vmatprep.subr.mxu0 0.0
  %1506 = vmatpush1.msra.mxu0 0.0
  %1507 = vmatprep.subr.mxu0 0.0
  %1508 = vmatpush1.msra.mxu0 0.0
  %1509 = vmatprep.subr.mxu0 0.0
  %1510 = vmatpush1.msra.mxu0 0.0
  %1511 = vmatprep.subr.mxu0 0.0
  %1512 = vmatpush1.msra.mxu0 0.0
  %1513 = vmatprep.subr.mxu0 0.0
  %1514 = vmatpush1.msra.mxu0 0.0
  %1515 = vmatprep.subr.mxu0 0.0
  %1516 = vmatpush1.msra.mxu0 0.0
  %1517 = vmatprep.subr.mxu0 0.0
  %1518 = vmatpush1.msra.mxu0 0.0
  %1519 = vmatprep.subr.mxu0 0.0
  %1520 = vmatpush1.msra.mxu0 0.0
  %1521 = vmatprep.subr.mxu0 0.0
  %1522 = vmatpush1.msra.mxu0 0.0
  %1523 = vmatprep.subr.mxu0 0.0
  %1524 = vmatpush1.msra.mxu0 0.0
  %1525 = vmatprep.subr.mxu0 0.0
  %1526 = vmatpush1.msra.mxu0 0.0
  %1527 = vmatprep.subr.mxu0 0.0
  %1528 = vmatpush1.msra.mxu0 0.0
  %1529 = vmatprep.subr.mxu0 0.0
  %1530 = vmatpush1.msra.mxu0 0.0
  %1531 = vmatprep.subr.mxu0 0.0
  %1532 = vmatpush1.msra.mxu0 0.0
  %1533 = vmatprep.subr.mxu0 0.0
  %1534 = vmatpush1.msra.mxu0 0.0
  %1535 = vmatprep.subr.mxu0 0.0
  %1536 = vmatpush1.msra.mxu0 0.0
  %1537 = vmatprep.subr.mxu0 0.0
  %1538 = vmatpush1.msra.mxu0 0.0
  %1539 = vmatprep.subr.mxu0 0.0
  %1540 = vmatpush1.msra.mxu0 0.0
  %1541 = vmatprep.subr.mxu0 0.0
  %1542 = vmatpush1.msra.mxu0 0.0
  %1543 = vmatprep.subr.mxu0 0.0
  %1544 = vmatpush1.msra.mxu0 0.0
  %1545 = vmatprep.subr.mxu0 0.0
  %1546 = vmatpush1.msra.mxu0 0.0
  %1547 = vmatprep.subr.mxu0 0.0
  %1548 = vmatpush1.msra.mxu0 0.0
  %1549 = vmatprep.subr.mxu0 0.0
  %1550 = vmatpush1.msra.mxu0 0.0
  %1551 = vmatprep.subr.mxu0 0.0
  %1552 = vmatpush1.msra.mxu0 0.0
  %1553 = vmatprep.subr.mxu0 0.0
  %1554 = vmatpush1.msra.mxu0 0.0
  %1555 = vmatprep.subr.mxu0 0.0
  %1556 = vmatpush1.msra.mxu0 0.0
  %1557 = vmatprep.subr.mxu0 0.0
  %1558 = vmatpush1.msra.mxu0 0.0
  %1559 = vmatprep.subr.mxu0 0.0
  %1560 = vmatpush1.msra.mxu0 0.0
  %1561 = vmatprep.mubr.f32.mxu0 0.0
  %1562 = vmatmul.mubr.f32.gmra.mrb[0].mxu0 %v493
  %v1563 = vpop.f32.mrb[0].mxu0
  %v1564 = vadd.f32 %v1489, %v1563
  %v1565 = vpop.f32.mrb[0].mxu0
  %1566 = vmatprep.mubr.f32.mxu0 0.0
  %1567 = vmatmul.mubr.f32.gmra.mrb[0].mxu0 %v496
  %v1568 = vpop.f32.mrb[0].mxu0
  %v1569 = vadd.f32 %v1494, %v1568
  %v1570 = vpop.f32.mrb[0].mxu0
  %1571 = vdwg.mxu0
  %v1572 = vadd.f32 %v642, %v644
  %v1573 = vadd.f32 %v1572, %v796
  %v1574 = vadd.f32 %v1573, %v798
  %v1575 = vadd.f32 %v1574, %v950
  %v1576 = vadd.f32 %v1575, %v952
  %v1577 = vadd.f32 %v1576, %v1104
  %v1578 = vadd.f32 %v1577, %v1106
  %v1579 = vadd.f32 %v1578, %v1258
  %v1580 = vadd.f32 %v1579, %v1260
  %v1581 = vadd.f32 %v1580, %v1412
  %v1582 = vadd.f32 %v1581, %v1414
  %v1583 = vsel %vm491, %v1564, 0.0
  %v1584 = vadd.f32 %v1582, %v1583
  %1585 = vadd.xlane.f32.xlu0 %v1584
  %v1586 = vpop.xlane.xlu0 %1585
  %v1587 = vadd.f32 %v648, %v650
  %v1588 = vadd.f32 %v1587, %v802
  %v1589 = vadd.f32 %v1588, %v804
  %v1590 = vadd.f32 %v1589, %v956
  %v1591 = vadd.f32 %v1590, %v958
  %v1592 = vadd.f32 %v1591, %v1110
  %v1593 = vadd.f32 %v1592, %v1112
  %v1594 = vadd.f32 %v1593, %v1264
  %v1595 = vadd.f32 %v1594, %v1266
  %v1596 = vadd.f32 %v1595, %v1418
  %v1597 = vadd.f32 %v1596, %v1420
  %v1598 = vsel %vm491, %v1569, 0.0
  %v1599 = vadd.f32 %v1597, %v1598
  %1600 = vadd.xlane.f32.xlu0 %v1599
  %v1601 = vpop.xlane.xlu0 %1600
  %v1602 = vrcp.pop 1568.0
  %v1603 = vmul.f32 %v1586, %v1602
  %v1604 = vmul.f32 %v1601, %v1602
  %v1605 = vsub.f32 %v642, %v1603
  %v1606 = vsub.f32 %v644, %v1603
  %v1607 = vsub.f32 %v796, %v1603
  %v1608 = vsub.f32 %v798, %v1603
  %v1609 = vsub.f32 %v950, %v1603
  %v1610 = vsub.f32 %v952, %v1603
  %v1611 = vsub.f32 %v1104, %v1603
  %v1612 = vsub.f32 %v1106, %v1603
  %v1613 = vsub.f32 %v1258, %v1603
  %v1614 = vsub.f32 %v1260, %v1603
  %v1615 = vsub.f32 %v1412, %v1603
  %v1616 = vsub.f32 %v1414, %v1603
  %v1617 = vsub.f32 %v1564, %v1603
  %v1618 = vsub.f32 %v648, %v1604
  %v1619 = vsub.f32 %v650, %v1604
  %v1620 = vsub.f32 %v802, %v1604
  %v1621 = vsub.f32 %v804, %v1604
  %v1622 = vsub.f32 %v956, %v1604
  %v1623 = vsub.f32 %v958, %v1604
  %v1624 = vsub.f32 %v1110, %v1604
  %v1625 = vsub.f32 %v1112, %v1604
  %v1626 = vsub.f32 %v1264, %v1604
  %v1627 = vsub.f32 %v1266, %v1604
  %v1628 = vsub.f32 %v1418, %v1604
  %v1629 = vsub.f32 %v1420, %v1604
  %v1630 = vsub.f32 %v1569, %v1604
  %v1631 = vmul.f32 %v1605, %v1605
  %v1632 = vmul.f32 %v1606, %v1606
  %v1633 = vmul.f32 %v1607, %v1607
  %v1634 = vmul.f32 %v1608, %v1608
  %v1635 = vmul.f32 %v1609, %v1609
  %v1636 = vmul.f32 %v1610, %v1610
  %v1637 = vmul.f32 %v1611, %v1611
  %v1638 = vmul.f32 %v1612, %v1612
  %v1639 = vmul.f32 %v1613, %v1613
  %v1640 = vmul.f32 %v1614, %v1614
  %v1641 = vmul.f32 %v1615, %v1615
  %v1642 = vmul.f32 %v1616, %v1616
  %v1643 = vmul.f32 %v1617, %v1617
  %v1644 = vmul.f32 %v1618, %v1618
  %v1645 = vmul.f32 %v1619, %v1619
  %v1646 = vmul.f32 %v1620, %v1620
  %v1647 = vmul.f32 %v1621, %v1621
  %v1648 = vmul.f32 %v1622, %v1622
  %v1649 = vmul.f32 %v1623, %v1623
  %v1650 = vmul.f32 %v1624, %v1624
  %v1651 = vmul.f32 %v1625, %v1625
  %v1652 = vmul.f32 %v1626, %v1626
  %v1653 = vmul.f32 %v1627, %v1627
  %v1654 = vmul.f32 %v1628, %v1628
  %v1655 = vmul.f32 %v1629, %v1629
  %v1656 = vmul.f32 %v1630, %v1630
  %v1657 = vadd.f32 %v1631, %v1632
  %v1658 = vadd.f32 %v1657, %v1633
  %v1659 = vadd.f32 %v1658, %v1634
  %v1660 = vadd.f32 %v1659, %v1635
  %v1661 = vadd.f32 %v1660, %v1636
  %v1662 = vadd.f32 %v1661, %v1637
  %v1663 = vadd.f32 %v1662, %v1638
  %v1664 = vadd.f32 %v1663, %v1639
  %v1665 = vadd.f32 %v1664, %v1640
  %v1666 = vadd.f32 %v1665, %v1641
  %v1667 = vadd.f32 %v1666, %v1642
  %v1668 = vsel %vm491, %v1643, 0.0
  %v1669 = vadd.f32 %v1667, %v1668
  %1670 = vadd.xlane.f32.xlu0 %v1669
  %v1671 = vpop.xlane.xlu0 %1670
  %v1672 = vadd.f32 %v1644, %v1645
  %v1673 = vadd.f32 %v1672, %v1646
  %v1674 = vadd.f32 %v1673, %v1647
  %v1675 = vadd.f32 %v1674, %v1648
  %v1676 = vadd.f32 %v1675, %v1649
  %v1677 = vadd.f32 %v1676, %v1650
  %v1678 = vadd.f32 %v1677, %v1651
  %v1679 = vadd.f32 %v1678, %v1652
  %v1680 = vadd.f32 %v1679, %v1653
  %v1681 = vadd.f32 %v1680, %v1654
  %v1682 = vadd.f32 %v1681, %v1655
  %v1683 = vsel %vm491, %v1656, 0.0
  %v1684 = vadd.f32 %v1682, %v1683
  %1685 = vadd.xlane.f32.xlu0 %v1684
  %v1686 = vpop.xlane.xlu0 %1685
  %v1687 = vmul.f32 %v1671, %v1602
  %v1688 = vmul.f32 %v1686, %v1602
  %v1689 = vld [vmem:[%s2] sm:$0xff]
  %v1690 = vld [vmem:[%s2 + $0x8] sm:$0xff]
  %v1691 = vadd.f32 %v1687, 1e-05
  %v1692 = vadd.f32 %v1688, 1e-05
  %v1693 = vrsqrt.pop %v1691
  %v1694 = vrsqrt.pop %v1692
  %v1695 = vmul.f32 %v1689, %v1693
  %v1696 = vmul.f32 %v1690, %v1694
  %v1697 = vld [vmem:[%s3] sm:$0xff]
  %v1698 = vld [vmem:[%s3 + $0x8] sm:$0xff]
  %v1699 = vmul.f32 %v1603, %v1695
  %v1700 = vmul.f32 %v1604, %v1696
  %v1701 = vsub.f32 %v1697, %v1699
  %v1702 = vsub.f32 %v1698, %v1700
  %1704 = vset.pattern.permute.xlu0 0
  %1705 = vperm.xlu0 %1704, %v1695
  %v1706 = vpop.permute.xlu0 %1705
  %1709 = vset.pattern.permute.xlu0 0
  %1710 = vperm.xlu0 %1709, %v1696
  %v1711 = vpop.permute.xlu0 %1710
  %v1713 = vmul.f32 %v642, %v1706
  %v1714 = vmul.f32 %v644, %v1706
  %v1715 = vmul.f32 %v796, %v1706
  %v1716 = vmul.f32 %v798, %v1706
  %v1717 = vmul.f32 %v950, %v1706
  %v1718 = vmul.f32 %v952, %v1706
  %v1719 = vmul.f32 %v1104, %v1706
  %v1720 = vmul.f32 %v1106, %v1706
  %v1721 = vmul.f32 %v1258, %v1706
  %v1722 = vmul.f32 %v1260, %v1706
  %v1723 = vmul.f32 %v1412, %v1706
  %v1724 = vmul.f32 %v1414, %v1706
  %v1725 = vmul.f32 %v1564, %v1706
  %v1726 = vmul.f32 %v648, %v1711
  %v1727 = vmul.f32 %v650, %v1711
  %v1728 = vmul.f32 %v802, %v1711
  %v1729 = vmul.f32 %v804, %v1711
  %v1730 = vmul.f32 %v956, %v1711
  %v1731 = vmul.f32 %v958, %v1711
  %v1732 = vmul.f32 %v1110, %v1711
  %v1733 = vmul.f32 %v1112, %v1711
  %v1734 = vmul.f32 %v1264, %v1711
  %v1735 = vmul.f32 %v1266, %v1711
  %v1736 = vmul.f32 %v1418, %v1711
  %v1737 = vmul.f32 %v1420, %v1711
  %v1738 = vmul.f32 %v1569, %v1711
  %1740 = vset.pattern.permute.xlu0 0
  %1741 = vperm.xlu0 %1740, %v1701
  %v1742 = vpop.permute.xlu0 %1741
  %1745 = vset.pattern.permute.xlu0 0
  %1746 = vperm.xlu0 %1745, %v1702
  %v1747 = vpop.permute.xlu0 %1746
  %v1749 = vadd.f32 %v1713, %v1742
  %v1750 = vadd.f32 %v1714, %v1742
  %v1751 = vadd.f32 %v1715, %v1742
  %v1752 = vadd.f32 %v1716, %v1742
  %v1753 = vadd.f32 %v1717, %v1742
  %v1754 = vadd.f32 %v1718, %v1742
  %v1755 = vadd.f32 %v1719, %v1742
  %v1756 = vadd.f32 %v1720, %v1742
  %v1757 = vadd.f32 %v1721, %v1742
  %v1758 = vadd.f32 %v1722, %v1742
  %v1759 = vadd.f32 %v1723, %v1742
  %v1760 = vadd.f32 %v1724, %v1742
  %v1761 = vadd.f32 %v1725, %v1742
  %v1762 = vadd.f32 %v1726, %v1747
  %v1763 = vadd.f32 %v1727, %v1747
  %v1764 = vadd.f32 %v1728, %v1747
  %v1765 = vadd.f32 %v1729, %v1747
  %v1766 = vadd.f32 %v1730, %v1747
  %v1767 = vadd.f32 %v1731, %v1747
  %v1768 = vadd.f32 %v1732, %v1747
  %v1769 = vadd.f32 %v1733, %v1747
  %v1770 = vadd.f32 %v1734, %v1747
  %v1771 = vadd.f32 %v1735, %v1747
  %v1772 = vadd.f32 %v1736, %v1747
  %v1773 = vadd.f32 %v1737, %v1747
  %v1774 = vadd.f32 %v1738, %v1747
  %v1775 = vmax.f32 %v1749, 0.0
  %v1776 = vmax.f32 %v1750, 0.0
  %v1777 = vmax.f32 %v1751, 0.0
  %v1778 = vmax.f32 %v1752, 0.0
  %v1779 = vmax.f32 %v1753, 0.0
  %v1780 = vmax.f32 %v1754, 0.0
  %v1781 = vmax.f32 %v1755, 0.0
  %v1782 = vmax.f32 %v1756, 0.0
  %v1783 = vmax.f32 %v1757, 0.0
  %v1784 = vmax.f32 %v1758, 0.0
  %v1785 = vmax.f32 %v1759, 0.0
  %v1786 = vmax.f32 %v1760, 0.0
  %v1787 = vmax.f32 %v1761, 0.0
  %v1788 = vmax.f32 %v1762, 0.0
  %v1789 = vmax.f32 %v1763, 0.0
  %v1790 = vmax.f32 %v1764, 0.0
  %v1791 = vmax.f32 %v1765, 0.0
  %v1792 = vmax.f32 %v1766, 0.0
  %v1793 = vmax.f32 %v1767, 0.0
  %v1794 = vmax.f32 %v1768, 0.0
  %v1795 = vmax.f32 %v1769, 0.0
  %v1796 = vmax.f32 %v1770, 0.0
  %v1797 = vmax.f32 %v1771, 0.0
  %v1798 = vmax.f32 %v1772, 0.0
  %v1799 = vmax.f32 %v1773, 0.0
  %v1800 = vmax.f32 %v1774, 0.0
  %1801 = vst [vmem:[%s4] sm:$0xff] %v1775
  %1802 = vst [vmem:[%s4 + $0x8] sm:$0xff] %v1776
  %1803 = vst [vmem:[%s4 + $0x10] sm:$0xff] %v1777
  %1804 = vst [vmem:[%s4 + $0x18] sm:$0xff] %v1778
  %1805 = vst [vmem:[%s4 + $0x20] sm:$0xff] %v1779
  %1806 = vst [vmem:[%s4 + $0x28] sm:$0xff] %v1780
  %1807 = vst [vmem:[%s4 + $0x30] sm:$0xff] %v1781
  %1808 = vst [vmem:[%s4 + $0x38] sm:$0xff] %v1782
  %1809 = vst [vmem:[%s4 + $0x40] sm:$0xff] %v1783
  %1810 = vst [vmem:[%s4 + $0x48] sm:$0xff] %v1784
  %1811 = vst [vmem:[%s4 + $0x50] sm:$0xff] %v1785
  %1812 = vst [vmem:[%s4 + $0x58] sm:$0xff] %v1786
  %1813 = vst.msk [vmem:[%s4 + $0x60] sm:$0xff] %vm491, %v1787
  %1814 = vst [vmem:[%s4 + $0x68] sm:$0xff] %v1788
  %1815 = vst [vmem:[%s4 + $0x70] sm:$0xff] %v1789
  %1816 = vst [vmem:[%s4 + $0x78] sm:$0xff] %v1790
  %1817 = vst [vmem:[%s4 + $0x80] sm:$0xff] %v1791
  %1818 = vst [vmem:[%s4 + $0x88] sm:$0xff] %v1792
  %1819 = vst [vmem:[%s4 + $0x90] sm:$0xff] %v1793
  %1820 = vst [vmem:[%s4 + $0x98] sm:$0xff] %v1794
  %1821 = vst [vmem:[%s4 + $0xa0] sm:$0xff] %v1795
  %1822 = vst [vmem:[%s4 + $0xa8] sm:$0xff] %v1796
  %1823 = vst [vmem:[%s4 + $0xb0] sm:$0xff] %v1797
  %1824 = vst [vmem:[%s4 + $0xb8] sm:$0xff] %v1798
  %1825 = vst [vmem:[%s4 + $0xc0] sm:$0xff] %v1799
  %1826 = vst.msk [vmem:[%s4 + $0xc8] sm:$0xff] %vm491, %v1800
  // Predicated region
  $region18: #{vae_cnn_forward.18} parent=0 // pred_check
    _
  $region19: #{vae_cnn_forward.18} parent=0 // pred_check_branch
    %1828 = sbr.rel (0) target = $region21
  $region20: #{vae_cnn_forward.18} parent=0 // pred_region
    _
  $region21: #{vae_cnn_forward.18} parent=0 // pred_fallthru
    _
  // Predicated region
  $region22: #{vae_cnn_forward.18} parent=0 // pred_check
    _
  $region23: #{vae_cnn_forward.18} parent=0 // pred_check_branch
    %1830 = sbr.rel (0) target = $region25
  $region24: #{vae_cnn_forward.18} parent=0 // pred_region
    _
  $region25: #{vae_cnn_forward.18} parent=0 // pred_fallthru
    _

// kernel: vae_cnn_forward.19
$region0: #{vae_cnn_forward.19}
  #allocation0 [shape = 'u32[]', space=smem, size = 0x4, offset = 0x4, fixed_abs, tag = 'smem constant byte address 0x4 - core index']
  #allocation1 [shape = 'u32[144,128]{1,0:T(1,128)}', space=vmem, size = 0x12000, scoped, tag = 'internal scratch']
  %s0 = inlined_call_operand.vmem [shape: f32[3,144], index: 0, kind: input, shape index: {}]
  %s1 = inlined_call_operand.vmem [shape: f32[144,1568], index: 1, kind: input, shape index: {}]
  %s2 = inlined_call_operand.vmem [shape: f32[3,1568], index: 2, kind: output, shape index: {}]
  %s3 = sld [smem:[#allocation0]]
  $region18: #{vae_cnn_forward.19} parent=0
    _
  %s5 = ssub.s32 1, %s3
  %s6 = scalar_select 0, %s5, %s3
  // Predicated region
  $region2: #{vae_cnn_forward.19} parent=0 // pred_check
    _
  $region3: #{vae_cnn_forward.19} parent=0 // pred_check_branch
    %8 = sbr.rel (0) target = $region5
  $region4: #{vae_cnn_forward.19} parent=0 // pred_region
    _
  $region5: #{vae_cnn_forward.19} parent=0 // pred_fallthru
    _
  // Predicated region
  $region6: #{vae_cnn_forward.19} parent=0 // pred_check
    _
  $region7: #{vae_cnn_forward.19} parent=0 // pred_check_branch
    %10 = sbr.rel (0) target = $region9
  $region8: #{vae_cnn_forward.19} parent=0 // pred_region
    _
  $region9: #{vae_cnn_forward.19} parent=0 // pred_fallthru
    _
  %v11 = vld [vmem:[%s0] sm:$0x77]
  %v12 = vld [vmem:[%s1] sm:$0xff]
  %v13 = vld [vmem:[%s1 + $0x8] sm:$0xff]
  %v14 = vld [vmem:[%s1 + $0x10] sm:$0xff]
  %v15 = vld [vmem:[%s1 + $0x18] sm:$0xff]
  %v16 = vld [vmem:[%s1 + $0x20] sm:$0xff]
  %v17 = vld [vmem:[%s1 + $0x28] sm:$0xff]
  %v18 = vld [vmem:[%s1 + $0x30] sm:$0xff]
  %v19 = vld [vmem:[%s1 + $0x38] sm:$0xff]
  %v20 = vld [vmem:[%s1 + $0x40] sm:$0xff]
  %v21 = vld [vmem:[%s1 + $0x48] sm:$0xff]
  %v22 = vld [vmem:[%s1 + $0x50] sm:$0xff]
  %v23 = vld [vmem:[%s1 + $0x58] sm:$0xff]
  %v24 = vld [vmem:[%s1 + $0x60] sm:$0xff]
  %v25 = vld [vmem:[%s1 + $0x68] sm:$0xff]
  %v26 = vld [vmem:[%s1 + $0x70] sm:$0xff]
  %v27 = vld [vmem:[%s1 + $0x78] sm:$0xff]
  %v28 = vld [vmem:[%s1 + $0x80] sm:$0xff]
  %v29 = vld [vmem:[%s1 + $0x88] sm:$0xff]
  %v30 = vld [vmem:[%s1 + $0x90] sm:$0xff]
  %v31 = vld [vmem:[%s1 + $0x98] sm:$0xff]
  %v32 = vld [vmem:[%s1 + $0xa0] sm:$0xff]
  %v33 = vld [vmem:[%s1 + $0xa8] sm:$0xff]
  %v34 = vld [vmem:[%s1 + $0xb0] sm:$0xff]
  %v35 = vld [vmem:[%s1 + $0xb8] sm:$0xff]
  %v36 = vld [vmem:[%s1 + $0xc0] sm:$0xff]
  %v37 = vld [vmem:[%s1 + $0xc8] sm:$0xff]
  %v38 = vld [vmem:[%s1 + $0xd0] sm:$0xff]
  %v39 = vld [vmem:[%s1 + $0xd8] sm:$0xff]
  %v40 = vld [vmem:[%s1 + $0xe0] sm:$0xff]
  %v41 = vld [vmem:[%s1 + $0xe8] sm:$0xff]
  %v42 = vld [vmem:[%s1 + $0xf0] sm:$0xff]
  %v43 = vld [vmem:[%s1 + $0xf8] sm:$0xff]
  %v44 = vld [vmem:[%s1 + $0x100] sm:$0xff]
  %v45 = vld [vmem:[%s1 + $0x108] sm:$0xff]
  %v46 = vld [vmem:[%s1 + $0x110] sm:$0xff]
  %v47 = vld [vmem:[%s1 + $0x118] sm:$0xff]
  %v48 = vld [vmem:[%s1 + $0x120] sm:$0xff]
  %v49 = vld [vmem:[%s1 + $0x128] sm:$0xff]
  %v50 = vld [vmem:[%s1 + $0x130] sm:$0xff]
  %v51 = vld [vmem:[%s1 + $0x138] sm:$0xff]
  %v52 = vld [vmem:[%s1 + $0x140] sm:$0xff]
  %v53 = vld [vmem:[%s1 + $0x148] sm:$0xff]
  %v54 = vld [vmem:[%s1 + $0x150] sm:$0xff]
  %v55 = vld [vmem:[%s1 + $0x158] sm:$0xff]
  %v56 = vld [vmem:[%s1 + $0x160] sm:$0xff]
  %v57 = vld [vmem:[%s1 + $0x168] sm:$0xff]
  %v58 = vld [vmem:[%s1 + $0x170] sm:$0xff]
  %v59 = vld [vmem:[%s1 + $0x178] sm:$0xff]
  %v60 = vld [vmem:[%s1 + $0x180] sm:$0xff]
  %v61 = vld [vmem:[%s1 + $0x188] sm:$0xff]
  %v62 = vld [vmem:[%s1 + $0x190] sm:$0xff]
  %v63 = vld [vmem:[%s1 + $0x198] sm:$0xff]
  %v64 = vld [vmem:[%s1 + $0x1a0] sm:$0xff]
  %v65 = vld [vmem:[%s1 + $0x1a8] sm:$0xff]
  %v66 = vld [vmem:[%s1 + $0x1b0] sm:$0xff]
  %v67 = vld [vmem:[%s1 + $0x1b8] sm:$0xff]
  %v68 = vld [vmem:[%s1 + $0x1c0] sm:$0xff]
  %v69 = vld [vmem:[%s1 + $0x1c8] sm:$0xff]
  %v70 = vld [vmem:[%s1 + $0x1d0] sm:$0xff]
  %v71 = vld [vmem:[%s1 + $0x1d8] sm:$0xff]
  %v72 = vld [vmem:[%s1 + $0x1e0] sm:$0xff]
  %v73 = vld [vmem:[%s1 + $0x1e8] sm:$0xff]
  %v74 = vld [vmem:[%s1 + $0x1f0] sm:$0xff]
  %v75 = vld [vmem:[%s1 + $0x1f8] sm:$0xff]
  %v76 = vld [vmem:[%s1 + $0x200] sm:$0xff]
  %v77 = vld [vmem:[%s1 + $0x208] sm:$0xff]
  %v78 = vld [vmem:[%s1 + $0x210] sm:$0xff]
  %v79 = vld [vmem:[%s1 + $0x218] sm:$0xff]
  %v80 = vld [vmem:[%s1 + $0x220] sm:$0xff]
  %v81 = vld [vmem:[%s1 + $0x228] sm:$0xff]
  %v82 = vld [vmem:[%s1 + $0x230] sm:$0xff]
  %v83 = vld [vmem:[%s1 + $0x238] sm:$0xff]
  %v84 = vld [vmem:[%s1 + $0x240] sm:$0xff]
  %v85 = vld [vmem:[%s1 + $0x248] sm:$0xff]
  %v86 = vld [vmem:[%s1 + $0x250] sm:$0xff]
  %v87 = vld [vmem:[%s1 + $0x258] sm:$0xff]
  %v88 = vld [vmem:[%s1 + $0x260] sm:$0xff]
  %v89 = vld [vmem:[%s1 + $0x268] sm:$0xff]
  %v90 = vld [vmem:[%s1 + $0x270] sm:$0xff]
  %v91 = vld [vmem:[%s1 + $0x278] sm:$0xff]
  %v92 = vld [vmem:[%s1 + $0x280] sm:$0xff]
  %v93 = vld [vmem:[%s1 + $0x288] sm:$0xff]
  %v94 = vld [vmem:[%s1 + $0x290] sm:$0xff]
  %v95 = vld [vmem:[%s1 + $0x298] sm:$0xff]
  %v96 = vld [vmem:[%s1 + $0x2a0] sm:$0xff]
  %v97 = vld [vmem:[%s1 + $0x2a8] sm:$0xff]
  %v98 = vld [vmem:[%s1 + $0x2b0] sm:$0xff]
  %v99 = vld [vmem:[%s1 + $0x2b8] sm:$0xff]
  %v100 = vld [vmem:[%s1 + $0x2c0] sm:$0xff]
  %v101 = vld [vmem:[%s1 + $0x2c8] sm:$0xff]
  %v102 = vld [vmem:[%s1 + $0x2d0] sm:$0xff]
  %v103 = vld [vmem:[%s1 + $0x2d8] sm:$0xff]
  %v104 = vld [vmem:[%s1 + $0x2e0] sm:$0xff]
  %v105 = vld [vmem:[%s1 + $0x2e8] sm:$0xff]
  %v106 = vld [vmem:[%s1 + $0x2f0] sm:$0xff]
  %v107 = vld [vmem:[%s1 + $0x2f8] sm:$0xff]
  %v108 = vld [vmem:[%s1 + $0x300] sm:$0xff]
  %v109 = vld [vmem:[%s1 + $0x308] sm:$0xff]
  %v110 = vld [vmem:[%s1 + $0x310] sm:$0xff]
  %v111 = vld [vmem:[%s1 + $0x318] sm:$0xff]
  %v112 = vld [vmem:[%s1 + $0x320] sm:$0xff]
  %v113 = vld [vmem:[%s1 + $0x328] sm:$0xff]
  %v114 = vld [vmem:[%s1 + $0x330] sm:$0xff]
  %v115 = vld [vmem:[%s1 + $0x338] sm:$0xff]
  %v116 = vld [vmem:[%s1 + $0x340] sm:$0xff]
  %v117 = vld [vmem:[%s1 + $0x348] sm:$0xff]
  %v118 = vld [vmem:[%s1 + $0x350] sm:$0xff]
  %v119 = vld [vmem:[%s1 + $0x358] sm:$0xff]
  %v120 = vld [vmem:[%s1 + $0x360] sm:$0xff]
  %v121 = vld [vmem:[%s1 + $0x368] sm:$0xff]
  %v122 = vld [vmem:[%s1 + $0x370] sm:$0xff]
  %v123 = vld [vmem:[%s1 + $0x378] sm:$0xff]
  %v124 = vld [vmem:[%s1 + $0x380] sm:$0xff]
  %v125 = vld [vmem:[%s1 + $0x388] sm:$0xff]
  %v126 = vld [vmem:[%s1 + $0x390] sm:$0xff]
  %v127 = vld [vmem:[%s1 + $0x398] sm:$0xff]
  %v128 = vld [vmem:[%s1 + $0x3a0] sm:$0xff]
  %v129 = vld [vmem:[%s1 + $0x3a8] sm:$0xff]
  %v130 = vld [vmem:[%s1 + $0x3b0] sm:$0xff]
  %v131 = vld [vmem:[%s1 + $0x3b8] sm:$0xff]
  %v132 = vld [vmem:[%s1 + $0x3c0] sm:$0xff]
  %v133 = vld [vmem:[%s1 + $0x3c8] sm:$0xff]
  %v134 = vld [vmem:[%s1 + $0x3d0] sm:$0xff]
  %v135 = vld [vmem:[%s1 + $0x3d8] sm:$0xff]
  %v136 = vld [vmem:[%s1 + $0x3e0] sm:$0xff]
  %v137 = vld [vmem:[%s1 + $0x3e8] sm:$0xff]
  %v138 = vld [vmem:[%s1 + $0x3f0] sm:$0xff]
  %v139 = vld [vmem:[%s1 + $0x3f8] sm:$0xff]
  %v140 = vld [vmem:[%s1 + $0x400] sm:$0xff]
  %v141 = vld [vmem:[%s1 + $0x408] sm:$0xff]
  %v142 = vld [vmem:[%s1 + $0x410] sm:$0xff]
  %v143 = vld [vmem:[%s1 + $0x418] sm:$0xff]
  %v144 = vld [vmem:[%s1 + $0x420] sm:$0xff]
  %v145 = vld [vmem:[%s1 + $0x428] sm:$0xff]
  %v146 = vld [vmem:[%s1 + $0x430] sm:$0xff]
  %v147 = vld [vmem:[%s1 + $0x438] sm:$0xff]
  %v148 = vld [vmem:[%s1 + $0x440] sm:$0xff]
  %v149 = vld [vmem:[%s1 + $0x448] sm:$0xff]
  %v150 = vld [vmem:[%s1 + $0x450] sm:$0xff]
  %v151 = vld [vmem:[%s1 + $0x458] sm:$0xff]
  %v152 = vld [vmem:[%s1 + $0x460] sm:$0xff]
  %v153 = vld [vmem:[%s1 + $0x468] sm:$0xff]
  %v154 = vld [vmem:[%s1 + $0x470] sm:$0xff]
  %v155 = vld [vmem:[%s1 + $0x478] sm:$0xff]
  %v156 = vld [vmem:[%s1 + $0x480] sm:$0xff]
  %v157 = vld [vmem:[%s1 + $0x488] sm:$0xff]
  %v158 = vld [vmem:[%s1 + $0x490] sm:$0xff]
  %v159 = vld [vmem:[%s1 + $0x498] sm:$0xff]
  %v160 = vld [vmem:[%s1 + $0x4a0] sm:$0xff]
  %v161 = vld [vmem:[%s1 + $0x4a8] sm:$0xff]
  %v162 = vld [vmem:[%s1 + $0x4b0] sm:$0xff]
  %v163 = vld [vmem:[%s1 + $0x4b8] sm:$0xff]
  %v164 = vld [vmem:[%s1 + $0x4c0] sm:$0xff]
  %v165 = vld [vmem:[%s1 + $0x4c8] sm:$0xff]
  %v166 = vld [vmem:[%s1 + $0x4d0] sm:$0xff]
  %v167 = vld [vmem:[%s1 + $0x4d8] sm:$0xff]
  %v168 = vld [vmem:[%s1 + $0x4e0] sm:$0xff]
  %v169 = vld [vmem:[%s1 + $0x4e8] sm:$0xff]
  %v170 = vld [vmem:[%s1 + $0x4f0] sm:$0xff]
  %v171 = vld [vmem:[%s1 + $0x4f8] sm:$0xff]
  %v172 = vld [vmem:[%s1 + $0x500] sm:$0xff]
  %v173 = vld [vmem:[%s1 + $0x508] sm:$0xff]
  %v174 = vld [vmem:[%s1 + $0x510] sm:$0xff]
  %v175 = vld [vmem:[%s1 + $0x518] sm:$0xff]
  %v176 = vld [vmem:[%s1 + $0x520] sm:$0xff]
  %v177 = vld [vmem:[%s1 + $0x528] sm:$0xff]
  %v178 = vld [vmem:[%s1 + $0x530] sm:$0xff]
  %v179 = vld [vmem:[%s1 + $0x538] sm:$0xff]
  %v180 = vld [vmem:[%s1 + $0x540] sm:$0xff]
  %v181 = vld [vmem:[%s1 + $0x548] sm:$0xff]
  %v182 = vld [vmem:[%s1 + $0x550] sm:$0xff]
  %v183 = vld [vmem:[%s1 + $0x558] sm:$0xff]
  %v184 = vld [vmem:[%s1 + $0x560] sm:$0xff]
  %v185 = vld [vmem:[%s1 + $0x568] sm:$0xff]
  %v186 = vld [vmem:[%s1 + $0x570] sm:$0xff]
  %v187 = vld [vmem:[%s1 + $0x578] sm:$0xff]
  %v188 = vld [vmem:[%s1 + $0x580] sm:$0xff]
  %v189 = vld [vmem:[%s1 + $0x588] sm:$0xff]
  %v190 = vld [vmem:[%s1 + $0x590] sm:$0xff]
  %v191 = vld [vmem:[%s1 + $0x598] sm:$0xff]
  %v192 = vld [vmem:[%s1 + $0x5a0] sm:$0xff]
  %v193 = vld [vmem:[%s1 + $0x5a8] sm:$0xff]
  %v194 = vld [vmem:[%s1 + $0x5b0] sm:$0xff]
  %v195 = vld [vmem:[%s1 + $0x5b8] sm:$0xff]
  %v196 = vld [vmem:[%s1 + $0x5c0] sm:$0xff]
  %v197 = vld [vmem:[%s1 + $0x5c8] sm:$0xff]
  %v198 = vld [vmem:[%s1 + $0x5d0] sm:$0xff]
  %v199 = vld [vmem:[%s1 + $0x5d8] sm:$0xff]
  %v200 = vld [vmem:[%s1 + $0x5e0] sm:$0xff]
  %v201 = vld [vmem:[%s1 + $0x5e8] sm:$0xff]
  %v202 = vld [vmem:[%s1 + $0x5f0] sm:$0xff]
  %v203 = vld [vmem:[%s1 + $0x5f8] sm:$0xff]
  %v204 = vld [vmem:[%s1 + $0x600] sm:$0xff]
  %v205 = vld [vmem:[%s1 + $0x608] sm:$0xff]
  %v206 = vld [vmem:[%s1 + $0x610] sm:$0xff]
  %v207 = vld [vmem:[%s1 + $0x618] sm:$0xff]
  %v208 = vld [vmem:[%s1 + $0x620] sm:$0xff]
  %v209 = vld [vmem:[%s1 + $0x628] sm:$0xff]
  %v210 = vld [vmem:[%s1 + $0x630] sm:$0xff]
  %v211 = vld [vmem:[%s1 + $0x638] sm:$0xff]
  %v212 = vld [vmem:[%s1 + $0x640] sm:$0xff]
  %v213 = vld [vmem:[%s1 + $0x648] sm:$0xff]
  %v214 = vld [vmem:[%s1 + $0x650] sm:$0xff]
  %v215 = vld [vmem:[%s1 + $0x658] sm:$0xff]
  %v216 = vld [vmem:[%s1 + $0x660] sm:$0xff]
  %v217 = vld [vmem:[%s1 + $0x668] sm:$0xff]
  %v218 = vld [vmem:[%s1 + $0x670] sm:$0xff]
  %v219 = vld [vmem:[%s1 + $0x678] sm:$0xff]
  %v220 = vld [vmem:[%s1 + $0x680] sm:$0xff]
  %v221 = vld [vmem:[%s1 + $0x688] sm:$0xff]
  %v222 = vld [vmem:[%s1 + $0x690] sm:$0xff]
  %v223 = vld [vmem:[%s1 + $0x698] sm:$0xff]
  %v224 = vld [vmem:[%s1 + $0x6a0] sm:$0xff]
  %v225 = vld [vmem:[%s1 + $0x6a8] sm:$0xff]
  %v226 = vld [vmem:[%s1 + $0x6b0] sm:$0xff]
  %v227 = vld [vmem:[%s1 + $0x6b8] sm:$0xff]
  %v228 = vld [vmem:[%s1 + $0x6c0] sm:$0xff]
  %v229 = vld [vmem:[%s1 + $0x6c8] sm:$0xff]
  %v230 = vld [vmem:[%s1 + $0x6d0] sm:$0xff]
  %v231 = vld [vmem:[%s1 + $0x6d8] sm:$0xff]
  %v232 = vld [vmem:[%s1 + $0x6e0] sm:$0xff]
  %v233 = vld [vmem:[%s1 + $0x6e8] sm:$0xff]
  %v234 = vld [vmem:[%s1 + $0x6f0] sm:$0xff]
  %v235 = vld [vmem:[%s1 + $0x6f8] sm:$0xff]
  %v236 = vld [vmem:[%s1 + $0x700] sm:$0xff]
  %v237 = vld [vmem:[%s1 + $0x708] sm:$0xff]
  %v238 = vld [vmem:[%s1 + $0x710] sm:$0xff]
  %v239 = vld [vmem:[%s1 + $0x718] sm:$0xff]
  %v240 = vld [vmem:[%s1 + $0x720] sm:$0xff]
  %v241 = vld [vmem:[%s1 + $0x728] sm:$0xff]
  %v242 = vld [vmem:[%s1 + $0x730] sm:$0xff]
  %v243 = vld [vmem:[%s1 + $0x738] sm:$0xff]
  %v244 = vld [vmem:[%s1 + $0x740] sm:$0xff]
  %v245 = vld [vmem:[%s1 + $0x748] sm:$0xff]
  %v247 = vcombine.high %v11, %v11
  %vm248 = vcmask 130048
  %v249 = vsel %vm248, %v247, 0
  %251 = vmatprep.subr.mxu0 %v13
  %252 = vmatpush1.msra.mxu0 %v12
  %253 = vmatprep.subr.mxu0 %v26
  %254 = vmatpush1.msra.mxu0 %v25
  %255 = vmatprep.subr.mxu0 %v39
  %256 = vmatpush1.msra.mxu0 %v38
  %257 = vmatprep.subr.mxu0 %v52
  %258 = vmatpush1.msra.mxu0 %v51
  %259 = vmatprep.subr.mxu0 %v65
  %260 = vmatpush1.msra.mxu0 %v64
  %261 = vmatprep.subr.mxu0 %v78
  %262 = vmatpush1.msra.mxu0 %v77
  %263 = vmatprep.subr.mxu0 %v91
  %264 = vmatpush1.msra.mxu0 %v90
  %265 = vmatprep.subr.mxu0 %v104
  %266 = vmatpush1.msra.mxu0 %v103
  %267 = vmatprep.subr.mxu0 %v117
  %268 = vmatpush1.msra.mxu0 %v116
  %269 = vmatprep.subr.mxu0 %v130
  %270 = vmatpush1.msra.mxu0 %v129
  %271 = vmatprep.subr.mxu0 %v143
  %272 = vmatpush1.msra.mxu0 %v142
  %273 = vmatprep.subr.mxu0 %v156
  %274 = vmatpush1.msra.mxu0 %v155
  %275 = vmatprep.subr.mxu0 %v169
  %276 = vmatpush1.msra.mxu0 %v168
  %277 = vmatprep.subr.mxu0 %v182
  %278 = vmatpush1.msra.mxu0 %v181
  %279 = vmatprep.subr.mxu0 %v195
  %280 = vmatpush1.msra.mxu0 %v194
  %281 = vmatprep.subr.mxu0 %v208
  %282 = vmatpush1.msra.mxu0 %v207
  %283 = vmatprep.subr.mxu0 %v221
  %284 = vmatpush1.msra.mxu0 %v220
  %285 = vmatprep.subr.mxu0 %v234
  %286 = vmatpush1.msra.mxu0 %v233
  %287 = vmatprep.subr.mxu0 0.0
  %288 = vmatpush1.msra.mxu0 0.0
  %289 = vmatprep.subr.mxu0 0.0
  %290 = vmatpush1.msra.mxu0 0.0
  %291 = vmatprep.subr.mxu0 0.0
  %292 = vmatpush1.msra.mxu0 0.0
  %293 = vmatprep.subr.mxu0 0.0
  %294 = vmatpush1.msra.mxu0 0.0
  %295 = vmatprep.subr.mxu0 0.0
  %296 = vmatpush1.msra.mxu0 0.0
  %297 = vmatprep.subr.mxu0 0.0
  %298 = vmatpush1.msra.mxu0 0.0
  %299 = vmatprep.subr.mxu0 0.0
  %300 = vmatpush1.msra.mxu0 0.0
  %301 = vmatprep.subr.mxu0 0.0
  %302 = vmatpush1.msra.mxu0 0.0
  %303 = vmatprep.subr.mxu0 0.0
  %304 = vmatpush1.msra.mxu0 0.0
  %305 = vmatprep.subr.mxu0 0.0
  %306 = vmatpush1.msra.mxu0 0.0
  %307 = vmatprep.subr.mxu0 0.0
  %308 = vmatpush1.msra.mxu0 0.0
  %309 = vmatprep.subr.mxu0 0.0
  %310 = vmatpush1.msra.mxu0 0.0
  %311 = vmatprep.subr.mxu0 0.0
  %312 = vmatpush1.msra.mxu0 0.0
  %313 = vmatprep.subr.mxu0 0.0
  %314 = vmatpush1.msra.mxu0 0.0
  %315 = vmatprep.mubr.f32.mxu0 %v249
  %316 = vmatmul.mubr.f32.gmra.mrb[0].mxu0 %v11
  %v317 = vpop.f32.mrb[0].mxu0
  %v318 = vadd.f32 0.0, %v317
  %v319 = vpop.f32.mrb[0].mxu0
  %v320 = vadd.f32 0.0, %v319
  %321 = vdwg.mxu0
  %322 = vmatprep.subr.mxu0 %v15
  %323 = vmatpush1.msra.mxu0 %v14
  %324 = vmatprep.subr.mxu0 %v28
  %325 = vmatpush1.msra.mxu0 %v27
  %326 = vmatprep.subr.mxu0 %v41
  %327 = vmatpush1.msra.mxu0 %v40
  %328 = vmatprep.subr.mxu0 %v54
  %329 = vmatpush1.msra.mxu0 %v53
  %330 = vmatprep.subr.mxu0 %v67
  %331 = vmatpush1.msra.mxu0 %v66
  %332 = vmatprep.subr.mxu0 %v80
  %333 = vmatpush1.msra.mxu0 %v79
  %334 = vmatprep.subr.mxu0 %v93
  %335 = vmatpush1.msra.mxu0 %v92
  %336 = vmatprep.subr.mxu0 %v106
  %337 = vmatpush1.msra.mxu0 %v105
  %338 = vmatprep.subr.mxu0 %v119
  %339 = vmatpush1.msra.mxu0 %v118
  %340 = vmatprep.subr.mxu0 %v132
  %341 = vmatpush1.msra.mxu0 %v131
  %342 = vmatprep.subr.mxu0 %v145
  %343 = vmatpush1.msra.mxu0 %v144
  %344 = vmatprep.subr.mxu0 %v158
  %345 = vmatpush1.msra.mxu0 %v157
  %346 = vmatprep.subr.mxu0 %v171
  %347 = vmatpush1.msra.mxu0 %v170
  %348 = vmatprep.subr.mxu0 %v184
  %349 = vmatpush1.msra.mxu0 %v183
  %350 = vmatprep.subr.mxu0 %v197
  %351 = vmatpush1.msra.mxu0 %v196
  %352 = vmatprep.subr.mxu0 %v210
  %353 = vmatpush1.msra.mxu0 %v209
  %354 = vmatprep.subr.mxu0 %v223
  %355 = vmatpush1.msra.mxu0 %v222
  %356 = vmatprep.subr.mxu0 %v236
  %357 = vmatpush1.msra.mxu0 %v235
  %358 = vmatprep.subr.mxu0 0.0
  %359 = vmatpush1.msra.mxu0 0.0
  %360 = vmatprep.subr.mxu0 0.0
  %361 = vmatpush1.msra.mxu0 0.0
  %362 = vmatprep.subr.mxu0 0.0
  %363 = vmatpush1.msra.mxu0 0.0
  %364 = vmatprep.subr.mxu0 0.0
  %365 = vmatpush1.msra.mxu0 0.0
  %366 = vmatprep.subr.mxu0 0.0
  %367 = vmatpush1.msra.mxu0 0.0
  %368 = vmatprep.subr.mxu0 0.0
  %369 = vmatpush1.msra.mxu0 0.0
  %370 = vmatprep.subr.mxu0 0.0
  %371 = vmatpush1.msra.mxu0 0.0
  %372 = vmatprep.subr.mxu0 0.0
  %373 = vmatpush1.msra.mxu0 0.0
  %374 = vmatprep.subr.mxu0 0.0
  %375 = vmatpush1.msra.mxu0 0.0
  %376 = vmatprep.subr.mxu0 0.0
  %377 = vmatpush1.msra.mxu0 0.0
  %378 = vmatprep.subr.mxu0 0.0
  %379 = vmatpush1.msra.mxu0 0.0
  %380 = vmatprep.subr.mxu0 0.0
  %381 = vmatpush1.msra.mxu0 0.0
  %382 = vmatprep.subr.mxu0 0.0
  %383 = vmatpush1.msra.mxu0 0.0
  %384 = vmatprep.subr.mxu0 0.0
  %385 = vmatpush1.msra.mxu0 0.0
  %386 = vmatprep.mubr.f32.mxu0 %v249
  %387 = vmatmul.mubr.f32.gmra.mrb[0].mxu0 %v11
  %v388 = vpop.f32.mrb[0].mxu0
  %v389 = vadd.f32 0.0, %v388
  %v390 = vpop.f32.mrb[0].mxu0
  %v391 = vadd.f32 0.0, %v390
  %392 = vdwg.mxu0
  %393 = vmatprep.subr.mxu0 %v17
  %394 = vmatpush1.msra.mxu0 %v16
  %395 = vmatprep.subr.mxu0 %v30
  %396 = vmatpush1.msra.mxu0 %v29
  %397 = vmatprep.subr.mxu0 %v43
  %398 = vmatpush1.msra.mxu0 %v42
  %399 = vmatprep.subr.mxu0 %v56
  %400 = vmatpush1.msra.mxu0 %v55
  %401 = vmatprep.subr.mxu0 %v69
  %402 = vmatpush1.msra.mxu0 %v68
  %403 = vmatprep.subr.mxu0 %v82
  %404 = vmatpush1.msra.mxu0 %v81
  %405 = vmatprep.subr.mxu0 %v95
  %406 = vmatpush1.msra.mxu0 %v94
  %407 = vmatprep.subr.mxu0 %v108
  %408 = vmatpush1.msra.mxu0 %v107
  %409 = vmatprep.subr.mxu0 %v121
  %410 = vmatpush1.msra.mxu0 %v120
  %411 = vmatprep.subr.mxu0 %v134
  %412 = vmatpush1.msra.mxu0 %v133
  %413 = vmatprep.subr.mxu0 %v147
  %414 = vmatpush1.msra.mxu0 %v146
  %415 = vmatprep.subr.mxu0 %v160
  %416 = vmatpush1.msra.mxu0 %v159
  %417 = vmatprep.subr.mxu0 %v173
  %418 = vmatpush1.msra.mxu0 %v172
  %419 = vmatprep.subr.mxu0 %v186
  %420 = vmatpush1.msra.mxu0 %v185
  %421 = vmatprep.subr.mxu0 %v199
  %422 = vmatpush1.msra.mxu0 %v198
  %423 = vmatprep.subr.mxu0 %v212
  %424 = vmatpush1.msra.mxu0 %v211
  %425 = vmatprep.subr.mxu0 %v225
  %426 = vmatpush1.msra.mxu0 %v224
  %427 = vmatprep.subr.mxu0 %v238
  %428 = vmatpush1.msra.mxu0 %v237
  %429 = vmatprep.subr.mxu0 0.0
  %430 = vmatpush1.msra.mxu0 0.0
  %431 = vmatprep.subr.mxu0 0.0
  %432 = vmatpush1.msra.mxu0 0.0
  %433 = vmatprep.subr.mxu0 0.0
  %434 = vmatpush1.msra.mxu0 0.0
  %435 = vmatprep.subr.mxu0 0.0
  %436 = vmatpush1.msra.mxu0 0.0
  %437 = vmatprep.subr.mxu0 0.0
  %438 = vmatpush1.msra.mxu0 0.0
  %439 = vmatprep.subr.mxu0 0.0
  %440 = vmatpush1.msra.mxu0 0.0
  %441 = vmatprep.subr.mxu0 0.0
  %442 = vmatpush1.msra.mxu0 0.0
  %443 = vmatprep.subr.mxu0 0.0
  %444 = vmatpush1.msra.mxu0 0.0
  %445 = vmatprep.subr.mxu0 0.0
  %446 = vmatpush1.msra.mxu0 0.0
  %447 = vmatprep.subr.mxu0 0.0
  %448 = vmatpush1.msra.mxu0 0.0
  %449 = vmatprep.subr.mxu0 0.0
  %450 = vmatpush1.msra.mxu0 0.0
  %451 = vmatprep.subr.mxu0 0.0
  %452 = vmatpush1.msra.mxu0 0.0
  %453 = vmatprep.subr.mxu0 0.0
  %454 = vmatpush1.msra.mxu0 0.0
  %455 = vmatprep.subr.mxu0 0.0
  %456 = vmatpush1.msra.mxu0 0.0
  %457 = vmatprep.mubr.f32.mxu0 %v249
  %458 = vmatmul.mubr.f32.gmra.mrb[0].mxu0 %v11
  %v459 = vpop.f32.mrb[0].mxu0
  %v460 = vadd.f32 0.0, %v459
  %v461 = vpop.f32.mrb[0].mxu0
  %v462 = vadd.f32 0.0, %v461
  %463 = vdwg.mxu0
  %464 = vmatprep.subr.mxu0 %v19
  %465 = vmatpush1.msra.mxu0 %v18
  %466 = vmatprep.subr.mxu0 %v32
  %467 = vmatpush1.msra.mxu0 %v31
  %468 = vmatprep.subr.mxu0 %v45
  %469 = vmatpush1.msra.mxu0 %v44
  %470 = vmatprep.subr.mxu0 %v58
  %471 = vmatpush1.msra.mxu0 %v57
  %472 = vmatprep.subr.mxu0 %v71
  %473 = vmatpush1.msra.mxu0 %v70
  %474 = vmatprep.subr.mxu0 %v84
  %475 = vmatpush1.msra.mxu0 %v83
  %476 = vmatprep.subr.mxu0 %v97
  %477 = vmatpush1.msra.mxu0 %v96
  %478 = vmatprep.subr.mxu0 %v110
  %479 = vmatpush1.msra.mxu0 %v109
  %480 = vmatprep.subr.mxu0 %v123
  %481 = vmatpush1.msra.mxu0 %v122
  %482 = vmatprep.subr.mxu0 %v136
  %483 = vmatpush1.msra.mxu0 %v135
  %484 = vmatprep.subr.mxu0 %v149
  %485 = vmatpush1.msra.mxu0 %v148
  %486 = vmatprep.subr.mxu0 %v162
  %487 = vmatpush1.msra.mxu0 %v161
  %488 = vmatprep.subr.mxu0 %v175
  %489 = vmatpush1.msra.mxu0 %v174
  %490 = vmatprep.subr.mxu0 %v188
  %491 = vmatpush1.msra.mxu0 %v187
  %492 = vmatprep.subr.mxu0 %v201
  %493 = vmatpush1.msra.mxu0 %v200
  %494 = vmatprep.subr.mxu0 %v214
  %495 = vmatpush1.msra.mxu0 %v213
  %496 = vmatprep.subr.mxu0 %v227
  %497 = vmatpush1.msra.mxu0 %v226
  %498 = vmatprep.subr.mxu0 %v240
  %499 = vmatpush1.msra.mxu0 %v239
  %500 = vmatprep.subr.mxu0 0.0
  %501 = vmatpush1.msra.mxu0 0.0
  %502 = vmatprep.subr.mxu0 0.0
  %503 = vmatpush1.msra.mxu0 0.0
  %504 = vmatprep.subr.mxu0 0.0
  %505 = vmatpush1.msra.mxu0 0.0
  %506 = vmatprep.subr.mxu0 0.0
  %507 = vmatpush1.msra.mxu0 0.0
  %508 = vmatprep.subr.mxu0 0.0
  %509 = vmatpush1.msra.mxu0 0.0
  %510 = vmatprep.subr.mxu0 0.0
  %511 = vmatpush1.msra.mxu0 0.0
  %512 = vmatprep.subr.mxu0 0.0
  %513 = vmatpush1.msra.mxu0 0.0
  %514 = vmatprep.subr.mxu0 0.0
  %515 = vmatpush1.msra.mxu0 0.0
  %516 = vmatprep.subr.mxu0 0.0
  %517 = vmatpush1.msra.mxu0 0.0
  %518 = vmatprep.subr.mxu0 0.0
  %519 = vmatpush1.msra.mxu0 0.0
  %520 = vmatprep.subr.mxu0 0.0
  %521 = vmatpush1.msra.mxu0 0.0
  %522 = vmatprep.subr.mxu0 0.0
  %523 = vmatpush1.msra.mxu0 0.0
  %524 = vmatprep.subr.mxu0 0.0
  %525 = vmatpush1.msra.mxu0 0.0
  %526 = vmatprep.subr.mxu0 0.0
  %527 = vmatpush1.msra.mxu0 0.0
  %528 = vmatprep.mubr.f32.mxu0 %v249
  %529 = vmatmul.mubr.f32.gmra.mrb[0].mxu0 %v11
  %v530 = vpop.f32.mrb[0].mxu0
  %v531 = vadd.f32 0.0, %v530
  %v532 = vpop.f32.mrb[0].mxu0
  %v533 = vadd.f32 0.0, %v532
  %534 = vdwg.mxu0
  %535 = vmatprep.subr.mxu0 %v21
  %536 = vmatpush1.msra.mxu0 %v20
  %537 = vmatprep.subr.mxu0 %v34
  %538 = vmatpush1.msra.mxu0 %v33
  %539 = vmatprep.subr.mxu0 %v47
  %540 = vmatpush1.msra.mxu0 %v46
  %541 = vmatprep.subr.mxu0 %v60
  %542 = vmatpush1.msra.mxu0 %v59
  %543 = vmatprep.subr.mxu0 %v73
  %544 = vmatpush1.msra.mxu0 %v72
  %545 = vmatprep.subr.mxu0 %v86
  %546 = vmatpush1.msra.mxu0 %v85
  %547 = vmatprep.subr.mxu0 %v99
  %548 = vmatpush1.msra.mxu0 %v98
  %549 = vmatprep.subr.mxu0 %v112
  %550 = vmatpush1.msra.mxu0 %v111
  %551 = vmatprep.subr.mxu0 %v125
  %552 = vmatpush1.msra.mxu0 %v124
  %553 = vmatprep.subr.mxu0 %v138
  %554 = vmatpush1.msra.mxu0 %v137
  %555 = vmatprep.subr.mxu0 %v151
  %556 = vmatpush1.msra.mxu0 %v150
  %557 = vmatprep.subr.mxu0 %v164
  %558 = vmatpush1.msra.mxu0 %v163
  %559 = vmatprep.subr.mxu0 %v177
  %560 = vmatpush1.msra.mxu0 %v176
  %561 = vmatprep.subr.mxu0 %v190
  %562 = vmatpush1.msra.mxu0 %v189
  %563 = vmatprep.subr.mxu0 %v203
  %564 = vmatpush1.msra.mxu0 %v202
  %565 = vmatprep.subr.mxu0 %v216
  %566 = vmatpush1.msra.mxu0 %v215
  %567 = vmatprep.subr.mxu0 %v229
  %568 = vmatpush1.msra.mxu0 %v228
  %569 = vmatprep.subr.mxu0 %v242
  %570 = vmatpush1.msra.mxu0 %v241
  %571 = vmatprep.subr.mxu0 0.0
  %572 = vmatpush1.msra.mxu0 0.0
  %573 = vmatprep.subr.mxu0 0.0
  %574 = vmatpush1.msra.mxu0 0.0
  %575 = vmatprep.subr.mxu0 0.0
  %576 = vmatpush1.msra.mxu0 0.0
  %577 = vmatprep.subr.mxu0 0.0
  %578 = vmatpush1.msra.mxu0 0.0
  %579 = vmatprep.subr.mxu0 0.0
  %580 = vmatpush1.msra.mxu0 0.0
  %581 = vmatprep.subr.mxu0 0.0
  %582 = vmatpush1.msra.mxu0 0.0
  %583 = vmatprep.subr.mxu0 0.0
  %584 = vmatpush1.msra.mxu0 0.0
  %585 = vmatprep.subr.mxu0 0.0
  %586 = vmatpush1.msra.mxu0 0.0
  %587 = vmatprep.subr.mxu0 0.0
  %588 = vmatpush1.msra.mxu0 0.0
  %589 = vmatprep.subr.mxu0 0.0
  %590 = vmatpush1.msra.mxu0 0.0
  %591 = vmatprep.subr.mxu0 0.0
  %592 = vmatpush1.msra.mxu0 0.0
  %593 = vmatprep.subr.mxu0 0.0
  %594 = vmatpush1.msra.mxu0 0.0
  %595 = vmatprep.subr.mxu0 0.0
  %596 = vmatpush1.msra.mxu0 0.0
  %597 = vmatprep.subr.mxu0 0.0
  %598 = vmatpush1.msra.mxu0 0.0
  %599 = vmatprep.mubr.f32.mxu0 %v249
  %600 = vmatmul.mubr.f32.gmra.mrb[0].mxu0 %v11
  %v601 = vpop.f32.mrb[0].mxu0
  %v602 = vadd.f32 0.0, %v601
  %v603 = vpop.f32.mrb[0].mxu0
  %v604 = vadd.f32 0.0, %v603
  %605 = vdwg.mxu0
  %606 = vmatprep.subr.mxu0 %v23
  %607 = vmatpush1.msra.mxu0 %v22
  %608 = vmatprep.subr.mxu0 %v36
  %609 = vmatpush1.msra.mxu0 %v35
  %610 = vmatprep.subr.mxu0 %v49
  %611 = vmatpush1.msra.mxu0 %v48
  %612 = vmatprep.subr.mxu0 %v62
  %613 = vmatpush1.msra.mxu0 %v61
  %614 = vmatprep.subr.mxu0 %v75
  %615 = vmatpush1.msra.mxu0 %v74
  %616 = vmatprep.subr.mxu0 %v88
  %617 = vmatpush1.msra.mxu0 %v87
  %618 = vmatprep.subr.mxu0 %v101
  %619 = vmatpush1.msra.mxu0 %v100
  %620 = vmatprep.subr.mxu0 %v114
  %621 = vmatpush1.msra.mxu0 %v113
  %622 = vmatprep.subr.mxu0 %v127
  %623 = vmatpush1.msra.mxu0 %v126
  %624 = vmatprep.subr.mxu0 %v140
  %625 = vmatpush1.msra.mxu0 %v139
  %626 = vmatprep.subr.mxu0 %v153
  %627 = vmatpush1.msra.mxu0 %v152
  %628 = vmatprep.subr.mxu0 %v166
  %629 = vmatpush1.msra.mxu0 %v165
  %630 = vmatprep.subr.mxu0 %v179
  %631 = vmatpush1.msra.mxu0 %v178
  %632 = vmatprep.subr.mxu0 %v192
  %633 = vmatpush1.msra.mxu0 %v191
  %634 = vmatprep.subr.mxu0 %v205
  %635 = vmatpush1.msra.mxu0 %v204
  %636 = vmatprep.subr.mxu0 %v218
  %637 = vmatpush1.msra.mxu0 %v217
  %638 = vmatprep.subr.mxu0 %v231
  %639 = vmatpush1.msra.mxu0 %v230
  %640 = vmatprep.subr.mxu0 %v244
  %641 = vmatpush1.msra.mxu0 %v243
  %642 = vmatprep.subr.mxu0 0.0
  %643 = vmatpush1.msra.mxu0 0.0
  %644 = vmatprep.subr.mxu0 0.0
  %645 = vmatpush1.msra.mxu0 0.0
  %646 = vmatprep.subr.mxu0 0.0
  %647 = vmatpush1.msra.mxu0 0.0
  %648 = vmatprep.subr.mxu0 0.0
  %649 = vmatpush1.msra.mxu0 0.0
  %650 = vmatprep.subr.mxu0 0.0
  %651 = vmatpush1.msra.mxu0 0.0
  %652 = vmatprep.subr.mxu0 0.0
  %653 = vmatpush1.msra.mxu0 0.0
  %654 = vmatprep.subr.mxu0 0.0
  %655 = vmatpush1.msra.mxu0 0.0
  %656 = vmatprep.subr.mxu0 0.0
  %657 = vmatpush1.msra.mxu0 0.0
  %658 = vmatprep.subr.mxu0 0.0
  %659 = vmatpush1.msra.mxu0 0.0
  %660 = vmatprep.subr.mxu0 0.0
  %661 = vmatpush1.msra.mxu0 0.0
  %662 = vmatprep.subr.mxu0 0.0
  %663 = vmatpush1.msra.mxu0 0.0
  %664 = vmatprep.subr.mxu0 0.0
  %665 = vmatpush1.msra.mxu0 0.0
  %666 = vmatprep.subr.mxu0 0.0
  %667 = vmatpush1.msra.mxu0 0.0
  %668 = vmatprep.subr.mxu0 0.0
  %669 = vmatpush1.msra.mxu0 0.0
  %670 = vmatprep.mubr.f32.mxu0 %v249
  %671 = vmatmul.mubr.f32.gmra.mrb[0].mxu0 %v11
  %v672 = vpop.f32.mrb[0].mxu0
  %v673 = vadd.f32 0.0, %v672
  %v674 = vpop.f32.mrb[0].mxu0
  %v675 = vadd.f32 0.0, %v674
  %676 = vdwg.mxu0
  %677 = vmatprep.subr.mxu0 0.0
  %678 = vmatpush1.msra.mxu0 %v24
  %679 = vmatprep.subr.mxu0 0.0
  %680 = vmatpush1.msra.mxu0 %v37
  %681 = vmatprep.subr.mxu0 0.0
  %682 = vmatpush1.msra.mxu0 %v50
  %683 = vmatprep.subr.mxu0 0.0
  %684 = vmatpush1.msra.mxu0 %v63
  %685 = vmatprep.subr.mxu0 0.0
  %686 = vmatpush1.msra.mxu0 %v76
  %687 = vmatprep.subr.mxu0 0.0
  %688 = vmatpush1.msra.mxu0 %v89
  %689 = vmatprep.subr.mxu0 0.0
  %690 = vmatpush1.msra.mxu0 %v102
  %691 = vmatprep.subr.mxu0 0.0
  %692 = vmatpush1.msra.mxu0 %v115
  %693 = vmatprep.subr.mxu0 0.0
  %694 = vmatpush1.msra.mxu0 %v128
  %695 = vmatprep.subr.mxu0 0.0
  %696 = vmatpush1.msra.mxu0 %v141
  %697 = vmatprep.subr.mxu0 0.0
  %698 = vmatpush1.msra.mxu0 %v154
  %699 = vmatprep.subr.mxu0 0.0
  %700 = vmatpush1.msra.mxu0 %v167
  %701 = vmatprep.subr.mxu0 0.0
  %702 = vmatpush1.msra.mxu0 %v180
  %703 = vmatprep.subr.mxu0 0.0
  %704 = vmatpush1.msra.mxu0 %v193
  %705 = vmatprep.subr.mxu0 0.0
  %706 = vmatpush1.msra.mxu0 %v206
  %707 = vmatprep.subr.mxu0 0.0
  %708 = vmatpush1.msra.mxu0 %v219
  %709 = vmatprep.subr.mxu0 0.0
  %710 = vmatpush1.msra.mxu0 %v232
  %711 = vmatprep.subr.mxu0 0.0
  %712 = vmatpush1.msra.mxu0 %v245
  %713 = vmatprep.subr.mxu0 0.0
  %714 = vmatpush1.msra.mxu0 0.0
  %715 = vmatprep.subr.mxu0 0.0
  %716 = vmatpush1.msra.mxu0 0.0
  %717 = vmatprep.subr.mxu0 0.0
  %718 = vmatpush1.msra.mxu0 0.0
  %719 = vmatprep.subr.mxu0 0.0
  %720 = vmatpush1.msra.mxu0 0.0
  %721 = vmatprep.subr.mxu0 0.0
  %722 = vmatpush1.msra.mxu0 0.0
  %723 = vmatprep.subr.mxu0 0.0
  %724 = vmatpush1.msra.mxu0 0.0
  %725 = vmatprep.subr.mxu0 0.0
  %726 = vmatpush1.msra.mxu0 0.0
  %727 = vmatprep.subr.mxu0 0.0
  %728 = vmatpush1.msra.mxu0 0.0
  %729 = vmatprep.subr.mxu0 0.0
  %730 = vmatpush1.msra.mxu0 0.0
  %731 = vmatprep.subr.mxu0 0.0
  %732 = vmatpush1.msra.mxu0 0.0
  %733 = vmatprep.subr.mxu0 0.0
  %734 = vmatpush1.msra.mxu0 0.0
  %735 = vmatprep.subr.mxu0 0.0
  %736 = vmatpush1.msra.mxu0 0.0
  %737 = vmatprep.subr.mxu0 0.0
  %738 = vmatpush1.msra.mxu0 0.0
  %739 = vmatprep.subr.mxu0 0.0
  %740 = vmatpush1.msra.mxu0 0.0
  %741 = vmatprep.mubr.f32.mxu0 %v249
  %742 = vmatmul.mubr.f32.gmra.mrb[0].mxu0 %v11
  %v743 = vpop.f32.mrb[0].mxu0
  %v744 = vadd.f32 0.0, %v743
  %v745 = vpop.f32.mrb[0].mxu0
  %746 = vdwg.mxu0
  %v747 = vxor.u32 %v318, 2147483648
  %v748 = vxor.u32 %v320, 2147483648
  %v749 = vxor.u32 %v389, 2147483648
  %v750 = vxor.u32 %v391, 2147483648
  %v751 = vxor.u32 %v460, 2147483648
  %v752 = vxor.u32 %v462, 2147483648
  %v753 = vxor.u32 %v531, 2147483648
  %v754 = vxor.u32 %v533, 2147483648
  %v755 = vxor.u32 %v602, 2147483648
  %v756 = vxor.u32 %v604, 2147483648
  %v757 = vxor.u32 %v673, 2147483648
  %v758 = vxor.u32 %v675, 2147483648
  %v759 = vxor.u32 %v744, 2147483648
  %v760 = vmul.f32 %v747, 1.442695
  %v761 = vpow.pop %v760
  %v762 = vmul.f32 %v748, 1.442695
  %v763 = vpow.pop %v762
  %v764 = vmul.f32 %v749, 1.442695
  %v765 = vpow.pop %v764
  %v766 = vmul.f32 %v750, 1.442695
  %v767 = vpow.pop %v766
  %v768 = vmul.f32 %v751, 1.442695
  %v769 = vpow.pop %v768
  %v770 = vmul.f32 %v752, 1.442695
  %v771 = vpow.pop %v770
  %v772 = vmul.f32 %v753, 1.442695
  %v773 = vpow.pop %v772
  %v774 = vmul.f32 %v754, 1.442695
  %v775 = vpow.pop %v774
  %v776 = vmul.f32 %v755, 1.442695
  %v777 = vpow.pop %v776
  %v778 = vmul.f32 %v756, 1.442695
  %v779 = vpow.pop %v778
  %v780 = vmul.f32 %v757, 1.442695
  %v781 = vpow.pop %v780
  %v782 = vmul.f32 %v758, 1.442695
  %v783 = vpow.pop %v782
  %v784 = vmul.f32 %v759, 1.442695
  %v785 = vpow.pop %v784
  %v786 = vadd.f32 %v761, 1.0
  %v787 = vadd.f32 %v763, 1.0
  %v788 = vadd.f32 %v765, 1.0
  %v789 = vadd.f32 %v767, 1.0
  %v790 = vadd.f32 %v769, 1.0
  %v791 = vadd.f32 %v771, 1.0
  %v792 = vadd.f32 %v773, 1.0
  %v793 = vadd.f32 %v775, 1.0
  %v794 = vadd.f32 %v777, 1.0
  %v795 = vadd.f32 %v779, 1.0
  %v796 = vadd.f32 %v781, 1.0
  %v797 = vadd.f32 %v783, 1.0
  %v798 = vadd.f32 %v785, 1.0
  %v799 = vrcp.pop %v786
  %v800 = vmul.f32 1.0, %v799
  %v801 = vrcp.pop %v787
  %v802 = vmul.f32 1.0, %v801
  %v803 = vrcp.pop %v788
  %v804 = vmul.f32 1.0, %v803
  %v805 = vrcp.pop %v789
  %v806 = vmul.f32 1.0, %v805
  %v807 = vrcp.pop %v790
  %v808 = vmul.f32 1.0, %v807
  %v809 = vrcp.pop %v791
  %v810 = vmul.f32 1.0, %v809
  %v811 = vrcp.pop %v792
  %v812 = vmul.f32 1.0, %v811
  %v813 = vrcp.pop %v793
  %v814 = vmul.f32 1.0, %v813
  %v815 = vrcp.pop %v794
  %v816 = vmul.f32 1.0, %v815
  %v817 = vrcp.pop %v795
  %v818 = vmul.f32 1.0, %v817
  %v819 = vrcp.pop %v796
  %v820 = vmul.f32 1.0, %v819
  %v821 = vrcp.pop %v797
  %v822 = vmul.f32 1.0, %v821
  %v823 = vrcp.pop %v798
  %v824 = vmul.f32 1.0, %v823
  %v837 = vcombine.low %v800, %v802
  %v838 = vcombine.low %v804, %v806
  %v839 = vcombine.low %v808, %v810
  %v840 = vcombine.low %v812, %v814
  %v841 = vcombine.low %v816, %v818
  %v842 = vcombine.low %v820, %v822
  %849 = vst [vmem:[%s2] sm:$0x77] %v837
  %850 = vst [vmem:[%s2 + $0x8] sm:$0x77] %v838
  %851 = vst [vmem:[%s2 + $0x10] sm:$0x77] %v839
  %852 = vst [vmem:[%s2 + $0x18] sm:$0x77] %v840
  %853 = vst [vmem:[%s2 + $0x20] sm:$0x77] %v841
  %854 = vst [vmem:[%s2 + $0x28] sm:$0x77] %v842
  %vm855 = vcmask 256000
  %856 = vst.msk [vmem:[%s2 + $0x30] sm:$0x7] %vm855, %v824
  // Predicated region
  $region10: #{vae_cnn_forward.19} parent=0 // pred_check
    _
  $region11: #{vae_cnn_forward.19} parent=0 // pred_check_branch
    %858 = sbr.rel (0) target = $region13
  $region12: #{vae_cnn_forward.19} parent=0 // pred_region
    _
  $region13: #{vae_cnn_forward.19} parent=0 // pred_fallthru
    _
  // Predicated region
  $region14: #{vae_cnn_forward.19} parent=0 // pred_check
    _
  $region15: #{vae_cnn_forward.19} parent=0 // pred_check_branch
    %860 = sbr.rel (0) target = $region17
  $region16: #{vae_cnn_forward.19} parent=0 // pred_region
    _
  $region17: #{vae_cnn_forward.19} parent=0 // pred_fallthru
    _

</llo_original>
